<compile_context>
chip_gen: v6e
topology: v6e:2x2x1
jax: 0.10.0
libtpu: 0.0.40
codegen_flags: <defaults>
</compile_context>

<pallas_src>
import functools
import math

import jax
import jax.numpy as jnp
from jax.experimental import pallas as pl
from jax.experimental.pallas import tpu as pltpu

NEG_SLOPE = 0.2          # GATv2Conv default negative_slope
EDGE_DIM = 3
HPAD = 4                 # head slots padded to 4 (conv4 has H=2; extra slots are zero/unused)
SLAB_W = 256             # lane width of both parameter slabs (= max 2*H*C)
# (F_in, heads, out_channels) for conv1..conv4
LAYER_CFG = ((5, 4, 16), (64, 4, 32), (128, 4, 32), (128, 2, 32))
NUM_LAYERS = len(LAYER_CFG)


# ------------------------------ fused Pallas kernel -------------------------

def _fused_gnn_kernel(x_ref, ef_ref, nb_ref, pool_ref, w_ref, b_ref, out_ref, alpha_scr,
                      *, N, woffs, aoffs, boffs, lwoff, lboff):
    """conv1..conv4 (GATv2 + fused ReLU) -> mean pool -> Linear(64, 32)."""
    NN = N * N

    # Hoisted lane-broadcasts (JAX does not CSE broadcast_in_dim; do these ONCE, not per layer).
    efc = ef_ref[...]                                               # (NN, 3)
    ef0 = jnp.broadcast_to(efc[:, 0:1], (NN, 128))
    ef1 = jnp.broadcast_to(efc[:, 1:2], (NN, 128))
    ef2 = jnp.broadcast_to(efc[:, 2:3], (NN, 128))
    # Hoisted additive softmax mask, broadcast across the (padded) head axis: (N, HPAD, N).
    nb = jnp.broadcast_to(nb_ref[...][:, None, :], (N, HPAD, N))

    h = x_ref[...]                                                  # current node features (f32)
    for li, (fin, H, C) in enumerate(LAYER_CFG):                    # static unroll over 4 layers
        HC = H * C
        wlr = w_ref[woffs[li]:woffs[li] + fin, :2 * HC]             # bf16 (fin, 2HC) = [Wl | Wr]
        attsel = w_ref[aoffs[li]:aoffs[li] + HC, :HPAD]             # bf16 (HC, HPAD) block-diag att
        bb = b_ref[boffs[li]:boffs[li] + 8, :]                      # f32  (8, 256) bias block
        blr = bb[0:1, :2 * HC]                                      # [b_l | b_r]
        we0, we1, we2 = bb[1:2, :HC], bb[2:3, :HC], bb[3:4, :HC]    # edge-proj weight rows
        bo = bb[4:5, :HC]                                           # output bias

        # Fused node projections (one MXU matmul): xl -> source (x_j), xr -> target (x_i).
        xlr = jnp.dot(h.astype(jnp.bfloat16), wlr,
                      preferred_element_type=jnp.float32) + blr     # (N, 2HC)
        xl = xlr[:, :HC]
        xr = xlr[:, HC:2 * HC]

        # K=3 edge projection as rank-1 VPU FMAs (overlaps the MXU work above).
        ef = ef0[:, :HC] * we0 + ef1[:, :HC] * we1 + ef2[:, :HC] * we2      # (NN, HC)

        # Lane-dense messages m[t, s, :] = x_i(t) + x_j(s) + e(t,s), LeakyReLU(0.2).
        m = xr[:, None, :] + xl[None, :, :] + ef.reshape(N, N, HC)
        m = jnp.maximum(m, NEG_SLOPE * m)

        # Per-head scores via ONE bf16 matmul against the block-diagonal att selector.
        score = jnp.dot(m.reshape(NN, HC).astype(jnp.bfloat16), attsel,
                        preferred_element_type=jnp.float32)          # (NN, HPAD)
        # Head-major layout (N, HPAD, N): softmax over sources s on the lane axis.
        score = jnp.swapaxes(score.reshape(N, N, HPAD), 1, 2) + nb
        mx = jnp.max(score, axis=-1, keepdims=True)
        p = jnp.exp(score - mx)                                       # off-edges -> 0
        den = jnp.sum(p, axis=-1, keepdims=True)                      # self-loops => den >= 1
        alpha_scr[...] = p * pl.reciprocal(den, approx=True)          # EUP slot; ~2^-12 rel. err.

        # Per-head MXU aggregation: out_h = alpha_h @ xl_h  (no (N,N,HC) temp, no XLU reduce).
        xlb = xl.astype(jnp.bfloat16)
        outs = []
        for hh in range(H):
            a_h = alpha_scr[:, hh, :].astype(jnp.bfloat16)            # (N, N)
            outs.append(jnp.dot(a_h, xlb[:, hh * C:(hh + 1) * C],
                                preferred_element_type=jnp.float32))  # (N, C)
        h = jnp.maximum(jnp.concatenate(outs, axis=-1) + bo, 0.0)     # fused trailing ReLU
        # TODO(synk): conv3's dropout(p=0.4) on attention coefficients is eval-mode (identity).

    # global_mean_pool + nn.Linear(64, 32), padded to a full (8, 128) lane-dense store.
    pooled = jnp.dot(pool_ref[...], h, preferred_element_type=jnp.float32)    # (8, 64)
    lin_w = b_ref[lwoff:lwoff + 64, :128]                                     # (64, 128) zero-padded
    lin_b = b_ref[lboff:lboff + 1, :128]                                      # (1, 128)  zero-padded
    out_ref[...] = jnp.dot(pooled, lin_w, preferred_element_type=jnp.float32) + lin_b


# ------------------------------ wrapper --------------------------------------

def _att_selector(att, H, C):
    """att (H, C) -> block-diagonal selector (HC, HPAD) with att folded in; padded head
    columns (>= H) are zero, so their (unused) scores are just the additive mask."""
    HC = H * C
    sel = jnp.zeros((HC, HPAD), jnp.float32)
    for hh in range(H):
        sel = sel.at[hh * C:(hh + 1) * C, hh].set(att[hh])
    return sel


def _pack_slab(blocks, width, dtype):
    """Stack 2-D blocks into one (rows, width) slab; each block starts at an 8-aligned
    row offset and occupies lanes [0, block_cols). Returns (slab, row_offsets)."""
    parts, offsets, row = [], [], 0
    for blk in blocks:
        offsets.append(row)
        rpad = -(-blk.shape[0] // 8) * 8
        part = jnp.zeros((rpad, width), dtype)
        part = part.at[:blk.shape[0], :blk.shape[1]].set(blk.astype(dtype))
        parts.append(part)
        row += rpad
    return jnp.concatenate(parts, axis=0), offsets


def _cost_estimate(N, BP, inputs):
    NN = N * N
    flops, trans = 0, 0
    for fin, H, C in LAYER_CFG:
        HC = H * C
        flops += 2 * N * fin * 2 * HC          # fused xl/xr projection
        flops += 8 * NN * HC                   # edge FMAs + message build + LeakyReLU
        flops += 2 * NN * HC * HPAD            # score matmul
        flops += 5 * NN * HPAD                 # softmax adds / mults
        flops += 2 * H * N * N * C             # per-head aggregation matmuls
        trans += NN * HPAD + N * HPAD          # exp + approx reciprocal
    flops += 2 * BP * N * 64 + 2 * BP * 64 * 128
    bytes_accessed = sum(math.prod(a.shape) * a.dtype.itemsize for a in inputs) + 4 * BP * 128
    return pl.CostEstimate(flops=flops, transcendentals=trans, bytes_accessed=bytes_accessed)


def gnn_forward(params, x, ef_flat, neg_bias, pool_mat):
    N = x.shape[0]
    B = pool_mat.shape[0]
    BP = max(8, -(-B // 8) * 8)
    pool_pad = jnp.zeros((BP, N), jnp.float32).at[:B].set(pool_mat)

    # Pack 34 small parameter tensors into two VMEM slabs (2 DMAs instead of ~38).
    w_blocks, b_blocks = [], []
    for name, (fin, H, C) in zip(("conv1", "conv2", "conv3", "conv4"), LAYER_CFG):
        wl, bl, wr, br, we, att, bo = params[name]
        HC = H * C
        w_blocks.append(jnp.concatenate([wl, wr], axis=1))           # (fin, 2HC)
        w_blocks.append(_att_selector(att, H, C))                    # (HC, HPAD)
        bb = jnp.zeros((8, SLAB_W), jnp.float32)
        bb = bb.at[0, :2 * HC].set(jnp.concatenate([bl, br], axis=1)[0])
        bb = bb.at[1:4, :HC].set(we)
        bb = bb.at[4, :HC].set(bo[0])
        b_blocks.append(bb)
    b_blocks.append(params["lin_w"])                                 # (64, 32)
    b_blocks.append(params["lin_b"])                                 # (1, 32)

    w_slab, w_offs = _pack_slab(w_blocks, SLAB_W, jnp.bfloat16)
    b_slab, b_offs = _pack_slab(b_blocks, SLAB_W, jnp.float32)
    woffs, aoffs = tuple(w_offs[0::2]), tuple(w_offs[1::2])
    boffs = tuple(b_offs[:NUM_LAYERS])
    lwoff, lboff = b_offs[NUM_LAYERS], b_offs[NUM_LAYERS + 1]

    inputs = [x, ef_flat, neg_bias, pool_pad, w_slab, b_slab]
    est = sum(math.prod(a.shape) * a.dtype.itemsize for a in inputs)
    est += 8 * N * N * 128 * 4 + BP * 128 * 4                        # in-flight temps (generous)
    vmem_limit = min(64 << 20, max(32 << 20, 2 * est))

    # TODO(synk): for larger N, grid over target-node tiles (layer as an outer 'arbitrary' axis,
    # t-tiles 'parallel' for v7x's second TensorCore, h carried in persistent VMEM scratch);
    # at N=16 everything (<2 MiB) is VMEM-resident and a single program is fastest.
    out = pl.pallas_call(
        functools.partial(_fused_gnn_kernel, N=N, woffs=woffs, aoffs=aoffs,
                          boffs=boffs, lwoff=lwoff, lboff=lboff),
        out_shape=jax.ShapeDtypeStruct((BP, 128), jnp.float32),
        in_specs=[pl.BlockSpec(memory_space=pltpu.MemorySpace.VMEM)] * len(inputs),
        out_specs=pl.BlockSpec(memory_space=pltpu.MemorySpace.VMEM),
        scratch_shapes=[pltpu.VMEM((N, HPAD, N), jnp.float32)],
        compiler_params=pltpu.CompilerParams(vmem_limit_bytes=vmem_limit),
        cost_estimate=_cost_estimate(N, BP, inputs),
    )(*inputs)
    return out[:B, :32]


# ------------------------------ params & graph glue --------------------------

def _glorot(key, shape):
    fan_in, fan_out = shape
    lim = (6.0 / (fan_in + fan_out)) ** 0.5
    return jax.random.uniform(key, shape, jnp.float32, -lim, lim)


def init_gat_params(key, fin, H, C):
    HC = H * C
    k = jax.random.split(key, 4)
    return (
        _glorot(k[0], (fin, HC)),                 # W_l (source / x_j projection)
        jnp.zeros((1, HC), jnp.float32),          # b_l
        _glorot(k[1], (fin, HC)),                 # W_r (target / x_i projection)
        jnp.zeros((1, HC), jnp.float32),          # b_r
        _glorot(k[2], (EDGE_DIM, HC)),            # W_edge (no bias in PyG lin_edge)
        _glorot(k[3], (H, C)),                    # att
        jnp.zeros((1, HC), jnp.float32),          # output bias
    )


def init_params(key):
    ks = jax.random.split(key, 6)
    return {
        "conv1": init_gat_params(ks[0], 5, 4, 16),
        "conv2": init_gat_params(ks[1], 64, 4, 32),
        "conv3": init_gat_params(ks[2], 128, 4, 32),
        "conv4": init_gat_params(ks[3], 128, 2, 32),
        "lin_w": _glorot(ks[4], (64, 32)),
        "lin_b": jnp.zeros((1, 32), jnp.float32),
    }


def build_dense_graph(edge_index, edge_features, num_nodes):
    """Dense adjacency + dense edge features, reproducing GATv2Conv's default
    remove_self_loops + add_self_loops(fill_value='mean') preprocessing.
    NOTE: assumes no duplicate (dst, src) pairs (last write would win otherwise)."""
    src, dst = edge_index[0], edge_index[1]
    mask = jnp.zeros((num_nodes, num_nodes), jnp.float32).at[dst, src].set(1.0)
    ed = jnp.zeros((num_nodes, num_nodes, EDGE_DIM), jnp.float32).at[dst, src].set(edge_features)
    # self-loop attr = mean of incoming edge attrs (0 if none)
    sums = jnp.zeros((num_nodes, EDGE_DIM), jnp.float32).at[dst].add(edge_features)
    cnt = jnp.zeros((num_nodes,), jnp.float32).at[dst].add(1.0)
    loop_attr = sums / jnp.maximum(cnt, 1.0)[:, None]
    idx = jnp.arange(num_nodes)
    mask = mask.at[idx, idx].set(1.0)
    ed = ed.at[idx, idx].set(loop_attr)
    return ed.reshape(num_nodes * num_nodes, EDGE_DIM), mask


def build_pool_matrix(batch, num_graphs):
    onehot = (batch[None, :] == jnp.arange(num_graphs)[:, None]).astype(jnp.float32)
    counts = jnp.maximum(onehot.sum(axis=1, keepdims=True), 1.0)
    return onehot / counts     # (B, N), rows implement mean pooling


if __name__ == "__main__":
    key = jax.random.PRNGKey(0)
    k_param, k_x, k_e = jax.random.split(key, 3)

    N = 16                 # two graphs of 8 nodes each
    num_graphs = 2
    x = jax.random.normal(k_x, (N, 5), jnp.float32)
    batch = jnp.concatenate([jnp.zeros(8, jnp.int32), jnp.ones(8, jnp.int32)])

    # ring + reverse-ring edges within each graph (no self-loops, no duplicates)
    src_list, dst_list = [], []
    for g in range(num_graphs):
        base = g * 8
        for i in range(8):
            s, d = base + i, base + (i + 1) % 8
            src_list += [s, d]
            dst_list += [d, s]
    edge_index = jnp.array([src_list, dst_list], jnp.int32)            # (2, 32)
    edge_features = jax.random.normal(k_e, (edge_index.shape[1], EDGE_DIM), jnp.float32)

    params = init_params(k_param)
    ef_flat, mask = build_dense_graph(edge_index, edge_features, N)
    neg_bias = (mask - 1.0) * 1e30                    # (N, N) additive softmax mask
    pool_mat = build_pool_matrix(batch, num_graphs)

    fwd = jax.jit(gnn_forward)
    out = fwd(params, x, ef_flat, neg_bias, pool_mat)
    jax.block_until_ready(out)
    assert out.shape == (num_graphs, 32) and out.dtype == jnp.float32
    print("KERNEL_OK")
</pallas_src>

<mosaic_0001>
module attributes {stable_mosaic.version = 11 : i64} {
  func.func @_fused_gnn_kernel(%arg0: memref<16x5xf32, #tpu.memory_space<vmem>>, %arg1: memref<256x3xf32, #tpu.memory_space<vmem>>, %arg2: memref<16x16xf32, #tpu.memory_space<vmem>>, %arg3: memref<8x16xf32, #tpu.memory_space<vmem>>, %arg4: memref<712x256xbf16, #tpu.memory_space<vmem>>, %arg5: memref<104x256xf32, #tpu.memory_space<vmem>>, %arg6: memref<8x128xf32, #tpu.memory_space<vmem>>, %arg7: memref<16x4x16xf32, #tpu.memory_space<vmem>>) attributes {dimension_semantics = [], scalar_prefetch = 0 : i64, scratch_operands = 1 : i64, tpu.core_type = #tpu.core_type<tc>} {
    %c0 = arith.constant 0 : index
    %c0_0 = arith.constant 0 : index
    %0 = vector.load %arg1[%c0, %c0_0] : memref<256x3xf32, #tpu.memory_space<vmem>>, vector<256x3xf32>
    %1 = vector.extract_strided_slice %0 {offsets = [0, 0], sizes = [256, 1], strides = [1, 1]} : vector<256x3xf32> to vector<256x1xf32>
    %2 = vector.shape_cast %1 : vector<256x1xf32> to vector<256x1xf32>
    %3 = vector.broadcast %2 : vector<256x1xf32> to vector<256x128xf32>
    %4 = vector.extract_strided_slice %0 {offsets = [0, 1], sizes = [256, 1], strides = [1, 1]} : vector<256x3xf32> to vector<256x1xf32>
    %5 = vector.shape_cast %4 : vector<256x1xf32> to vector<256x1xf32>
    %6 = vector.broadcast %5 : vector<256x1xf32> to vector<256x128xf32>
    %7 = vector.extract_strided_slice %0 {offsets = [0, 2], sizes = [256, 1], strides = [1, 1]} : vector<256x3xf32> to vector<256x1xf32>
    %8 = vector.shape_cast %7 : vector<256x1xf32> to vector<256x1xf32>
    %9 = vector.broadcast %8 : vector<256x1xf32> to vector<256x128xf32>
    %c0_1 = arith.constant 0 : index
    %c0_2 = arith.constant 0 : index
    %10 = vector.load %arg2[%c0_1, %c0_2] : memref<16x16xf32, #tpu.memory_space<vmem>>, vector<16x16xf32>
    %11 = vector.shape_cast %10 : vector<16x16xf32> to vector<16x1x16xf32>
    %12 = vector.shape_cast %11 : vector<16x1x16xf32> to vector<16x1x16xf32>
    %13 = vector.broadcast %12 : vector<16x1x16xf32> to vector<16x4x16xf32>
    %c0_3 = arith.constant 0 : index
    %c0_4 = arith.constant 0 : index
    %14 = vector.load %arg0[%c0_3, %c0_4] : memref<16x5xf32, #tpu.memory_space<vmem>>, vector<16x5xf32>
    %c0_5 = arith.constant 0 : index
    %c0_6 = arith.constant 0 : index
    %15 = vector.load %arg4[%c0_5, %c0_6] : memref<712x256xbf16, #tpu.memory_space<vmem>>, vector<5x128xbf16>
    %c8 = arith.constant 8 : index
    %c0_7 = arith.constant 0 : index
    %16 = vector.load %arg4[%c8, %c0_7] : memref<712x256xbf16, #tpu.memory_space<vmem>>, vector<64x4xbf16>
    %c0_8 = arith.constant 0 : index
    %c0_9 = arith.constant 0 : index
    %17 = vector.load %arg5[%c0_8, %c0_9] : memref<104x256xf32, #tpu.memory_space<vmem>>, vector<8x256xf32>
    %18 = vector.extract_strided_slice %17 {offsets = [0, 0], sizes = [1, 128], strides = [1, 1]} : vector<8x256xf32> to vector<1x128xf32>
    %19 = vector.extract_strided_slice %17 {offsets = [1, 0], sizes = [1, 64], strides = [1, 1]} : vector<8x256xf32> to vector<1x64xf32>
    %20 = vector.extract_strided_slice %17 {offsets = [2, 0], sizes = [1, 64], strides = [1, 1]} : vector<8x256xf32> to vector<1x64xf32>
    %21 = vector.extract_strided_slice %17 {offsets = [3, 0], sizes = [1, 64], strides = [1, 1]} : vector<8x256xf32> to vector<1x64xf32>
    %22 = vector.extract_strided_slice %17 {offsets = [4, 0], sizes = [1, 64], strides = [1, 1]} : vector<8x256xf32> to vector<1x64xf32>
    %23 = arith.truncf %14 : vector<16x5xf32> to vector<16x5xbf16>
    %cst = arith.constant dense<0.000000e+00> : vector<16x128xf32>
    %24 = tpu.matmul %23, %15, %cst {dimension_numbers = #tpu.dot_dimension_numbers<[1], [0], [0], [1], [0, 0, 1, 1], [], []>} : vector<16x5xbf16>, vector<5x128xbf16>, vector<16x128xf32> -> vector<16x128xf32>
    %25 = vector.broadcast %18 : vector<1x128xf32> to vector<16x128xf32>
    %26 = arith.addf %24, %25 : vector<16x128xf32>
    %27 = vector.extract_strided_slice %26 {offsets = [0, 0], sizes = [16, 64], strides = [1, 1]} : vector<16x128xf32> to vector<16x64xf32>
    %28 = vector.extract_strided_slice %26 {offsets = [0, 64], sizes = [16, 64], strides = [1, 1]} : vector<16x128xf32> to vector<16x64xf32>
    %29 = vector.extract_strided_slice %3 {offsets = [0, 0], sizes = [256, 64], strides = [1, 1]} : vector<256x128xf32> to vector<256x64xf32>
    %30 = vector.broadcast %19 : vector<1x64xf32> to vector<256x64xf32>
    %31 = arith.mulf %29, %30 : vector<256x64xf32>
    %32 = vector.extract_strided_slice %6 {offsets = [0, 0], sizes = [256, 64], strides = [1, 1]} : vector<256x128xf32> to vector<256x64xf32>
    %33 = vector.broadcast %20 : vector<1x64xf32> to vector<256x64xf32>
    %34 = arith.mulf %32, %33 : vector<256x64xf32>
    %35 = arith.addf %31, %34 : vector<256x64xf32>
    %36 = vector.extract_strided_slice %9 {offsets = [0, 0], sizes = [256, 64], strides = [1, 1]} : vector<256x128xf32> to vector<256x64xf32>
    %37 = vector.broadcast %21 : vector<1x64xf32> to vector<256x64xf32>
    %38 = arith.mulf %36, %37 : vector<256x64xf32>
    %39 = arith.addf %35, %38 : vector<256x64xf32>
    %40 = vector.shape_cast %28 : vector<16x64xf32> to vector<16x1x64xf32>
    %41 = vector.shape_cast %27 : vector<16x64xf32> to vector<1x16x64xf32>
    %42 = vector.broadcast %40 : vector<16x1x64xf32> to vector<16x16x64xf32>
    %43 = vector.broadcast %41 : vector<1x16x64xf32> to vector<16x16x64xf32>
    %44 = arith.addf %42, %43 : vector<16x16x64xf32>
    %45 = vector.shape_cast %39 : vector<256x64xf32> to vector<16x16x64xf32>
    %46 = arith.addf %44, %45 : vector<16x16x64xf32>
    %cst_10 = arith.constant 2.000000e-01 : f32
    %47 = vector.broadcast %cst_10 : f32 to vector<16x16x64xf32>
    %48 = arith.mulf %47, %46 : vector<16x16x64xf32>
    %49 = arith.maximumf %46, %48 : vector<16x16x64xf32>
    %50 = vector.shape_cast %49 : vector<16x16x64xf32> to vector<256x64xf32>
    %51 = arith.truncf %50 : vector<256x64xf32> to vector<256x64xbf16>
    %cst_11 = arith.constant dense<0.000000e+00> : vector<256x4xf32>
    %52 = tpu.matmul %51, %16, %cst_11 {dimension_numbers = #tpu.dot_dimension_numbers<[1], [0], [0], [1], [0, 0, 1, 1], [], []>} : vector<256x64xbf16>, vector<64x4xbf16>, vector<256x4xf32> -> vector<256x4xf32>
    %53 = vector.shape_cast %52 : vector<256x4xf32> to vector<16x16x4xf32>
    %54 = tpu.transpose %53, [0, 2, 1] : vector<16x16x4xf32> -> vector<16x4x16xf32>
    %55 = arith.addf %54, %13 : vector<16x4x16xf32>
    %cst_12 = arith.constant dense<0xFF800000> : vector<16x4xf32>
    %56 = vector.multi_reduction <maximumf>, %55, %cst_12 [2] : vector<16x4x16xf32> to vector<16x4xf32>
    %57 = vector.shape_cast %56 : vector<16x4xf32> to vector<16x4x1xf32>
    %58 = vector.broadcast %57 : vector<16x4x1xf32> to vector<16x4x16xf32>
    %59 = arith.subf %55, %58 : vector<16x4x16xf32>
    %60 = math.exp %59 : vector<16x4x16xf32>
    %cst_13 = arith.constant dense<0.000000e+00> : vector<16x4xf32>
    %61 = vector.multi_reduction <add>, %60, %cst_13 [2] : vector<16x4x16xf32> to vector<16x4xf32>
    %62 = vector.shape_cast %61 : vector<16x4xf32> to vector<16x4x1xf32>
    %63 = tpu.reciprocal %62 {approx = true} : vector<16x4x1xf32> -> vector<16x4x1xf32>
    %64 = vector.broadcast %63 : vector<16x4x1xf32> to vector<16x4x16xf32>
    %65 = arith.mulf %60, %64 : vector<16x4x16xf32>
    %c0_14 = arith.constant 0 : index
    %c0_15 = arith.constant 0 : index
    %c0_16 = arith.constant 0 : index
    %66 = vector.load %arg7[%c0_14, %c0_15, %c0_16] : memref<16x4x16xf32, #tpu.memory_space<vmem>>, vector<16x4x16xf32>
    tpu.vector_store %arg7[%c0_14, %c0_15, %c0_16], %65 {strides = array<i32>} : memref<16x4x16xf32, #tpu.memory_space<vmem>>, vector<16x4x16xf32>,
    %67 = arith.truncf %27 : vector<16x64xf32> to vector<16x64xbf16>
    %c0_17 = arith.constant 0 : index
    %c0_18 = arith.constant 0 : index
    %c0_19 = arith.constant 0 : index
    %68 = vector.load %arg7[%c0_17, %c0_18, %c0_19] : memref<16x4x16xf32, #tpu.memory_space<vmem>>, vector<16x1x16xf32>
    %69 = vector.shape_cast %68 : vector<16x1x16xf32> to vector<16x16xf32>
    %70 = arith.truncf %69 : vector<16x16xf32> to vector<16x16xbf16>
    %71 = vector.extract_strided_slice %67 {offsets = [0, 0], sizes = [16, 16], strides = [1, 1]} : vector<16x64xbf16> to vector<16x16xbf16>
    %cst_20 = arith.constant dense<0.000000e+00> : vector<16x16xf32>
    %72 = tpu.matmul %70, %71, %cst_20 {dimension_numbers = #tpu.dot_dimension_numbers<[1], [0], [0], [1], [0, 0, 1, 1], [], []>} : vector<16x16xbf16>, vector<16x16xbf16>, vector<16x16xf32> -> vector<16x16xf32>
    %c0_21 = arith.constant 0 : index
    %c1 = arith.constant 1 : index
    %c0_22 = arith.constant 0 : index
    %73 = vector.load %arg7[%c0_21, %c1, %c0_22] : memref<16x4x16xf32, #tpu.memory_space<vmem>>, vector<16x1x16xf32>
    %74 = vector.shape_cast %73 : vector<16x1x16xf32> to vector<16x16xf32>
    %75 = arith.truncf %74 : vector<16x16xf32> to vector<16x16xbf16>
    %76 = vector.extract_strided_slice %67 {offsets = [0, 16], sizes = [16, 16], strides = [1, 1]} : vector<16x64xbf16> to vector<16x16xbf16>
    %cst_23 = arith.constant dense<0.000000e+00> : vector<16x16xf32>
    %77 = tpu.matmul %75, %76, %cst_23 {dimension_numbers = #tpu.dot_dimension_numbers<[1], [0], [0], [1], [0, 0, 1, 1], [], []>} : vector<16x16xbf16>, vector<16x16xbf16>, vector<16x16xf32> -> vector<16x16xf32>
    %c0_24 = arith.constant 0 : index
    %c2 = arith.constant 2 : index
    %c0_25 = arith.constant 0 : index
    %78 = vector.load %arg7[%c0_24, %c2, %c0_25] : memref<16x4x16xf32, #tpu.memory_space<vmem>>, vector<16x1x16xf32>
    %79 = vector.shape_cast %78 : vector<16x1x16xf32> to vector<16x16xf32>
    %80 = arith.truncf %79 : vector<16x16xf32> to vector<16x16xbf16>
    %81 = vector.extract_strided_slice %67 {offsets = [0, 32], sizes = [16, 16], strides = [1, 1]} : vector<16x64xbf16> to vector<16x16xbf16>
    %cst_26 = arith.constant dense<0.000000e+00> : vector<16x16xf32>
    %82 = tpu.matmul %80, %81, %cst_26 {dimension_numbers = #tpu.dot_dimension_numbers<[1], [0], [0], [1], [0, 0, 1, 1], [], []>} : vector<16x16xbf16>, vector<16x16xbf16>, vector<16x16xf32> -> vector<16x16xf32>
    %c0_27 = arith.constant 0 : index
    %c3 = arith.constant 3 : index
    %c0_28 = arith.constant 0 : index
    %83 = vector.load %arg7[%c0_27, %c3, %c0_28] : memref<16x4x16xf32, #tpu.memory_space<vmem>>, vector<16x1x16xf32>
    %84 = vector.shape_cast %83 : vector<16x1x16xf32> to vector<16x16xf32>
    %85 = arith.truncf %84 : vector<16x16xf32> to vector<16x16xbf16>
    %86 = vector.extract_strided_slice %67 {offsets = [0, 48], sizes = [16, 16], strides = [1, 1]} : vector<16x64xbf16> to vector<16x16xbf16>
    %cst_29 = arith.constant dense<0.000000e+00> : vector<16x16xf32>
    %87 = tpu.matmul %85, %86, %cst_29 {dimension_numbers = #tpu.dot_dimension_numbers<[1], [0], [0], [1], [0, 0, 1, 1], [], []>} : vector<16x16xbf16>, vector<16x16xbf16>, vector<16x16xf32> -> vector<16x16xf32>
    %88 = tpu.concatenate %72, %77, %82, %87 in 1 : vector<16x16xf32>, vector<16x16xf32>, vector<16x16xf32>, vector<16x16xf32> -> vector<16x64xf32>
    %89 = vector.broadcast %22 : vector<1x64xf32> to vector<16x64xf32>
    %90 = arith.addf %88, %89 : vector<16x64xf32>
    %cst_30 = arith.constant 0.000000e+00 : f32
    %91 = vector.broadcast %cst_30 : f32 to vector<16x64xf32>
    %92 = arith.maximumf %90, %91 : vector<16x64xf32>
    %c72 = arith.constant 72 : index
    %c0_31 = arith.constant 0 : index
    %93 = vector.load %arg4[%c72, %c0_31] : memref<712x256xbf16, #tpu.memory_space<vmem>>, vector<64x256xbf16>
    %c136 = arith.constant 136 : index
    %c0_32 = arith.constant 0 : index
    %94 = vector.load %arg4[%c136, %c0_32] : memref<712x256xbf16, #tpu.memory_space<vmem>>, vector<128x4xbf16>
    %c8_33 = arith.constant 8 : index
    %c0_34 = arith.constant 0 : index
    %95 = vector.load %arg5[%c8_33, %c0_34] : memref<104x256xf32, #tpu.memory_space<vmem>>, vector<8x256xf32>
    %96 = vector.extract_strided_slice %95 {offsets = [0, 0], sizes = [1, 256], strides = [1, 1]} : vector<8x256xf32> to vector<1x256xf32>
    %97 = vector.extract_strided_slice %95 {offsets = [1, 0], sizes = [1, 128], strides = [1, 1]} : vector<8x256xf32> to vector<1x128xf32>
    %98 = vector.extract_strided_slice %95 {offsets = [2, 0], sizes = [1, 128], strides = [1, 1]} : vector<8x256xf32> to vector<1x128xf32>
    %99 = vector.extract_strided_slice %95 {offsets = [3, 0], sizes = [1, 128], strides = [1, 1]} : vector<8x256xf32> to vector<1x128xf32>
    %100 = vector.extract_strided_slice %95 {offsets = [4, 0], sizes = [1, 128], strides = [1, 1]} : vector<8x256xf32> to vector<1x128xf32>
    %101 = arith.truncf %92 : vector<16x64xf32> to vector<16x64xbf16>
    %cst_35 = arith.constant dense<0.000000e+00> : vector<16x256xf32>
    %102 = tpu.matmul %101, %93, %cst_35 {dimension_numbers = #tpu.dot_dimension_numbers<[1], [0], [0], [1], [0, 0, 1, 1], [], []>} : vector<16x64xbf16>, vector<64x256xbf16>, vector<16x256xf32> -> vector<16x256xf32>
    %103 = vector.broadcast %96 : vector<1x256xf32> to vector<16x256xf32>
    %104 = arith.addf %102, %103 : vector<16x256xf32>
    %105 = vector.extract_strided_slice %104 {offsets = [0, 0], sizes = [16, 128], strides = [1, 1]} : vector<16x256xf32> to vector<16x128xf32>
    %106 = vector.extract_strided_slice %104 {offsets = [0, 128], sizes = [16, 128], strides = [1, 1]} : vector<16x256xf32> to vector<16x128xf32>
    %107 = vector.broadcast %97 : vector<1x128xf32> to vector<256x128xf32>
    %108 = arith.mulf %3, %107 : vector<256x128xf32>
    %109 = vector.broadcast %98 : vector<1x128xf32> to vector<256x128xf32>
    %110 = arith.mulf %6, %109 : vector<256x128xf32>
    %111 = arith.addf %108, %110 : vector<256x128xf32>
    %112 = vector.broadcast %99 : vector<1x128xf32> to vector<256x128xf32>
    %113 = arith.mulf %9, %112 : vector<256x128xf32>
    %114 = arith.addf %111, %113 : vector<256x128xf32>
    %115 = vector.shape_cast %106 : vector<16x128xf32> to vector<16x1x128xf32>
    %116 = vector.shape_cast %105 : vector<16x128xf32> to vector<1x16x128xf32>
    %117 = vector.broadcast %115 : vector<16x1x128xf32> to vector<16x16x128xf32>
    %118 = vector.broadcast %116 : vector<1x16x128xf32> to vector<16x16x128xf32>
    %119 = arith.addf %117, %118 : vector<16x16x128xf32>
    %120 = vector.shape_cast %114 : vector<256x128xf32> to vector<16x16x128xf32>
    %121 = arith.addf %119, %120 : vector<16x16x128xf32>
    %cst_36 = arith.constant 2.000000e-01 : f32
    %122 = vector.broadcast %cst_36 : f32 to vector<16x16x128xf32>
    %123 = arith.mulf %122, %121 : vector<16x16x128xf32>
    %124 = arith.maximumf %121, %123 : vector<16x16x128xf32>
    %125 = vector.shape_cast %124 : vector<16x16x128xf32> to vector<256x128xf32>
    %126 = arith.truncf %125 : vector<256x128xf32> to vector<256x128xbf16>
    %cst_37 = arith.constant dense<0.000000e+00> : vector<256x4xf32>
    %127 = tpu.matmul %126, %94, %cst_37 {dimension_numbers = #tpu.dot_dimension_numbers<[1], [0], [0], [1], [0, 0, 1, 1], [], []>} : vector<256x128xbf16>, vector<128x4xbf16>, vector<256x4xf32> -> vector<256x4xf32>
    %128 = vector.shape_cast %127 : vector<256x4xf32> to vector<16x16x4xf32>
    %129 = tpu.transpose %128, [0, 2, 1] : vector<16x16x4xf32> -> vector<16x4x16xf32>
    %130 = arith.addf %129, %13 : vector<16x4x16xf32>
    %cst_38 = arith.constant dense<0xFF800000> : vector<16x4xf32>
    %131 = vector.multi_reduction <maximumf>, %130, %cst_38 [2] : vector<16x4x16xf32> to vector<16x4xf32>
    %132 = vector.shape_cast %131 : vector<16x4xf32> to vector<16x4x1xf32>
    %133 = vector.broadcast %132 : vector<16x4x1xf32> to vector<16x4x16xf32>
    %134 = arith.subf %130, %133 : vector<16x4x16xf32>
    %135 = math.exp %134 : vector<16x4x16xf32>
    %cst_39 = arith.constant dense<0.000000e+00> : vector<16x4xf32>
    %136 = vector.multi_reduction <add>, %135, %cst_39 [2] : vector<16x4x16xf32> to vector<16x4xf32>
    %137 = vector.shape_cast %136 : vector<16x4xf32> to vector<16x4x1xf32>
    %138 = tpu.reciprocal %137 {approx = true} : vector<16x4x1xf32> -> vector<16x4x1xf32>
    %139 = vector.broadcast %138 : vector<16x4x1xf32> to vector<16x4x16xf32>
    %140 = arith.mulf %135, %139 : vector<16x4x16xf32>
    %c0_40 = arith.constant 0 : index
    %c0_41 = arith.constant 0 : index
    %c0_42 = arith.constant 0 : index
    %141 = vector.load %arg7[%c0_40, %c0_41, %c0_42] : memref<16x4x16xf32, #tpu.memory_space<vmem>>, vector<16x4x16xf32>
    tpu.vector_store %arg7[%c0_40, %c0_41, %c0_42], %140 {strides = array<i32>} : memref<16x4x16xf32, #tpu.memory_space<vmem>>, vector<16x4x16xf32>,
    %142 = arith.truncf %105 : vector<16x128xf32> to vector<16x128xbf16>
    %c0_43 = arith.constant 0 : index
    %c0_44 = arith.constant 0 : index
    %c0_45 = arith.constant 0 : index
    %143 = vector.load %arg7[%c0_43, %c0_44, %c0_45] : memref<16x4x16xf32, #tpu.memory_space<vmem>>, vector<16x1x16xf32>
    %144 = vector.shape_cast %143 : vector<16x1x16xf32> to vector<16x16xf32>
    %145 = arith.truncf %144 : vector<16x16xf32> to vector<16x16xbf16>
    %146 = vector.extract_strided_slice %142 {offsets = [0, 0], sizes = [16, 32], strides = [1, 1]} : vector<16x128xbf16> to vector<16x32xbf16>
    %cst_46 = arith.constant dense<0.000000e+00> : vector<16x32xf32>
    %147 = tpu.matmul %145, %146, %cst_46 {dimension_numbers = #tpu.dot_dimension_numbers<[1], [0], [0], [1], [0, 0, 1, 1], [], []>} : vector<16x16xbf16>, vector<16x32xbf16>, vector<16x32xf32> -> vector<16x32xf32>
    %c0_47 = arith.constant 0 : index
    %c1_48 = arith.constant 1 : index
    %c0_49 = arith.constant 0 : index
    %148 = vector.load %arg7[%c0_47, %c1_48, %c0_49] : memref<16x4x16xf32, #tpu.memory_space<vmem>>, vector<16x1x16xf32>
    %149 = vector.shape_cast %148 : vector<16x1x16xf32> to vector<16x16xf32>
    %150 = arith.truncf %149 : vector<16x16xf32> to vector<16x16xbf16>
    %151 = vector.extract_strided_slice %142 {offsets = [0, 32], sizes = [16, 32], strides = [1, 1]} : vector<16x128xbf16> to vector<16x32xbf16>
    %cst_50 = arith.constant dense<0.000000e+00> : vector<16x32xf32>
    %152 = tpu.matmul %150, %151, %cst_50 {dimension_numbers = #tpu.dot_dimension_numbers<[1], [0], [0], [1], [0, 0, 1, 1], [], []>} : vector<16x16xbf16>, vector<16x32xbf16>, vector<16x32xf32> -> vector<16x32xf32>
    %c0_51 = arith.constant 0 : index
    %c2_52 = arith.constant 2 : index
    %c0_53 = arith.constant 0 : index
    %153 = vector.load %arg7[%c0_51, %c2_52, %c0_53] : memref<16x4x16xf32, #tpu.memory_space<vmem>>, vector<16x1x16xf32>
    %154 = vector.shape_cast %153 : vector<16x1x16xf32> to vector<16x16xf32>
    %155 = arith.truncf %154 : vector<16x16xf32> to vector<16x16xbf16>
    %156 = vector.extract_strided_slice %142 {offsets = [0, 64], sizes = [16, 32], strides = [1, 1]} : vector<16x128xbf16> to vector<16x32xbf16>
    %cst_54 = arith.constant dense<0.000000e+00> : vector<16x32xf32>
    %157 = tpu.matmul %155, %156, %cst_54 {dimension_numbers = #tpu.dot_dimension_numbers<[1], [0], [0], [1], [0, 0, 1, 1], [], []>} : vector<16x16xbf16>, vector<16x32xbf16>, vector<16x32xf32> -> vector<16x32xf32>
    %c0_55 = arith.constant 0 : index
    %c3_56 = arith.constant 3 : index
    %c0_57 = arith.constant 0 : index
    %158 = vector.load %arg7[%c0_55, %c3_56, %c0_57] : memref<16x4x16xf32, #tpu.memory_space<vmem>>, vector<16x1x16xf32>
    %159 = vector.shape_cast %158 : vector<16x1x16xf32> to vector<16x16xf32>
    %160 = arith.truncf %159 : vector<16x16xf32> to vector<16x16xbf16>
    %161 = vector.extract_strided_slice %142 {offsets = [0, 96], sizes = [16, 32], strides = [1, 1]} : vector<16x128xbf16> to vector<16x32xbf16>
    %cst_58 = arith.constant dense<0.000000e+00> : vector<16x32xf32>
    %162 = tpu.matmul %160, %161, %cst_58 {dimension_numbers = #tpu.dot_dimension_numbers<[1], [0], [0], [1], [0, 0, 1, 1], [], []>} : vector<16x16xbf16>, vector<16x32xbf16>, vector<16x32xf32> -> vector<16x32xf32>
    %163 = tpu.concatenate %147, %152, %157, %162 in 1 : vector<16x32xf32>, vector<16x32xf32>, vector<16x32xf32>, vector<16x32xf32> -> vector<16x128xf32>
    %164 = vector.broadcast %100 : vector<1x128xf32> to vector<16x128xf32>
    %165 = arith.addf %163, %164 : vector<16x128xf32>
    %cst_59 = arith.constant 0.000000e+00 : f32
    %166 = vector.broadcast %cst_59 : f32 to vector<16x128xf32>
    %167 = arith.maximumf %165, %166 : vector<16x128xf32>
    %c264 = arith.constant 264 : index
    %c0_60 = arith.constant 0 : index
    %168 = vector.load %arg4[%c264, %c0_60] : memref<712x256xbf16, #tpu.memory_space<vmem>>, vector<128x256xbf16>
    %c392 = arith.constant 392 : index
    %c0_61 = arith.constant 0 : index
    %169 = vector.load %arg4[%c392, %c0_61] : memref<712x256xbf16, #tpu.memory_space<vmem>>, vector<128x4xbf16>
    %c16 = arith.constant 16 : index
    %c0_62 = arith.constant 0 : index
    %170 = vector.load %arg5[%c16, %c0_62] : memref<104x256xf32, #tpu.memory_space<vmem>>, vector<8x256xf32>
    %171 = vector.extract_strided_slice %170 {offsets = [0, 0], sizes = [1, 256], strides = [1, 1]} : vector<8x256xf32> to vector<1x256xf32>
    %172 = vector.extract_strided_slice %170 {offsets = [1, 0], sizes = [1, 128], strides = [1, 1]} : vector<8x256xf32> to vector<1x128xf32>
    %173 = vector.extract_strided_slice %170 {offsets = [2, 0], sizes = [1, 128], strides = [1, 1]} : vector<8x256xf32> to vector<1x128xf32>
    %174 = vector.extract_strided_slice %170 {offsets = [3, 0], sizes = [1, 128], strides = [1, 1]} : vector<8x256xf32> to vector<1x128xf32>
    %175 = vector.extract_strided_slice %170 {offsets = [4, 0], sizes = [1, 128], strides = [1, 1]} : vector<8x256xf32> to vector<1x128xf32>
    %176 = arith.truncf %167 : vector<16x128xf32> to vector<16x128xbf16>
    %cst_63 = arith.constant dense<0.000000e+00> : vector<16x256xf32>
    %177 = tpu.matmul %176, %168, %cst_63 {dimension_numbers = #tpu.dot_dimension_numbers<[1], [0], [0], [1], [0, 0, 1, 1], [], []>} : vector<16x128xbf16>, vector<128x256xbf16>, vector<16x256xf32> -> vector<16x256xf32>
    %178 = vector.broadcast %171 : vector<1x256xf32> to vector<16x256xf32>
    %179 = arith.addf %177, %178 : vector<16x256xf32>
    %180 = vector.extract_strided_slice %179 {offsets = [0, 0], sizes = [16, 128], strides = [1, 1]} : vector<16x256xf32> to vector<16x128xf32>
    %181 = vector.extract_strided_slice %179 {offsets = [0, 128], sizes = [16, 128], strides = [1, 1]} : vector<16x256xf32> to vector<16x128xf32>
    %182 = vector.broadcast %172 : vector<1x128xf32> to vector<256x128xf32>
    %183 = arith.mulf %3, %182 : vector<256x128xf32>
    %184 = vector.broadcast %173 : vector<1x128xf32> to vector<256x128xf32>
    %185 = arith.mulf %6, %184 : vector<256x128xf32>
    %186 = arith.addf %183, %185 : vector<256x128xf32>
    %187 = vector.broadcast %174 : vector<1x128xf32> to vector<256x128xf32>
    %188 = arith.mulf %9, %187 : vector<256x128xf32>
    %189 = arith.addf %186, %188 : vector<256x128xf32>
    %190 = vector.shape_cast %181 : vector<16x128xf32> to vector<16x1x128xf32>
    %191 = vector.shape_cast %180 : vector<16x128xf32> to vector<1x16x128xf32>
    %192 = vector.broadcast %190 : vector<16x1x128xf32> to vector<16x16x128xf32>
    %193 = vector.broadcast %191 : vector<1x16x128xf32> to vector<16x16x128xf32>
    %194 = arith.addf %192, %193 : vector<16x16x128xf32>
    %195 = vector.shape_cast %189 : vector<256x128xf32> to vector<16x16x128xf32>
    %196 = arith.addf %194, %195 : vector<16x16x128xf32>
    %cst_64 = arith.constant 2.000000e-01 : f32
    %197 = vector.broadcast %cst_64 : f32 to vector<16x16x128xf32>
    %198 = arith.mulf %197, %196 : vector<16x16x128xf32>
    %199 = arith.maximumf %196, %198 : vector<16x16x128xf32>
    %200 = vector.shape_cast %199 : vector<16x16x128xf32> to vector<256x128xf32>
    %201 = arith.truncf %200 : vector<256x128xf32> to vector<256x128xbf16>
    %cst_65 = arith.constant dense<0.000000e+00> : vector<256x4xf32>
    %202 = tpu.matmul %201, %169, %cst_65 {dimension_numbers = #tpu.dot_dimension_numbers<[1], [0], [0], [1], [0, 0, 1, 1], [], []>} : vector<256x128xbf16>, vector<128x4xbf16>, vector<256x4xf32> -> vector<256x4xf32>
    %203 = vector.shape_cast %202 : vector<256x4xf32> to vector<16x16x4xf32>
    %204 = tpu.transpose %203, [0, 2, 1] : vector<16x16x4xf32> -> vector<16x4x16xf32>
    %205 = arith.addf %204, %13 : vector<16x4x16xf32>
    %cst_66 = arith.constant dense<0xFF800000> : vector<16x4xf32>
    %206 = vector.multi_reduction <maximumf>, %205, %cst_66 [2] : vector<16x4x16xf32> to vector<16x4xf32>
    %207 = vector.shape_cast %206 : vector<16x4xf32> to vector<16x4x1xf32>
    %208 = vector.broadcast %207 : vector<16x4x1xf32> to vector<16x4x16xf32>
    %209 = arith.subf %205, %208 : vector<16x4x16xf32>
    %210 = math.exp %209 : vector<16x4x16xf32>
    %cst_67 = arith.constant dense<0.000000e+00> : vector<16x4xf32>
    %211 = vector.multi_reduction <add>, %210, %cst_67 [2] : vector<16x4x16xf32> to vector<16x4xf32>
    %212 = vector.shape_cast %211 : vector<16x4xf32> to vector<16x4x1xf32>
    %213 = tpu.reciprocal %212 {approx = true} : vector<16x4x1xf32> -> vector<16x4x1xf32>
    %214 = vector.broadcast %213 : vector<16x4x1xf32> to vector<16x4x16xf32>
    %215 = arith.mulf %210, %214 : vector<16x4x16xf32>
    %c0_68 = arith.constant 0 : index
    %c0_69 = arith.constant 0 : index
    %c0_70 = arith.constant 0 : index
    %216 = vector.load %arg7[%c0_68, %c0_69, %c0_70] : memref<16x4x16xf32, #tpu.memory_space<vmem>>, vector<16x4x16xf32>
    tpu.vector_store %arg7[%c0_68, %c0_69, %c0_70], %215 {strides = array<i32>} : memref<16x4x16xf32, #tpu.memory_space<vmem>>, vector<16x4x16xf32>,
    %217 = arith.truncf %180 : vector<16x128xf32> to vector<16x128xbf16>
    %c0_71 = arith.constant 0 : index
    %c0_72 = arith.constant 0 : index
    %c0_73 = arith.constant 0 : index
    %218 = vector.load %arg7[%c0_71, %c0_72, %c0_73] : memref<16x4x16xf32, #tpu.memory_space<vmem>>, vector<16x1x16xf32>
    %219 = vector.shape_cast %218 : vector<16x1x16xf32> to vector<16x16xf32>
    %220 = arith.truncf %219 : vector<16x16xf32> to vector<16x16xbf16>
    %221 = vector.extract_strided_slice %217 {offsets = [0, 0], sizes = [16, 32], strides = [1, 1]} : vector<16x128xbf16> to vector<16x32xbf16>
    %cst_74 = arith.constant dense<0.000000e+00> : vector<16x32xf32>
    %222 = tpu.matmul %220, %221, %cst_74 {dimension_numbers = #tpu.dot_dimension_numbers<[1], [0], [0], [1], [0, 0, 1, 1], [], []>} : vector<16x16xbf16>, vector<16x32xbf16>, vector<16x32xf32> -> vector<16x32xf32>
    %c0_75 = arith.constant 0 : index
    %c1_76 = arith.constant 1 : index
    %c0_77 = arith.constant 0 : index
    %223 = vector.load %arg7[%c0_75, %c1_76, %c0_77] : memref<16x4x16xf32, #tpu.memory_space<vmem>>, vector<16x1x16xf32>
    %224 = vector.shape_cast %223 : vector<16x1x16xf32> to vector<16x16xf32>
    %225 = arith.truncf %224 : vector<16x16xf32> to vector<16x16xbf16>
    %226 = vector.extract_strided_slice %217 {offsets = [0, 32], sizes = [16, 32], strides = [1, 1]} : vector<16x128xbf16> to vector<16x32xbf16>
    %cst_78 = arith.constant dense<0.000000e+00> : vector<16x32xf32>
    %227 = tpu.matmul %225, %226, %cst_78 {dimension_numbers = #tpu.dot_dimension_numbers<[1], [0], [0], [1], [0, 0, 1, 1], [], []>} : vector<16x16xbf16>, vector<16x32xbf16>, vector<16x32xf32> -> vector<16x32xf32>
    %c0_79 = arith.constant 0 : index
    %c2_80 = arith.constant 2 : index
    %c0_81 = arith.constant 0 : index
    %228 = vector.load %arg7[%c0_79, %c2_80, %c0_81] : memref<16x4x16xf32, #tpu.memory_space<vmem>>, vector<16x1x16xf32>
    %229 = vector.shape_cast %228 : vector<16x1x16xf32> to vector<16x16xf32>
    %230 = arith.truncf %229 : vector<16x16xf32> to vector<16x16xbf16>
    %231 = vector.extract_strided_slice %217 {offsets = [0, 64], sizes = [16, 32], strides = [1, 1]} : vector<16x128xbf16> to vector<16x32xbf16>
    %cst_82 = arith.constant dense<0.000000e+00> : vector<16x32xf32>
    %232 = tpu.matmul %230, %231, %cst_82 {dimension_numbers = #tpu.dot_dimension_numbers<[1], [0], [0], [1], [0, 0, 1, 1], [], []>} : vector<16x16xbf16>, vector<16x32xbf16>, vector<16x32xf32> -> vector<16x32xf32>
    %c0_83 = arith.constant 0 : index
    %c3_84 = arith.constant 3 : index
    %c0_85 = arith.constant 0 : index
    %233 = vector.load %arg7[%c0_83, %c3_84, %c0_85] : memref<16x4x16xf32, #tpu.memory_space<vmem>>, vector<16x1x16xf32>
    %234 = vector.shape_cast %233 : vector<16x1x16xf32> to vector<16x16xf32>
    %235 = arith.truncf %234 : vector<16x16xf32> to vector<16x16xbf16>
    %236 = vector.extract_strided_slice %217 {offsets = [0, 96], sizes = [16, 32], strides = [1, 1]} : vector<16x128xbf16> to vector<16x32xbf16>
    %cst_86 = arith.constant dense<0.000000e+00> : vector<16x32xf32>
    %237 = tpu.matmul %235, %236, %cst_86 {dimension_numbers = #tpu.dot_dimension_numbers<[1], [0], [0], [1], [0, 0, 1, 1], [], []>} : vector<16x16xbf16>, vector<16x32xbf16>, vector<16x32xf32> -> vector<16x32xf32>
    %238 = tpu.concatenate %222, %227, %232, %237 in 1 : vector<16x32xf32>, vector<16x32xf32>, vector<16x32xf32>, vector<16x32xf32> -> vector<16x128xf32>
    %239 = vector.broadcast %175 : vector<1x128xf32> to vector<16x128xf32>
    %240 = arith.addf %238, %239 : vector<16x128xf32>
    %cst_87 = arith.constant 0.000000e+00 : f32
    %241 = vector.broadcast %cst_87 : f32 to vector<16x128xf32>
    %242 = arith.maximumf %240, %241 : vector<16x128xf32>
    %c520 = arith.constant 520 : index
    %c0_88 = arith.constant 0 : index
    %243 = vector.load %arg4[%c520, %c0_88] : memref<712x256xbf16, #tpu.memory_space<vmem>>, vector<128x128xbf16>
    %c648 = arith.constant 648 : index
    %c0_89 = arith.constant 0 : index
    %244 = vector.load %arg4[%c648, %c0_89] : memref<712x256xbf16, #tpu.memory_space<vmem>>, vector<64x4xbf16>
    %c24 = arith.constant 24 : index
    %c0_90 = arith.constant 0 : index
    %245 = vector.load %arg5[%c24, %c0_90] : memref<104x256xf32, #tpu.memory_space<vmem>>, vector<8x256xf32>
    %246 = vector.extract_strided_slice %245 {offsets = [0, 0], sizes = [1, 128], strides = [1, 1]} : vector<8x256xf32> to vector<1x128xf32>
    %247 = vector.extract_strided_slice %245 {offsets = [1, 0], sizes = [1, 64], strides = [1, 1]} : vector<8x256xf32> to vector<1x64xf32>
    %248 = vector.extract_strided_slice %245 {offsets = [2, 0], sizes = [1, 64], strides = [1, 1]} : vector<8x256xf32> to vector<1x64xf32>
    %249 = vector.extract_strided_slice %245 {offsets = [3, 0], sizes = [1, 64], strides = [1, 1]} : vector<8x256xf32> to vector<1x64xf32>
    %250 = vector.extract_strided_slice %245 {offsets = [4, 0], sizes = [1, 64], strides = [1, 1]} : vector<8x256xf32> to vector<1x64xf32>
    %251 = arith.truncf %242 : vector<16x128xf32> to vector<16x128xbf16>
    %cst_91 = arith.constant dense<0.000000e+00> : vector<16x128xf32>
    %252 = tpu.matmul %251, %243, %cst_91 {dimension_numbers = #tpu.dot_dimension_numbers<[1], [0], [0], [1], [0, 0, 1, 1], [], []>} : vector<16x128xbf16>, vector<128x128xbf16>, vector<16x128xf32> -> vector<16x128xf32>
    %253 = vector.broadcast %246 : vector<1x128xf32> to vector<16x128xf32>
    %254 = arith.addf %252, %253 : vector<16x128xf32>
    %255 = vector.extract_strided_slice %254 {offsets = [0, 0], sizes = [16, 64], strides = [1, 1]} : vector<16x128xf32> to vector<16x64xf32>
    %256 = vector.extract_strided_slice %254 {offsets = [0, 64], sizes = [16, 64], strides = [1, 1]} : vector<16x128xf32> to vector<16x64xf32>
    %257 = vector.extract_strided_slice %3 {offsets = [0, 0], sizes = [256, 64], strides = [1, 1]} : vector<256x128xf32> to vector<256x64xf32>
    %258 = vector.broadcast %247 : vector<1x64xf32> to vector<256x64xf32>
    %259 = arith.mulf %257, %258 : vector<256x64xf32>
    %260 = vector.extract_strided_slice %6 {offsets = [0, 0], sizes = [256, 64], strides = [1, 1]} : vector<256x128xf32> to vector<256x64xf32>
    %261 = vector.broadcast %248 : vector<1x64xf32> to vector<256x64xf32>
    %262 = arith.mulf %260, %261 : vector<256x64xf32>
    %263 = arith.addf %259, %262 : vector<256x64xf32>
    %264 = vector.extract_strided_slice %9 {offsets = [0, 0], sizes = [256, 64], strides = [1, 1]} : vector<256x128xf32> to vector<256x64xf32>
    %265 = vector.broadcast %249 : vector<1x64xf32> to vector<256x64xf32>
    %266 = arith.mulf %264, %265 : vector<256x64xf32>
    %267 = arith.addf %263, %266 : vector<256x64xf32>
    %268 = vector.shape_cast %256 : vector<16x64xf32> to vector<16x1x64xf32>
    %269 = vector.shape_cast %255 : vector<16x64xf32> to vector<1x16x64xf32>
    %270 = vector.broadcast %268 : vector<16x1x64xf32> to vector<16x16x64xf32>
    %271 = vector.broadcast %269 : vector<1x16x64xf32> to vector<16x16x64xf32>
    %272 = arith.addf %270, %271 : vector<16x16x64xf32>
    %273 = vector.shape_cast %267 : vector<256x64xf32> to vector<16x16x64xf32>
    %274 = arith.addf %272, %273 : vector<16x16x64xf32>
    %cst_92 = arith.constant 2.000000e-01 : f32
    %275 = vector.broadcast %cst_92 : f32 to vector<16x16x64xf32>
    %276 = arith.mulf %275, %274 : vector<16x16x64xf32>
    %277 = arith.maximumf %274, %276 : vector<16x16x64xf32>
    %278 = vector.shape_cast %277 : vector<16x16x64xf32> to vector<256x64xf32>
    %279 = arith.truncf %278 : vector<256x64xf32> to vector<256x64xbf16>
    %cst_93 = arith.constant dense<0.000000e+00> : vector<256x4xf32>
    %280 = tpu.matmul %279, %244, %cst_93 {dimension_numbers = #tpu.dot_dimension_numbers<[1], [0], [0], [1], [0, 0, 1, 1], [], []>} : vector<256x64xbf16>, vector<64x4xbf16>, vector<256x4xf32> -> vector<256x4xf32>
    %281 = vector.shape_cast %280 : vector<256x4xf32> to vector<16x16x4xf32>
    %282 = tpu.transpose %281, [0, 2, 1] : vector<16x16x4xf32> -> vector<16x4x16xf32>
    %283 = arith.addf %282, %13 : vector<16x4x16xf32>
    %cst_94 = arith.constant dense<0xFF800000> : vector<16x4xf32>
    %284 = vector.multi_reduction <maximumf>, %283, %cst_94 [2] : vector<16x4x16xf32> to vector<16x4xf32>
    %285 = vector.shape_cast %284 : vector<16x4xf32> to vector<16x4x1xf32>
    %286 = vector.broadcast %285 : vector<16x4x1xf32> to vector<16x4x16xf32>
    %287 = arith.subf %283, %286 : vector<16x4x16xf32>
    %288 = math.exp %287 : vector<16x4x16xf32>
    %cst_95 = arith.constant dense<0.000000e+00> : vector<16x4xf32>
    %289 = vector.multi_reduction <add>, %288, %cst_95 [2] : vector<16x4x16xf32> to vector<16x4xf32>
    %290 = vector.shape_cast %289 : vector<16x4xf32> to vector<16x4x1xf32>
    %291 = tpu.reciprocal %290 {approx = true} : vector<16x4x1xf32> -> vector<16x4x1xf32>
    %292 = vector.broadcast %291 : vector<16x4x1xf32> to vector<16x4x16xf32>
    %293 = arith.mulf %288, %292 : vector<16x4x16xf32>
    %c0_96 = arith.constant 0 : index
    %c0_97 = arith.constant 0 : index
    %c0_98 = arith.constant 0 : index
    %294 = vector.load %arg7[%c0_96, %c0_97, %c0_98] : memref<16x4x16xf32, #tpu.memory_space<vmem>>, vector<16x4x16xf32>
    tpu.vector_store %arg7[%c0_96, %c0_97, %c0_98], %293 {strides = array<i32>} : memref<16x4x16xf32, #tpu.memory_space<vmem>>, vector<16x4x16xf32>,
    %295 = arith.truncf %255 : vector<16x64xf32> to vector<16x64xbf16>
    %c0_99 = arith.constant 0 : index
    %c0_100 = arith.constant 0 : index
    %c0_101 = arith.constant 0 : index
    %296 = vector.load %arg7[%c0_99, %c0_100, %c0_101] : memref<16x4x16xf32, #tpu.memory_space<vmem>>, vector<16x1x16xf32>
    %297 = vector.shape_cast %296 : vector<16x1x16xf32> to vector<16x16xf32>
    %298 = arith.truncf %297 : vector<16x16xf32> to vector<16x16xbf16>
    %299 = vector.extract_strided_slice %295 {offsets = [0, 0], sizes = [16, 32], strides = [1, 1]} : vector<16x64xbf16> to vector<16x32xbf16>
    %cst_102 = arith.constant dense<0.000000e+00> : vector<16x32xf32>
    %300 = tpu.matmul %298, %299, %cst_102 {dimension_numbers = #tpu.dot_dimension_numbers<[1], [0], [0], [1], [0, 0, 1, 1], [], []>} : vector<16x16xbf16>, vector<16x32xbf16>, vector<16x32xf32> -> vector<16x32xf32>
    %c0_103 = arith.constant 0 : index
    %c1_104 = arith.constant 1 : index
    %c0_105 = arith.constant 0 : index
    %301 = vector.load %arg7[%c0_103, %c1_104, %c0_105] : memref<16x4x16xf32, #tpu.memory_space<vmem>>, vector<16x1x16xf32>
    %302 = vector.shape_cast %301 : vector<16x1x16xf32> to vector<16x16xf32>
    %303 = arith.truncf %302 : vector<16x16xf32> to vector<16x16xbf16>
    %304 = vector.extract_strided_slice %295 {offsets = [0, 32], sizes = [16, 32], strides = [1, 1]} : vector<16x64xbf16> to vector<16x32xbf16>
    %cst_106 = arith.constant dense<0.000000e+00> : vector<16x32xf32>
    %305 = tpu.matmul %303, %304, %cst_106 {dimension_numbers = #tpu.dot_dimension_numbers<[1], [0], [0], [1], [0, 0, 1, 1], [], []>} : vector<16x16xbf16>, vector<16x32xbf16>, vector<16x32xf32> -> vector<16x32xf32>
    %306 = tpu.concatenate %300, %305 in 1 : vector<16x32xf32>, vector<16x32xf32> -> vector<16x64xf32>
    %307 = vector.broadcast %250 : vector<1x64xf32> to vector<16x64xf32>
    %308 = arith.addf %306, %307 : vector<16x64xf32>
    %cst_107 = arith.constant 0.000000e+00 : f32
    %309 = vector.broadcast %cst_107 : f32 to vector<16x64xf32>
    %310 = arith.maximumf %308, %309 : vector<16x64xf32>
    %c0_108 = arith.constant 0 : index
    %c0_109 = arith.constant 0 : index
    %311 = vector.load %arg3[%c0_108, %c0_109] : memref<8x16xf32, #tpu.memory_space<vmem>>, vector<8x16xf32>
    %cst_110 = arith.constant dense<0.000000e+00> : vector<8x64xf32>
    %312 = tpu.matmul %311, %310, %cst_110 {dimension_numbers = #tpu.dot_dimension_numbers<[1], [0], [0], [1], [0, 0, 1, 1], [], []>} : vector<8x16xf32>, vector<16x64xf32>, vector<8x64xf32> -> vector<8x64xf32>
    %c32 = arith.constant 32 : index
    %c0_111 = arith.constant 0 : index
    %313 = vector.load %arg5[%c32, %c0_111] : memref<104x256xf32, #tpu.memory_space<vmem>>, vector<64x128xf32>
    %c96 = arith.constant 96 : index
    %c0_112 = arith.constant 0 : index
    %314 = vector.load %arg5[%c96, %c0_112] : memref<104x256xf32, #tpu.memory_space<vmem>>, vector<1x128xf32>
    %cst_113 = arith.constant dense<0.000000e+00> : vector<8x128xf32>
    %315 = tpu.matmul %312, %313, %cst_113 {dimension_numbers = #tpu.dot_dimension_numbers<[1], [0], [0], [1], [0, 0, 1, 1], [], []>} : vector<8x64xf32>, vector<64x128xf32>, vector<8x128xf32> -> vector<8x128xf32>
    %316 = vector.broadcast %314 : vector<1x128xf32> to vector<8x128xf32>
    %317 = arith.addf %315, %316 : vector<8x128xf32>
    %c0_114 = arith.constant 0 : index
    %c0_115 = arith.constant 0 : index
    %318 = vector.load %arg6[%c0_114, %c0_115] : memref<8x128xf32, #tpu.memory_space<vmem>>, vector<8x128xf32>
    tpu.vector_store %arg6[%c0_114, %c0_115], %317 {strides = array<i32>} : memref<8x128xf32, #tpu.memory_space<vmem>>, vector<8x128xf32>,
    return
  }
}

</mosaic_0001>

<llo_original>
// kernel: gnn_forward.1
$region0: #{gnn_forward.1}
  #allocation0 [shape = 'u32[]', space=smem, size = 0x4, offset = 0x4, fixed_abs, tag = 'smem constant byte address 0x4 - core index']
  #allocation1 [shape = 'u32[144,128]{1,0:T(1,128)}', space=vmem, size = 0x12000, scoped, tag = 'internal scratch']
  #allocation2 [shape = 'f32[16,4,16]{2,1,0:T(4,128)}', space=vmem, size = 0x8000, scoped, tag = 'scratch operand']
  %s0 = inlined_call_operand.vmem [shape: f32[16,5], index: 0, kind: input, shape index: {}]
  %s1 = inlined_call_operand.vmem [shape: f32[256,3], index: 1, kind: input, shape index: {}]
  %s2 = inlined_call_operand.vmem [shape: f32[16,16], index: 2, kind: input, shape index: {}]
  %s3 = inlined_call_operand.vmem [shape: f32[8,16], index: 3, kind: input, shape index: {}]
  %s4 = inlined_call_operand.vmem [shape: bf16[712,256], index: 4, kind: input, shape index: {}]
  %s5 = inlined_call_operand.vmem [shape: f32[104,256], index: 5, kind: input, shape index: {}]
  %s6 = inlined_call_operand.vmem [shape: f32[8,128], index: 6, kind: output, shape index: {}]
  %s7 = sld [smem:[#allocation0]]
  $region34: #{gnn_forward.1} parent=0
    _
  %s9 = ssub.s32 1, %s7
  %s10 = scalar_select 0, %s9, %s7
  // Predicated region
  $region2: #{gnn_forward.1} parent=0 // pred_check
    _
  $region3: #{gnn_forward.1} parent=0 // pred_check_branch
    %12 = sbr.rel (0) target = $region5
  $region4: #{gnn_forward.1} parent=0 // pred_region
    _
  $region5: #{gnn_forward.1} parent=0 // pred_fallthru
    _
  // Predicated region
  $region6: #{gnn_forward.1} parent=0 // pred_check
    _
  $region7: #{gnn_forward.1} parent=0 // pred_check_branch
    %14 = sbr.rel (0) target = $region9
  $region8: #{gnn_forward.1} parent=0 // pred_region
    _
  $region9: #{gnn_forward.1} parent=0 // pred_fallthru
    _
  // Predicated region
  $region10: #{gnn_forward.1} parent=0 // pred_check
    _
  $region11: #{gnn_forward.1} parent=0 // pred_check_branch
    %16 = sbr.rel (0) target = $region13
  $region12: #{gnn_forward.1} parent=0 // pred_region
    _
  $region13: #{gnn_forward.1} parent=0 // pred_fallthru
    _
  // Predicated region
  $region14: #{gnn_forward.1} parent=0 // pred_check
    _
  $region15: #{gnn_forward.1} parent=0 // pred_check_branch
    %18 = sbr.rel (0) target = $region17
  $region16: #{gnn_forward.1} parent=0 // pred_region
    _
  $region17: #{gnn_forward.1} parent=0 // pred_fallthru
    _
  // Predicated region
  $region18: #{gnn_forward.1} parent=0 // pred_check
    _
  $region19: #{gnn_forward.1} parent=0 // pred_check_branch
    %20 = sbr.rel (0) target = $region21
  $region20: #{gnn_forward.1} parent=0 // pred_region
    _
  $region21: #{gnn_forward.1} parent=0 // pred_fallthru
    _
  // Predicated region
  $region22: #{gnn_forward.1} parent=0 // pred_check
    _
  $region23: #{gnn_forward.1} parent=0 // pred_check_branch
    %22 = sbr.rel (0) target = $region25
  $region24: #{gnn_forward.1} parent=0 // pred_region
    _
  $region25: #{gnn_forward.1} parent=0 // pred_fallthru
    _
  %v24 = vld [vmem:[%s1] sm:$0xff]
  %v25 = vld [vmem:[%s1 + $0x8] sm:$0xff]
  %v26 = vld [vmem:[%s1 + $0x10] sm:$0xff]
  %v27 = vld [vmem:[%s1 + $0x18] sm:$0xff]
  %v28 = vld [vmem:[%s1 + $0x20] sm:$0xff]
  %v29 = vld [vmem:[%s1 + $0x28] sm:$0xff]
  %v30 = vld [vmem:[%s1 + $0x30] sm:$0xff]
  %v31 = vld [vmem:[%s1 + $0x38] sm:$0xff]
  %v32 = vld [vmem:[%s1 + $0x40] sm:$0xff]
  %v33 = vld [vmem:[%s1 + $0x48] sm:$0xff]
  %v34 = vld [vmem:[%s1 + $0x50] sm:$0xff]
  %v35 = vld [vmem:[%s1 + $0x58] sm:$0xff]
  %v36 = vld [vmem:[%s1 + $0x60] sm:$0xff]
  %v37 = vld [vmem:[%s1 + $0x68] sm:$0xff]
  %v38 = vld [vmem:[%s1 + $0x70] sm:$0xff]
  %v39 = vld [vmem:[%s1 + $0x78] sm:$0xff]
  %v40 = vld [vmem:[%s1 + $0x80] sm:$0xff]
  %v41 = vld [vmem:[%s1 + $0x88] sm:$0xff]
  %v42 = vld [vmem:[%s1 + $0x90] sm:$0xff]
  %v43 = vld [vmem:[%s1 + $0x98] sm:$0xff]
  %v44 = vld [vmem:[%s1 + $0xa0] sm:$0xff]
  %v45 = vld [vmem:[%s1 + $0xa8] sm:$0xff]
  %v46 = vld [vmem:[%s1 + $0xb0] sm:$0xff]
  %v47 = vld [vmem:[%s1 + $0xb8] sm:$0xff]
  %v48 = vld [vmem:[%s1 + $0xc0] sm:$0xff]
  %v49 = vld [vmem:[%s1 + $0xc8] sm:$0xff]
  %v50 = vld [vmem:[%s1 + $0xd0] sm:$0xff]
  %v51 = vld [vmem:[%s1 + $0xd8] sm:$0xff]
  %v52 = vld [vmem:[%s1 + $0xe0] sm:$0xff]
  %v53 = vld [vmem:[%s1 + $0xe8] sm:$0xff]
  %v54 = vld [vmem:[%s1 + $0xf0] sm:$0xff]
  %v55 = vld [vmem:[%s1 + $0xf8] sm:$0xff]
  %57 = vset.pattern.permute.xlu0 0
  %58 = vperm.xlu0 %57, %v24
  %v59 = vpop.permute.xlu0 %58
  %62 = vset.pattern.permute.xlu0 0
  %63 = vperm.xlu0 %62, %v25
  %v64 = vpop.permute.xlu0 %63
  %67 = vset.pattern.permute.xlu0 0
  %68 = vperm.xlu0 %67, %v26
  %v69 = vpop.permute.xlu0 %68
  %72 = vset.pattern.permute.xlu0 0
  %73 = vperm.xlu0 %72, %v27
  %v74 = vpop.permute.xlu0 %73
  %77 = vset.pattern.permute.xlu0 0
  %78 = vperm.xlu0 %77, %v28
  %v79 = vpop.permute.xlu0 %78
  %82 = vset.pattern.permute.xlu0 0
  %83 = vperm.xlu0 %82, %v29
  %v84 = vpop.permute.xlu0 %83
  %87 = vset.pattern.permute.xlu0 0
  %88 = vperm.xlu0 %87, %v30
  %v89 = vpop.permute.xlu0 %88
  %92 = vset.pattern.permute.xlu0 0
  %93 = vperm.xlu0 %92, %v31
  %v94 = vpop.permute.xlu0 %93
  %97 = vset.pattern.permute.xlu0 0
  %98 = vperm.xlu0 %97, %v32
  %v99 = vpop.permute.xlu0 %98
  %102 = vset.pattern.permute.xlu0 0
  %103 = vperm.xlu0 %102, %v33
  %v104 = vpop.permute.xlu0 %103
  %107 = vset.pattern.permute.xlu0 0
  %108 = vperm.xlu0 %107, %v34
  %v109 = vpop.permute.xlu0 %108
  %112 = vset.pattern.permute.xlu0 0
  %113 = vperm.xlu0 %112, %v35
  %v114 = vpop.permute.xlu0 %113
  %117 = vset.pattern.permute.xlu0 0
  %118 = vperm.xlu0 %117, %v36
  %v119 = vpop.permute.xlu0 %118
  %122 = vset.pattern.permute.xlu0 0
  %123 = vperm.xlu0 %122, %v37
  %v124 = vpop.permute.xlu0 %123
  %127 = vset.pattern.permute.xlu0 0
  %128 = vperm.xlu0 %127, %v38
  %v129 = vpop.permute.xlu0 %128
  %132 = vset.pattern.permute.xlu0 0
  %133 = vperm.xlu0 %132, %v39
  %v134 = vpop.permute.xlu0 %133
  %137 = vset.pattern.permute.xlu0 0
  %138 = vperm.xlu0 %137, %v40
  %v139 = vpop.permute.xlu0 %138
  %142 = vset.pattern.permute.xlu0 0
  %143 = vperm.xlu0 %142, %v41
  %v144 = vpop.permute.xlu0 %143
  %147 = vset.pattern.permute.xlu0 0
  %148 = vperm.xlu0 %147, %v42
  %v149 = vpop.permute.xlu0 %148
  %152 = vset.pattern.permute.xlu0 0
  %153 = vperm.xlu0 %152, %v43
  %v154 = vpop.permute.xlu0 %153
  %157 = vset.pattern.permute.xlu0 0
  %158 = vperm.xlu0 %157, %v44
  %v159 = vpop.permute.xlu0 %158
  %162 = vset.pattern.permute.xlu0 0
  %163 = vperm.xlu0 %162, %v45
  %v164 = vpop.permute.xlu0 %163
  %167 = vset.pattern.permute.xlu0 0
  %168 = vperm.xlu0 %167, %v46
  %v169 = vpop.permute.xlu0 %168
  %172 = vset.pattern.permute.xlu0 0
  %173 = vperm.xlu0 %172, %v47
  %v174 = vpop.permute.xlu0 %173
  %177 = vset.pattern.permute.xlu0 0
  %178 = vperm.xlu0 %177, %v48
  %v179 = vpop.permute.xlu0 %178
  %182 = vset.pattern.permute.xlu0 0
  %183 = vperm.xlu0 %182, %v49
  %v184 = vpop.permute.xlu0 %183
  %187 = vset.pattern.permute.xlu0 0
  %188 = vperm.xlu0 %187, %v50
  %v189 = vpop.permute.xlu0 %188
  %192 = vset.pattern.permute.xlu0 0
  %193 = vperm.xlu0 %192, %v51
  %v194 = vpop.permute.xlu0 %193
  %197 = vset.pattern.permute.xlu0 0
  %198 = vperm.xlu0 %197, %v52
  %v199 = vpop.permute.xlu0 %198
  %202 = vset.pattern.permute.xlu0 0
  %203 = vperm.xlu0 %202, %v53
  %v204 = vpop.permute.xlu0 %203
  %207 = vset.pattern.permute.xlu0 0
  %208 = vperm.xlu0 %207, %v54
  %v209 = vpop.permute.xlu0 %208
  %212 = vset.pattern.permute.xlu0 0
  %213 = vperm.xlu0 %212, %v55
  %v214 = vpop.permute.xlu0 %213
  %216 = vset.pattern.permute.xlu0 1
  %217 = vperm.xlu0 %216, %v24
  %v218 = vpop.permute.xlu0 %217
  %220 = vset.pattern.permute.xlu0 1
  %221 = vperm.xlu0 %220, %v25
  %v222 = vpop.permute.xlu0 %221
  %224 = vset.pattern.permute.xlu0 1
  %225 = vperm.xlu0 %224, %v26
  %v226 = vpop.permute.xlu0 %225
  %228 = vset.pattern.permute.xlu0 1
  %229 = vperm.xlu0 %228, %v27
  %v230 = vpop.permute.xlu0 %229
  %232 = vset.pattern.permute.xlu0 1
  %233 = vperm.xlu0 %232, %v28
  %v234 = vpop.permute.xlu0 %233
  %236 = vset.pattern.permute.xlu0 1
  %237 = vperm.xlu0 %236, %v29
  %v238 = vpop.permute.xlu0 %237
  %240 = vset.pattern.permute.xlu0 1
  %241 = vperm.xlu0 %240, %v30
  %v242 = vpop.permute.xlu0 %241
  %244 = vset.pattern.permute.xlu0 1
  %245 = vperm.xlu0 %244, %v31
  %v246 = vpop.permute.xlu0 %245
  %248 = vset.pattern.permute.xlu0 1
  %249 = vperm.xlu0 %248, %v32
  %v250 = vpop.permute.xlu0 %249
  %252 = vset.pattern.permute.xlu0 1
  %253 = vperm.xlu0 %252, %v33
  %v254 = vpop.permute.xlu0 %253
  %256 = vset.pattern.permute.xlu0 1
  %257 = vperm.xlu0 %256, %v34
  %v258 = vpop.permute.xlu0 %257
  %260 = vset.pattern.permute.xlu0 1
  %261 = vperm.xlu0 %260, %v35
  %v262 = vpop.permute.xlu0 %261
  %264 = vset.pattern.permute.xlu0 1
  %265 = vperm.xlu0 %264, %v36
  %v266 = vpop.permute.xlu0 %265
  %268 = vset.pattern.permute.xlu0 1
  %269 = vperm.xlu0 %268, %v37
  %v270 = vpop.permute.xlu0 %269
  %272 = vset.pattern.permute.xlu0 1
  %273 = vperm.xlu0 %272, %v38
  %v274 = vpop.permute.xlu0 %273
  %276 = vset.pattern.permute.xlu0 1
  %277 = vperm.xlu0 %276, %v39
  %v278 = vpop.permute.xlu0 %277
  %280 = vset.pattern.permute.xlu0 1
  %281 = vperm.xlu0 %280, %v40
  %v282 = vpop.permute.xlu0 %281
  %284 = vset.pattern.permute.xlu0 1
  %285 = vperm.xlu0 %284, %v41
  %v286 = vpop.permute.xlu0 %285
  %288 = vset.pattern.permute.xlu0 1
  %289 = vperm.xlu0 %288, %v42
  %v290 = vpop.permute.xlu0 %289
  %292 = vset.pattern.permute.xlu0 1
  %293 = vperm.xlu0 %292, %v43
  %v294 = vpop.permute.xlu0 %293
  %296 = vset.pattern.permute.xlu0 1
  %297 = vperm.xlu0 %296, %v44
  %v298 = vpop.permute.xlu0 %297
  %300 = vset.pattern.permute.xlu0 1
  %301 = vperm.xlu0 %300, %v45
  %v302 = vpop.permute.xlu0 %301
  %304 = vset.pattern.permute.xlu0 1
  %305 = vperm.xlu0 %304, %v46
  %v306 = vpop.permute.xlu0 %305
  %308 = vset.pattern.permute.xlu0 1
  %309 = vperm.xlu0 %308, %v47
  %v310 = vpop.permute.xlu0 %309
  %312 = vset.pattern.permute.xlu0 1
  %313 = vperm.xlu0 %312, %v48
  %v314 = vpop.permute.xlu0 %313
  %316 = vset.pattern.permute.xlu0 1
  %317 = vperm.xlu0 %316, %v49
  %v318 = vpop.permute.xlu0 %317
  %320 = vset.pattern.permute.xlu0 1
  %321 = vperm.xlu0 %320, %v50
  %v322 = vpop.permute.xlu0 %321
  %324 = vset.pattern.permute.xlu0 1
  %325 = vperm.xlu0 %324, %v51
  %v326 = vpop.permute.xlu0 %325
  %328 = vset.pattern.permute.xlu0 1
  %329 = vperm.xlu0 %328, %v52
  %v330 = vpop.permute.xlu0 %329
  %332 = vset.pattern.permute.xlu0 1
  %333 = vperm.xlu0 %332, %v53
  %v334 = vpop.permute.xlu0 %333
  %336 = vset.pattern.permute.xlu0 1
  %337 = vperm.xlu0 %336, %v54
  %v338 = vpop.permute.xlu0 %337
  %340 = vset.pattern.permute.xlu0 1
  %341 = vperm.xlu0 %340, %v55
  %v342 = vpop.permute.xlu0 %341
  %344 = vset.pattern.permute.xlu0 2
  %345 = vperm.xlu0 %344, %v24
  %v346 = vpop.permute.xlu0 %345
  %348 = vset.pattern.permute.xlu0 2
  %349 = vperm.xlu0 %348, %v25
  %v350 = vpop.permute.xlu0 %349
  %352 = vset.pattern.permute.xlu0 2
  %353 = vperm.xlu0 %352, %v26
  %v354 = vpop.permute.xlu0 %353
  %356 = vset.pattern.permute.xlu0 2
  %357 = vperm.xlu0 %356, %v27
  %v358 = vpop.permute.xlu0 %357
  %360 = vset.pattern.permute.xlu0 2
  %361 = vperm.xlu0 %360, %v28
  %v362 = vpop.permute.xlu0 %361
  %364 = vset.pattern.permute.xlu0 2
  %365 = vperm.xlu0 %364, %v29
  %v366 = vpop.permute.xlu0 %365
  %368 = vset.pattern.permute.xlu0 2
  %369 = vperm.xlu0 %368, %v30
  %v370 = vpop.permute.xlu0 %369
  %372 = vset.pattern.permute.xlu0 2
  %373 = vperm.xlu0 %372, %v31
  %v374 = vpop.permute.xlu0 %373
  %376 = vset.pattern.permute.xlu0 2
  %377 = vperm.xlu0 %376, %v32
  %v378 = vpop.permute.xlu0 %377
  %380 = vset.pattern.permute.xlu0 2
  %381 = vperm.xlu0 %380, %v33
  %v382 = vpop.permute.xlu0 %381
  %384 = vset.pattern.permute.xlu0 2
  %385 = vperm.xlu0 %384, %v34
  %v386 = vpop.permute.xlu0 %385
  %388 = vset.pattern.permute.xlu0 2
  %389 = vperm.xlu0 %388, %v35
  %v390 = vpop.permute.xlu0 %389
  %392 = vset.pattern.permute.xlu0 2
  %393 = vperm.xlu0 %392, %v36
  %v394 = vpop.permute.xlu0 %393
  %396 = vset.pattern.permute.xlu0 2
  %397 = vperm.xlu0 %396, %v37
  %v398 = vpop.permute.xlu0 %397
  %400 = vset.pattern.permute.xlu0 2
  %401 = vperm.xlu0 %400, %v38
  %v402 = vpop.permute.xlu0 %401
  %404 = vset.pattern.permute.xlu0 2
  %405 = vperm.xlu0 %404, %v39
  %v406 = vpop.permute.xlu0 %405
  %408 = vset.pattern.permute.xlu0 2
  %409 = vperm.xlu0 %408, %v40
  %v410 = vpop.permute.xlu0 %409
  %412 = vset.pattern.permute.xlu0 2
  %413 = vperm.xlu0 %412, %v41
  %v414 = vpop.permute.xlu0 %413
  %416 = vset.pattern.permute.xlu0 2
  %417 = vperm.xlu0 %416, %v42
  %v418 = vpop.permute.xlu0 %417
  %420 = vset.pattern.permute.xlu0 2
  %421 = vperm.xlu0 %420, %v43
  %v422 = vpop.permute.xlu0 %421
  %424 = vset.pattern.permute.xlu0 2
  %425 = vperm.xlu0 %424, %v44
  %v426 = vpop.permute.xlu0 %425
  %428 = vset.pattern.permute.xlu0 2
  %429 = vperm.xlu0 %428, %v45
  %v430 = vpop.permute.xlu0 %429
  %432 = vset.pattern.permute.xlu0 2
  %433 = vperm.xlu0 %432, %v46
  %v434 = vpop.permute.xlu0 %433
  %436 = vset.pattern.permute.xlu0 2
  %437 = vperm.xlu0 %436, %v47
  %v438 = vpop.permute.xlu0 %437
  %440 = vset.pattern.permute.xlu0 2
  %441 = vperm.xlu0 %440, %v48
  %v442 = vpop.permute.xlu0 %441
  %444 = vset.pattern.permute.xlu0 2
  %445 = vperm.xlu0 %444, %v49
  %v446 = vpop.permute.xlu0 %445
  %448 = vset.pattern.permute.xlu0 2
  %449 = vperm.xlu0 %448, %v50
  %v450 = vpop.permute.xlu0 %449
  %452 = vset.pattern.permute.xlu0 2
  %453 = vperm.xlu0 %452, %v51
  %v454 = vpop.permute.xlu0 %453
  %456 = vset.pattern.permute.xlu0 2
  %457 = vperm.xlu0 %456, %v52
  %v458 = vpop.permute.xlu0 %457
  %460 = vset.pattern.permute.xlu0 2
  %461 = vperm.xlu0 %460, %v53
  %v462 = vpop.permute.xlu0 %461
  %464 = vset.pattern.permute.xlu0 2
  %465 = vperm.xlu0 %464, %v54
  %v466 = vpop.permute.xlu0 %465
  %468 = vset.pattern.permute.xlu0 2
  %469 = vperm.xlu0 %468, %v55
  %v470 = vpop.permute.xlu0 %469
  %v472 = vld [vmem:[%s2] sm:$0xff]
  %v473 = vld [vmem:[%s2 + $0x8] sm:$0xff]
  %v476 = vcombine.high %v472, %v472
  %v478 = vunpack.c.l.s4 1966171168
  %v479 = vunpack.c.0.s8 %v478
  %v480 = vlaneseq
  %v481 = vshrl.u32 %v480, 7
  %v482 = vsub.s32 %v479, %v481
  %v483 = vrot.slane %v472, %v482
  %v485 = vunpack.c.l.s4 1966171168
  %v486 = vunpack.c.0.s8 %v485
  %v487 = vlaneseq
  %v488 = vshrl.u32 %v487, 7
  %v489 = vsub.s32 %v486, %v488
  %v490 = vrot.slane %v476, %v489
  %v491 = vcombine.high %v483, %v483
  %v492 = vcombine.high %v490, %v490
  %v494 = vunpack.c.l.s4 1966171168
  %v495 = vunpack.c.0.s8 %v494
  %v496 = vlaneseq
  %v497 = vshrl.u32 %v496, 7
  %v498 = vsub.s32 %v495, %v497
  %v499 = vrot.slane %v483, %v498
  %v501 = vunpack.c.l.s4 1966171168
  %v502 = vunpack.c.0.s8 %v501
  %v503 = vlaneseq
  %v504 = vshrl.u32 %v503, 7
  %v505 = vsub.s32 %v502, %v504
  %v506 = vrot.slane %v490, %v505
  %v508 = vunpack.c.l.s4 1966171168
  %v509 = vunpack.c.0.s8 %v508
  %v510 = vlaneseq
  %v511 = vshrl.u32 %v510, 7
  %v512 = vsub.s32 %v509, %v511
  %v513 = vrot.slane %v491, %v512
  %v515 = vunpack.c.l.s4 1966171168
  %v516 = vunpack.c.0.s8 %v515
  %v517 = vlaneseq
  %v518 = vshrl.u32 %v517, 7
  %v519 = vsub.s32 %v516, %v518
  %v520 = vrot.slane %v492, %v519
  %v521 = vcombine.high %v499, %v499
  %v522 = vcombine.high %v506, %v506
  %v523 = vcombine.high %v513, %v513
  %v524 = vcombine.high %v520, %v520
  %v525 = vcombine.high %v473, %v473
  %v527 = vunpack.c.l.s4 1966171168
  %v528 = vunpack.c.0.s8 %v527
  %v529 = vlaneseq
  %v530 = vshrl.u32 %v529, 7
  %v531 = vsub.s32 %v528, %v530
  %v532 = vrot.slane %v473, %v531
  %v534 = vunpack.c.l.s4 1966171168
  %v535 = vunpack.c.0.s8 %v534
  %v536 = vlaneseq
  %v537 = vshrl.u32 %v536, 7
  %v538 = vsub.s32 %v535, %v537
  %v539 = vrot.slane %v525, %v538
  %v540 = vcombine.high %v532, %v532
  %v541 = vcombine.high %v539, %v539
  %v543 = vunpack.c.l.s4 1966171168
  %v544 = vunpack.c.0.s8 %v543
  %v545 = vlaneseq
  %v546 = vshrl.u32 %v545, 7
  %v547 = vsub.s32 %v544, %v546
  %v548 = vrot.slane %v532, %v547
  %v550 = vunpack.c.l.s4 1966171168
  %v551 = vunpack.c.0.s8 %v550
  %v552 = vlaneseq
  %v553 = vshrl.u32 %v552, 7
  %v554 = vsub.s32 %v551, %v553
  %v555 = vrot.slane %v539, %v554
  %v557 = vunpack.c.l.s4 1966171168
  %v558 = vunpack.c.0.s8 %v557
  %v559 = vlaneseq
  %v560 = vshrl.u32 %v559, 7
  %v561 = vsub.s32 %v558, %v560
  %v562 = vrot.slane %v540, %v561
  %v564 = vunpack.c.l.s4 1966171168
  %v565 = vunpack.c.0.s8 %v564
  %v566 = vlaneseq
  %v567 = vshrl.u32 %v566, 7
  %v568 = vsub.s32 %v565, %v567
  %v569 = vrot.slane %v541, %v568
  %v570 = vcombine.high %v548, %v548
  %v571 = vcombine.high %v555, %v555
  %v572 = vcombine.high %v562, %v562
  %v573 = vcombine.high %v569, %v569
  %v574 = vlaneseq
  %v575 = vshrl.u32 %v574, 7
  %v576 = vsub.s32 0, %v575
  %v577 = vrot.slane %v499, %v576
  %v578 = vlaneseq
  %v579 = vshrl.u32 %v578, 7
  %v580 = vsub.s32 0, %v579
  %v581 = vrot.slane %v513, %v580
  %v582 = vlaneseq
  %v583 = vshrl.u32 %v582, 7
  %v584 = vsub.s32 0, %v583
  %v585 = vrot.slane %v521, %v584
  %v586 = vlaneseq
  %v587 = vshrl.u32 %v586, 7
  %v588 = vsub.s32 0, %v587
  %v589 = vrot.slane %v523, %v588
  %v590 = vlaneseq
  %v591 = vshrl.u32 %v590, 7
  %v592 = vsub.s32 0, %v591
  %v593 = vrot.slane %v506, %v592
  %v594 = vlaneseq
  %v595 = vshrl.u32 %v594, 7
  %v596 = vsub.s32 0, %v595
  %v597 = vrot.slane %v520, %v596
  %v598 = vlaneseq
  %v599 = vshrl.u32 %v598, 7
  %v600 = vsub.s32 0, %v599
  %v601 = vrot.slane %v522, %v600
  %v602 = vlaneseq
  %v603 = vshrl.u32 %v602, 7
  %v604 = vsub.s32 0, %v603
  %v605 = vrot.slane %v524, %v604
  %v606 = vlaneseq
  %v607 = vshrl.u32 %v606, 7
  %v608 = vsub.s32 0, %v607
  %v609 = vrot.slane %v548, %v608
  %v610 = vlaneseq
  %v611 = vshrl.u32 %v610, 7
  %v612 = vsub.s32 0, %v611
  %v613 = vrot.slane %v562, %v612
  %v614 = vlaneseq
  %v615 = vshrl.u32 %v614, 7
  %v616 = vsub.s32 0, %v615
  %v617 = vrot.slane %v570, %v616
  %v618 = vlaneseq
  %v619 = vshrl.u32 %v618, 7
  %v620 = vsub.s32 0, %v619
  %v621 = vrot.slane %v572, %v620
  %v622 = vlaneseq
  %v623 = vshrl.u32 %v622, 7
  %v624 = vsub.s32 0, %v623
  %v625 = vrot.slane %v555, %v624
  %v626 = vlaneseq
  %v627 = vshrl.u32 %v626, 7
  %v628 = vsub.s32 0, %v627
  %v629 = vrot.slane %v569, %v628
  %v630 = vlaneseq
  %v631 = vshrl.u32 %v630, 7
  %v632 = vsub.s32 0, %v631
  %v633 = vrot.slane %v571, %v632
  %v634 = vlaneseq
  %v635 = vshrl.u32 %v634, 7
  %v636 = vsub.s32 0, %v635
  %v637 = vrot.slane %v573, %v636
  %v654 = vld [vmem:[%s0] sm:$0xff]
  %v655 = vld [vmem:[%s0 + $0x8] sm:$0xff]
  %v656 = vld [vmem:[%s4] sm:$0x7]
  %v657 = vld [vmem:[%s4 + $0x8] sm:$0xf]
  %v658 = vld [vmem:[%s4 + $0x10] sm:$0xf]
  %v659 = vld [vmem:[%s4 + $0x18] sm:$0xf]
  %v660 = vld [vmem:[%s4 + $0x20] sm:$0xf]
  %v661 = vld [vmem:[%s4 + $0x28] sm:$0xf]
  %v662 = vld [vmem:[%s4 + $0x30] sm:$0xf]
  %v663 = vld [vmem:[%s4 + $0x38] sm:$0xf]
  %v664 = vld [vmem:[%s4 + $0x40] sm:$0xf]
  %v665 = vld [vmem:[%s5] sm:$0xff]
  %v666 = vpack.c.bf16 %v655, %v654
  %v667 = vlaneseq
  %v668 = vshrl.u32 %v667, 7
  %v669 = vsub.s32 0, %v668
  %v670 = vrot.slane %v665, %v669
  %vm671 = vcmask 39936
  %v673 = vsel %vm671, %v666, 0
  %vm675 = vcmask 1041408
  %vm676 = vcmask 1042432
  %v677 = vsel %vm675, 4294967295, 65535
  %v678 = vsel %vm676, %v677, 0
  %v680 = vand.u32 %v656, %v678
  %682 = vmatprep.subr.bf16.mxu0 0
  %683 = vmatpush1.bf16.msra.mxu0 0
  %684 = vmatprep.subr.bf16.mxu0 0
  %685 = vmatpush1.bf16.msra.mxu0 0
  %686 = vmatprep.subr.bf16.mxu0 0
  %687 = vmatpush1.bf16.msra.mxu0 0
  %688 = vmatprep.subr.bf16.mxu0 0
  %689 = vmatpush1.bf16.msra.mxu0 0
  %690 = vmatprep.subr.bf16.mxu0 0
  %691 = vmatpush1.bf16.msra.mxu0 0
  %692 = vmatprep.subr.bf16.mxu0 0
  %693 = vmatpush1.bf16.msra.mxu0 0
  %694 = vmatprep.subr.bf16.mxu0 0
  %695 = vmatpush1.bf16.msra.mxu0 0
  %696 = vmatprep.subr.bf16.mxu0 0
  %697 = vmatpush1.bf16.msra.mxu0 %v680
  %698 = vmatprep.subr.bf16.mxu0 0
  %699 = vmatpush2.bf16.msra.mxu0 0
  %700 = vmatprep.subr.bf16.mxu0 0
  %701 = vmatpush2.bf16.msra.mxu0 0
  %702 = vmatprep.subr.bf16.mxu0 0
  %703 = vmatpush2.bf16.msra.mxu0 0
  %704 = vmatprep.subr.bf16.mxu0 0
  %705 = vmatpush2.bf16.msra.mxu0 0
  %706 = vmatprep.subr.bf16.mxu0 0
  %707 = vmatpush2.bf16.msra.mxu0 0
  %708 = vmatprep.subr.bf16.mxu0 0
  %709 = vmatpush2.bf16.msra.mxu0 0
  %710 = vmatprep.subr.bf16.mxu0 0
  %711 = vmatpush2.bf16.msra.mxu0 0
  %712 = vmatprep.subr.bf16.mxu0 0
  %713 = vmatpush2.bf16.msra.mxu0 0
  %714 = vmatprep.mubr.bf16.mxu0 0
  %715 = vmatmul.mubr.bf16.gmra.mxu0 %v673
  %v716 = vpop.f32.mrf.mxu0
  %v717 = vadd.f32 %v670, %v716
  %v718 = vpop.f32.mrf.mxu0
  %v719 = vpop.f32.mrf.mxu0
  %v720 = vadd.f32 %v670, %v719
  %v721 = vpop.f32.mrf.mxu0
  %722 = vdwg.mxu0
  %v723 = vlaneseq
  %v724 = vshrl.u32 %v723, 7
  %v725 = vsub.s32 1, %v724
  %v726 = vrot.slane %v665, %v725
  %v727 = vmul.f32 %v59, %v726
  %v728 = vmul.f32 %v64, %v726
  %v729 = vmul.f32 %v69, %v726
  %v730 = vmul.f32 %v74, %v726
  %v731 = vmul.f32 %v79, %v726
  %v732 = vmul.f32 %v84, %v726
  %v733 = vmul.f32 %v89, %v726
  %v734 = vmul.f32 %v94, %v726
  %v735 = vmul.f32 %v99, %v726
  %v736 = vmul.f32 %v104, %v726
  %v737 = vmul.f32 %v109, %v726
  %v738 = vmul.f32 %v114, %v726
  %v739 = vmul.f32 %v119, %v726
  %v740 = vmul.f32 %v124, %v726
  %v741 = vmul.f32 %v129, %v726
  %v742 = vmul.f32 %v134, %v726
  %v743 = vmul.f32 %v139, %v726
  %v744 = vmul.f32 %v144, %v726
  %v745 = vmul.f32 %v149, %v726
  %v746 = vmul.f32 %v154, %v726
  %v747 = vmul.f32 %v159, %v726
  %v748 = vmul.f32 %v164, %v726
  %v749 = vmul.f32 %v169, %v726
  %v750 = vmul.f32 %v174, %v726
  %v751 = vmul.f32 %v179, %v726
  %v752 = vmul.f32 %v184, %v726
  %v753 = vmul.f32 %v189, %v726
  %v754 = vmul.f32 %v194, %v726
  %v755 = vmul.f32 %v199, %v726
  %v756 = vmul.f32 %v204, %v726
  %v757 = vmul.f32 %v209, %v726
  %v758 = vmul.f32 %v214, %v726
  %v759 = vlaneseq
  %v760 = vshrl.u32 %v759, 7
  %v761 = vsub.s32 2, %v760
  %v762 = vrot.slane %v665, %v761
  %v763 = vmul.f32 %v218, %v762
  %v764 = vmul.f32 %v222, %v762
  %v765 = vmul.f32 %v226, %v762
  %v766 = vmul.f32 %v230, %v762
  %v767 = vmul.f32 %v234, %v762
  %v768 = vmul.f32 %v238, %v762
  %v769 = vmul.f32 %v242, %v762
  %v770 = vmul.f32 %v246, %v762
  %v771 = vmul.f32 %v250, %v762
  %v772 = vmul.f32 %v254, %v762
  %v773 = vmul.f32 %v258, %v762
  %v774 = vmul.f32 %v262, %v762
  %v775 = vmul.f32 %v266, %v762
  %v776 = vmul.f32 %v270, %v762
  %v777 = vmul.f32 %v274, %v762
  %v778 = vmul.f32 %v278, %v762
  %v779 = vmul.f32 %v282, %v762
  %v780 = vmul.f32 %v286, %v762
  %v781 = vmul.f32 %v290, %v762
  %v782 = vmul.f32 %v294, %v762
  %v783 = vmul.f32 %v298, %v762
  %v784 = vmul.f32 %v302, %v762
  %v785 = vmul.f32 %v306, %v762
  %v786 = vmul.f32 %v310, %v762
  %v787 = vmul.f32 %v314, %v762
  %v788 = vmul.f32 %v318, %v762
  %v789 = vmul.f32 %v322, %v762
  %v790 = vmul.f32 %v326, %v762
  %v791 = vmul.f32 %v330, %v762
  %v792 = vmul.f32 %v334, %v762
  %v793 = vmul.f32 %v338, %v762
  %v794 = vmul.f32 %v342, %v762
  %v795 = vadd.f32 %v727, %v763
  %v796 = vadd.f32 %v728, %v764
  %v797 = vadd.f32 %v729, %v765
  %v798 = vadd.f32 %v730, %v766
  %v799 = vadd.f32 %v731, %v767
  %v800 = vadd.f32 %v732, %v768
  %v801 = vadd.f32 %v733, %v769
  %v802 = vadd.f32 %v734, %v770
  %v803 = vadd.f32 %v735, %v771
  %v804 = vadd.f32 %v736, %v772
  %v805 = vadd.f32 %v737, %v773
  %v806 = vadd.f32 %v738, %v774
  %v807 = vadd.f32 %v739, %v775
  %v808 = vadd.f32 %v740, %v776
  %v809 = vadd.f32 %v741, %v777
  %v810 = vadd.f32 %v742, %v778
  %v811 = vadd.f32 %v743, %v779
  %v812 = vadd.f32 %v744, %v780
  %v813 = vadd.f32 %v745, %v781
  %v814 = vadd.f32 %v746, %v782
  %v815 = vadd.f32 %v747, %v783
  %v816 = vadd.f32 %v748, %v784
  %v817 = vadd.f32 %v749, %v785
  %v818 = vadd.f32 %v750, %v786
  %v819 = vadd.f32 %v751, %v787
  %v820 = vadd.f32 %v752, %v788
  %v821 = vadd.f32 %v753, %v789
  %v822 = vadd.f32 %v754, %v790
  %v823 = vadd.f32 %v755, %v791
  %v824 = vadd.f32 %v756, %v792
  %v825 = vadd.f32 %v757, %v793
  %v826 = vadd.f32 %v758, %v794
  %v827 = vlaneseq
  %v828 = vshrl.u32 %v827, 7
  %v829 = vsub.s32 3, %v828
  %v830 = vrot.slane %v665, %v829
  %v831 = vmul.f32 %v346, %v830
  %v832 = vmul.f32 %v350, %v830
  %v833 = vmul.f32 %v354, %v830
  %v834 = vmul.f32 %v358, %v830
  %v835 = vmul.f32 %v362, %v830
  %v836 = vmul.f32 %v366, %v830
  %v837 = vmul.f32 %v370, %v830
  %v838 = vmul.f32 %v374, %v830
  %v839 = vmul.f32 %v378, %v830
  %v840 = vmul.f32 %v382, %v830
  %v841 = vmul.f32 %v386, %v830
  %v842 = vmul.f32 %v390, %v830
  %v843 = vmul.f32 %v394, %v830
  %v844 = vmul.f32 %v398, %v830
  %v845 = vmul.f32 %v402, %v830
  %v846 = vmul.f32 %v406, %v830
  %v847 = vmul.f32 %v410, %v830
  %v848 = vmul.f32 %v414, %v830
  %v849 = vmul.f32 %v418, %v830
  %v850 = vmul.f32 %v422, %v830
  %v851 = vmul.f32 %v426, %v830
  %v852 = vmul.f32 %v430, %v830
  %v853 = vmul.f32 %v434, %v830
  %v854 = vmul.f32 %v438, %v830
  %v855 = vmul.f32 %v442, %v830
  %v856 = vmul.f32 %v446, %v830
  %v857 = vmul.f32 %v450, %v830
  %v858 = vmul.f32 %v454, %v830
  %v859 = vmul.f32 %v458, %v830
  %v860 = vmul.f32 %v462, %v830
  %v861 = vmul.f32 %v466, %v830
  %v862 = vmul.f32 %v470, %v830
  %v863 = vadd.f32 %v795, %v831
  %v864 = vadd.f32 %v796, %v832
  %v865 = vadd.f32 %v797, %v833
  %v866 = vadd.f32 %v798, %v834
  %v867 = vadd.f32 %v799, %v835
  %v868 = vadd.f32 %v800, %v836
  %v869 = vadd.f32 %v801, %v837
  %v870 = vadd.f32 %v802, %v838
  %v871 = vadd.f32 %v803, %v839
  %v872 = vadd.f32 %v804, %v840
  %v873 = vadd.f32 %v805, %v841
  %v874 = vadd.f32 %v806, %v842
  %v875 = vadd.f32 %v807, %v843
  %v876 = vadd.f32 %v808, %v844
  %v877 = vadd.f32 %v809, %v845
  %v878 = vadd.f32 %v810, %v846
  %v879 = vadd.f32 %v811, %v847
  %v880 = vadd.f32 %v812, %v848
  %v881 = vadd.f32 %v813, %v849
  %v882 = vadd.f32 %v814, %v850
  %v883 = vadd.f32 %v815, %v851
  %v884 = vadd.f32 %v816, %v852
  %v885 = vadd.f32 %v817, %v853
  %v886 = vadd.f32 %v818, %v854
  %v887 = vadd.f32 %v819, %v855
  %v888 = vadd.f32 %v820, %v856
  %v889 = vadd.f32 %v821, %v857
  %v890 = vadd.f32 %v822, %v858
  %v891 = vadd.f32 %v823, %v859
  %v892 = vadd.f32 %v824, %v860
  %v893 = vadd.f32 %v825, %v861
  %v894 = vadd.f32 %v826, %v862
  %v897 = vcombine.high %v717, %v717
  %v899 = vunpack.c.l.s4 1966171168
  %v900 = vunpack.c.0.s8 %v899
  %v901 = vlaneseq
  %v902 = vshrl.u32 %v901, 7
  %v903 = vsub.s32 %v900, %v902
  %v904 = vrot.slane %v717, %v903
  %v906 = vunpack.c.l.s4 1966171168
  %v907 = vunpack.c.0.s8 %v906
  %v908 = vlaneseq
  %v909 = vshrl.u32 %v908, 7
  %v910 = vsub.s32 %v907, %v909
  %v911 = vrot.slane %v897, %v910
  %v912 = vcombine.high %v904, %v904
  %v913 = vcombine.high %v911, %v911
  %v915 = vunpack.c.l.s4 1966171168
  %v916 = vunpack.c.0.s8 %v915
  %v917 = vlaneseq
  %v918 = vshrl.u32 %v917, 7
  %v919 = vsub.s32 %v916, %v918
  %v920 = vrot.slane %v904, %v919
  %v922 = vunpack.c.l.s4 1966171168
  %v923 = vunpack.c.0.s8 %v922
  %v924 = vlaneseq
  %v925 = vshrl.u32 %v924, 7
  %v926 = vsub.s32 %v923, %v925
  %v927 = vrot.slane %v911, %v926
  %v929 = vunpack.c.l.s4 1966171168
  %v930 = vunpack.c.0.s8 %v929
  %v931 = vlaneseq
  %v932 = vshrl.u32 %v931, 7
  %v933 = vsub.s32 %v930, %v932
  %v934 = vrot.slane %v912, %v933
  %v936 = vunpack.c.l.s4 1966171168
  %v937 = vunpack.c.0.s8 %v936
  %v938 = vlaneseq
  %v939 = vshrl.u32 %v938, 7
  %v940 = vsub.s32 %v937, %v939
  %v941 = vrot.slane %v913, %v940
  %v942 = vcombine.high %v920, %v920
  %v943 = vcombine.high %v927, %v927
  %v944 = vcombine.high %v934, %v934
  %v945 = vcombine.high %v941, %v941
  %v946 = vcombine.high %v720, %v720
  %v948 = vunpack.c.l.s4 1966171168
  %v949 = vunpack.c.0.s8 %v948
  %v950 = vlaneseq
  %v951 = vshrl.u32 %v950, 7
  %v952 = vsub.s32 %v949, %v951
  %v953 = vrot.slane %v720, %v952
  %v955 = vunpack.c.l.s4 1966171168
  %v956 = vunpack.c.0.s8 %v955
  %v957 = vlaneseq
  %v958 = vshrl.u32 %v957, 7
  %v959 = vsub.s32 %v956, %v958
  %v960 = vrot.slane %v946, %v959
  %v961 = vcombine.high %v953, %v953
  %v962 = vcombine.high %v960, %v960
  %v964 = vunpack.c.l.s4 1966171168
  %v965 = vunpack.c.0.s8 %v964
  %v966 = vlaneseq
  %v967 = vshrl.u32 %v966, 7
  %v968 = vsub.s32 %v965, %v967
  %v969 = vrot.slane %v953, %v968
  %v971 = vunpack.c.l.s4 1966171168
  %v972 = vunpack.c.0.s8 %v971
  %v973 = vlaneseq
  %v974 = vshrl.u32 %v973, 7
  %v975 = vsub.s32 %v972, %v974
  %v976 = vrot.slane %v960, %v975
  %v978 = vunpack.c.l.s4 1966171168
  %v979 = vunpack.c.0.s8 %v978
  %v980 = vlaneseq
  %v981 = vshrl.u32 %v980, 7
  %v982 = vsub.s32 %v979, %v981
  %v983 = vrot.slane %v961, %v982
  %v985 = vunpack.c.l.s4 1966171168
  %v986 = vunpack.c.0.s8 %v985
  %v987 = vlaneseq
  %v988 = vshrl.u32 %v987, 7
  %v989 = vsub.s32 %v986, %v988
  %v990 = vrot.slane %v962, %v989
  %v991 = vcombine.high %v969, %v969
  %v992 = vcombine.high %v976, %v976
  %v993 = vcombine.high %v983, %v983
  %v994 = vcombine.high %v990, %v990
  %v995 = vlaneseq
  %v996 = vshrl.u32 %v995, 7
  %v997 = vsub.s32 0, %v996
  %v998 = vrot.slane %v920, %v997
  %v999 = vlaneseq
  %v1000 = vshrl.u32 %v999, 7
  %v1001 = vsub.s32 0, %v1000
  %v1002 = vrot.slane %v934, %v1001
  %v1003 = vlaneseq
  %v1004 = vshrl.u32 %v1003, 7
  %v1005 = vsub.s32 0, %v1004
  %v1006 = vrot.slane %v942, %v1005
  %v1007 = vlaneseq
  %v1008 = vshrl.u32 %v1007, 7
  %v1009 = vsub.s32 0, %v1008
  %v1010 = vrot.slane %v944, %v1009
  %v1011 = vlaneseq
  %v1012 = vshrl.u32 %v1011, 7
  %v1013 = vsub.s32 0, %v1012
  %v1014 = vrot.slane %v927, %v1013
  %v1015 = vlaneseq
  %v1016 = vshrl.u32 %v1015, 7
  %v1017 = vsub.s32 0, %v1016
  %v1018 = vrot.slane %v941, %v1017
  %v1019 = vlaneseq
  %v1020 = vshrl.u32 %v1019, 7
  %v1021 = vsub.s32 0, %v1020
  %v1022 = vrot.slane %v943, %v1021
  %v1023 = vlaneseq
  %v1024 = vshrl.u32 %v1023, 7
  %v1025 = vsub.s32 0, %v1024
  %v1026 = vrot.slane %v945, %v1025
  %v1027 = vlaneseq
  %v1028 = vshrl.u32 %v1027, 7
  %v1029 = vsub.s32 0, %v1028
  %v1030 = vrot.slane %v969, %v1029
  %v1031 = vlaneseq
  %v1032 = vshrl.u32 %v1031, 7
  %v1033 = vsub.s32 0, %v1032
  %v1034 = vrot.slane %v983, %v1033
  %v1035 = vlaneseq
  %v1036 = vshrl.u32 %v1035, 7
  %v1037 = vsub.s32 0, %v1036
  %v1038 = vrot.slane %v991, %v1037
  %v1039 = vlaneseq
  %v1040 = vshrl.u32 %v1039, 7
  %v1041 = vsub.s32 0, %v1040
  %v1042 = vrot.slane %v993, %v1041
  %v1043 = vlaneseq
  %v1044 = vshrl.u32 %v1043, 7
  %v1045 = vsub.s32 0, %v1044
  %v1046 = vrot.slane %v976, %v1045
  %v1047 = vlaneseq
  %v1048 = vshrl.u32 %v1047, 7
  %v1049 = vsub.s32 0, %v1048
  %v1050 = vrot.slane %v990, %v1049
  %v1051 = vlaneseq
  %v1052 = vshrl.u32 %v1051, 7
  %v1053 = vsub.s32 0, %v1052
  %v1054 = vrot.slane %v992, %v1053
  %v1055 = vlaneseq
  %v1056 = vshrl.u32 %v1055, 7
  %v1057 = vsub.s32 0, %v1056
  %v1058 = vrot.slane %v994, %v1057
  %1075 = vrot.lane.b32.xlu0 %v717, 64
  %v1076 = vpop.permute.xlu0 %1075
  %1077 = vrot.lane.b32.xlu0 %v720, 64
  %v1078 = vpop.permute.xlu0 %1077
  %v1081 = vadd.f32 %v998, %v1076
  %v1082 = vadd.f32 %v998, %v1078
  %v1083 = vadd.f32 %v1002, %v1076
  %v1084 = vadd.f32 %v1002, %v1078
  %v1085 = vadd.f32 %v1006, %v1076
  %v1086 = vadd.f32 %v1006, %v1078
  %v1087 = vadd.f32 %v1010, %v1076
  %v1088 = vadd.f32 %v1010, %v1078
  %v1089 = vadd.f32 %v1014, %v1076
  %v1090 = vadd.f32 %v1014, %v1078
  %v1091 = vadd.f32 %v1018, %v1076
  %v1092 = vadd.f32 %v1018, %v1078
  %v1093 = vadd.f32 %v1022, %v1076
  %v1094 = vadd.f32 %v1022, %v1078
  %v1095 = vadd.f32 %v1026, %v1076
  %v1096 = vadd.f32 %v1026, %v1078
  %v1097 = vadd.f32 %v1030, %v1076
  %v1098 = vadd.f32 %v1030, %v1078
  %v1099 = vadd.f32 %v1034, %v1076
  %v1100 = vadd.f32 %v1034, %v1078
  %v1101 = vadd.f32 %v1038, %v1076
  %v1102 = vadd.f32 %v1038, %v1078
  %v1103 = vadd.f32 %v1042, %v1076
  %v1104 = vadd.f32 %v1042, %v1078
  %v1105 = vadd.f32 %v1046, %v1076
  %v1106 = vadd.f32 %v1046, %v1078
  %v1107 = vadd.f32 %v1050, %v1076
  %v1108 = vadd.f32 %v1050, %v1078
  %v1109 = vadd.f32 %v1054, %v1076
  %v1110 = vadd.f32 %v1054, %v1078
  %v1111 = vadd.f32 %v1058, %v1076
  %v1112 = vadd.f32 %v1058, %v1078
  %1145 = vrot.lane.b32.xlu0 %v863, 64
  %v1146 = vpop.permute.xlu0 %1145
  %1147 = vrot.lane.b32.xlu0 %v864, 64
  %v1148 = vpop.permute.xlu0 %1147
  %1149 = vrot.lane.b32.xlu0 %v865, 64
  %v1150 = vpop.permute.xlu0 %1149
  %1151 = vrot.lane.b32.xlu0 %v866, 64
  %v1152 = vpop.permute.xlu0 %1151
  %1153 = vrot.lane.b32.xlu0 %v867, 64
  %v1154 = vpop.permute.xlu0 %1153
  %1155 = vrot.lane.b32.xlu0 %v868, 64
  %v1156 = vpop.permute.xlu0 %1155
  %1157 = vrot.lane.b32.xlu0 %v869, 64
  %v1158 = vpop.permute.xlu0 %1157
  %1159 = vrot.lane.b32.xlu0 %v870, 64
  %v1160 = vpop.permute.xlu0 %1159
  %1161 = vrot.lane.b32.xlu0 %v871, 64
  %v1162 = vpop.permute.xlu0 %1161
  %1163 = vrot.lane.b32.xlu0 %v872, 64
  %v1164 = vpop.permute.xlu0 %1163
  %1165 = vrot.lane.b32.xlu0 %v873, 64
  %v1166 = vpop.permute.xlu0 %1165
  %1167 = vrot.lane.b32.xlu0 %v874, 64
  %v1168 = vpop.permute.xlu0 %1167
  %1169 = vrot.lane.b32.xlu0 %v875, 64
  %v1170 = vpop.permute.xlu0 %1169
  %1171 = vrot.lane.b32.xlu0 %v876, 64
  %v1172 = vpop.permute.xlu0 %1171
  %1173 = vrot.lane.b32.xlu0 %v877, 64
  %v1174 = vpop.permute.xlu0 %1173
  %1175 = vrot.lane.b32.xlu0 %v878, 64
  %v1176 = vpop.permute.xlu0 %1175
  %1177 = vrot.lane.b32.xlu0 %v879, 64
  %v1178 = vpop.permute.xlu0 %1177
  %1179 = vrot.lane.b32.xlu0 %v880, 64
  %v1180 = vpop.permute.xlu0 %1179
  %1181 = vrot.lane.b32.xlu0 %v881, 64
  %v1182 = vpop.permute.xlu0 %1181
  %1183 = vrot.lane.b32.xlu0 %v882, 64
  %v1184 = vpop.permute.xlu0 %1183
  %1185 = vrot.lane.b32.xlu0 %v883, 64
  %v1186 = vpop.permute.xlu0 %1185
  %1187 = vrot.lane.b32.xlu0 %v884, 64
  %v1188 = vpop.permute.xlu0 %1187
  %1189 = vrot.lane.b32.xlu0 %v885, 64
  %v1190 = vpop.permute.xlu0 %1189
  %1191 = vrot.lane.b32.xlu0 %v886, 64
  %v1192 = vpop.permute.xlu0 %1191
  %1193 = vrot.lane.b32.xlu0 %v887, 64
  %v1194 = vpop.permute.xlu0 %1193
  %1195 = vrot.lane.b32.xlu0 %v888, 64
  %v1196 = vpop.permute.xlu0 %1195
  %1197 = vrot.lane.b32.xlu0 %v889, 64
  %v1198 = vpop.permute.xlu0 %1197
  %1199 = vrot.lane.b32.xlu0 %v890, 64
  %v1200 = vpop.permute.xlu0 %1199
  %1201 = vrot.lane.b32.xlu0 %v891, 64
  %v1202 = vpop.permute.xlu0 %1201
  %1203 = vrot.lane.b32.xlu0 %v892, 64
  %v1204 = vpop.permute.xlu0 %1203
  %1205 = vrot.lane.b32.xlu0 %v893, 64
  %v1206 = vpop.permute.xlu0 %1205
  %1207 = vrot.lane.b32.xlu0 %v894, 64
  %v1208 = vpop.permute.xlu0 %1207
  %v1241 = vadd.f32 %v1081, %v1146
  %v1242 = vadd.f32 %v1082, %v1148
  %v1243 = vadd.f32 %v1083, %v1150
  %v1244 = vadd.f32 %v1084, %v1152
  %v1245 = vadd.f32 %v1085, %v1154
  %v1246 = vadd.f32 %v1086, %v1156
  %v1247 = vadd.f32 %v1087, %v1158
  %v1248 = vadd.f32 %v1088, %v1160
  %v1249 = vadd.f32 %v1089, %v1162
  %v1250 = vadd.f32 %v1090, %v1164
  %v1251 = vadd.f32 %v1091, %v1166
  %v1252 = vadd.f32 %v1092, %v1168
  %v1253 = vadd.f32 %v1093, %v1170
  %v1254 = vadd.f32 %v1094, %v1172
  %v1255 = vadd.f32 %v1095, %v1174
  %v1256 = vadd.f32 %v1096, %v1176
  %v1257 = vadd.f32 %v1097, %v1178
  %v1258 = vadd.f32 %v1098, %v1180
  %v1259 = vadd.f32 %v1099, %v1182
  %v1260 = vadd.f32 %v1100, %v1184
  %v1261 = vadd.f32 %v1101, %v1186
  %v1262 = vadd.f32 %v1102, %v1188
  %v1263 = vadd.f32 %v1103, %v1190
  %v1264 = vadd.f32 %v1104, %v1192
  %v1265 = vadd.f32 %v1105, %v1194
  %v1266 = vadd.f32 %v1106, %v1196
  %v1267 = vadd.f32 %v1107, %v1198
  %v1268 = vadd.f32 %v1108, %v1200
  %v1269 = vadd.f32 %v1109, %v1202
  %v1270 = vadd.f32 %v1110, %v1204
  %v1271 = vadd.f32 %v1111, %v1206
  %v1272 = vadd.f32 %v1112, %v1208
  %v1273 = vmul.f32 %v1241, 0.2
  %v1274 = vmul.f32 %v1242, 0.2
  %v1275 = vmul.f32 %v1243, 0.2
  %v1276 = vmul.f32 %v1244, 0.2
  %v1277 = vmul.f32 %v1245, 0.2
  %v1278 = vmul.f32 %v1246, 0.2
  %v1279 = vmul.f32 %v1247, 0.2
  %v1280 = vmul.f32 %v1248, 0.2
  %v1281 = vmul.f32 %v1249, 0.2
  %v1282 = vmul.f32 %v1250, 0.2
  %v1283 = vmul.f32 %v1251, 0.2
  %v1284 = vmul.f32 %v1252, 0.2
  %v1285 = vmul.f32 %v1253, 0.2
  %v1286 = vmul.f32 %v1254, 0.2
  %v1287 = vmul.f32 %v1255, 0.2
  %v1288 = vmul.f32 %v1256, 0.2
  %v1289 = vmul.f32 %v1257, 0.2
  %v1290 = vmul.f32 %v1258, 0.2
  %v1291 = vmul.f32 %v1259, 0.2
  %v1292 = vmul.f32 %v1260, 0.2
  %v1293 = vmul.f32 %v1261, 0.2
  %v1294 = vmul.f32 %v1262, 0.2
  %v1295 = vmul.f32 %v1263, 0.2
  %v1296 = vmul.f32 %v1264, 0.2
  %v1297 = vmul.f32 %v1265, 0.2
  %v1298 = vmul.f32 %v1266, 0.2
  %v1299 = vmul.f32 %v1267, 0.2
  %v1300 = vmul.f32 %v1268, 0.2
  %v1301 = vmul.f32 %v1269, 0.2
  %v1302 = vmul.f32 %v1270, 0.2
  %v1303 = vmul.f32 %v1271, 0.2
  %v1304 = vmul.f32 %v1272, 0.2
  %v1305 = vmax.f32 %v1241, %v1273
  %v1306 = vmax.f32 %v1242, %v1274
  %v1307 = vmax.f32 %v1243, %v1275
  %v1308 = vmax.f32 %v1244, %v1276
  %v1309 = vmax.f32 %v1245, %v1277
  %v1310 = vmax.f32 %v1246, %v1278
  %v1311 = vmax.f32 %v1247, %v1279
  %v1312 = vmax.f32 %v1248, %v1280
  %v1313 = vmax.f32 %v1249, %v1281
  %v1314 = vmax.f32 %v1250, %v1282
  %v1315 = vmax.f32 %v1251, %v1283
  %v1316 = vmax.f32 %v1252, %v1284
  %v1317 = vmax.f32 %v1253, %v1285
  %v1318 = vmax.f32 %v1254, %v1286
  %v1319 = vmax.f32 %v1255, %v1287
  %v1320 = vmax.f32 %v1256, %v1288
  %v1321 = vmax.f32 %v1257, %v1289
  %v1322 = vmax.f32 %v1258, %v1290
  %v1323 = vmax.f32 %v1259, %v1291
  %v1324 = vmax.f32 %v1260, %v1292
  %v1325 = vmax.f32 %v1261, %v1293
  %v1326 = vmax.f32 %v1262, %v1294
  %v1327 = vmax.f32 %v1263, %v1295
  %v1328 = vmax.f32 %v1264, %v1296
  %v1329 = vmax.f32 %v1265, %v1297
  %v1330 = vmax.f32 %v1266, %v1298
  %v1331 = vmax.f32 %v1267, %v1299
  %v1332 = vmax.f32 %v1268, %v1300
  %v1333 = vmax.f32 %v1269, %v1301
  %v1334 = vmax.f32 %v1270, %v1302
  %v1335 = vmax.f32 %v1271, %v1303
  %v1336 = vmax.f32 %v1272, %v1304
  %v1337 = vpack.c.bf16 %v1306, %v1305
  %v1338 = vpack.c.bf16 %v1308, %v1307
  %v1339 = vpack.c.bf16 %v1310, %v1309
  %v1340 = vpack.c.bf16 %v1312, %v1311
  %v1341 = vpack.c.bf16 %v1314, %v1313
  %v1342 = vpack.c.bf16 %v1316, %v1315
  %v1343 = vpack.c.bf16 %v1318, %v1317
  %v1344 = vpack.c.bf16 %v1320, %v1319
  %v1345 = vpack.c.bf16 %v1322, %v1321
  %v1346 = vpack.c.bf16 %v1324, %v1323
  %v1347 = vpack.c.bf16 %v1326, %v1325
  %v1348 = vpack.c.bf16 %v1328, %v1327
  %v1349 = vpack.c.bf16 %v1330, %v1329
  %v1350 = vpack.c.bf16 %v1332, %v1331
  %v1351 = vpack.c.bf16 %v1334, %v1333
  %v1352 = vpack.c.bf16 %v1336, %v1335
  %1369 = vrot.lane.b32.xlu0 %v1337, 64
  %v1370 = vpop.permute.xlu0 %1369
  %1371 = vrot.lane.b32.xlu0 %v1338, 64
  %v1372 = vpop.permute.xlu0 %1371
  %1373 = vrot.lane.b32.xlu0 %v1339, 64
  %v1374 = vpop.permute.xlu0 %1373
  %1375 = vrot.lane.b32.xlu0 %v1340, 64
  %v1376 = vpop.permute.xlu0 %1375
  %1377 = vrot.lane.b32.xlu0 %v1341, 64
  %v1378 = vpop.permute.xlu0 %1377
  %1379 = vrot.lane.b32.xlu0 %v1342, 64
  %v1380 = vpop.permute.xlu0 %1379
  %1381 = vrot.lane.b32.xlu0 %v1343, 64
  %v1382 = vpop.permute.xlu0 %1381
  %1383 = vrot.lane.b32.xlu0 %v1344, 64
  %v1384 = vpop.permute.xlu0 %1383
  %1385 = vrot.lane.b32.xlu0 %v1345, 64
  %v1386 = vpop.permute.xlu0 %1385
  %1387 = vrot.lane.b32.xlu0 %v1346, 64
  %v1388 = vpop.permute.xlu0 %1387
  %1389 = vrot.lane.b32.xlu0 %v1347, 64
  %v1390 = vpop.permute.xlu0 %1389
  %1391 = vrot.lane.b32.xlu0 %v1348, 64
  %v1392 = vpop.permute.xlu0 %1391
  %1393 = vrot.lane.b32.xlu0 %v1349, 64
  %v1394 = vpop.permute.xlu0 %1393
  %1395 = vrot.lane.b32.xlu0 %v1350, 64
  %v1396 = vpop.permute.xlu0 %1395
  %1397 = vrot.lane.b32.xlu0 %v1351, 64
  %v1398 = vpop.permute.xlu0 %1397
  %1399 = vrot.lane.b32.xlu0 %v1352, 64
  %v1400 = vpop.permute.xlu0 %1399
  %v1409 = vunpack.c.l.b16 %v657
  %v1410 = vunpack.c.l.b16 %v658
  %v1411 = vunpack.c.l.b16 %v659
  %v1412 = vunpack.c.l.b16 %v660
  %v1413 = vunpack.c.l.b16 %v661
  %v1414 = vunpack.c.l.b16 %v662
  %v1415 = vunpack.c.l.b16 %v663
  %v1416 = vunpack.c.l.b16 %v664
  %v1417 = vpack.c.b16 %v1410, %v1409
  %v1418 = vpack.c.b16 %v1412, %v1411
  %v1419 = vpack.c.b16 %v1414, %v1413
  %v1420 = vpack.c.b16 %v1416, %v1415
  %vm1425 = vcmask 523264
  %v1427 = vsel %vm1425, %v1370, 0
  %v1430 = vsel %vm1425, %v1372, 0
  %v1433 = vsel %vm1425, %v1374, 0
  %v1436 = vsel %vm1425, %v1376, 0
  %v1439 = vsel %vm1425, %v1378, 0
  %v1442 = vsel %vm1425, %v1380, 0
  %v1445 = vsel %vm1425, %v1382, 0
  %v1448 = vsel %vm1425, %v1384, 0
  %v1451 = vsel %vm1425, %v1386, 0
  %v1454 = vsel %vm1425, %v1388, 0
  %v1457 = vsel %vm1425, %v1390, 0
  %v1460 = vsel %vm1425, %v1392, 0
  %v1463 = vsel %vm1425, %v1394, 0
  %v1466 = vsel %vm1425, %v1396, 0
  %v1469 = vsel %vm1425, %v1398, 0
  %v1472 = vsel %vm1425, %v1400, 0
  %1474 = vmatprep.subr.bf16.mxu0 0
  %1475 = vmatpush1.bf16.msra.mxu0 0
  %1476 = vmatprep.subr.bf16.mxu0 0
  %1477 = vmatpush1.bf16.msra.mxu0 0
  %1478 = vmatprep.subr.bf16.mxu0 0
  %1479 = vmatpush1.bf16.msra.mxu0 0
  %1480 = vmatprep.subr.bf16.mxu0 0
  %1481 = vmatpush1.bf16.msra.mxu0 0
  %1482 = vmatprep.subr.bf16.mxu0 0
  %1483 = vmatpush1.bf16.msra.mxu0 %v1420
  %1484 = vmatprep.subr.bf16.mxu0 0
  %1485 = vmatpush1.bf16.msra.mxu0 %v1419
  %1486 = vmatprep.subr.bf16.mxu0 0
  %1487 = vmatpush1.bf16.msra.mxu0 %v1418
  %1488 = vmatprep.subr.bf16.mxu0 0
  %1489 = vmatpush1.bf16.msra.mxu0 %v1417
  %1490 = vmatprep.subr.bf16.mxu0 0
  %1491 = vmatpush2.bf16.msra.mxu0 0
  %1492 = vmatprep.subr.bf16.mxu0 0
  %1493 = vmatpush2.bf16.msra.mxu0 0
  %1494 = vmatprep.subr.bf16.mxu0 0
  %1495 = vmatpush2.bf16.msra.mxu0 0
  %1496 = vmatprep.subr.bf16.mxu0 0
  %1497 = vmatpush2.bf16.msra.mxu0 0
  %1498 = vmatprep.subr.bf16.mxu0 0
  %1499 = vmatpush2.bf16.msra.mxu0 0
  %1500 = vmatprep.subr.bf16.mxu0 0
  %1501 = vmatpush2.bf16.msra.mxu0 0
  %1502 = vmatprep.subr.bf16.mxu0 0
  %1503 = vmatpush2.bf16.msra.mxu0 0
  %1504 = vmatprep.subr.bf16.mxu0 0
  %1505 = vmatpush2.bf16.msra.mxu0 0
  %1506 = vmatprep.mubr.bf16.mxu0 0
  %1507 = vmatmul.mubr.bf16.gmra.mxu0 %v1427
  %v1508 = vpop.f32.mrf.mxu0
  %v1509 = vadd.f32 0.0, %v1508
  %v1510 = vpop.f32.mrf.mxu0
  %v1511 = vpop.f32.mrf.mxu0
  %v1512 = vadd.f32 0.0, %v1511
  %v1513 = vpop.f32.mrf.mxu0
  %1514 = vmatprep.mubr.bf16.mxu0 0
  %1515 = vmatmul.mubr.bf16.gmra.mxu0 %v1430
  %v1516 = vpop.f32.mrf.mxu0
  %v1517 = vadd.f32 0.0, %v1516
  %v1518 = vpop.f32.mrf.mxu0
  %v1519 = vpop.f32.mrf.mxu0
  %v1520 = vadd.f32 0.0, %v1519
  %v1521 = vpop.f32.mrf.mxu0
  %1522 = vmatprep.mubr.bf16.mxu0 0
  %1523 = vmatmul.mubr.bf16.gmra.mxu0 %v1433
  %v1524 = vpop.f32.mrf.mxu0
  %v1525 = vadd.f32 0.0, %v1524
  %v1526 = vpop.f32.mrf.mxu0
  %v1527 = vpop.f32.mrf.mxu0
  %v1528 = vadd.f32 0.0, %v1527
  %v1529 = vpop.f32.mrf.mxu0
  %1530 = vmatprep.mubr.bf16.mxu0 0
  %1531 = vmatmul.mubr.bf16.gmra.mxu0 %v1436
  %v1532 = vpop.f32.mrf.mxu0
  %v1533 = vadd.f32 0.0, %v1532
  %v1534 = vpop.f32.mrf.mxu0
  %v1535 = vpop.f32.mrf.mxu0
  %v1536 = vadd.f32 0.0, %v1535
  %v1537 = vpop.f32.mrf.mxu0
  %1538 = vmatprep.mubr.bf16.mxu0 0
  %1539 = vmatmul.mubr.bf16.gmra.mxu0 %v1439
  %v1540 = vpop.f32.mrf.mxu0
  %v1541 = vadd.f32 0.0, %v1540
  %v1542 = vpop.f32.mrf.mxu0
  %v1543 = vpop.f32.mrf.mxu0
  %v1544 = vadd.f32 0.0, %v1543
  %v1545 = vpop.f32.mrf.mxu0
  %1546 = vmatprep.mubr.bf16.mxu0 0
  %1547 = vmatmul.mubr.bf16.gmra.mxu0 %v1442
  %v1548 = vpop.f32.mrf.mxu0
  %v1549 = vadd.f32 0.0, %v1548
  %v1550 = vpop.f32.mrf.mxu0
  %v1551 = vpop.f32.mrf.mxu0
  %v1552 = vadd.f32 0.0, %v1551
  %v1553 = vpop.f32.mrf.mxu0
  %1554 = vmatprep.mubr.bf16.mxu0 0
  %1555 = vmatmul.mubr.bf16.gmra.mxu0 %v1445
  %v1556 = vpop.f32.mrf.mxu0
  %v1557 = vadd.f32 0.0, %v1556
  %v1558 = vpop.f32.mrf.mxu0
  %v1559 = vpop.f32.mrf.mxu0
  %v1560 = vadd.f32 0.0, %v1559
  %v1561 = vpop.f32.mrf.mxu0
  %1562 = vmatprep.mubr.bf16.mxu0 0
  %1563 = vmatmul.mubr.bf16.gmra.mxu0 %v1448
  %v1564 = vpop.f32.mrf.mxu0
  %v1565 = vadd.f32 0.0, %v1564
  %v1566 = vpop.f32.mrf.mxu0
  %v1567 = vpop.f32.mrf.mxu0
  %v1568 = vadd.f32 0.0, %v1567
  %v1569 = vpop.f32.mrf.mxu0
  %1570 = vmatprep.mubr.bf16.mxu0 0
  %1571 = vmatmul.mubr.bf16.gmra.mxu0 %v1451
  %v1572 = vpop.f32.mrf.mxu0
  %v1573 = vadd.f32 0.0, %v1572
  %v1574 = vpop.f32.mrf.mxu0
  %v1575 = vpop.f32.mrf.mxu0
  %v1576 = vadd.f32 0.0, %v1575
  %v1577 = vpop.f32.mrf.mxu0
  %1578 = vmatprep.mubr.bf16.mxu0 0
  %1579 = vmatmul.mubr.bf16.gmra.mxu0 %v1454
  %v1580 = vpop.f32.mrf.mxu0
  %v1581 = vadd.f32 0.0, %v1580
  %v1582 = vpop.f32.mrf.mxu0
  %v1583 = vpop.f32.mrf.mxu0
  %v1584 = vadd.f32 0.0, %v1583
  %v1585 = vpop.f32.mrf.mxu0
  %1586 = vmatprep.mubr.bf16.mxu0 0
  %1587 = vmatmul.mubr.bf16.gmra.mxu0 %v1457
  %v1588 = vpop.f32.mrf.mxu0
  %v1589 = vadd.f32 0.0, %v1588
  %v1590 = vpop.f32.mrf.mxu0
  %v1591 = vpop.f32.mrf.mxu0
  %v1592 = vadd.f32 0.0, %v1591
  %v1593 = vpop.f32.mrf.mxu0
  %1594 = vmatprep.mubr.bf16.mxu0 0
  %1595 = vmatmul.mubr.bf16.gmra.mxu0 %v1460
  %v1596 = vpop.f32.mrf.mxu0
  %v1597 = vadd.f32 0.0, %v1596
  %v1598 = vpop.f32.mrf.mxu0
  %v1599 = vpop.f32.mrf.mxu0
  %v1600 = vadd.f32 0.0, %v1599
  %v1601 = vpop.f32.mrf.mxu0
  %1602 = vmatprep.mubr.bf16.mxu0 0
  %1603 = vmatmul.mubr.bf16.gmra.mxu0 %v1463
  %v1604 = vpop.f32.mrf.mxu0
  %v1605 = vadd.f32 0.0, %v1604
  %v1606 = vpop.f32.mrf.mxu0
  %v1607 = vpop.f32.mrf.mxu0
  %v1608 = vadd.f32 0.0, %v1607
  %v1609 = vpop.f32.mrf.mxu0
  %1610 = vmatprep.mubr.bf16.mxu0 0
  %1611 = vmatmul.mubr.bf16.gmra.mxu0 %v1466
  %v1612 = vpop.f32.mrf.mxu0
  %v1613 = vadd.f32 0.0, %v1612
  %v1614 = vpop.f32.mrf.mxu0
  %v1615 = vpop.f32.mrf.mxu0
  %v1616 = vadd.f32 0.0, %v1615
  %v1617 = vpop.f32.mrf.mxu0
  %1618 = vmatprep.mubr.bf16.mxu0 0
  %1619 = vmatmul.mubr.bf16.gmra.mxu0 %v1469
  %v1620 = vpop.f32.mrf.mxu0
  %v1621 = vadd.f32 0.0, %v1620
  %v1622 = vpop.f32.mrf.mxu0
  %v1623 = vpop.f32.mrf.mxu0
  %v1624 = vadd.f32 0.0, %v1623
  %v1625 = vpop.f32.mrf.mxu0
  %1626 = vmatprep.mubr.bf16.mxu0 0
  %1627 = vmatmul.mubr.bf16.gmra.mxu0 %v1472
  %v1628 = vpop.f32.mrf.mxu0
  %v1629 = vadd.f32 0.0, %v1628
  %v1630 = vpop.f32.mrf.mxu0
  %v1631 = vpop.f32.mrf.mxu0
  %v1632 = vadd.f32 0.0, %v1631
  %v1633 = vpop.f32.mrf.mxu0
  %1634 = vdwg.mxu0
  %1635 = vxpose.xlu0.b32.start [1/16] %v1509, 128
  %1636 = vxpose.xlu0.b32.cont [2/16] %v1512, 128
  %1637 = vxpose.xlu0.b32.cont [3/16] 0.0, 128
  %1638 = vxpose.xlu0.b32.cont [4/16] 0.0, 128
  %1639 = vxpose.xlu0.b32.cont [5/16] 0.0, 128
  %1640 = vxpose.xlu0.b32.cont [6/16] 0.0, 128
  %1641 = vxpose.xlu0.b32.cont [7/16] 0.0, 128
  %1642 = vxpose.xlu0.b32.cont [8/16] 0.0, 128
  %1643 = vxpose.xlu0.b32.cont [9/16] 0.0, 128
  %1644 = vxpose.xlu0.b32.cont [10/16] 0.0, 128
  %1645 = vxpose.xlu0.b32.cont [11/16] 0.0, 128
  %1646 = vxpose.xlu0.b32.cont [12/16] 0.0, 128
  %1647 = vxpose.xlu0.b32.cont [13/16] 0.0, 128
  %1648 = vxpose.xlu0.b32.cont [14/16] 0.0, 128
  %1649 = vxpose.xlu0.b32.cont [15/16] 0.0, 128
  %1650 = vxpose.xlu0.b32.end [16/16] 0.0, 128
  %v1651 = vpop.trf.xlu0
  %v1652 = vpop.trf.xlu0
  %v1653 = vpop.trf.xlu0
  %v1654 = vpop.trf.xlu0
  %v1655 = vpop.trf.xlu0
  %v1656 = vpop.trf.xlu0
  %v1657 = vpop.trf.xlu0
  %v1658 = vpop.trf.xlu0
  %v1659 = vpop.trf.xlu0
  %v1660 = vpop.trf.xlu0
  %v1661 = vpop.trf.xlu0
  %v1662 = vpop.trf.xlu0
  %v1663 = vpop.trf.xlu0
  %v1664 = vpop.trf.xlu0
  %v1665 = vpop.trf.xlu0
  %v1666 = vpop.trf.xlu0
  %1667 = vxpose.xlu0.b32.start [1/16] %v1517, 128
  %1668 = vxpose.xlu0.b32.cont [2/16] %v1520, 128
  %1669 = vxpose.xlu0.b32.cont [3/16] 0.0, 128
  %1670 = vxpose.xlu0.b32.cont [4/16] 0.0, 128
  %1671 = vxpose.xlu0.b32.cont [5/16] 0.0, 128
  %1672 = vxpose.xlu0.b32.cont [6/16] 0.0, 128
  %1673 = vxpose.xlu0.b32.cont [7/16] 0.0, 128
  %1674 = vxpose.xlu0.b32.cont [8/16] 0.0, 128
  %1675 = vxpose.xlu0.b32.cont [9/16] 0.0, 128
  %1676 = vxpose.xlu0.b32.cont [10/16] 0.0, 128
  %1677 = vxpose.xlu0.b32.cont [11/16] 0.0, 128
  %1678 = vxpose.xlu0.b32.cont [12/16] 0.0, 128
  %1679 = vxpose.xlu0.b32.cont [13/16] 0.0, 128
  %1680 = vxpose.xlu0.b32.cont [14/16] 0.0, 128
  %1681 = vxpose.xlu0.b32.cont [15/16] 0.0, 128
  %1682 = vxpose.xlu0.b32.end [16/16] 0.0, 128
  %v1683 = vpop.trf.xlu0
  %v1684 = vpop.trf.xlu0
  %v1685 = vpop.trf.xlu0
  %v1686 = vpop.trf.xlu0
  %v1687 = vpop.trf.xlu0
  %v1688 = vpop.trf.xlu0
  %v1689 = vpop.trf.xlu0
  %v1690 = vpop.trf.xlu0
  %v1691 = vpop.trf.xlu0
  %v1692 = vpop.trf.xlu0
  %v1693 = vpop.trf.xlu0
  %v1694 = vpop.trf.xlu0
  %v1695 = vpop.trf.xlu0
  %v1696 = vpop.trf.xlu0
  %v1697 = vpop.trf.xlu0
  %v1698 = vpop.trf.xlu0
  %1699 = vxpose.xlu0.b32.start [1/16] %v1525, 128
  %1700 = vxpose.xlu0.b32.cont [2/16] %v1528, 128
  %1701 = vxpose.xlu0.b32.cont [3/16] 0.0, 128
  %1702 = vxpose.xlu0.b32.cont [4/16] 0.0, 128
  %1703 = vxpose.xlu0.b32.cont [5/16] 0.0, 128
  %1704 = vxpose.xlu0.b32.cont [6/16] 0.0, 128
  %1705 = vxpose.xlu0.b32.cont [7/16] 0.0, 128
  %1706 = vxpose.xlu0.b32.cont [8/16] 0.0, 128
  %1707 = vxpose.xlu0.b32.cont [9/16] 0.0, 128
  %1708 = vxpose.xlu0.b32.cont [10/16] 0.0, 128
  %1709 = vxpose.xlu0.b32.cont [11/16] 0.0, 128
  %1710 = vxpose.xlu0.b32.cont [12/16] 0.0, 128
  %1711 = vxpose.xlu0.b32.cont [13/16] 0.0, 128
  %1712 = vxpose.xlu0.b32.cont [14/16] 0.0, 128
  %1713 = vxpose.xlu0.b32.cont [15/16] 0.0, 128
  %1714 = vxpose.xlu0.b32.end [16/16] 0.0, 128
  %v1715 = vpop.trf.xlu0
  %v1716 = vpop.trf.xlu0
  %v1717 = vpop.trf.xlu0
  %v1718 = vpop.trf.xlu0
  %v1719 = vpop.trf.xlu0
  %v1720 = vpop.trf.xlu0
  %v1721 = vpop.trf.xlu0
  %v1722 = vpop.trf.xlu0
  %v1723 = vpop.trf.xlu0
  %v1724 = vpop.trf.xlu0
  %v1725 = vpop.trf.xlu0
  %v1726 = vpop.trf.xlu0
  %v1727 = vpop.trf.xlu0
  %v1728 = vpop.trf.xlu0
  %v1729 = vpop.trf.xlu0
  %v1730 = vpop.trf.xlu0
  %1731 = vxpose.xlu0.b32.start [1/16] %v1533, 128
  %1732 = vxpose.xlu0.b32.cont [2/16] %v1536, 128
  %1733 = vxpose.xlu0.b32.cont [3/16] 0.0, 128
  %1734 = vxpose.xlu0.b32.cont [4/16] 0.0, 128
  %1735 = vxpose.xlu0.b32.cont [5/16] 0.0, 128
  %1736 = vxpose.xlu0.b32.cont [6/16] 0.0, 128
  %1737 = vxpose.xlu0.b32.cont [7/16] 0.0, 128
  %1738 = vxpose.xlu0.b32.cont [8/16] 0.0, 128
  %1739 = vxpose.xlu0.b32.cont [9/16] 0.0, 128
  %1740 = vxpose.xlu0.b32.cont [10/16] 0.0, 128
  %1741 = vxpose.xlu0.b32.cont [11/16] 0.0, 128
  %1742 = vxpose.xlu0.b32.cont [12/16] 0.0, 128
  %1743 = vxpose.xlu0.b32.cont [13/16] 0.0, 128
  %1744 = vxpose.xlu0.b32.cont [14/16] 0.0, 128
  %1745 = vxpose.xlu0.b32.cont [15/16] 0.0, 128
  %1746 = vxpose.xlu0.b32.end [16/16] 0.0, 128
  %v1747 = vpop.trf.xlu0
  %v1748 = vpop.trf.xlu0
  %v1749 = vpop.trf.xlu0
  %v1750 = vpop.trf.xlu0
  %v1751 = vpop.trf.xlu0
  %v1752 = vpop.trf.xlu0
  %v1753 = vpop.trf.xlu0
  %v1754 = vpop.trf.xlu0
  %v1755 = vpop.trf.xlu0
  %v1756 = vpop.trf.xlu0
  %v1757 = vpop.trf.xlu0
  %v1758 = vpop.trf.xlu0
  %v1759 = vpop.trf.xlu0
  %v1760 = vpop.trf.xlu0
  %v1761 = vpop.trf.xlu0
  %v1762 = vpop.trf.xlu0
  %1763 = vxpose.xlu0.b32.start [1/16] %v1541, 128
  %1764 = vxpose.xlu0.b32.cont [2/16] %v1544, 128
  %1765 = vxpose.xlu0.b32.cont [3/16] 0.0, 128
  %1766 = vxpose.xlu0.b32.cont [4/16] 0.0, 128
  %1767 = vxpose.xlu0.b32.cont [5/16] 0.0, 128
  %1768 = vxpose.xlu0.b32.cont [6/16] 0.0, 128
  %1769 = vxpose.xlu0.b32.cont [7/16] 0.0, 128
  %1770 = vxpose.xlu0.b32.cont [8/16] 0.0, 128
  %1771 = vxpose.xlu0.b32.cont [9/16] 0.0, 128
  %1772 = vxpose.xlu0.b32.cont [10/16] 0.0, 128
  %1773 = vxpose.xlu0.b32.cont [11/16] 0.0, 128
  %1774 = vxpose.xlu0.b32.cont [12/16] 0.0, 128
  %1775 = vxpose.xlu0.b32.cont [13/16] 0.0, 128
  %1776 = vxpose.xlu0.b32.cont [14/16] 0.0, 128
  %1777 = vxpose.xlu0.b32.cont [15/16] 0.0, 128
  %1778 = vxpose.xlu0.b32.end [16/16] 0.0, 128
  %v1779 = vpop.trf.xlu0
  %v1780 = vpop.trf.xlu0
  %v1781 = vpop.trf.xlu0
  %v1782 = vpop.trf.xlu0
  %v1783 = vpop.trf.xlu0
  %v1784 = vpop.trf.xlu0
  %v1785 = vpop.trf.xlu0
  %v1786 = vpop.trf.xlu0
  %v1787 = vpop.trf.xlu0
  %v1788 = vpop.trf.xlu0
  %v1789 = vpop.trf.xlu0
  %v1790 = vpop.trf.xlu0
  %v1791 = vpop.trf.xlu0
  %v1792 = vpop.trf.xlu0
  %v1793 = vpop.trf.xlu0
  %v1794 = vpop.trf.xlu0
  %1795 = vxpose.xlu0.b32.start [1/16] %v1549, 128
  %1796 = vxpose.xlu0.b32.cont [2/16] %v1552, 128
  %1797 = vxpose.xlu0.b32.cont [3/16] 0.0, 128
  %1798 = vxpose.xlu0.b32.cont [4/16] 0.0, 128
  %1799 = vxpose.xlu0.b32.cont [5/16] 0.0, 128
  %1800 = vxpose.xlu0.b32.cont [6/16] 0.0, 128
  %1801 = vxpose.xlu0.b32.cont [7/16] 0.0, 128
  %1802 = vxpose.xlu0.b32.cont [8/16] 0.0, 128
  %1803 = vxpose.xlu0.b32.cont [9/16] 0.0, 128
  %1804 = vxpose.xlu0.b32.cont [10/16] 0.0, 128
  %1805 = vxpose.xlu0.b32.cont [11/16] 0.0, 128
  %1806 = vxpose.xlu0.b32.cont [12/16] 0.0, 128
  %1807 = vxpose.xlu0.b32.cont [13/16] 0.0, 128
  %1808 = vxpose.xlu0.b32.cont [14/16] 0.0, 128
  %1809 = vxpose.xlu0.b32.cont [15/16] 0.0, 128
  %1810 = vxpose.xlu0.b32.end [16/16] 0.0, 128
  %v1811 = vpop.trf.xlu0
  %v1812 = vpop.trf.xlu0
  %v1813 = vpop.trf.xlu0
  %v1814 = vpop.trf.xlu0
  %v1815 = vpop.trf.xlu0
  %v1816 = vpop.trf.xlu0
  %v1817 = vpop.trf.xlu0
  %v1818 = vpop.trf.xlu0
  %v1819 = vpop.trf.xlu0
  %v1820 = vpop.trf.xlu0
  %v1821 = vpop.trf.xlu0
  %v1822 = vpop.trf.xlu0
  %v1823 = vpop.trf.xlu0
  %v1824 = vpop.trf.xlu0
  %v1825 = vpop.trf.xlu0
  %v1826 = vpop.trf.xlu0
  %1827 = vxpose.xlu0.b32.start [1/16] %v1557, 128
  %1828 = vxpose.xlu0.b32.cont [2/16] %v1560, 128
  %1829 = vxpose.xlu0.b32.cont [3/16] 0.0, 128
  %1830 = vxpose.xlu0.b32.cont [4/16] 0.0, 128
  %1831 = vxpose.xlu0.b32.cont [5/16] 0.0, 128
  %1832 = vxpose.xlu0.b32.cont [6/16] 0.0, 128
  %1833 = vxpose.xlu0.b32.cont [7/16] 0.0, 128
  %1834 = vxpose.xlu0.b32.cont [8/16] 0.0, 128
  %1835 = vxpose.xlu0.b32.cont [9/16] 0.0, 128
  %1836 = vxpose.xlu0.b32.cont [10/16] 0.0, 128
  %1837 = vxpose.xlu0.b32.cont [11/16] 0.0, 128
  %1838 = vxpose.xlu0.b32.cont [12/16] 0.0, 128
  %1839 = vxpose.xlu0.b32.cont [13/16] 0.0, 128
  %1840 = vxpose.xlu0.b32.cont [14/16] 0.0, 128
  %1841 = vxpose.xlu0.b32.cont [15/16] 0.0, 128
  %1842 = vxpose.xlu0.b32.end [16/16] 0.0, 128
  %v1843 = vpop.trf.xlu0
  %v1844 = vpop.trf.xlu0
  %v1845 = vpop.trf.xlu0
  %v1846 = vpop.trf.xlu0
  %v1847 = vpop.trf.xlu0
  %v1848 = vpop.trf.xlu0
  %v1849 = vpop.trf.xlu0
  %v1850 = vpop.trf.xlu0
  %v1851 = vpop.trf.xlu0
  %v1852 = vpop.trf.xlu0
  %v1853 = vpop.trf.xlu0
  %v1854 = vpop.trf.xlu0
  %v1855 = vpop.trf.xlu0
  %v1856 = vpop.trf.xlu0
  %v1857 = vpop.trf.xlu0
  %v1858 = vpop.trf.xlu0
  %1859 = vxpose.xlu0.b32.start [1/16] %v1565, 128
  %1860 = vxpose.xlu0.b32.cont [2/16] %v1568, 128
  %1861 = vxpose.xlu0.b32.cont [3/16] 0.0, 128
  %1862 = vxpose.xlu0.b32.cont [4/16] 0.0, 128
  %1863 = vxpose.xlu0.b32.cont [5/16] 0.0, 128
  %1864 = vxpose.xlu0.b32.cont [6/16] 0.0, 128
  %1865 = vxpose.xlu0.b32.cont [7/16] 0.0, 128
  %1866 = vxpose.xlu0.b32.cont [8/16] 0.0, 128
  %1867 = vxpose.xlu0.b32.cont [9/16] 0.0, 128
  %1868 = vxpose.xlu0.b32.cont [10/16] 0.0, 128
  %1869 = vxpose.xlu0.b32.cont [11/16] 0.0, 128
  %1870 = vxpose.xlu0.b32.cont [12/16] 0.0, 128
  %1871 = vxpose.xlu0.b32.cont [13/16] 0.0, 128
  %1872 = vxpose.xlu0.b32.cont [14/16] 0.0, 128
  %1873 = vxpose.xlu0.b32.cont [15/16] 0.0, 128
  %1874 = vxpose.xlu0.b32.end [16/16] 0.0, 128
  %v1875 = vpop.trf.xlu0
  %v1876 = vpop.trf.xlu0
  %v1877 = vpop.trf.xlu0
  %v1878 = vpop.trf.xlu0
  %v1879 = vpop.trf.xlu0
  %v1880 = vpop.trf.xlu0
  %v1881 = vpop.trf.xlu0
  %v1882 = vpop.trf.xlu0
  %v1883 = vpop.trf.xlu0
  %v1884 = vpop.trf.xlu0
  %v1885 = vpop.trf.xlu0
  %v1886 = vpop.trf.xlu0
  %v1887 = vpop.trf.xlu0
  %v1888 = vpop.trf.xlu0
  %v1889 = vpop.trf.xlu0
  %v1890 = vpop.trf.xlu0
  %1891 = vxpose.xlu0.b32.start [1/16] %v1573, 128
  %1892 = vxpose.xlu0.b32.cont [2/16] %v1576, 128
  %1893 = vxpose.xlu0.b32.cont [3/16] 0.0, 128
  %1894 = vxpose.xlu0.b32.cont [4/16] 0.0, 128
  %1895 = vxpose.xlu0.b32.cont [5/16] 0.0, 128
  %1896 = vxpose.xlu0.b32.cont [6/16] 0.0, 128
  %1897 = vxpose.xlu0.b32.cont [7/16] 0.0, 128
  %1898 = vxpose.xlu0.b32.cont [8/16] 0.0, 128
  %1899 = vxpose.xlu0.b32.cont [9/16] 0.0, 128
  %1900 = vxpose.xlu0.b32.cont [10/16] 0.0, 128
  %1901 = vxpose.xlu0.b32.cont [11/16] 0.0, 128
  %1902 = vxpose.xlu0.b32.cont [12/16] 0.0, 128
  %1903 = vxpose.xlu0.b32.cont [13/16] 0.0, 128
  %1904 = vxpose.xlu0.b32.cont [14/16] 0.0, 128
  %1905 = vxpose.xlu0.b32.cont [15/16] 0.0, 128
  %1906 = vxpose.xlu0.b32.end [16/16] 0.0, 128
  %v1907 = vpop.trf.xlu0
  %v1908 = vpop.trf.xlu0
  %v1909 = vpop.trf.xlu0
  %v1910 = vpop.trf.xlu0
  %v1911 = vpop.trf.xlu0
  %v1912 = vpop.trf.xlu0
  %v1913 = vpop.trf.xlu0
  %v1914 = vpop.trf.xlu0
  %v1915 = vpop.trf.xlu0
  %v1916 = vpop.trf.xlu0
  %v1917 = vpop.trf.xlu0
  %v1918 = vpop.trf.xlu0
  %v1919 = vpop.trf.xlu0
  %v1920 = vpop.trf.xlu0
  %v1921 = vpop.trf.xlu0
  %v1922 = vpop.trf.xlu0
  %1923 = vxpose.xlu0.b32.start [1/16] %v1581, 128
  %1924 = vxpose.xlu0.b32.cont [2/16] %v1584, 128
  %1925 = vxpose.xlu0.b32.cont [3/16] 0.0, 128
  %1926 = vxpose.xlu0.b32.cont [4/16] 0.0, 128
  %1927 = vxpose.xlu0.b32.cont [5/16] 0.0, 128
  %1928 = vxpose.xlu0.b32.cont [6/16] 0.0, 128
  %1929 = vxpose.xlu0.b32.cont [7/16] 0.0, 128
  %1930 = vxpose.xlu0.b32.cont [8/16] 0.0, 128
  %1931 = vxpose.xlu0.b32.cont [9/16] 0.0, 128
  %1932 = vxpose.xlu0.b32.cont [10/16] 0.0, 128
  %1933 = vxpose.xlu0.b32.cont [11/16] 0.0, 128
  %1934 = vxpose.xlu0.b32.cont [12/16] 0.0, 128
  %1935 = vxpose.xlu0.b32.cont [13/16] 0.0, 128
  %1936 = vxpose.xlu0.b32.cont [14/16] 0.0, 128
  %1937 = vxpose.xlu0.b32.cont [15/16] 0.0, 128
  %1938 = vxpose.xlu0.b32.end [16/16] 0.0, 128
  %v1939 = vpop.trf.xlu0
  %v1940 = vpop.trf.xlu0
  %v1941 = vpop.trf.xlu0
  %v1942 = vpop.trf.xlu0
  %v1943 = vpop.trf.xlu0
  %v1944 = vpop.trf.xlu0
  %v1945 = vpop.trf.xlu0
  %v1946 = vpop.trf.xlu0
  %v1947 = vpop.trf.xlu0
  %v1948 = vpop.trf.xlu0
  %v1949 = vpop.trf.xlu0
  %v1950 = vpop.trf.xlu0
  %v1951 = vpop.trf.xlu0
  %v1952 = vpop.trf.xlu0
  %v1953 = vpop.trf.xlu0
  %v1954 = vpop.trf.xlu0
  %1955 = vxpose.xlu0.b32.start [1/16] %v1589, 128
  %1956 = vxpose.xlu0.b32.cont [2/16] %v1592, 128
  %1957 = vxpose.xlu0.b32.cont [3/16] 0.0, 128
  %1958 = vxpose.xlu0.b32.cont [4/16] 0.0, 128
  %1959 = vxpose.xlu0.b32.cont [5/16] 0.0, 128
  %1960 = vxpose.xlu0.b32.cont [6/16] 0.0, 128
  %1961 = vxpose.xlu0.b32.cont [7/16] 0.0, 128
  %1962 = vxpose.xlu0.b32.cont [8/16] 0.0, 128
  %1963 = vxpose.xlu0.b32.cont [9/16] 0.0, 128
  %1964 = vxpose.xlu0.b32.cont [10/16] 0.0, 128
  %1965 = vxpose.xlu0.b32.cont [11/16] 0.0, 128
  %1966 = vxpose.xlu0.b32.cont [12/16] 0.0, 128
  %1967 = vxpose.xlu0.b32.cont [13/16] 0.0, 128
  %1968 = vxpose.xlu0.b32.cont [14/16] 0.0, 128
  %1969 = vxpose.xlu0.b32.cont [15/16] 0.0, 128
  %1970 = vxpose.xlu0.b32.end [16/16] 0.0, 128
  %v1971 = vpop.trf.xlu0
  %v1972 = vpop.trf.xlu0
  %v1973 = vpop.trf.xlu0
  %v1974 = vpop.trf.xlu0
  %v1975 = vpop.trf.xlu0
  %v1976 = vpop.trf.xlu0
  %v1977 = vpop.trf.xlu0
  %v1978 = vpop.trf.xlu0
  %v1979 = vpop.trf.xlu0
  %v1980 = vpop.trf.xlu0
  %v1981 = vpop.trf.xlu0
  %v1982 = vpop.trf.xlu0
  %v1983 = vpop.trf.xlu0
  %v1984 = vpop.trf.xlu0
  %v1985 = vpop.trf.xlu0
  %v1986 = vpop.trf.xlu0
  %1987 = vxpose.xlu0.b32.start [1/16] %v1597, 128
  %1988 = vxpose.xlu0.b32.cont [2/16] %v1600, 128
  %1989 = vxpose.xlu0.b32.cont [3/16] 0.0, 128
  %1990 = vxpose.xlu0.b32.cont [4/16] 0.0, 128
  %1991 = vxpose.xlu0.b32.cont [5/16] 0.0, 128
  %1992 = vxpose.xlu0.b32.cont [6/16] 0.0, 128
  %1993 = vxpose.xlu0.b32.cont [7/16] 0.0, 128
  %1994 = vxpose.xlu0.b32.cont [8/16] 0.0, 128
  %1995 = vxpose.xlu0.b32.cont [9/16] 0.0, 128
  %1996 = vxpose.xlu0.b32.cont [10/16] 0.0, 128
  %1997 = vxpose.xlu0.b32.cont [11/16] 0.0, 128
  %1998 = vxpose.xlu0.b32.cont [12/16] 0.0, 128
  %1999 = vxpose.xlu0.b32.cont [13/16] 0.0, 128
  %2000 = vxpose.xlu0.b32.cont [14/16] 0.0, 128
  %2001 = vxpose.xlu0.b32.cont [15/16] 0.0, 128
  %2002 = vxpose.xlu0.b32.end [16/16] 0.0, 128
  %v2003 = vpop.trf.xlu0
  %v2004 = vpop.trf.xlu0
  %v2005 = vpop.trf.xlu0
  %v2006 = vpop.trf.xlu0
  %v2007 = vpop.trf.xlu0
  %v2008 = vpop.trf.xlu0
  %v2009 = vpop.trf.xlu0
  %v2010 = vpop.trf.xlu0
  %v2011 = vpop.trf.xlu0
  %v2012 = vpop.trf.xlu0
  %v2013 = vpop.trf.xlu0
  %v2014 = vpop.trf.xlu0
  %v2015 = vpop.trf.xlu0
  %v2016 = vpop.trf.xlu0
  %v2017 = vpop.trf.xlu0
  %v2018 = vpop.trf.xlu0
  %2019 = vxpose.xlu0.b32.start [1/16] %v1605, 128
  %2020 = vxpose.xlu0.b32.cont [2/16] %v1608, 128
  %2021 = vxpose.xlu0.b32.cont [3/16] 0.0, 128
  %2022 = vxpose.xlu0.b32.cont [4/16] 0.0, 128
  %2023 = vxpose.xlu0.b32.cont [5/16] 0.0, 128
  %2024 = vxpose.xlu0.b32.cont [6/16] 0.0, 128
  %2025 = vxpose.xlu0.b32.cont [7/16] 0.0, 128
  %2026 = vxpose.xlu0.b32.cont [8/16] 0.0, 128
  %2027 = vxpose.xlu0.b32.cont [9/16] 0.0, 128
  %2028 = vxpose.xlu0.b32.cont [10/16] 0.0, 128
  %2029 = vxpose.xlu0.b32.cont [11/16] 0.0, 128
  %2030 = vxpose.xlu0.b32.cont [12/16] 0.0, 128
  %2031 = vxpose.xlu0.b32.cont [13/16] 0.0, 128
  %2032 = vxpose.xlu0.b32.cont [14/16] 0.0, 128
  %2033 = vxpose.xlu0.b32.cont [15/16] 0.0, 128
  %2034 = vxpose.xlu0.b32.end [16/16] 0.0, 128
  %v2035 = vpop.trf.xlu0
  %v2036 = vpop.trf.xlu0
  %v2037 = vpop.trf.xlu0
  %v2038 = vpop.trf.xlu0
  %v2039 = vpop.trf.xlu0
  %v2040 = vpop.trf.xlu0
  %v2041 = vpop.trf.xlu0
  %v2042 = vpop.trf.xlu0
  %v2043 = vpop.trf.xlu0
  %v2044 = vpop.trf.xlu0
  %v2045 = vpop.trf.xlu0
  %v2046 = vpop.trf.xlu0
  %v2047 = vpop.trf.xlu0
  %v2048 = vpop.trf.xlu0
  %v2049 = vpop.trf.xlu0
  %v2050 = vpop.trf.xlu0
  %2051 = vxpose.xlu0.b32.start [1/16] %v1613, 128
  %2052 = vxpose.xlu0.b32.cont [2/16] %v1616, 128
  %2053 = vxpose.xlu0.b32.cont [3/16] 0.0, 128
  %2054 = vxpose.xlu0.b32.cont [4/16] 0.0, 128
  %2055 = vxpose.xlu0.b32.cont [5/16] 0.0, 128
  %2056 = vxpose.xlu0.b32.cont [6/16] 0.0, 128
  %2057 = vxpose.xlu0.b32.cont [7/16] 0.0, 128
  %2058 = vxpose.xlu0.b32.cont [8/16] 0.0, 128
  %2059 = vxpose.xlu0.b32.cont [9/16] 0.0, 128
  %2060 = vxpose.xlu0.b32.cont [10/16] 0.0, 128
  %2061 = vxpose.xlu0.b32.cont [11/16] 0.0, 128
  %2062 = vxpose.xlu0.b32.cont [12/16] 0.0, 128
  %2063 = vxpose.xlu0.b32.cont [13/16] 0.0, 128
  %2064 = vxpose.xlu0.b32.cont [14/16] 0.0, 128
  %2065 = vxpose.xlu0.b32.cont [15/16] 0.0, 128
  %2066 = vxpose.xlu0.b32.end [16/16] 0.0, 128
  %v2067 = vpop.trf.xlu0
  %v2068 = vpop.trf.xlu0
  %v2069 = vpop.trf.xlu0
  %v2070 = vpop.trf.xlu0
  %v2071 = vpop.trf.xlu0
  %v2072 = vpop.trf.xlu0
  %v2073 = vpop.trf.xlu0
  %v2074 = vpop.trf.xlu0
  %v2075 = vpop.trf.xlu0
  %v2076 = vpop.trf.xlu0
  %v2077 = vpop.trf.xlu0
  %v2078 = vpop.trf.xlu0
  %v2079 = vpop.trf.xlu0
  %v2080 = vpop.trf.xlu0
  %v2081 = vpop.trf.xlu0
  %v2082 = vpop.trf.xlu0
  %2083 = vxpose.xlu0.b32.start [1/16] %v1621, 128
  %2084 = vxpose.xlu0.b32.cont [2/16] %v1624, 128
  %2085 = vxpose.xlu0.b32.cont [3/16] 0.0, 128
  %2086 = vxpose.xlu0.b32.cont [4/16] 0.0, 128
  %2087 = vxpose.xlu0.b32.cont [5/16] 0.0, 128
  %2088 = vxpose.xlu0.b32.cont [6/16] 0.0, 128
  %2089 = vxpose.xlu0.b32.cont [7/16] 0.0, 128
  %2090 = vxpose.xlu0.b32.cont [8/16] 0.0, 128
  %2091 = vxpose.xlu0.b32.cont [9/16] 0.0, 128
  %2092 = vxpose.xlu0.b32.cont [10/16] 0.0, 128
  %2093 = vxpose.xlu0.b32.cont [11/16] 0.0, 128
  %2094 = vxpose.xlu0.b32.cont [12/16] 0.0, 128
  %2095 = vxpose.xlu0.b32.cont [13/16] 0.0, 128
  %2096 = vxpose.xlu0.b32.cont [14/16] 0.0, 128
  %2097 = vxpose.xlu0.b32.cont [15/16] 0.0, 128
  %2098 = vxpose.xlu0.b32.end [16/16] 0.0, 128
  %v2099 = vpop.trf.xlu0
  %v2100 = vpop.trf.xlu0
  %v2101 = vpop.trf.xlu0
  %v2102 = vpop.trf.xlu0
  %v2103 = vpop.trf.xlu0
  %v2104 = vpop.trf.xlu0
  %v2105 = vpop.trf.xlu0
  %v2106 = vpop.trf.xlu0
  %v2107 = vpop.trf.xlu0
  %v2108 = vpop.trf.xlu0
  %v2109 = vpop.trf.xlu0
  %v2110 = vpop.trf.xlu0
  %v2111 = vpop.trf.xlu0
  %v2112 = vpop.trf.xlu0
  %v2113 = vpop.trf.xlu0
  %v2114 = vpop.trf.xlu0
  %2115 = vxpose.xlu0.b32.start [1/16] %v1629, 128
  %2116 = vxpose.xlu0.b32.cont [2/16] %v1632, 128
  %2117 = vxpose.xlu0.b32.cont [3/16] 0.0, 128
  %2118 = vxpose.xlu0.b32.cont [4/16] 0.0, 128
  %2119 = vxpose.xlu0.b32.cont [5/16] 0.0, 128
  %2120 = vxpose.xlu0.b32.cont [6/16] 0.0, 128
  %2121 = vxpose.xlu0.b32.cont [7/16] 0.0, 128
  %2122 = vxpose.xlu0.b32.cont [8/16] 0.0, 128
  %2123 = vxpose.xlu0.b32.cont [9/16] 0.0, 128
  %2124 = vxpose.xlu0.b32.cont [10/16] 0.0, 128
  %2125 = vxpose.xlu0.b32.cont [11/16] 0.0, 128
  %2126 = vxpose.xlu0.b32.cont [12/16] 0.0, 128
  %2127 = vxpose.xlu0.b32.cont [13/16] 0.0, 128
  %2128 = vxpose.xlu0.b32.cont [14/16] 0.0, 128
  %2129 = vxpose.xlu0.b32.cont [15/16] 0.0, 128
  %2130 = vxpose.xlu0.b32.end [16/16] 0.0, 128
  %v2131 = vpop.trf.xlu0
  %v2132 = vpop.trf.xlu0
  %v2133 = vpop.trf.xlu0
  %v2134 = vpop.trf.xlu0
  %v2135 = vpop.trf.xlu0
  %v2136 = vpop.trf.xlu0
  %v2137 = vpop.trf.xlu0
  %v2138 = vpop.trf.xlu0
  %v2139 = vpop.trf.xlu0
  %v2140 = vpop.trf.xlu0
  %v2141 = vpop.trf.xlu0
  %v2142 = vpop.trf.xlu0
  %v2143 = vpop.trf.xlu0
  %v2144 = vpop.trf.xlu0
  %v2145 = vpop.trf.xlu0
  %v2146 = vpop.trf.xlu0
  %v2147 = vadd.f32 %v1651, %v577
  %v2148 = vadd.f32 %v1683, %v581
  %v2149 = vadd.f32 %v1715, %v585
  %v2150 = vadd.f32 %v1747, %v589
  %v2151 = vadd.f32 %v1779, %v593
  %v2152 = vadd.f32 %v1811, %v597
  %v2153 = vadd.f32 %v1843, %v601
  %v2154 = vadd.f32 %v1875, %v605
  %v2155 = vadd.f32 %v1907, %v609
  %v2156 = vadd.f32 %v1939, %v613
  %v2157 = vadd.f32 %v1971, %v617
  %v2158 = vadd.f32 %v2003, %v621
  %v2159 = vadd.f32 %v2035, %v625
  %v2160 = vadd.f32 %v2067, %v629
  %v2161 = vadd.f32 %v2099, %v633
  %v2162 = vadd.f32 %v2131, %v637
  %vm2163 = vcmask 125952
  %v2164 = vsel %vm2163, %v2147, -inf
  %2165 = vmax.xlane.f32.xlu0 %v2164
  %v2166 = vpop.xlane.xlu0 %2165
  %v2167 = vsel %vm2163, %v2148, -inf
  %2168 = vmax.xlane.f32.xlu0 %v2167
  %v2169 = vpop.xlane.xlu0 %2168
  %v2170 = vsel %vm2163, %v2149, -inf
  %2171 = vmax.xlane.f32.xlu0 %v2170
  %v2172 = vpop.xlane.xlu0 %2171
  %v2173 = vsel %vm2163, %v2150, -inf
  %2174 = vmax.xlane.f32.xlu0 %v2173
  %v2175 = vpop.xlane.xlu0 %2174
  %v2176 = vsel %vm2163, %v2151, -inf
  %2177 = vmax.xlane.f32.xlu0 %v2176
  %v2178 = vpop.xlane.xlu0 %2177
  %v2179 = vsel %vm2163, %v2152, -inf
  %2180 = vmax.xlane.f32.xlu0 %v2179
  %v2181 = vpop.xlane.xlu0 %2180
  %v2182 = vsel %vm2163, %v2153, -inf
  %2183 = vmax.xlane.f32.xlu0 %v2182
  %v2184 = vpop.xlane.xlu0 %2183
  %v2185 = vsel %vm2163, %v2154, -inf
  %2186 = vmax.xlane.f32.xlu0 %v2185
  %v2187 = vpop.xlane.xlu0 %2186
  %v2188 = vsel %vm2163, %v2155, -inf
  %2189 = vmax.xlane.f32.xlu0 %v2188
  %v2190 = vpop.xlane.xlu0 %2189
  %v2191 = vsel %vm2163, %v2156, -inf
  %2192 = vmax.xlane.f32.xlu0 %v2191
  %v2193 = vpop.xlane.xlu0 %2192
  %v2194 = vsel %vm2163, %v2157, -inf
  %2195 = vmax.xlane.f32.xlu0 %v2194
  %v2196 = vpop.xlane.xlu0 %2195
  %v2197 = vsel %vm2163, %v2158, -inf
  %2198 = vmax.xlane.f32.xlu0 %v2197
  %v2199 = vpop.xlane.xlu0 %2198
  %v2200 = vsel %vm2163, %v2159, -inf
  %2201 = vmax.xlane.f32.xlu0 %v2200
  %v2202 = vpop.xlane.xlu0 %2201
  %v2203 = vsel %vm2163, %v2160, -inf
  %2204 = vmax.xlane.f32.xlu0 %v2203
  %v2205 = vpop.xlane.xlu0 %2204
  %v2206 = vsel %vm2163, %v2161, -inf
  %2207 = vmax.xlane.f32.xlu0 %v2206
  %v2208 = vpop.xlane.xlu0 %2207
  %v2209 = vsel %vm2163, %v2162, -inf
  %2210 = vmax.xlane.f32.xlu0 %v2209
  %v2211 = vpop.xlane.xlu0 %2210
  %v2212 = vsub.f32 %v2147, %v2166
  %v2213 = vsub.f32 %v2148, %v2169
  %v2214 = vsub.f32 %v2149, %v2172
  %v2215 = vsub.f32 %v2150, %v2175
  %v2216 = vsub.f32 %v2151, %v2178
  %v2217 = vsub.f32 %v2152, %v2181
  %v2218 = vsub.f32 %v2153, %v2184
  %v2219 = vsub.f32 %v2154, %v2187
  %v2220 = vsub.f32 %v2155, %v2190
  %v2221 = vsub.f32 %v2156, %v2193
  %v2222 = vsub.f32 %v2157, %v2196
  %v2223 = vsub.f32 %v2158, %v2199
  %v2224 = vsub.f32 %v2159, %v2202
  %v2225 = vsub.f32 %v2160, %v2205
  %v2226 = vsub.f32 %v2161, %v2208
  %v2227 = vsub.f32 %v2162, %v2211
  %v2228 = vmul.f32 %v2212, 1.442695
  %v2229 = vpow.pop %v2228
  %v2230 = vmul.f32 %v2213, 1.442695
  %v2231 = vpow.pop %v2230
  %v2232 = vmul.f32 %v2214, 1.442695
  %v2233 = vpow.pop %v2232
  %v2234 = vmul.f32 %v2215, 1.442695
  %v2235 = vpow.pop %v2234
  %v2236 = vmul.f32 %v2216, 1.442695
  %v2237 = vpow.pop %v2236
  %v2238 = vmul.f32 %v2217, 1.442695
  %v2239 = vpow.pop %v2238
  %v2240 = vmul.f32 %v2218, 1.442695
  %v2241 = vpow.pop %v2240
  %v2242 = vmul.f32 %v2219, 1.442695
  %v2243 = vpow.pop %v2242
  %v2244 = vmul.f32 %v2220, 1.442695
  %v2245 = vpow.pop %v2244
  %v2246 = vmul.f32 %v2221, 1.442695
  %v2247 = vpow.pop %v2246
  %v2248 = vmul.f32 %v2222, 1.442695
  %v2249 = vpow.pop %v2248
  %v2250 = vmul.f32 %v2223, 1.442695
  %v2251 = vpow.pop %v2250
  %v2252 = vmul.f32 %v2224, 1.442695
  %v2253 = vpow.pop %v2252
  %v2254 = vmul.f32 %v2225, 1.442695
  %v2255 = vpow.pop %v2254
  %v2256 = vmul.f32 %v2226, 1.442695
  %v2257 = vpow.pop %v2256
  %v2258 = vmul.f32 %v2227, 1.442695
  %v2259 = vpow.pop %v2258
  %v2260 = vsel %vm2163, %v2229, 0.0
  %2261 = vadd.xlane.f32.xlu0 %v2260
  %v2262 = vpop.xlane.xlu0 %2261
  %v2263 = vsel %vm2163, %v2231, 0.0
  %2264 = vadd.xlane.f32.xlu0 %v2263
  %v2265 = vpop.xlane.xlu0 %2264
  %v2266 = vsel %vm2163, %v2233, 0.0
  %2267 = vadd.xlane.f32.xlu0 %v2266
  %v2268 = vpop.xlane.xlu0 %2267
  %v2269 = vsel %vm2163, %v2235, 0.0
  %2270 = vadd.xlane.f32.xlu0 %v2269
  %v2271 = vpop.xlane.xlu0 %2270
  %v2272 = vsel %vm2163, %v2237, 0.0
  %2273 = vadd.xlane.f32.xlu0 %v2272
  %v2274 = vpop.xlane.xlu0 %2273
  %v2275 = vsel %vm2163, %v2239, 0.0
  %2276 = vadd.xlane.f32.xlu0 %v2275
  %v2277 = vpop.xlane.xlu0 %2276
  %v2278 = vsel %vm2163, %v2241, 0.0
  %2279 = vadd.xlane.f32.xlu0 %v2278
  %v2280 = vpop.xlane.xlu0 %2279
  %v2281 = vsel %vm2163, %v2243, 0.0
  %2282 = vadd.xlane.f32.xlu0 %v2281
  %v2283 = vpop.xlane.xlu0 %2282
  %v2284 = vsel %vm2163, %v2245, 0.0
  %2285 = vadd.xlane.f32.xlu0 %v2284
  %v2286 = vpop.xlane.xlu0 %2285
  %v2287 = vsel %vm2163, %v2247, 0.0
  %2288 = vadd.xlane.f32.xlu0 %v2287
  %v2289 = vpop.xlane.xlu0 %2288
  %v2290 = vsel %vm2163, %v2249, 0.0
  %2291 = vadd.xlane.f32.xlu0 %v2290
  %v2292 = vpop.xlane.xlu0 %2291
  %v2293 = vsel %vm2163, %v2251, 0.0
  %2294 = vadd.xlane.f32.xlu0 %v2293
  %v2295 = vpop.xlane.xlu0 %2294
  %v2296 = vsel %vm2163, %v2253, 0.0
  %2297 = vadd.xlane.f32.xlu0 %v2296
  %v2298 = vpop.xlane.xlu0 %2297
  %v2299 = vsel %vm2163, %v2255, 0.0
  %2300 = vadd.xlane.f32.xlu0 %v2299
  %v2301 = vpop.xlane.xlu0 %2300
  %v2302 = vsel %vm2163, %v2257, 0.0
  %2303 = vadd.xlane.f32.xlu0 %v2302
  %v2304 = vpop.xlane.xlu0 %2303
  %v2305 = vsel %vm2163, %v2259, 0.0
  %2306 = vadd.xlane.f32.xlu0 %v2305
  %v2307 = vpop.xlane.xlu0 %2306
  %v2308 = vrcp.pop %v2262
  %v2309 = vrcp.pop %v2265
  %v2310 = vrcp.pop %v2268
  %v2311 = vrcp.pop %v2271
  %v2312 = vrcp.pop %v2274
  %v2313 = vrcp.pop %v2277
  %v2314 = vrcp.pop %v2280
  %v2315 = vrcp.pop %v2283
  %v2316 = vrcp.pop %v2286
  %v2317 = vrcp.pop %v2289
  %v2318 = vrcp.pop %v2292
  %v2319 = vrcp.pop %v2295
  %v2320 = vrcp.pop %v2298
  %v2321 = vrcp.pop %v2301
  %v2322 = vrcp.pop %v2304
  %v2323 = vrcp.pop %v2307
  %v2324 = vmul.f32 %v2229, %v2308
  %v2325 = vmul.f32 %v2231, %v2309
  %v2326 = vmul.f32 %v2233, %v2310
  %v2327 = vmul.f32 %v2235, %v2311
  %v2328 = vmul.f32 %v2237, %v2312
  %v2329 = vmul.f32 %v2239, %v2313
  %v2330 = vmul.f32 %v2241, %v2314
  %v2331 = vmul.f32 %v2243, %v2315
  %v2332 = vmul.f32 %v2245, %v2316
  %v2333 = vmul.f32 %v2247, %v2317
  %v2334 = vmul.f32 %v2249, %v2318
  %v2335 = vmul.f32 %v2251, %v2319
  %v2336 = vmul.f32 %v2253, %v2320
  %v2337 = vmul.f32 %v2255, %v2321
  %v2338 = vmul.f32 %v2257, %v2322
  %v2339 = vmul.f32 %v2259, %v2323
  %2340 = vst.msk [vmem:[#allocation2] sm:$0xf] %vm2163, %v2324
  %2341 = vst.msk [vmem:[#allocation2 + $0x4] sm:$0xf] %vm2163, %v2325
  %2342 = vst.msk [vmem:[#allocation2 + $0x8] sm:$0xf] %vm2163, %v2326
  %2343 = vst.msk [vmem:[#allocation2 + $0xc] sm:$0xf] %vm2163, %v2327
  %2344 = vst.msk [vmem:[#allocation2 + $0x10] sm:$0xf] %vm2163, %v2328
  %2345 = vst.msk [vmem:[#allocation2 + $0x14] sm:$0xf] %vm2163, %v2329
  %2346 = vst.msk [vmem:[#allocation2 + $0x18] sm:$0xf] %vm2163, %v2330
  %2347 = vst.msk [vmem:[#allocation2 + $0x1c] sm:$0xf] %vm2163, %v2331
  %2348 = vst.msk [vmem:[#allocation2 + $0x20] sm:$0xf] %vm2163, %v2332
  %2349 = vst.msk [vmem:[#allocation2 + $0x24] sm:$0xf] %vm2163, %v2333
  %2350 = vst.msk [vmem:[#allocation2 + $0x28] sm:$0xf] %vm2163, %v2334
  %2351 = vst.msk [vmem:[#allocation2 + $0x2c] sm:$0xf] %vm2163, %v2335
  %2352 = vst.msk [vmem:[#allocation2 + $0x30] sm:$0xf] %vm2163, %v2336
  %2353 = vst.msk [vmem:[#allocation2 + $0x34] sm:$0xf] %vm2163, %v2337
  %2354 = vst.msk [vmem:[#allocation2 + $0x38] sm:$0xf] %vm2163, %v2338
  %2355 = vst.msk [vmem:[#allocation2 + $0x3c] sm:$0xf] %vm2163, %v2339
  %v2356 = vpack.c.bf16 %v720, %v717
  %v2357 = vld [vmem:[#allocation2] sm:$0x1]
  %v2358 = vld [vmem:[#allocation2 + $0x4] sm:$0x1]
  %v2359 = vld [vmem:[#allocation2 + $0x8] sm:$0x1]
  %v2360 = vld [vmem:[#allocation2 + $0xc] sm:$0x1]
  %v2361 = vld [vmem:[#allocation2 + $0x10] sm:$0x1]
  %v2362 = vld [vmem:[#allocation2 + $0x14] sm:$0x1]
  %v2363 = vld [vmem:[#allocation2 + $0x18] sm:$0x1]
  %v2364 = vld [vmem:[#allocation2 + $0x1c] sm:$0x1]
  %v2365 = vld [vmem:[#allocation2 + $0x20] sm:$0x1]
  %v2366 = vld [vmem:[#allocation2 + $0x24] sm:$0x1]
  %v2367 = vld [vmem:[#allocation2 + $0x28] sm:$0x1]
  %v2368 = vld [vmem:[#allocation2 + $0x2c] sm:$0x1]
  %v2369 = vld [vmem:[#allocation2 + $0x30] sm:$0x1]
  %v2370 = vld [vmem:[#allocation2 + $0x34] sm:$0x1]
  %v2371 = vld [vmem:[#allocation2 + $0x38] sm:$0x1]
  %v2372 = vld [vmem:[#allocation2 + $0x3c] sm:$0x1]
  %v2373 = vpack.c.bf16 %v2357, %v2357
  %v2374 = vpack.c.bf16 %v2358, %v2358
  %v2375 = vpack.c.bf16 %v2359, %v2359
  %v2376 = vpack.c.bf16 %v2360, %v2360
  %v2377 = vpack.c.bf16 %v2361, %v2361
  %v2378 = vpack.c.bf16 %v2362, %v2362
  %v2379 = vpack.c.bf16 %v2363, %v2363
  %v2380 = vpack.c.bf16 %v2364, %v2364
  %v2381 = vpack.c.bf16 %v2365, %v2365
  %v2382 = vpack.c.bf16 %v2366, %v2366
  %v2383 = vpack.c.bf16 %v2367, %v2367
  %v2384 = vpack.c.bf16 %v2368, %v2368
  %v2385 = vpack.c.bf16 %v2369, %v2369
  %v2386 = vpack.c.bf16 %v2370, %v2370
  %v2387 = vpack.c.bf16 %v2371, %v2371
  %v2388 = vpack.c.bf16 %v2372, %v2372
  %v2405 = vunpack.c.l.b16 %v2373
  %v2406 = vunpack.c.l.b16 %v2374
  %v2407 = vunpack.c.l.b16 %v2375
  %v2408 = vunpack.c.l.b16 %v2376
  %v2409 = vunpack.c.l.b16 %v2377
  %v2410 = vunpack.c.l.b16 %v2378
  %v2411 = vunpack.c.l.b16 %v2379
  %v2412 = vunpack.c.l.b16 %v2380
  %v2413 = vunpack.c.l.b16 %v2381
  %v2414 = vunpack.c.l.b16 %v2382
  %v2415 = vunpack.c.l.b16 %v2383
  %v2416 = vunpack.c.l.b16 %v2384
  %v2417 = vunpack.c.l.b16 %v2385
  %v2418 = vunpack.c.l.b16 %v2386
  %v2419 = vunpack.c.l.b16 %v2387
  %v2420 = vunpack.c.l.b16 %v2388
  %v2421 = vrot.slane %v2406, 7
  %vm2422 = vcmask 1041409
  %v2423 = vsel %vm2422, %v2421, %v2405
  %v2424 = vrot.slane %v2407, 6
  %vm2425 = vcmask 1042434
  %v2426 = vsel %vm2425, %v2424, %v2423
  %v2427 = vrot.slane %v2408, 5
  %vm2428 = vcmask 1043459
  %v2429 = vsel %vm2428, %v2427, %v2426
  %v2430 = vrot.slane %v2409, 4
  %vm2431 = vcmask 1044484
  %v2432 = vsel %vm2431, %v2430, %v2429
  %v2433 = vrot.slane %v2410, 3
  %vm2434 = vcmask 1045509
  %v2435 = vsel %vm2434, %v2433, %v2432
  %v2436 = vrot.slane %v2411, 2
  %vm2437 = vcmask 1046534
  %v2438 = vsel %vm2437, %v2436, %v2435
  %v2439 = vrot.slane %v2412, 1
  %vm2440 = vcmask 1047559
  %v2441 = vsel %vm2440, %v2439, %v2438
  %v2442 = vrot.slane %v2414, 7
  %v2443 = vsel %vm2422, %v2442, %v2413
  %v2444 = vrot.slane %v2415, 6
  %v2445 = vsel %vm2425, %v2444, %v2443
  %v2446 = vrot.slane %v2416, 5
  %v2447 = vsel %vm2428, %v2446, %v2445
  %v2448 = vrot.slane %v2417, 4
  %v2449 = vsel %vm2431, %v2448, %v2447
  %v2450 = vrot.slane %v2418, 3
  %v2451 = vsel %vm2434, %v2450, %v2449
  %v2452 = vrot.slane %v2419, 2
  %v2453 = vsel %vm2437, %v2452, %v2451
  %v2454 = vrot.slane %v2420, 1
  %v2455 = vsel %vm2440, %v2454, %v2453
  %v2456 = vpack.c.b16 %v2455, %v2441
  %vm2457 = vcmask 130048
  %v2459 = vsel %vm2457, %v2456, 0
  %2461 = vmatprep.subr.bf16.mxu0 0
  %2462 = vmatpush1.bf16.msra.mxu0 0
  %2463 = vmatprep.subr.bf16.mxu0 0
  %2464 = vmatpush1.bf16.msra.mxu0 0
  %2465 = vmatprep.subr.bf16.mxu0 0
  %2466 = vmatpush1.bf16.msra.mxu0 0
  %2467 = vmatprep.subr.bf16.mxu0 0
  %2468 = vmatpush1.bf16.msra.mxu0 0
  %2469 = vmatprep.subr.bf16.mxu0 0
  %2470 = vmatpush1.bf16.msra.mxu0 0
  %2471 = vmatprep.subr.bf16.mxu0 0
  %2472 = vmatpush1.bf16.msra.mxu0 0
  %2473 = vmatprep.subr.bf16.mxu0 0
  %2474 = vmatpush1.bf16.msra.mxu0 0
  %2475 = vmatprep.subr.bf16.mxu0 0
  %2476 = vmatpush1.bf16.msra.mxu0 %v2356
  %2477 = vmatprep.subr.bf16.mxu0 0
  %2478 = vmatpush2.bf16.msra.mxu0 0
  %2479 = vmatprep.subr.bf16.mxu0 0
  %2480 = vmatpush2.bf16.msra.mxu0 0
  %2481 = vmatprep.subr.bf16.mxu0 0
  %2482 = vmatpush2.bf16.msra.mxu0 0
  %2483 = vmatprep.subr.bf16.mxu0 0
  %2484 = vmatpush2.bf16.msra.mxu0 0
  %2485 = vmatprep.subr.bf16.mxu0 0
  %2486 = vmatpush2.bf16.msra.mxu0 0
  %2487 = vmatprep.subr.bf16.mxu0 0
  %2488 = vmatpush2.bf16.msra.mxu0 0
  %2489 = vmatprep.subr.bf16.mxu0 0
  %2490 = vmatpush2.bf16.msra.mxu0 0
  %2491 = vmatprep.subr.bf16.mxu0 0
  %2492 = vmatpush2.bf16.msra.mxu0 0
  %2493 = vmatprep.mubr.bf16.mxu0 0
  %2494 = vmatmul.mubr.bf16.gmra.mxu0 %v2459
  %v2495 = vpop.f32.mrf.mxu0
  %v2496 = vadd.f32 0.0, %v2495
  %v2497 = vpop.f32.mrf.mxu0
  %v2498 = vpop.f32.mrf.mxu0
  %v2499 = vadd.f32 0.0, %v2498
  %v2500 = vpop.f32.mrf.mxu0
  %2501 = vdwg.mxu0
  %v2502 = vld [vmem:[#allocation2 + $0x1] sm:$0x1]
  %v2503 = vld [vmem:[#allocation2 + $0x5] sm:$0x1]
  %v2504 = vld [vmem:[#allocation2 + $0x9] sm:$0x1]
  %v2505 = vld [vmem:[#allocation2 + $0xd] sm:$0x1]
  %v2506 = vld [vmem:[#allocation2 + $0x11] sm:$0x1]
  %v2507 = vld [vmem:[#allocation2 + $0x15] sm:$0x1]
  %v2508 = vld [vmem:[#allocation2 + $0x19] sm:$0x1]
  %v2509 = vld [vmem:[#allocation2 + $0x1d] sm:$0x1]
  %v2510 = vld [vmem:[#allocation2 + $0x21] sm:$0x1]
  %v2511 = vld [vmem:[#allocation2 + $0x25] sm:$0x1]
  %v2512 = vld [vmem:[#allocation2 + $0x29] sm:$0x1]
  %v2513 = vld [vmem:[#allocation2 + $0x2d] sm:$0x1]
  %v2514 = vld [vmem:[#allocation2 + $0x31] sm:$0x1]
  %v2515 = vld [vmem:[#allocation2 + $0x35] sm:$0x1]
  %v2516 = vld [vmem:[#allocation2 + $0x39] sm:$0x1]
  %v2517 = vld [vmem:[#allocation2 + $0x3d] sm:$0x1]
  %v2518 = vpack.c.bf16 %v2502, %v2502
  %v2519 = vpack.c.bf16 %v2503, %v2503
  %v2520 = vpack.c.bf16 %v2504, %v2504
  %v2521 = vpack.c.bf16 %v2505, %v2505
  %v2522 = vpack.c.bf16 %v2506, %v2506
  %v2523 = vpack.c.bf16 %v2507, %v2507
  %v2524 = vpack.c.bf16 %v2508, %v2508
  %v2525 = vpack.c.bf16 %v2509, %v2509
  %v2526 = vpack.c.bf16 %v2510, %v2510
  %v2527 = vpack.c.bf16 %v2511, %v2511
  %v2528 = vpack.c.bf16 %v2512, %v2512
  %v2529 = vpack.c.bf16 %v2513, %v2513
  %v2530 = vpack.c.bf16 %v2514, %v2514
  %v2531 = vpack.c.bf16 %v2515, %v2515
  %v2532 = vpack.c.bf16 %v2516, %v2516
  %v2533 = vpack.c.bf16 %v2517, %v2517
  %v2550 = vunpack.c.l.b16 %v2518
  %v2551 = vunpack.c.l.b16 %v2519
  %v2552 = vunpack.c.l.b16 %v2520
  %v2553 = vunpack.c.l.b16 %v2521
  %v2554 = vunpack.c.l.b16 %v2522
  %v2555 = vunpack.c.l.b16 %v2523
  %v2556 = vunpack.c.l.b16 %v2524
  %v2557 = vunpack.c.l.b16 %v2525
  %v2558 = vunpack.c.l.b16 %v2526
  %v2559 = vunpack.c.l.b16 %v2527
  %v2560 = vunpack.c.l.b16 %v2528
  %v2561 = vunpack.c.l.b16 %v2529
  %v2562 = vunpack.c.l.b16 %v2530
  %v2563 = vunpack.c.l.b16 %v2531
  %v2564 = vunpack.c.l.b16 %v2532
  %v2565 = vunpack.c.l.b16 %v2533
  %v2566 = vrot.slane %v2551, 7
  %v2567 = vsel %vm2422, %v2566, %v2550
  %v2568 = vrot.slane %v2552, 6
  %v2569 = vsel %vm2425, %v2568, %v2567
  %v2570 = vrot.slane %v2553, 5
  %v2571 = vsel %vm2428, %v2570, %v2569
  %v2572 = vrot.slane %v2554, 4
  %v2573 = vsel %vm2431, %v2572, %v2571
  %v2574 = vrot.slane %v2555, 3
  %v2575 = vsel %vm2434, %v2574, %v2573
  %v2576 = vrot.slane %v2556, 2
  %v2577 = vsel %vm2437, %v2576, %v2575
  %v2578 = vrot.slane %v2557, 1
  %v2579 = vsel %vm2440, %v2578, %v2577
  %v2580 = vrot.slane %v2559, 7
  %v2581 = vsel %vm2422, %v2580, %v2558
  %v2582 = vrot.slane %v2560, 6
  %v2583 = vsel %vm2425, %v2582, %v2581
  %v2584 = vrot.slane %v2561, 5
  %v2585 = vsel %vm2428, %v2584, %v2583
  %v2586 = vrot.slane %v2562, 4
  %v2587 = vsel %vm2431, %v2586, %v2585
  %v2588 = vrot.slane %v2563, 3
  %v2589 = vsel %vm2434, %v2588, %v2587
  %v2590 = vrot.slane %v2564, 2
  %v2591 = vsel %vm2437, %v2590, %v2589
  %v2592 = vrot.slane %v2565, 1
  %v2593 = vsel %vm2440, %v2592, %v2591
  %v2594 = vpack.c.b16 %v2593, %v2579
  %2596 = vrot.lane.b32.xlu0 %v2356, 112
  %v2597 = vpop.permute.xlu0 %2596
  %v2600 = vsel %vm2457, %v2594, 0
  %2602 = vmatprep.subr.bf16.mxu0 0
  %2603 = vmatpush1.bf16.msra.mxu0 0
  %2604 = vmatprep.subr.bf16.mxu0 0
  %2605 = vmatpush1.bf16.msra.mxu0 0
  %2606 = vmatprep.subr.bf16.mxu0 0
  %2607 = vmatpush1.bf16.msra.mxu0 0
  %2608 = vmatprep.subr.bf16.mxu0 0
  %2609 = vmatpush1.bf16.msra.mxu0 0
  %2610 = vmatprep.subr.bf16.mxu0 0
  %2611 = vmatpush1.bf16.msra.mxu0 0
  %2612 = vmatprep.subr.bf16.mxu0 0
  %2613 = vmatpush1.bf16.msra.mxu0 0
  %2614 = vmatprep.subr.bf16.mxu0 0
  %2615 = vmatpush1.bf16.msra.mxu0 0
  %2616 = vmatprep.subr.bf16.mxu0 0
  %2617 = vmatpush1.bf16.msra.mxu0 %v2597
  %2618 = vmatprep.subr.bf16.mxu0 0
  %2619 = vmatpush2.bf16.msra.mxu0 0
  %2620 = vmatprep.subr.bf16.mxu0 0
  %2621 = vmatpush2.bf16.msra.mxu0 0
  %2622 = vmatprep.subr.bf16.mxu0 0
  %2623 = vmatpush2.bf16.msra.mxu0 0
  %2624 = vmatprep.subr.bf16.mxu0 0
  %2625 = vmatpush2.bf16.msra.mxu0 0
  %2626 = vmatprep.subr.bf16.mxu0 0
  %2627 = vmatpush2.bf16.msra.mxu0 0
  %2628 = vmatprep.subr.bf16.mxu0 0
  %2629 = vmatpush2.bf16.msra.mxu0 0
  %2630 = vmatprep.subr.bf16.mxu0 0
  %2631 = vmatpush2.bf16.msra.mxu0 0
  %2632 = vmatprep.subr.bf16.mxu0 0
  %2633 = vmatpush2.bf16.msra.mxu0 0
  %2634 = vmatprep.mubr.bf16.mxu0 0
  %2635 = vmatmul.mubr.bf16.gmra.mxu0 %v2600
  %v2636 = vpop.f32.mrf.mxu0
  %v2637 = vadd.f32 0.0, %v2636
  %v2638 = vpop.f32.mrf.mxu0
  %v2639 = vpop.f32.mrf.mxu0
  %v2640 = vadd.f32 0.0, %v2639
  %v2641 = vpop.f32.mrf.mxu0
  %2642 = vdwg.mxu0
  %v2643 = vld [vmem:[#allocation2 + $0x2] sm:$0x1]
  %v2644 = vld [vmem:[#allocation2 + $0x6] sm:$0x1]
  %v2645 = vld [vmem:[#allocation2 + $0xa] sm:$0x1]
  %v2646 = vld [vmem:[#allocation2 + $0xe] sm:$0x1]
  %v2647 = vld [vmem:[#allocation2 + $0x12] sm:$0x1]
  %v2648 = vld [vmem:[#allocation2 + $0x16] sm:$0x1]
  %v2649 = vld [vmem:[#allocation2 + $0x1a] sm:$0x1]
  %v2650 = vld [vmem:[#allocation2 + $0x1e] sm:$0x1]
  %v2651 = vld [vmem:[#allocation2 + $0x22] sm:$0x1]
  %v2652 = vld [vmem:[#allocation2 + $0x26] sm:$0x1]
  %v2653 = vld [vmem:[#allocation2 + $0x2a] sm:$0x1]
  %v2654 = vld [vmem:[#allocation2 + $0x2e] sm:$0x1]
  %v2655 = vld [vmem:[#allocation2 + $0x32] sm:$0x1]
  %v2656 = vld [vmem:[#allocation2 + $0x36] sm:$0x1]
  %v2657 = vld [vmem:[#allocation2 + $0x3a] sm:$0x1]
  %v2658 = vld [vmem:[#allocation2 + $0x3e] sm:$0x1]
  %v2659 = vpack.c.bf16 %v2643, %v2643
  %v2660 = vpack.c.bf16 %v2644, %v2644
  %v2661 = vpack.c.bf16 %v2645, %v2645
  %v2662 = vpack.c.bf16 %v2646, %v2646
  %v2663 = vpack.c.bf16 %v2647, %v2647
  %v2664 = vpack.c.bf16 %v2648, %v2648
  %v2665 = vpack.c.bf16 %v2649, %v2649
  %v2666 = vpack.c.bf16 %v2650, %v2650
  %v2667 = vpack.c.bf16 %v2651, %v2651
  %v2668 = vpack.c.bf16 %v2652, %v2652
  %v2669 = vpack.c.bf16 %v2653, %v2653
  %v2670 = vpack.c.bf16 %v2654, %v2654
  %v2671 = vpack.c.bf16 %v2655, %v2655
  %v2672 = vpack.c.bf16 %v2656, %v2656
  %v2673 = vpack.c.bf16 %v2657, %v2657
  %v2674 = vpack.c.bf16 %v2658, %v2658
  %v2691 = vunpack.c.l.b16 %v2659
  %v2692 = vunpack.c.l.b16 %v2660
  %v2693 = vunpack.c.l.b16 %v2661
  %v2694 = vunpack.c.l.b16 %v2662
  %v2695 = vunpack.c.l.b16 %v2663
  %v2696 = vunpack.c.l.b16 %v2664
  %v2697 = vunpack.c.l.b16 %v2665
  %v2698 = vunpack.c.l.b16 %v2666
  %v2699 = vunpack.c.l.b16 %v2667
  %v2700 = vunpack.c.l.b16 %v2668
  %v2701 = vunpack.c.l.b16 %v2669
  %v2702 = vunpack.c.l.b16 %v2670
  %v2703 = vunpack.c.l.b16 %v2671
  %v2704 = vunpack.c.l.b16 %v2672
  %v2705 = vunpack.c.l.b16 %v2673
  %v2706 = vunpack.c.l.b16 %v2674
  %v2707 = vrot.slane %v2692, 7
  %v2708 = vsel %vm2422, %v2707, %v2691
  %v2709 = vrot.slane %v2693, 6
  %v2710 = vsel %vm2425, %v2709, %v2708
  %v2711 = vrot.slane %v2694, 5
  %v2712 = vsel %vm2428, %v2711, %v2710
  %v2713 = vrot.slane %v2695, 4
  %v2714 = vsel %vm2431, %v2713, %v2712
  %v2715 = vrot.slane %v2696, 3
  %v2716 = vsel %vm2434, %v2715, %v2714
  %v2717 = vrot.slane %v2697, 2
  %v2718 = vsel %vm2437, %v2717, %v2716
  %v2719 = vrot.slane %v2698, 1
  %v2720 = vsel %vm2440, %v2719, %v2718
  %v2721 = vrot.slane %v2700, 7
  %v2722 = vsel %vm2422, %v2721, %v2699
  %v2723 = vrot.slane %v2701, 6
  %v2724 = vsel %vm2425, %v2723, %v2722
  %v2725 = vrot.slane %v2702, 5
  %v2726 = vsel %vm2428, %v2725, %v2724
  %v2727 = vrot.slane %v2703, 4
  %v2728 = vsel %vm2431, %v2727, %v2726
  %v2729 = vrot.slane %v2704, 3
  %v2730 = vsel %vm2434, %v2729, %v2728
  %v2731 = vrot.slane %v2705, 2
  %v2732 = vsel %vm2437, %v2731, %v2730
  %v2733 = vrot.slane %v2706, 1
  %v2734 = vsel %vm2440, %v2733, %v2732
  %v2735 = vpack.c.b16 %v2734, %v2720
  %2736 = vrot.lane.b32.xlu0 %v2356, 96
  %v2737 = vpop.permute.xlu0 %2736
  %v2740 = vsel %vm2457, %v2735, 0
  %2742 = vmatprep.subr.bf16.mxu0 0
  %2743 = vmatpush1.bf16.msra.mxu0 0
  %2744 = vmatprep.subr.bf16.mxu0 0
  %2745 = vmatpush1.bf16.msra.mxu0 0
  %2746 = vmatprep.subr.bf16.mxu0 0
  %2747 = vmatpush1.bf16.msra.mxu0 0
  %2748 = vmatprep.subr.bf16.mxu0 0
  %2749 = vmatpush1.bf16.msra.mxu0 0
  %2750 = vmatprep.subr.bf16.mxu0 0
  %2751 = vmatpush1.bf16.msra.mxu0 0
  %2752 = vmatprep.subr.bf16.mxu0 0
  %2753 = vmatpush1.bf16.msra.mxu0 0
  %2754 = vmatprep.subr.bf16.mxu0 0
  %2755 = vmatpush1.bf16.msra.mxu0 0
  %2756 = vmatprep.subr.bf16.mxu0 0
  %2757 = vmatpush1.bf16.msra.mxu0 %v2737
  %2758 = vmatprep.subr.bf16.mxu0 0
  %2759 = vmatpush2.bf16.msra.mxu0 0
  %2760 = vmatprep.subr.bf16.mxu0 0
  %2761 = vmatpush2.bf16.msra.mxu0 0
  %2762 = vmatprep.subr.bf16.mxu0 0
  %2763 = vmatpush2.bf16.msra.mxu0 0
  %2764 = vmatprep.subr.bf16.mxu0 0
  %2765 = vmatpush2.bf16.msra.mxu0 0
  %2766 = vmatprep.subr.bf16.mxu0 0
  %2767 = vmatpush2.bf16.msra.mxu0 0
  %2768 = vmatprep.subr.bf16.mxu0 0
  %2769 = vmatpush2.bf16.msra.mxu0 0
  %2770 = vmatprep.subr.bf16.mxu0 0
  %2771 = vmatpush2.bf16.msra.mxu0 0
  %2772 = vmatprep.subr.bf16.mxu0 0
  %2773 = vmatpush2.bf16.msra.mxu0 0
  %2774 = vmatprep.mubr.bf16.mxu0 0
  %2775 = vmatmul.mubr.bf16.gmra.mxu0 %v2740
  %v2776 = vpop.f32.mrf.mxu0
  %v2777 = vadd.f32 0.0, %v2776
  %v2778 = vpop.f32.mrf.mxu0
  %v2779 = vpop.f32.mrf.mxu0
  %v2780 = vadd.f32 0.0, %v2779
  %v2781 = vpop.f32.mrf.mxu0
  %2782 = vdwg.mxu0
  %v2783 = vld [vmem:[#allocation2 + $0x3] sm:$0x1]
  %v2784 = vld [vmem:[#allocation2 + $0x7] sm:$0x1]
  %v2785 = vld [vmem:[#allocation2 + $0xb] sm:$0x1]
  %v2786 = vld [vmem:[#allocation2 + $0xf] sm:$0x1]
  %v2787 = vld [vmem:[#allocation2 + $0x13] sm:$0x1]
  %v2788 = vld [vmem:[#allocation2 + $0x17] sm:$0x1]
  %v2789 = vld [vmem:[#allocation2 + $0x1b] sm:$0x1]
  %v2790 = vld [vmem:[#allocation2 + $0x1f] sm:$0x1]
  %v2791 = vld [vmem:[#allocation2 + $0x23] sm:$0x1]
  %v2792 = vld [vmem:[#allocation2 + $0x27] sm:$0x1]
  %v2793 = vld [vmem:[#allocation2 + $0x2b] sm:$0x1]
  %v2794 = vld [vmem:[#allocation2 + $0x2f] sm:$0x1]
  %v2795 = vld [vmem:[#allocation2 + $0x33] sm:$0x1]
  %v2796 = vld [vmem:[#allocation2 + $0x37] sm:$0x1]
  %v2797 = vld [vmem:[#allocation2 + $0x3b] sm:$0x1]
  %v2798 = vld [vmem:[#allocation2 + $0x3f] sm:$0x1]
  %v2799 = vpack.c.bf16 %v2783, %v2783
  %v2800 = vpack.c.bf16 %v2784, %v2784
  %v2801 = vpack.c.bf16 %v2785, %v2785
  %v2802 = vpack.c.bf16 %v2786, %v2786
  %v2803 = vpack.c.bf16 %v2787, %v2787
  %v2804 = vpack.c.bf16 %v2788, %v2788
  %v2805 = vpack.c.bf16 %v2789, %v2789
  %v2806 = vpack.c.bf16 %v2790, %v2790
  %v2807 = vpack.c.bf16 %v2791, %v2791
  %v2808 = vpack.c.bf16 %v2792, %v2792
  %v2809 = vpack.c.bf16 %v2793, %v2793
  %v2810 = vpack.c.bf16 %v2794, %v2794
  %v2811 = vpack.c.bf16 %v2795, %v2795
  %v2812 = vpack.c.bf16 %v2796, %v2796
  %v2813 = vpack.c.bf16 %v2797, %v2797
  %v2814 = vpack.c.bf16 %v2798, %v2798
  %v2831 = vunpack.c.l.b16 %v2799
  %v2832 = vunpack.c.l.b16 %v2800
  %v2833 = vunpack.c.l.b16 %v2801
  %v2834 = vunpack.c.l.b16 %v2802
  %v2835 = vunpack.c.l.b16 %v2803
  %v2836 = vunpack.c.l.b16 %v2804
  %v2837 = vunpack.c.l.b16 %v2805
  %v2838 = vunpack.c.l.b16 %v2806
  %v2839 = vunpack.c.l.b16 %v2807
  %v2840 = vunpack.c.l.b16 %v2808
  %v2841 = vunpack.c.l.b16 %v2809
  %v2842 = vunpack.c.l.b16 %v2810
  %v2843 = vunpack.c.l.b16 %v2811
  %v2844 = vunpack.c.l.b16 %v2812
  %v2845 = vunpack.c.l.b16 %v2813
  %v2846 = vunpack.c.l.b16 %v2814
  %v2847 = vrot.slane %v2832, 7
  %v2848 = vsel %vm2422, %v2847, %v2831
  %v2849 = vrot.slane %v2833, 6
  %v2850 = vsel %vm2425, %v2849, %v2848
  %v2851 = vrot.slane %v2834, 5
  %v2852 = vsel %vm2428, %v2851, %v2850
  %v2853 = vrot.slane %v2835, 4
  %v2854 = vsel %vm2431, %v2853, %v2852
  %v2855 = vrot.slane %v2836, 3
  %v2856 = vsel %vm2434, %v2855, %v2854
  %v2857 = vrot.slane %v2837, 2
  %v2858 = vsel %vm2437, %v2857, %v2856
  %v2859 = vrot.slane %v2838, 1
  %v2860 = vsel %vm2440, %v2859, %v2858
  %v2861 = vrot.slane %v2840, 7
  %v2862 = vsel %vm2422, %v2861, %v2839
  %v2863 = vrot.slane %v2841, 6
  %v2864 = vsel %vm2425, %v2863, %v2862
  %v2865 = vrot.slane %v2842, 5
  %v2866 = vsel %vm2428, %v2865, %v2864
  %v2867 = vrot.slane %v2843, 4
  %v2868 = vsel %vm2431, %v2867, %v2866
  %v2869 = vrot.slane %v2844, 3
  %v2870 = vsel %vm2434, %v2869, %v2868
  %v2871 = vrot.slane %v2845, 2
  %v2872 = vsel %vm2437, %v2871, %v2870
  %v2873 = vrot.slane %v2846, 1
  %v2874 = vsel %vm2440, %v2873, %v2872
  %v2875 = vpack.c.b16 %v2874, %v2860
  %2876 = vrot.lane.b32.xlu0 %v2356, 80
  %v2877 = vpop.permute.xlu0 %2876
  %v2880 = vsel %vm2457, %v2875, 0
  %2882 = vmatprep.subr.bf16.mxu0 0
  %2883 = vmatpush1.bf16.msra.mxu0 0
  %2884 = vmatprep.subr.bf16.mxu0 0
  %2885 = vmatpush1.bf16.msra.mxu0 0
  %2886 = vmatprep.subr.bf16.mxu0 0
  %2887 = vmatpush1.bf16.msra.mxu0 0
  %2888 = vmatprep.subr.bf16.mxu0 0
  %2889 = vmatpush1.bf16.msra.mxu0 0
  %2890 = vmatprep.subr.bf16.mxu0 0
  %2891 = vmatpush1.bf16.msra.mxu0 0
  %2892 = vmatprep.subr.bf16.mxu0 0
  %2893 = vmatpush1.bf16.msra.mxu0 0
  %2894 = vmatprep.subr.bf16.mxu0 0
  %2895 = vmatpush1.bf16.msra.mxu0 0
  %2896 = vmatprep.subr.bf16.mxu0 0
  %2897 = vmatpush1.bf16.msra.mxu0 %v2877
  %2898 = vmatprep.subr.bf16.mxu0 0
  %2899 = vmatpush2.bf16.msra.mxu0 0
  %2900 = vmatprep.subr.bf16.mxu0 0
  %2901 = vmatpush2.bf16.msra.mxu0 0
  %2902 = vmatprep.subr.bf16.mxu0 0
  %2903 = vmatpush2.bf16.msra.mxu0 0
  %2904 = vmatprep.subr.bf16.mxu0 0
  %2905 = vmatpush2.bf16.msra.mxu0 0
  %2906 = vmatprep.subr.bf16.mxu0 0
  %2907 = vmatpush2.bf16.msra.mxu0 0
  %2908 = vmatprep.subr.bf16.mxu0 0
  %2909 = vmatpush2.bf16.msra.mxu0 0
  %2910 = vmatprep.subr.bf16.mxu0 0
  %2911 = vmatpush2.bf16.msra.mxu0 0
  %2912 = vmatprep.subr.bf16.mxu0 0
  %2913 = vmatpush2.bf16.msra.mxu0 0
  %2914 = vmatprep.mubr.bf16.mxu0 0
  %2915 = vmatmul.mubr.bf16.gmra.mxu0 %v2880
  %v2916 = vpop.f32.mrf.mxu0
  %v2917 = vadd.f32 0.0, %v2916
  %v2918 = vpop.f32.mrf.mxu0
  %v2919 = vpop.f32.mrf.mxu0
  %v2920 = vadd.f32 0.0, %v2919
  %v2921 = vpop.f32.mrf.mxu0
  %2922 = vdwg.mxu0
  %2925 = vrot.lane.b32.xlu0 %v2637, 16
  %v2926 = vpop.permute.xlu0 %2925
  %2927 = vrot.lane.b32.xlu0 %v2640, 16
  %v2928 = vpop.permute.xlu0 %2927
  %2933 = vrot.lane.b32.xlu0 %v2777, 32
  %v2934 = vpop.permute.xlu0 %2933
  %2935 = vrot.lane.b32.xlu0 %v2780, 32
  %v2936 = vpop.permute.xlu0 %2935
  %2941 = vrot.lane.b32.xlu0 %v2917, 48
  %v2942 = vpop.permute.xlu0 %2941
  %2943 = vrot.lane.b32.xlu0 %v2920, 48
  %v2944 = vpop.permute.xlu0 %2943
  %v2947 = vsel %vm2457, %v2496, %v2926
  %v2948 = vsel %vm2457, %v2499, %v2928
  %vm2949 = vcmask 261120
  %v2950 = vsel %vm2949, %v2947, %v2934
  %v2951 = vsel %vm2949, %v2948, %v2936
  %vm2952 = vcmask 392192
  %v2953 = vsel %vm2952, %v2950, %v2942
  %v2954 = vsel %vm2952, %v2951, %v2944
  %v2955 = vlaneseq
  %v2956 = vshrl.u32 %v2955, 7
  %v2957 = vsub.s32 4, %v2956
  %v2958 = vrot.slane %v665, %v2957
  %v2959 = vadd.f32 %v2953, %v2958
  %v2960 = vadd.f32 %v2954, %v2958
  %v2961 = vmax.f32 %v2959, 0.0
  %v2962 = vmax.f32 %v2960, 0.0
  %v2963 = vld [vmem:[%s4 + $0x48] sm:$0xff]
  %v2964 = vld [vmem:[%s4 + $0x50] sm:$0xff]
  %v2965 = vld [vmem:[%s4 + $0x58] sm:$0xff]
  %v2966 = vld [vmem:[%s4 + $0x60] sm:$0xff]
  %v2967 = vld [vmem:[%s4 + $0x68] sm:$0xff]
  %v2968 = vld [vmem:[%s4 + $0x70] sm:$0xff]
  %v2969 = vld [vmem:[%s4 + $0x78] sm:$0xff]
  %v2970 = vld [vmem:[%s4 + $0x80] sm:$0xff]
  %v2971 = vld [vmem:[%s4 + $0x88] sm:$0xf]
  %v2972 = vld [vmem:[%s4 + $0x90] sm:$0xf]
  %v2973 = vld [vmem:[%s4 + $0x98] sm:$0xf]
  %v2974 = vld [vmem:[%s4 + $0xa0] sm:$0xf]
  %v2975 = vld [vmem:[%s4 + $0xa8] sm:$0xf]
  %v2976 = vld [vmem:[%s4 + $0xb0] sm:$0xf]
  %v2977 = vld [vmem:[%s4 + $0xb8] sm:$0xf]
  %v2978 = vld [vmem:[%s4 + $0xc0] sm:$0xf]
  %v2979 = vld [vmem:[%s4 + $0xc8] sm:$0xf]
  %v2980 = vld [vmem:[%s4 + $0xd0] sm:$0xf]
  %v2981 = vld [vmem:[%s4 + $0xd8] sm:$0xf]
  %v2982 = vld [vmem:[%s4 + $0xe0] sm:$0xf]
  %v2983 = vld [vmem:[%s4 + $0xe8] sm:$0xf]
  %v2984 = vld [vmem:[%s4 + $0xf0] sm:$0xf]
  %v2985 = vld [vmem:[%s4 + $0xf8] sm:$0xf]
  %v2986 = vld [vmem:[%s4 + $0x100] sm:$0xf]
  %v2987 = vld [vmem:[%s5 + $0x10] sm:$0xff]
  %v2988 = vld [vmem:[%s5 + $0x18] sm:$0xff]
  %v2989 = vpack.c.bf16 %v2962, %v2961
  %v2990 = vlaneseq
  %v2991 = vshrl.u32 %v2990, 7
  %v2992 = vsub.s32 0, %v2991
  %v2993 = vrot.slane %v2987, %v2992
  %v2994 = vlaneseq
  %v2995 = vshrl.u32 %v2994, 7
  %v2996 = vsub.s32 0, %v2995
  %v2997 = vrot.slane %v2988, %v2996
  %v3006 = vunpack.c.l.b16 %v2963
  %v3007 = vunpack.c.h.b16 %v2963
  %v3008 = vunpack.c.l.b16 %v2964
  %v3009 = vunpack.c.h.b16 %v2964
  %v3010 = vunpack.c.l.b16 %v2965
  %v3011 = vunpack.c.h.b16 %v2965
  %v3012 = vunpack.c.l.b16 %v2966
  %v3013 = vunpack.c.h.b16 %v2966
  %v3014 = vunpack.c.l.b16 %v2967
  %v3015 = vunpack.c.h.b16 %v2967
  %v3016 = vunpack.c.l.b16 %v2968
  %v3017 = vunpack.c.h.b16 %v2968
  %v3018 = vunpack.c.l.b16 %v2969
  %v3019 = vunpack.c.h.b16 %v2969
  %v3020 = vunpack.c.l.b16 %v2970
  %v3021 = vunpack.c.h.b16 %v2970
  %v3022 = vpack.c.b16 %v3008, %v3006
  %v3023 = vpack.c.b16 %v3009, %v3007
  %v3024 = vpack.c.b16 %v3012, %v3010
  %v3025 = vpack.c.b16 %v3013, %v3011
  %v3026 = vpack.c.b16 %v3016, %v3014
  %v3027 = vpack.c.b16 %v3017, %v3015
  %v3028 = vpack.c.b16 %v3020, %v3018
  %v3029 = vpack.c.b16 %v3021, %v3019
  %v3039 = vsel %vm1425, %v2989, 0
  %3041 = vmatprep.subr.bf16.mxu0 0
  %3042 = vmatpush1.bf16.msra.mxu0 0
  %3043 = vmatprep.subr.bf16.mxu0 0
  %3044 = vmatpush1.bf16.msra.mxu0 0
  %3045 = vmatprep.subr.bf16.mxu0 0
  %3046 = vmatpush1.bf16.msra.mxu0 0
  %3047 = vmatprep.subr.bf16.mxu0 0
  %3048 = vmatpush1.bf16.msra.mxu0 0
  %3049 = vmatprep.subr.bf16.mxu0 %v3029
  %3050 = vmatpush1.bf16.msra.mxu0 %v3028
  %3051 = vmatprep.subr.bf16.mxu0 %v3027
  %3052 = vmatpush1.bf16.msra.mxu0 %v3026
  %3053 = vmatprep.subr.bf16.mxu0 %v3025
  %3054 = vmatpush1.bf16.msra.mxu0 %v3024
  %3055 = vmatprep.subr.bf16.mxu0 %v3023
  %3056 = vmatpush1.bf16.msra.mxu0 %v3022
  %3057 = vmatprep.subr.bf16.mxu0 0
  %3058 = vmatpush2.bf16.msra.mxu0 0
  %3059 = vmatprep.subr.bf16.mxu0 0
  %3060 = vmatpush2.bf16.msra.mxu0 0
  %3061 = vmatprep.subr.bf16.mxu0 0
  %3062 = vmatpush2.bf16.msra.mxu0 0
  %3063 = vmatprep.subr.bf16.mxu0 0
  %3064 = vmatpush2.bf16.msra.mxu0 0
  %3065 = vmatprep.subr.bf16.mxu0 0
  %3066 = vmatpush2.bf16.msra.mxu0 0
  %3067 = vmatprep.subr.bf16.mxu0 0
  %3068 = vmatpush2.bf16.msra.mxu0 0
  %3069 = vmatprep.subr.bf16.mxu0 0
  %3070 = vmatpush2.bf16.msra.mxu0 0
  %3071 = vmatprep.subr.bf16.mxu0 0
  %3072 = vmatpush2.bf16.msra.mxu0 0
  %3073 = vmatprep.mubr.bf16.mxu0 0
  %3074 = vmatmul.mubr.bf16.gmra.mxu0 %v3039
  %v3075 = vpop.f32.mrf.mxu0
  %v3076 = vadd.f32 %v2993, %v3075
  %v3077 = vpop.f32.mrf.mxu0
  %v3078 = vadd.f32 %v2997, %v3077
  %v3079 = vpop.f32.mrf.mxu0
  %v3080 = vadd.f32 %v2993, %v3079
  %v3081 = vpop.f32.mrf.mxu0
  %v3082 = vadd.f32 %v2997, %v3081
  %3083 = vdwg.mxu0
  %v3084 = vlaneseq
  %v3085 = vshrl.u32 %v3084, 7
  %v3086 = vsub.s32 1, %v3085
  %v3087 = vrot.slane %v2987, %v3086
  %v3088 = vmul.f32 %v59, %v3087
  %v3089 = vmul.f32 %v64, %v3087
  %v3090 = vmul.f32 %v69, %v3087
  %v3091 = vmul.f32 %v74, %v3087
  %v3092 = vmul.f32 %v79, %v3087
  %v3093 = vmul.f32 %v84, %v3087
  %v3094 = vmul.f32 %v89, %v3087
  %v3095 = vmul.f32 %v94, %v3087
  %v3096 = vmul.f32 %v99, %v3087
  %v3097 = vmul.f32 %v104, %v3087
  %v3098 = vmul.f32 %v109, %v3087
  %v3099 = vmul.f32 %v114, %v3087
  %v3100 = vmul.f32 %v119, %v3087
  %v3101 = vmul.f32 %v124, %v3087
  %v3102 = vmul.f32 %v129, %v3087
  %v3103 = vmul.f32 %v134, %v3087
  %v3104 = vmul.f32 %v139, %v3087
  %v3105 = vmul.f32 %v144, %v3087
  %v3106 = vmul.f32 %v149, %v3087
  %v3107 = vmul.f32 %v154, %v3087
  %v3108 = vmul.f32 %v159, %v3087
  %v3109 = vmul.f32 %v164, %v3087
  %v3110 = vmul.f32 %v169, %v3087
  %v3111 = vmul.f32 %v174, %v3087
  %v3112 = vmul.f32 %v179, %v3087
  %v3113 = vmul.f32 %v184, %v3087
  %v3114 = vmul.f32 %v189, %v3087
  %v3115 = vmul.f32 %v194, %v3087
  %v3116 = vmul.f32 %v199, %v3087
  %v3117 = vmul.f32 %v204, %v3087
  %v3118 = vmul.f32 %v209, %v3087
  %v3119 = vmul.f32 %v214, %v3087
  %v3120 = vlaneseq
  %v3121 = vshrl.u32 %v3120, 7
  %v3122 = vsub.s32 2, %v3121
  %v3123 = vrot.slane %v2987, %v3122
  %v3124 = vmul.f32 %v218, %v3123
  %v3125 = vmul.f32 %v222, %v3123
  %v3126 = vmul.f32 %v226, %v3123
  %v3127 = vmul.f32 %v230, %v3123
  %v3128 = vmul.f32 %v234, %v3123
  %v3129 = vmul.f32 %v238, %v3123
  %v3130 = vmul.f32 %v242, %v3123
  %v3131 = vmul.f32 %v246, %v3123
  %v3132 = vmul.f32 %v250, %v3123
  %v3133 = vmul.f32 %v254, %v3123
  %v3134 = vmul.f32 %v258, %v3123
  %v3135 = vmul.f32 %v262, %v3123
  %v3136 = vmul.f32 %v266, %v3123
  %v3137 = vmul.f32 %v270, %v3123
  %v3138 = vmul.f32 %v274, %v3123
  %v3139 = vmul.f32 %v278, %v3123
  %v3140 = vmul.f32 %v282, %v3123
  %v3141 = vmul.f32 %v286, %v3123
  %v3142 = vmul.f32 %v290, %v3123
  %v3143 = vmul.f32 %v294, %v3123
  %v3144 = vmul.f32 %v298, %v3123
  %v3145 = vmul.f32 %v302, %v3123
  %v3146 = vmul.f32 %v306, %v3123
  %v3147 = vmul.f32 %v310, %v3123
  %v3148 = vmul.f32 %v314, %v3123
  %v3149 = vmul.f32 %v318, %v3123
  %v3150 = vmul.f32 %v322, %v3123
  %v3151 = vmul.f32 %v326, %v3123
  %v3152 = vmul.f32 %v330, %v3123
  %v3153 = vmul.f32 %v334, %v3123
  %v3154 = vmul.f32 %v338, %v3123
  %v3155 = vmul.f32 %v342, %v3123
  %v3156 = vadd.f32 %v3088, %v3124
  %v3157 = vadd.f32 %v3089, %v3125
  %v3158 = vadd.f32 %v3090, %v3126
  %v3159 = vadd.f32 %v3091, %v3127
  %v3160 = vadd.f32 %v3092, %v3128
  %v3161 = vadd.f32 %v3093, %v3129
  %v3162 = vadd.f32 %v3094, %v3130
  %v3163 = vadd.f32 %v3095, %v3131
  %v3164 = vadd.f32 %v3096, %v3132
  %v3165 = vadd.f32 %v3097, %v3133
  %v3166 = vadd.f32 %v3098, %v3134
  %v3167 = vadd.f32 %v3099, %v3135
  %v3168 = vadd.f32 %v3100, %v3136
  %v3169 = vadd.f32 %v3101, %v3137
  %v3170 = vadd.f32 %v3102, %v3138
  %v3171 = vadd.f32 %v3103, %v3139
  %v3172 = vadd.f32 %v3104, %v3140
  %v3173 = vadd.f32 %v3105, %v3141
  %v3174 = vadd.f32 %v3106, %v3142
  %v3175 = vadd.f32 %v3107, %v3143
  %v3176 = vadd.f32 %v3108, %v3144
  %v3177 = vadd.f32 %v3109, %v3145
  %v3178 = vadd.f32 %v3110, %v3146
  %v3179 = vadd.f32 %v3111, %v3147
  %v3180 = vadd.f32 %v3112, %v3148
  %v3181 = vadd.f32 %v3113, %v3149
  %v3182 = vadd.f32 %v3114, %v3150
  %v3183 = vadd.f32 %v3115, %v3151
  %v3184 = vadd.f32 %v3116, %v3152
  %v3185 = vadd.f32 %v3117, %v3153
  %v3186 = vadd.f32 %v3118, %v3154
  %v3187 = vadd.f32 %v3119, %v3155
  %v3188 = vlaneseq
  %v3189 = vshrl.u32 %v3188, 7
  %v3190 = vsub.s32 3, %v3189
  %v3191 = vrot.slane %v2987, %v3190
  %v3192 = vmul.f32 %v346, %v3191
  %v3193 = vmul.f32 %v350, %v3191
  %v3194 = vmul.f32 %v354, %v3191
  %v3195 = vmul.f32 %v358, %v3191
  %v3196 = vmul.f32 %v362, %v3191
  %v3197 = vmul.f32 %v366, %v3191
  %v3198 = vmul.f32 %v370, %v3191
  %v3199 = vmul.f32 %v374, %v3191
  %v3200 = vmul.f32 %v378, %v3191
  %v3201 = vmul.f32 %v382, %v3191
  %v3202 = vmul.f32 %v386, %v3191
  %v3203 = vmul.f32 %v390, %v3191
  %v3204 = vmul.f32 %v394, %v3191
  %v3205 = vmul.f32 %v398, %v3191
  %v3206 = vmul.f32 %v402, %v3191
  %v3207 = vmul.f32 %v406, %v3191
  %v3208 = vmul.f32 %v410, %v3191
  %v3209 = vmul.f32 %v414, %v3191
  %v3210 = vmul.f32 %v418, %v3191
  %v3211 = vmul.f32 %v422, %v3191
  %v3212 = vmul.f32 %v426, %v3191
  %v3213 = vmul.f32 %v430, %v3191
  %v3214 = vmul.f32 %v434, %v3191
  %v3215 = vmul.f32 %v438, %v3191
  %v3216 = vmul.f32 %v442, %v3191
  %v3217 = vmul.f32 %v446, %v3191
  %v3218 = vmul.f32 %v450, %v3191
  %v3219 = vmul.f32 %v454, %v3191
  %v3220 = vmul.f32 %v458, %v3191
  %v3221 = vmul.f32 %v462, %v3191
  %v3222 = vmul.f32 %v466, %v3191
  %v3223 = vmul.f32 %v470, %v3191
  %v3224 = vadd.f32 %v3156, %v3192
  %v3225 = vadd.f32 %v3157, %v3193
  %v3226 = vadd.f32 %v3158, %v3194
  %v3227 = vadd.f32 %v3159, %v3195
  %v3228 = vadd.f32 %v3160, %v3196
  %v3229 = vadd.f32 %v3161, %v3197
  %v3230 = vadd.f32 %v3162, %v3198
  %v3231 = vadd.f32 %v3163, %v3199
  %v3232 = vadd.f32 %v3164, %v3200
  %v3233 = vadd.f32 %v3165, %v3201
  %v3234 = vadd.f32 %v3166, %v3202
  %v3235 = vadd.f32 %v3167, %v3203
  %v3236 = vadd.f32 %v3168, %v3204
  %v3237 = vadd.f32 %v3169, %v3205
  %v3238 = vadd.f32 %v3170, %v3206
  %v3239 = vadd.f32 %v3171, %v3207
  %v3240 = vadd.f32 %v3172, %v3208
  %v3241 = vadd.f32 %v3173, %v3209
  %v3242 = vadd.f32 %v3174, %v3210
  %v3243 = vadd.f32 %v3175, %v3211
  %v3244 = vadd.f32 %v3176, %v3212
  %v3245 = vadd.f32 %v3177, %v3213
  %v3246 = vadd.f32 %v3178, %v3214
  %v3247 = vadd.f32 %v3179, %v3215
  %v3248 = vadd.f32 %v3180, %v3216
  %v3249 = vadd.f32 %v3181, %v3217
  %v3250 = vadd.f32 %v3182, %v3218
  %v3251 = vadd.f32 %v3183, %v3219
  %v3252 = vadd.f32 %v3184, %v3220
  %v3253 = vadd.f32 %v3185, %v3221
  %v3254 = vadd.f32 %v3186, %v3222
  %v3255 = vadd.f32 %v3187, %v3223
  %v3258 = vcombine.high %v3078, %v3078
  %v3260 = vunpack.c.l.s4 1966171168
  %v3261 = vunpack.c.0.s8 %v3260
  %v3262 = vlaneseq
  %v3263 = vshrl.u32 %v3262, 7
  %v3264 = vsub.s32 %v3261, %v3263
  %v3265 = vrot.slane %v3078, %v3264
  %v3267 = vunpack.c.l.s4 1966171168
  %v3268 = vunpack.c.0.s8 %v3267
  %v3269 = vlaneseq
  %v3270 = vshrl.u32 %v3269, 7
  %v3271 = vsub.s32 %v3268, %v3270
  %v3272 = vrot.slane %v3258, %v3271
  %v3273 = vcombine.high %v3265, %v3265
  %v3274 = vcombine.high %v3272, %v3272
  %v3276 = vunpack.c.l.s4 1966171168
  %v3277 = vunpack.c.0.s8 %v3276
  %v3278 = vlaneseq
  %v3279 = vshrl.u32 %v3278, 7
  %v3280 = vsub.s32 %v3277, %v3279
  %v3281 = vrot.slane %v3265, %v3280
  %v3283 = vunpack.c.l.s4 1966171168
  %v3284 = vunpack.c.0.s8 %v3283
  %v3285 = vlaneseq
  %v3286 = vshrl.u32 %v3285, 7
  %v3287 = vsub.s32 %v3284, %v3286
  %v3288 = vrot.slane %v3272, %v3287
  %v3290 = vunpack.c.l.s4 1966171168
  %v3291 = vunpack.c.0.s8 %v3290
  %v3292 = vlaneseq
  %v3293 = vshrl.u32 %v3292, 7
  %v3294 = vsub.s32 %v3291, %v3293
  %v3295 = vrot.slane %v3273, %v3294
  %v3297 = vunpack.c.l.s4 1966171168
  %v3298 = vunpack.c.0.s8 %v3297
  %v3299 = vlaneseq
  %v3300 = vshrl.u32 %v3299, 7
  %v3301 = vsub.s32 %v3298, %v3300
  %v3302 = vrot.slane %v3274, %v3301
  %v3303 = vcombine.high %v3281, %v3281
  %v3304 = vcombine.high %v3288, %v3288
  %v3305 = vcombine.high %v3295, %v3295
  %v3306 = vcombine.high %v3302, %v3302
  %v3307 = vcombine.high %v3082, %v3082
  %v3309 = vunpack.c.l.s4 1966171168
  %v3310 = vunpack.c.0.s8 %v3309
  %v3311 = vlaneseq
  %v3312 = vshrl.u32 %v3311, 7
  %v3313 = vsub.s32 %v3310, %v3312
  %v3314 = vrot.slane %v3082, %v3313
  %v3316 = vunpack.c.l.s4 1966171168
  %v3317 = vunpack.c.0.s8 %v3316
  %v3318 = vlaneseq
  %v3319 = vshrl.u32 %v3318, 7
  %v3320 = vsub.s32 %v3317, %v3319
  %v3321 = vrot.slane %v3307, %v3320
  %v3322 = vcombine.high %v3314, %v3314
  %v3323 = vcombine.high %v3321, %v3321
  %v3325 = vunpack.c.l.s4 1966171168
  %v3326 = vunpack.c.0.s8 %v3325
  %v3327 = vlaneseq
  %v3328 = vshrl.u32 %v3327, 7
  %v3329 = vsub.s32 %v3326, %v3328
  %v3330 = vrot.slane %v3314, %v3329
  %v3332 = vunpack.c.l.s4 1966171168
  %v3333 = vunpack.c.0.s8 %v3332
  %v3334 = vlaneseq
  %v3335 = vshrl.u32 %v3334, 7
  %v3336 = vsub.s32 %v3333, %v3335
  %v3337 = vrot.slane %v3321, %v3336
  %v3339 = vunpack.c.l.s4 1966171168
  %v3340 = vunpack.c.0.s8 %v3339
  %v3341 = vlaneseq
  %v3342 = vshrl.u32 %v3341, 7
  %v3343 = vsub.s32 %v3340, %v3342
  %v3344 = vrot.slane %v3322, %v3343
  %v3346 = vunpack.c.l.s4 1966171168
  %v3347 = vunpack.c.0.s8 %v3346
  %v3348 = vlaneseq
  %v3349 = vshrl.u32 %v3348, 7
  %v3350 = vsub.s32 %v3347, %v3349
  %v3351 = vrot.slane %v3323, %v3350
  %v3352 = vcombine.high %v3330, %v3330
  %v3353 = vcombine.high %v3337, %v3337
  %v3354 = vcombine.high %v3344, %v3344
  %v3355 = vcombine.high %v3351, %v3351
  %v3356 = vlaneseq
  %v3357 = vshrl.u32 %v3356, 7
  %v3358 = vsub.s32 0, %v3357
  %v3359 = vrot.slane %v3281, %v3358
  %v3360 = vlaneseq
  %v3361 = vshrl.u32 %v3360, 7
  %v3362 = vsub.s32 0, %v3361
  %v3363 = vrot.slane %v3295, %v3362
  %v3364 = vlaneseq
  %v3365 = vshrl.u32 %v3364, 7
  %v3366 = vsub.s32 0, %v3365
  %v3367 = vrot.slane %v3303, %v3366
  %v3368 = vlaneseq
  %v3369 = vshrl.u32 %v3368, 7
  %v3370 = vsub.s32 0, %v3369
  %v3371 = vrot.slane %v3305, %v3370
  %v3372 = vlaneseq
  %v3373 = vshrl.u32 %v3372, 7
  %v3374 = vsub.s32 0, %v3373
  %v3375 = vrot.slane %v3288, %v3374
  %v3376 = vlaneseq
  %v3377 = vshrl.u32 %v3376, 7
  %v3378 = vsub.s32 0, %v3377
  %v3379 = vrot.slane %v3302, %v3378
  %v3380 = vlaneseq
  %v3381 = vshrl.u32 %v3380, 7
  %v3382 = vsub.s32 0, %v3381
  %v3383 = vrot.slane %v3304, %v3382
  %v3384 = vlaneseq
  %v3385 = vshrl.u32 %v3384, 7
  %v3386 = vsub.s32 0, %v3385
  %v3387 = vrot.slane %v3306, %v3386
  %v3388 = vlaneseq
  %v3389 = vshrl.u32 %v3388, 7
  %v3390 = vsub.s32 0, %v3389
  %v3391 = vrot.slane %v3330, %v3390
  %v3392 = vlaneseq
  %v3393 = vshrl.u32 %v3392, 7
  %v3394 = vsub.s32 0, %v3393
  %v3395 = vrot.slane %v3344, %v3394
  %v3396 = vlaneseq
  %v3397 = vshrl.u32 %v3396, 7
  %v3398 = vsub.s32 0, %v3397
  %v3399 = vrot.slane %v3352, %v3398
  %v3400 = vlaneseq
  %v3401 = vshrl.u32 %v3400, 7
  %v3402 = vsub.s32 0, %v3401
  %v3403 = vrot.slane %v3354, %v3402
  %v3404 = vlaneseq
  %v3405 = vshrl.u32 %v3404, 7
  %v3406 = vsub.s32 0, %v3405
  %v3407 = vrot.slane %v3337, %v3406
  %v3408 = vlaneseq
  %v3409 = vshrl.u32 %v3408, 7
  %v3410 = vsub.s32 0, %v3409
  %v3411 = vrot.slane %v3351, %v3410
  %v3412 = vlaneseq
  %v3413 = vshrl.u32 %v3412, 7
  %v3414 = vsub.s32 0, %v3413
  %v3415 = vrot.slane %v3353, %v3414
  %v3416 = vlaneseq
  %v3417 = vshrl.u32 %v3416, 7
  %v3418 = vsub.s32 0, %v3417
  %v3419 = vrot.slane %v3355, %v3418
  %v3436 = vadd.f32 %v3359, %v3076
  %v3437 = vadd.f32 %v3359, %v3080
  %v3438 = vadd.f32 %v3363, %v3076
  %v3439 = vadd.f32 %v3363, %v3080
  %v3440 = vadd.f32 %v3367, %v3076
  %v3441 = vadd.f32 %v3367, %v3080
  %v3442 = vadd.f32 %v3371, %v3076
  %v3443 = vadd.f32 %v3371, %v3080
  %v3444 = vadd.f32 %v3375, %v3076
  %v3445 = vadd.f32 %v3375, %v3080
  %v3446 = vadd.f32 %v3379, %v3076
  %v3447 = vadd.f32 %v3379, %v3080
  %v3448 = vadd.f32 %v3383, %v3076
  %v3449 = vadd.f32 %v3383, %v3080
  %v3450 = vadd.f32 %v3387, %v3076
  %v3451 = vadd.f32 %v3387, %v3080
  %v3452 = vadd.f32 %v3391, %v3076
  %v3453 = vadd.f32 %v3391, %v3080
  %v3454 = vadd.f32 %v3395, %v3076
  %v3455 = vadd.f32 %v3395, %v3080
  %v3456 = vadd.f32 %v3399, %v3076
  %v3457 = vadd.f32 %v3399, %v3080
  %v3458 = vadd.f32 %v3403, %v3076
  %v3459 = vadd.f32 %v3403, %v3080
  %v3460 = vadd.f32 %v3407, %v3076
  %v3461 = vadd.f32 %v3407, %v3080
  %v3462 = vadd.f32 %v3411, %v3076
  %v3463 = vadd.f32 %v3411, %v3080
  %v3464 = vadd.f32 %v3415, %v3076
  %v3465 = vadd.f32 %v3415, %v3080
  %v3466 = vadd.f32 %v3419, %v3076
  %v3467 = vadd.f32 %v3419, %v3080
  %v3468 = vadd.f32 %v3436, %v3224
  %v3469 = vadd.f32 %v3437, %v3225
  %v3470 = vadd.f32 %v3438, %v3226
  %v3471 = vadd.f32 %v3439, %v3227
  %v3472 = vadd.f32 %v3440, %v3228
  %v3473 = vadd.f32 %v3441, %v3229
  %v3474 = vadd.f32 %v3442, %v3230
  %v3475 = vadd.f32 %v3443, %v3231
  %v3476 = vadd.f32 %v3444, %v3232
  %v3477 = vadd.f32 %v3445, %v3233
  %v3478 = vadd.f32 %v3446, %v3234
  %v3479 = vadd.f32 %v3447, %v3235
  %v3480 = vadd.f32 %v3448, %v3236
  %v3481 = vadd.f32 %v3449, %v3237
  %v3482 = vadd.f32 %v3450, %v3238
  %v3483 = vadd.f32 %v3451, %v3239
  %v3484 = vadd.f32 %v3452, %v3240
  %v3485 = vadd.f32 %v3453, %v3241
  %v3486 = vadd.f32 %v3454, %v3242
  %v3487 = vadd.f32 %v3455, %v3243
  %v3488 = vadd.f32 %v3456, %v3244
  %v3489 = vadd.f32 %v3457, %v3245
  %v3490 = vadd.f32 %v3458, %v3246
  %v3491 = vadd.f32 %v3459, %v3247
  %v3492 = vadd.f32 %v3460, %v3248
  %v3493 = vadd.f32 %v3461, %v3249
  %v3494 = vadd.f32 %v3462, %v3250
  %v3495 = vadd.f32 %v3463, %v3251
  %v3496 = vadd.f32 %v3464, %v3252
  %v3497 = vadd.f32 %v3465, %v3253
  %v3498 = vadd.f32 %v3466, %v3254
  %v3499 = vadd.f32 %v3467, %v3255
  %v3500 = vmul.f32 %v3468, 0.2
  %v3501 = vmul.f32 %v3469, 0.2
  %v3502 = vmul.f32 %v3470, 0.2
  %v3503 = vmul.f32 %v3471, 0.2
  %v3504 = vmul.f32 %v3472, 0.2
  %v3505 = vmul.f32 %v3473, 0.2
  %v3506 = vmul.f32 %v3474, 0.2
  %v3507 = vmul.f32 %v3475, 0.2
  %v3508 = vmul.f32 %v3476, 0.2
  %v3509 = vmul.f32 %v3477, 0.2
  %v3510 = vmul.f32 %v3478, 0.2
  %v3511 = vmul.f32 %v3479, 0.2
  %v3512 = vmul.f32 %v3480, 0.2
  %v3513 = vmul.f32 %v3481, 0.2
  %v3514 = vmul.f32 %v3482, 0.2
  %v3515 = vmul.f32 %v3483, 0.2
  %v3516 = vmul.f32 %v3484, 0.2
  %v3517 = vmul.f32 %v3485, 0.2
  %v3518 = vmul.f32 %v3486, 0.2
  %v3519 = vmul.f32 %v3487, 0.2
  %v3520 = vmul.f32 %v3488, 0.2
  %v3521 = vmul.f32 %v3489, 0.2
  %v3522 = vmul.f32 %v3490, 0.2
  %v3523 = vmul.f32 %v3491, 0.2
  %v3524 = vmul.f32 %v3492, 0.2
  %v3525 = vmul.f32 %v3493, 0.2
  %v3526 = vmul.f32 %v3494, 0.2
  %v3527 = vmul.f32 %v3495, 0.2
  %v3528 = vmul.f32 %v3496, 0.2
  %v3529 = vmul.f32 %v3497, 0.2
  %v3530 = vmul.f32 %v3498, 0.2
  %v3531 = vmul.f32 %v3499, 0.2
  %v3532 = vmax.f32 %v3468, %v3500
  %v3533 = vmax.f32 %v3469, %v3501
  %v3534 = vmax.f32 %v3470, %v3502
  %v3535 = vmax.f32 %v3471, %v3503
  %v3536 = vmax.f32 %v3472, %v3504
  %v3537 = vmax.f32 %v3473, %v3505
  %v3538 = vmax.f32 %v3474, %v3506
  %v3539 = vmax.f32 %v3475, %v3507
  %v3540 = vmax.f32 %v3476, %v3508
  %v3541 = vmax.f32 %v3477, %v3509
  %v3542 = vmax.f32 %v3478, %v3510
  %v3543 = vmax.f32 %v3479, %v3511
  %v3544 = vmax.f32 %v3480, %v3512
  %v3545 = vmax.f32 %v3481, %v3513
  %v3546 = vmax.f32 %v3482, %v3514
  %v3547 = vmax.f32 %v3483, %v3515
  %v3548 = vmax.f32 %v3484, %v3516
  %v3549 = vmax.f32 %v3485, %v3517
  %v3550 = vmax.f32 %v3486, %v3518
  %v3551 = vmax.f32 %v3487, %v3519
  %v3552 = vmax.f32 %v3488, %v3520
  %v3553 = vmax.f32 %v3489, %v3521
  %v3554 = vmax.f32 %v3490, %v3522
  %v3555 = vmax.f32 %v3491, %v3523
  %v3556 = vmax.f32 %v3492, %v3524
  %v3557 = vmax.f32 %v3493, %v3525
  %v3558 = vmax.f32 %v3494, %v3526
  %v3559 = vmax.f32 %v3495, %v3527
  %v3560 = vmax.f32 %v3496, %v3528
  %v3561 = vmax.f32 %v3497, %v3529
  %v3562 = vmax.f32 %v3498, %v3530
  %v3563 = vmax.f32 %v3499, %v3531
  %v3564 = vpack.c.bf16 %v3533, %v3532
  %v3565 = vpack.c.bf16 %v3535, %v3534
  %v3566 = vpack.c.bf16 %v3537, %v3536
  %v3567 = vpack.c.bf16 %v3539, %v3538
  %v3568 = vpack.c.bf16 %v3541, %v3540
  %v3569 = vpack.c.bf16 %v3543, %v3542
  %v3570 = vpack.c.bf16 %v3545, %v3544
  %v3571 = vpack.c.bf16 %v3547, %v3546
  %v3572 = vpack.c.bf16 %v3549, %v3548
  %v3573 = vpack.c.bf16 %v3551, %v3550
  %v3574 = vpack.c.bf16 %v3553, %v3552
  %v3575 = vpack.c.bf16 %v3555, %v3554
  %v3576 = vpack.c.bf16 %v3557, %v3556
  %v3577 = vpack.c.bf16 %v3559, %v3558
  %v3578 = vpack.c.bf16 %v3561, %v3560
  %v3579 = vpack.c.bf16 %v3563, %v3562
  %v3596 = vunpack.c.l.b16 %v2971
  %v3597 = vunpack.c.l.b16 %v2972
  %v3598 = vunpack.c.l.b16 %v2973
  %v3599 = vunpack.c.l.b16 %v2974
  %v3600 = vunpack.c.l.b16 %v2975
  %v3601 = vunpack.c.l.b16 %v2976
  %v3602 = vunpack.c.l.b16 %v2977
  %v3603 = vunpack.c.l.b16 %v2978
  %v3604 = vunpack.c.l.b16 %v2979
  %v3605 = vunpack.c.l.b16 %v2980
  %v3606 = vunpack.c.l.b16 %v2981
  %v3607 = vunpack.c.l.b16 %v2982
  %v3608 = vunpack.c.l.b16 %v2983
  %v3609 = vunpack.c.l.b16 %v2984
  %v3610 = vunpack.c.l.b16 %v2985
  %v3611 = vunpack.c.l.b16 %v2986
  %v3612 = vpack.c.b16 %v3597, %v3596
  %v3613 = vpack.c.b16 %v3599, %v3598
  %v3614 = vpack.c.b16 %v3601, %v3600
  %v3615 = vpack.c.b16 %v3603, %v3602
  %v3616 = vpack.c.b16 %v3605, %v3604
  %v3617 = vpack.c.b16 %v3607, %v3606
  %v3618 = vpack.c.b16 %v3609, %v3608
  %v3619 = vpack.c.b16 %v3611, %v3610
  %3628 = vmatprep.subr.bf16.mxu0 0
  %3629 = vmatpush1.bf16.msra.mxu0 %v3619
  %3630 = vmatprep.subr.bf16.mxu0 0
  %3631 = vmatpush1.bf16.msra.mxu0 %v3618
  %3632 = vmatprep.subr.bf16.mxu0 0
  %3633 = vmatpush1.bf16.msra.mxu0 %v3617
  %3634 = vmatprep.subr.bf16.mxu0 0
  %3635 = vmatpush1.bf16.msra.mxu0 %v3616
  %3636 = vmatprep.subr.bf16.mxu0 0
  %3637 = vmatpush1.bf16.msra.mxu0 %v3615
  %3638 = vmatprep.subr.bf16.mxu0 0
  %3639 = vmatpush1.bf16.msra.mxu0 %v3614
  %3640 = vmatprep.subr.bf16.mxu0 0
  %3641 = vmatpush1.bf16.msra.mxu0 %v3613
  %3642 = vmatprep.subr.bf16.mxu0 0
  %3643 = vmatpush1.bf16.msra.mxu0 %v3612
  %3644 = vmatprep.subr.bf16.mxu0 0
  %3645 = vmatpush2.bf16.msra.mxu0 0
  %3646 = vmatprep.subr.bf16.mxu0 0
  %3647 = vmatpush2.bf16.msra.mxu0 0
  %3648 = vmatprep.subr.bf16.mxu0 0
  %3649 = vmatpush2.bf16.msra.mxu0 0
  %3650 = vmatprep.subr.bf16.mxu0 0
  %3651 = vmatpush2.bf16.msra.mxu0 0
  %3652 = vmatprep.subr.bf16.mxu0 0
  %3653 = vmatpush2.bf16.msra.mxu0 0
  %3654 = vmatprep.subr.bf16.mxu0 0
  %3655 = vmatpush2.bf16.msra.mxu0 0
  %3656 = vmatprep.subr.bf16.mxu0 0
  %3657 = vmatpush2.bf16.msra.mxu0 0
  %3658 = vmatprep.subr.bf16.mxu0 0
  %3659 = vmatpush2.bf16.msra.mxu0 0
  %3660 = vmatprep.mubr.bf16.mxu0 0
  %3661 = vmatmul.mubr.bf16.gmra.mxu0 %v3564
  %v3662 = vpop.f32.mrf.mxu0
  %v3663 = vadd.f32 0.0, %v3662
  %v3664 = vpop.f32.mrf.mxu0
  %v3665 = vpop.f32.mrf.mxu0
  %v3666 = vadd.f32 0.0, %v3665
  %v3667 = vpop.f32.mrf.mxu0
  %3668 = vmatprep.mubr.bf16.mxu0 0
  %3669 = vmatmul.mubr.bf16.gmra.mxu0 %v3565
  %v3670 = vpop.f32.mrf.mxu0
  %v3671 = vadd.f32 0.0, %v3670
  %v3672 = vpop.f32.mrf.mxu0
  %v3673 = vpop.f32.mrf.mxu0
  %v3674 = vadd.f32 0.0, %v3673
  %v3675 = vpop.f32.mrf.mxu0
  %3676 = vmatprep.mubr.bf16.mxu0 0
  %3677 = vmatmul.mubr.bf16.gmra.mxu0 %v3566
  %v3678 = vpop.f32.mrf.mxu0
  %v3679 = vadd.f32 0.0, %v3678
  %v3680 = vpop.f32.mrf.mxu0
  %v3681 = vpop.f32.mrf.mxu0
  %v3682 = vadd.f32 0.0, %v3681
  %v3683 = vpop.f32.mrf.mxu0
  %3684 = vmatprep.mubr.bf16.mxu0 0
  %3685 = vmatmul.mubr.bf16.gmra.mxu0 %v3567
  %v3686 = vpop.f32.mrf.mxu0
  %v3687 = vadd.f32 0.0, %v3686
  %v3688 = vpop.f32.mrf.mxu0
  %v3689 = vpop.f32.mrf.mxu0
  %v3690 = vadd.f32 0.0, %v3689
  %v3691 = vpop.f32.mrf.mxu0
  %3692 = vmatprep.mubr.bf16.mxu0 0
  %3693 = vmatmul.mubr.bf16.gmra.mxu0 %v3568
  %v3694 = vpop.f32.mrf.mxu0
  %v3695 = vadd.f32 0.0, %v3694
  %v3696 = vpop.f32.mrf.mxu0
  %v3697 = vpop.f32.mrf.mxu0
  %v3698 = vadd.f32 0.0, %v3697
  %v3699 = vpop.f32.mrf.mxu0
  %3700 = vmatprep.mubr.bf16.mxu0 0
  %3701 = vmatmul.mubr.bf16.gmra.mxu0 %v3569
  %v3702 = vpop.f32.mrf.mxu0
  %v3703 = vadd.f32 0.0, %v3702
  %v3704 = vpop.f32.mrf.mxu0
  %v3705 = vpop.f32.mrf.mxu0
  %v3706 = vadd.f32 0.0, %v3705
  %v3707 = vpop.f32.mrf.mxu0
  %3708 = vmatprep.mubr.bf16.mxu0 0
  %3709 = vmatmul.mubr.bf16.gmra.mxu0 %v3570
  %v3710 = vpop.f32.mrf.mxu0
  %v3711 = vadd.f32 0.0, %v3710
  %v3712 = vpop.f32.mrf.mxu0
  %v3713 = vpop.f32.mrf.mxu0
  %v3714 = vadd.f32 0.0, %v3713
  %v3715 = vpop.f32.mrf.mxu0
  %3716 = vmatprep.mubr.bf16.mxu0 0
  %3717 = vmatmul.mubr.bf16.gmra.mxu0 %v3571
  %v3718 = vpop.f32.mrf.mxu0
  %v3719 = vadd.f32 0.0, %v3718
  %v3720 = vpop.f32.mrf.mxu0
  %v3721 = vpop.f32.mrf.mxu0
  %v3722 = vadd.f32 0.0, %v3721
  %v3723 = vpop.f32.mrf.mxu0
  %3724 = vmatprep.mubr.bf16.mxu0 0
  %3725 = vmatmul.mubr.bf16.gmra.mxu0 %v3572
  %v3726 = vpop.f32.mrf.mxu0
  %v3727 = vadd.f32 0.0, %v3726
  %v3728 = vpop.f32.mrf.mxu0
  %v3729 = vpop.f32.mrf.mxu0
  %v3730 = vadd.f32 0.0, %v3729
  %v3731 = vpop.f32.mrf.mxu0
  %3732 = vmatprep.mubr.bf16.mxu0 0
  %3733 = vmatmul.mubr.bf16.gmra.mxu0 %v3573
  %v3734 = vpop.f32.mrf.mxu0
  %v3735 = vadd.f32 0.0, %v3734
  %v3736 = vpop.f32.mrf.mxu0
  %v3737 = vpop.f32.mrf.mxu0
  %v3738 = vadd.f32 0.0, %v3737
  %v3739 = vpop.f32.mrf.mxu0
  %3740 = vmatprep.mubr.bf16.mxu0 0
  %3741 = vmatmul.mubr.bf16.gmra.mxu0 %v3574
  %v3742 = vpop.f32.mrf.mxu0
  %v3743 = vadd.f32 0.0, %v3742
  %v3744 = vpop.f32.mrf.mxu0
  %v3745 = vpop.f32.mrf.mxu0
  %v3746 = vadd.f32 0.0, %v3745
  %v3747 = vpop.f32.mrf.mxu0
  %3748 = vmatprep.mubr.bf16.mxu0 0
  %3749 = vmatmul.mubr.bf16.gmra.mxu0 %v3575
  %v3750 = vpop.f32.mrf.mxu0
  %v3751 = vadd.f32 0.0, %v3750
  %v3752 = vpop.f32.mrf.mxu0
  %v3753 = vpop.f32.mrf.mxu0
  %v3754 = vadd.f32 0.0, %v3753
  %v3755 = vpop.f32.mrf.mxu0
  %3756 = vmatprep.mubr.bf16.mxu0 0
  %3757 = vmatmul.mubr.bf16.gmra.mxu0 %v3576
  %v3758 = vpop.f32.mrf.mxu0
  %v3759 = vadd.f32 0.0, %v3758
  %v3760 = vpop.f32.mrf.mxu0
  %v3761 = vpop.f32.mrf.mxu0
  %v3762 = vadd.f32 0.0, %v3761
  %v3763 = vpop.f32.mrf.mxu0
  %3764 = vmatprep.mubr.bf16.mxu0 0
  %3765 = vmatmul.mubr.bf16.gmra.mxu0 %v3577
  %v3766 = vpop.f32.mrf.mxu0
  %v3767 = vadd.f32 0.0, %v3766
  %v3768 = vpop.f32.mrf.mxu0
  %v3769 = vpop.f32.mrf.mxu0
  %v3770 = vadd.f32 0.0, %v3769
  %v3771 = vpop.f32.mrf.mxu0
  %3772 = vmatprep.mubr.bf16.mxu0 0
  %3773 = vmatmul.mubr.bf16.gmra.mxu0 %v3578
  %v3774 = vpop.f32.mrf.mxu0
  %v3775 = vadd.f32 0.0, %v3774
  %v3776 = vpop.f32.mrf.mxu0
  %v3777 = vpop.f32.mrf.mxu0
  %v3778 = vadd.f32 0.0, %v3777
  %v3779 = vpop.f32.mrf.mxu0
  %3780 = vmatprep.mubr.bf16.mxu0 0
  %3781 = vmatmul.mubr.bf16.gmra.mxu0 %v3579
  %v3782 = vpop.f32.mrf.mxu0
  %v3783 = vadd.f32 0.0, %v3782
  %v3784 = vpop.f32.mrf.mxu0
  %v3785 = vpop.f32.mrf.mxu0
  %v3786 = vadd.f32 0.0, %v3785
  %v3787 = vpop.f32.mrf.mxu0
  %3788 = vdwg.mxu0
  %3789 = vxpose.xlu0.b32.start [1/16] %v3663, 128
  %3790 = vxpose.xlu0.b32.cont [2/16] %v3666, 128
  %3791 = vxpose.xlu0.b32.cont [3/16] 0.0, 128
  %3792 = vxpose.xlu0.b32.cont [4/16] 0.0, 128
  %3793 = vxpose.xlu0.b32.cont [5/16] 0.0, 128
  %3794 = vxpose.xlu0.b32.cont [6/16] 0.0, 128
  %3795 = vxpose.xlu0.b32.cont [7/16] 0.0, 128
  %3796 = vxpose.xlu0.b32.cont [8/16] 0.0, 128
  %3797 = vxpose.xlu0.b32.cont [9/16] 0.0, 128
  %3798 = vxpose.xlu0.b32.cont [10/16] 0.0, 128
  %3799 = vxpose.xlu0.b32.cont [11/16] 0.0, 128
  %3800 = vxpose.xlu0.b32.cont [12/16] 0.0, 128
  %3801 = vxpose.xlu0.b32.cont [13/16] 0.0, 128
  %3802 = vxpose.xlu0.b32.cont [14/16] 0.0, 128
  %3803 = vxpose.xlu0.b32.cont [15/16] 0.0, 128
  %3804 = vxpose.xlu0.b32.end [16/16] 0.0, 128
  %v3805 = vpop.trf.xlu0
  %v3806 = vpop.trf.xlu0
  %v3807 = vpop.trf.xlu0
  %v3808 = vpop.trf.xlu0
  %v3809 = vpop.trf.xlu0
  %v3810 = vpop.trf.xlu0
  %v3811 = vpop.trf.xlu0
  %v3812 = vpop.trf.xlu0
  %v3813 = vpop.trf.xlu0
  %v3814 = vpop.trf.xlu0
  %v3815 = vpop.trf.xlu0
  %v3816 = vpop.trf.xlu0
  %v3817 = vpop.trf.xlu0
  %v3818 = vpop.trf.xlu0
  %v3819 = vpop.trf.xlu0
  %v3820 = vpop.trf.xlu0
  %3821 = vxpose.xlu0.b32.start [1/16] %v3671, 128
  %3822 = vxpose.xlu0.b32.cont [2/16] %v3674, 128
  %3823 = vxpose.xlu0.b32.cont [3/16] 0.0, 128
  %3824 = vxpose.xlu0.b32.cont [4/16] 0.0, 128
  %3825 = vxpose.xlu0.b32.cont [5/16] 0.0, 128
  %3826 = vxpose.xlu0.b32.cont [6/16] 0.0, 128
  %3827 = vxpose.xlu0.b32.cont [7/16] 0.0, 128
  %3828 = vxpose.xlu0.b32.cont [8/16] 0.0, 128
  %3829 = vxpose.xlu0.b32.cont [9/16] 0.0, 128
  %3830 = vxpose.xlu0.b32.cont [10/16] 0.0, 128
  %3831 = vxpose.xlu0.b32.cont [11/16] 0.0, 128
  %3832 = vxpose.xlu0.b32.cont [12/16] 0.0, 128
  %3833 = vxpose.xlu0.b32.cont [13/16] 0.0, 128
  %3834 = vxpose.xlu0.b32.cont [14/16] 0.0, 128
  %3835 = vxpose.xlu0.b32.cont [15/16] 0.0, 128
  %3836 = vxpose.xlu0.b32.end [16/16] 0.0, 128
  %v3837 = vpop.trf.xlu0
  %v3838 = vpop.trf.xlu0
  %v3839 = vpop.trf.xlu0
  %v3840 = vpop.trf.xlu0
  %v3841 = vpop.trf.xlu0
  %v3842 = vpop.trf.xlu0
  %v3843 = vpop.trf.xlu0
  %v3844 = vpop.trf.xlu0
  %v3845 = vpop.trf.xlu0
  %v3846 = vpop.trf.xlu0
  %v3847 = vpop.trf.xlu0
  %v3848 = vpop.trf.xlu0
  %v3849 = vpop.trf.xlu0
  %v3850 = vpop.trf.xlu0
  %v3851 = vpop.trf.xlu0
  %v3852 = vpop.trf.xlu0
  %3853 = vxpose.xlu0.b32.start [1/16] %v3679, 128
  %3854 = vxpose.xlu0.b32.cont [2/16] %v3682, 128
  %3855 = vxpose.xlu0.b32.cont [3/16] 0.0, 128
  %3856 = vxpose.xlu0.b32.cont [4/16] 0.0, 128
  %3857 = vxpose.xlu0.b32.cont [5/16] 0.0, 128
  %3858 = vxpose.xlu0.b32.cont [6/16] 0.0, 128
  %3859 = vxpose.xlu0.b32.cont [7/16] 0.0, 128
  %3860 = vxpose.xlu0.b32.cont [8/16] 0.0, 128
  %3861 = vxpose.xlu0.b32.cont [9/16] 0.0, 128
  %3862 = vxpose.xlu0.b32.cont [10/16] 0.0, 128
  %3863 = vxpose.xlu0.b32.cont [11/16] 0.0, 128
  %3864 = vxpose.xlu0.b32.cont [12/16] 0.0, 128
  %3865 = vxpose.xlu0.b32.cont [13/16] 0.0, 128
  %3866 = vxpose.xlu0.b32.cont [14/16] 0.0, 128
  %3867 = vxpose.xlu0.b32.cont [15/16] 0.0, 128
  %3868 = vxpose.xlu0.b32.end [16/16] 0.0, 128
  %v3869 = vpop.trf.xlu0
  %v3870 = vpop.trf.xlu0
  %v3871 = vpop.trf.xlu0
  %v3872 = vpop.trf.xlu0
  %v3873 = vpop.trf.xlu0
  %v3874 = vpop.trf.xlu0
  %v3875 = vpop.trf.xlu0
  %v3876 = vpop.trf.xlu0
  %v3877 = vpop.trf.xlu0
  %v3878 = vpop.trf.xlu0
  %v3879 = vpop.trf.xlu0
  %v3880 = vpop.trf.xlu0
  %v3881 = vpop.trf.xlu0
  %v3882 = vpop.trf.xlu0
  %v3883 = vpop.trf.xlu0
  %v3884 = vpop.trf.xlu0
  %3885 = vxpose.xlu0.b32.start [1/16] %v3687, 128
  %3886 = vxpose.xlu0.b32.cont [2/16] %v3690, 128
  %3887 = vxpose.xlu0.b32.cont [3/16] 0.0, 128
  %3888 = vxpose.xlu0.b32.cont [4/16] 0.0, 128
  %3889 = vxpose.xlu0.b32.cont [5/16] 0.0, 128
  %3890 = vxpose.xlu0.b32.cont [6/16] 0.0, 128
  %3891 = vxpose.xlu0.b32.cont [7/16] 0.0, 128
  %3892 = vxpose.xlu0.b32.cont [8/16] 0.0, 128
  %3893 = vxpose.xlu0.b32.cont [9/16] 0.0, 128
  %3894 = vxpose.xlu0.b32.cont [10/16] 0.0, 128
  %3895 = vxpose.xlu0.b32.cont [11/16] 0.0, 128
  %3896 = vxpose.xlu0.b32.cont [12/16] 0.0, 128
  %3897 = vxpose.xlu0.b32.cont [13/16] 0.0, 128
  %3898 = vxpose.xlu0.b32.cont [14/16] 0.0, 128
  %3899 = vxpose.xlu0.b32.cont [15/16] 0.0, 128
  %3900 = vxpose.xlu0.b32.end [16/16] 0.0, 128
  %v3901 = vpop.trf.xlu0
  %v3902 = vpop.trf.xlu0
  %v3903 = vpop.trf.xlu0
  %v3904 = vpop.trf.xlu0
  %v3905 = vpop.trf.xlu0
  %v3906 = vpop.trf.xlu0
  %v3907 = vpop.trf.xlu0
  %v3908 = vpop.trf.xlu0
  %v3909 = vpop.trf.xlu0
  %v3910 = vpop.trf.xlu0
  %v3911 = vpop.trf.xlu0
  %v3912 = vpop.trf.xlu0
  %v3913 = vpop.trf.xlu0
  %v3914 = vpop.trf.xlu0
  %v3915 = vpop.trf.xlu0
  %v3916 = vpop.trf.xlu0
  %3917 = vxpose.xlu0.b32.start [1/16] %v3695, 128
  %3918 = vxpose.xlu0.b32.cont [2/16] %v3698, 128
  %3919 = vxpose.xlu0.b32.cont [3/16] 0.0, 128
  %3920 = vxpose.xlu0.b32.cont [4/16] 0.0, 128
  %3921 = vxpose.xlu0.b32.cont [5/16] 0.0, 128
  %3922 = vxpose.xlu0.b32.cont [6/16] 0.0, 128
  %3923 = vxpose.xlu0.b32.cont [7/16] 0.0, 128
  %3924 = vxpose.xlu0.b32.cont [8/16] 0.0, 128
  %3925 = vxpose.xlu0.b32.cont [9/16] 0.0, 128
  %3926 = vxpose.xlu0.b32.cont [10/16] 0.0, 128
  %3927 = vxpose.xlu0.b32.cont [11/16] 0.0, 128
  %3928 = vxpose.xlu0.b32.cont [12/16] 0.0, 128
  %3929 = vxpose.xlu0.b32.cont [13/16] 0.0, 128
  %3930 = vxpose.xlu0.b32.cont [14/16] 0.0, 128
  %3931 = vxpose.xlu0.b32.cont [15/16] 0.0, 128
  %3932 = vxpose.xlu0.b32.end [16/16] 0.0, 128
  %v3933 = vpop.trf.xlu0
  %v3934 = vpop.trf.xlu0
  %v3935 = vpop.trf.xlu0
  %v3936 = vpop.trf.xlu0
  %v3937 = vpop.trf.xlu0
  %v3938 = vpop.trf.xlu0
  %v3939 = vpop.trf.xlu0
  %v3940 = vpop.trf.xlu0
  %v3941 = vpop.trf.xlu0
  %v3942 = vpop.trf.xlu0
  %v3943 = vpop.trf.xlu0
  %v3944 = vpop.trf.xlu0
  %v3945 = vpop.trf.xlu0
  %v3946 = vpop.trf.xlu0
  %v3947 = vpop.trf.xlu0
  %v3948 = vpop.trf.xlu0
  %3949 = vxpose.xlu0.b32.start [1/16] %v3703, 128
  %3950 = vxpose.xlu0.b32.cont [2/16] %v3706, 128
  %3951 = vxpose.xlu0.b32.cont [3/16] 0.0, 128
  %3952 = vxpose.xlu0.b32.cont [4/16] 0.0, 128
  %3953 = vxpose.xlu0.b32.cont [5/16] 0.0, 128
  %3954 = vxpose.xlu0.b32.cont [6/16] 0.0, 128
  %3955 = vxpose.xlu0.b32.cont [7/16] 0.0, 128
  %3956 = vxpose.xlu0.b32.cont [8/16] 0.0, 128
  %3957 = vxpose.xlu0.b32.cont [9/16] 0.0, 128
  %3958 = vxpose.xlu0.b32.cont [10/16] 0.0, 128
  %3959 = vxpose.xlu0.b32.cont [11/16] 0.0, 128
  %3960 = vxpose.xlu0.b32.cont [12/16] 0.0, 128
  %3961 = vxpose.xlu0.b32.cont [13/16] 0.0, 128
  %3962 = vxpose.xlu0.b32.cont [14/16] 0.0, 128
  %3963 = vxpose.xlu0.b32.cont [15/16] 0.0, 128
  %3964 = vxpose.xlu0.b32.end [16/16] 0.0, 128
  %v3965 = vpop.trf.xlu0
  %v3966 = vpop.trf.xlu0
  %v3967 = vpop.trf.xlu0
  %v3968 = vpop.trf.xlu0
  %v3969 = vpop.trf.xlu0
  %v3970 = vpop.trf.xlu0
  %v3971 = vpop.trf.xlu0
  %v3972 = vpop.trf.xlu0
  %v3973 = vpop.trf.xlu0
  %v3974 = vpop.trf.xlu0
  %v3975 = vpop.trf.xlu0
  %v3976 = vpop.trf.xlu0
  %v3977 = vpop.trf.xlu0
  %v3978 = vpop.trf.xlu0
  %v3979 = vpop.trf.xlu0
  %v3980 = vpop.trf.xlu0
  %3981 = vxpose.xlu0.b32.start [1/16] %v3711, 128
  %3982 = vxpose.xlu0.b32.cont [2/16] %v3714, 128
  %3983 = vxpose.xlu0.b32.cont [3/16] 0.0, 128
  %3984 = vxpose.xlu0.b32.cont [4/16] 0.0, 128
  %3985 = vxpose.xlu0.b32.cont [5/16] 0.0, 128
  %3986 = vxpose.xlu0.b32.cont [6/16] 0.0, 128
  %3987 = vxpose.xlu0.b32.cont [7/16] 0.0, 128
  %3988 = vxpose.xlu0.b32.cont [8/16] 0.0, 128
  %3989 = vxpose.xlu0.b32.cont [9/16] 0.0, 128
  %3990 = vxpose.xlu0.b32.cont [10/16] 0.0, 128
  %3991 = vxpose.xlu0.b32.cont [11/16] 0.0, 128
  %3992 = vxpose.xlu0.b32.cont [12/16] 0.0, 128
  %3993 = vxpose.xlu0.b32.cont [13/16] 0.0, 128
  %3994 = vxpose.xlu0.b32.cont [14/16] 0.0, 128
  %3995 = vxpose.xlu0.b32.cont [15/16] 0.0, 128
  %3996 = vxpose.xlu0.b32.end [16/16] 0.0, 128
  %v3997 = vpop.trf.xlu0
  %v3998 = vpop.trf.xlu0
  %v3999 = vpop.trf.xlu0
  %v4000 = vpop.trf.xlu0
  %v4001 = vpop.trf.xlu0
  %v4002 = vpop.trf.xlu0
  %v4003 = vpop.trf.xlu0
  %v4004 = vpop.trf.xlu0
  %v4005 = vpop.trf.xlu0
  %v4006 = vpop.trf.xlu0
  %v4007 = vpop.trf.xlu0
  %v4008 = vpop.trf.xlu0
  %v4009 = vpop.trf.xlu0
  %v4010 = vpop.trf.xlu0
  %v4011 = vpop.trf.xlu0
  %v4012 = vpop.trf.xlu0
  %4013 = vxpose.xlu0.b32.start [1/16] %v3719, 128
  %4014 = vxpose.xlu0.b32.cont [2/16] %v3722, 128
  %4015 = vxpose.xlu0.b32.cont [3/16] 0.0, 128
  %4016 = vxpose.xlu0.b32.cont [4/16] 0.0, 128
  %4017 = vxpose.xlu0.b32.cont [5/16] 0.0, 128
  %4018 = vxpose.xlu0.b32.cont [6/16] 0.0, 128
  %4019 = vxpose.xlu0.b32.cont [7/16] 0.0, 128
  %4020 = vxpose.xlu0.b32.cont [8/16] 0.0, 128
  %4021 = vxpose.xlu0.b32.cont [9/16] 0.0, 128
  %4022 = vxpose.xlu0.b32.cont [10/16] 0.0, 128
  %4023 = vxpose.xlu0.b32.cont [11/16] 0.0, 128
  %4024 = vxpose.xlu0.b32.cont [12/16] 0.0, 128
  %4025 = vxpose.xlu0.b32.cont [13/16] 0.0, 128
  %4026 = vxpose.xlu0.b32.cont [14/16] 0.0, 128
  %4027 = vxpose.xlu0.b32.cont [15/16] 0.0, 128
  %4028 = vxpose.xlu0.b32.end [16/16] 0.0, 128
  %v4029 = vpop.trf.xlu0
  %v4030 = vpop.trf.xlu0
  %v4031 = vpop.trf.xlu0
  %v4032 = vpop.trf.xlu0
  %v4033 = vpop.trf.xlu0
  %v4034 = vpop.trf.xlu0
  %v4035 = vpop.trf.xlu0
  %v4036 = vpop.trf.xlu0
  %v4037 = vpop.trf.xlu0
  %v4038 = vpop.trf.xlu0
  %v4039 = vpop.trf.xlu0
  %v4040 = vpop.trf.xlu0
  %v4041 = vpop.trf.xlu0
  %v4042 = vpop.trf.xlu0
  %v4043 = vpop.trf.xlu0
  %v4044 = vpop.trf.xlu0
  %4045 = vxpose.xlu0.b32.start [1/16] %v3727, 128
  %4046 = vxpose.xlu0.b32.cont [2/16] %v3730, 128
  %4047 = vxpose.xlu0.b32.cont [3/16] 0.0, 128
  %4048 = vxpose.xlu0.b32.cont [4/16] 0.0, 128
  %4049 = vxpose.xlu0.b32.cont [5/16] 0.0, 128
  %4050 = vxpose.xlu0.b32.cont [6/16] 0.0, 128
  %4051 = vxpose.xlu0.b32.cont [7/16] 0.0, 128
  %4052 = vxpose.xlu0.b32.cont [8/16] 0.0, 128
  %4053 = vxpose.xlu0.b32.cont [9/16] 0.0, 128
  %4054 = vxpose.xlu0.b32.cont [10/16] 0.0, 128
  %4055 = vxpose.xlu0.b32.cont [11/16] 0.0, 128
  %4056 = vxpose.xlu0.b32.cont [12/16] 0.0, 128
  %4057 = vxpose.xlu0.b32.cont [13/16] 0.0, 128
  %4058 = vxpose.xlu0.b32.cont [14/16] 0.0, 128
  %4059 = vxpose.xlu0.b32.cont [15/16] 0.0, 128
  %4060 = vxpose.xlu0.b32.end [16/16] 0.0, 128
  %v4061 = vpop.trf.xlu0
  %v4062 = vpop.trf.xlu0
  %v4063 = vpop.trf.xlu0
  %v4064 = vpop.trf.xlu0
  %v4065 = vpop.trf.xlu0
  %v4066 = vpop.trf.xlu0
  %v4067 = vpop.trf.xlu0
  %v4068 = vpop.trf.xlu0
  %v4069 = vpop.trf.xlu0
  %v4070 = vpop.trf.xlu0
  %v4071 = vpop.trf.xlu0
  %v4072 = vpop.trf.xlu0
  %v4073 = vpop.trf.xlu0
  %v4074 = vpop.trf.xlu0
  %v4075 = vpop.trf.xlu0
  %v4076 = vpop.trf.xlu0
  %4077 = vxpose.xlu0.b32.start [1/16] %v3735, 128
  %4078 = vxpose.xlu0.b32.cont [2/16] %v3738, 128
  %4079 = vxpose.xlu0.b32.cont [3/16] 0.0, 128
  %4080 = vxpose.xlu0.b32.cont [4/16] 0.0, 128
  %4081 = vxpose.xlu0.b32.cont [5/16] 0.0, 128
  %4082 = vxpose.xlu0.b32.cont [6/16] 0.0, 128
  %4083 = vxpose.xlu0.b32.cont [7/16] 0.0, 128
  %4084 = vxpose.xlu0.b32.cont [8/16] 0.0, 128
  %4085 = vxpose.xlu0.b32.cont [9/16] 0.0, 128
  %4086 = vxpose.xlu0.b32.cont [10/16] 0.0, 128
  %4087 = vxpose.xlu0.b32.cont [11/16] 0.0, 128
  %4088 = vxpose.xlu0.b32.cont [12/16] 0.0, 128
  %4089 = vxpose.xlu0.b32.cont [13/16] 0.0, 128
  %4090 = vxpose.xlu0.b32.cont [14/16] 0.0, 128
  %4091 = vxpose.xlu0.b32.cont [15/16] 0.0, 128
  %4092 = vxpose.xlu0.b32.end [16/16] 0.0, 128
  %v4093 = vpop.trf.xlu0
  %v4094 = vpop.trf.xlu0
  %v4095 = vpop.trf.xlu0
  %v4096 = vpop.trf.xlu0
  %v4097 = vpop.trf.xlu0
  %v4098 = vpop.trf.xlu0
  %v4099 = vpop.trf.xlu0
  %v4100 = vpop.trf.xlu0
  %v4101 = vpop.trf.xlu0
  %v4102 = vpop.trf.xlu0
  %v4103 = vpop.trf.xlu0
  %v4104 = vpop.trf.xlu0
  %v4105 = vpop.trf.xlu0
  %v4106 = vpop.trf.xlu0
  %v4107 = vpop.trf.xlu0
  %v4108 = vpop.trf.xlu0
  %4109 = vxpose.xlu0.b32.start [1/16] %v3743, 128
  %4110 = vxpose.xlu0.b32.cont [2/16] %v3746, 128
  %4111 = vxpose.xlu0.b32.cont [3/16] 0.0, 128
  %4112 = vxpose.xlu0.b32.cont [4/16] 0.0, 128
  %4113 = vxpose.xlu0.b32.cont [5/16] 0.0, 128
  %4114 = vxpose.xlu0.b32.cont [6/16] 0.0, 128
  %4115 = vxpose.xlu0.b32.cont [7/16] 0.0, 128
  %4116 = vxpose.xlu0.b32.cont [8/16] 0.0, 128
  %4117 = vxpose.xlu0.b32.cont [9/16] 0.0, 128
  %4118 = vxpose.xlu0.b32.cont [10/16] 0.0, 128
  %4119 = vxpose.xlu0.b32.cont [11/16] 0.0, 128
  %4120 = vxpose.xlu0.b32.cont [12/16] 0.0, 128
  %4121 = vxpose.xlu0.b32.cont [13/16] 0.0, 128
  %4122 = vxpose.xlu0.b32.cont [14/16] 0.0, 128
  %4123 = vxpose.xlu0.b32.cont [15/16] 0.0, 128
  %4124 = vxpose.xlu0.b32.end [16/16] 0.0, 128
  %v4125 = vpop.trf.xlu0
  %v4126 = vpop.trf.xlu0
  %v4127 = vpop.trf.xlu0
  %v4128 = vpop.trf.xlu0
  %v4129 = vpop.trf.xlu0
  %v4130 = vpop.trf.xlu0
  %v4131 = vpop.trf.xlu0
  %v4132 = vpop.trf.xlu0
  %v4133 = vpop.trf.xlu0
  %v4134 = vpop.trf.xlu0
  %v4135 = vpop.trf.xlu0
  %v4136 = vpop.trf.xlu0
  %v4137 = vpop.trf.xlu0
  %v4138 = vpop.trf.xlu0
  %v4139 = vpop.trf.xlu0
  %v4140 = vpop.trf.xlu0
  %4141 = vxpose.xlu0.b32.start [1/16] %v3751, 128
  %4142 = vxpose.xlu0.b32.cont [2/16] %v3754, 128
  %4143 = vxpose.xlu0.b32.cont [3/16] 0.0, 128
  %4144 = vxpose.xlu0.b32.cont [4/16] 0.0, 128
  %4145 = vxpose.xlu0.b32.cont [5/16] 0.0, 128
  %4146 = vxpose.xlu0.b32.cont [6/16] 0.0, 128
  %4147 = vxpose.xlu0.b32.cont [7/16] 0.0, 128
  %4148 = vxpose.xlu0.b32.cont [8/16] 0.0, 128
  %4149 = vxpose.xlu0.b32.cont [9/16] 0.0, 128
  %4150 = vxpose.xlu0.b32.cont [10/16] 0.0, 128
  %4151 = vxpose.xlu0.b32.cont [11/16] 0.0, 128
  %4152 = vxpose.xlu0.b32.cont [12/16] 0.0, 128
  %4153 = vxpose.xlu0.b32.cont [13/16] 0.0, 128
  %4154 = vxpose.xlu0.b32.cont [14/16] 0.0, 128
  %4155 = vxpose.xlu0.b32.cont [15/16] 0.0, 128
  %4156 = vxpose.xlu0.b32.end [16/16] 0.0, 128
  %v4157 = vpop.trf.xlu0
  %v4158 = vpop.trf.xlu0
  %v4159 = vpop.trf.xlu0
  %v4160 = vpop.trf.xlu0
  %v4161 = vpop.trf.xlu0
  %v4162 = vpop.trf.xlu0
  %v4163 = vpop.trf.xlu0
  %v4164 = vpop.trf.xlu0
  %v4165 = vpop.trf.xlu0
  %v4166 = vpop.trf.xlu0
  %v4167 = vpop.trf.xlu0
  %v4168 = vpop.trf.xlu0
  %v4169 = vpop.trf.xlu0
  %v4170 = vpop.trf.xlu0
  %v4171 = vpop.trf.xlu0
  %v4172 = vpop.trf.xlu0
  %4173 = vxpose.xlu0.b32.start [1/16] %v3759, 128
  %4174 = vxpose.xlu0.b32.cont [2/16] %v3762, 128
  %4175 = vxpose.xlu0.b32.cont [3/16] 0.0, 128
  %4176 = vxpose.xlu0.b32.cont [4/16] 0.0, 128
  %4177 = vxpose.xlu0.b32.cont [5/16] 0.0, 128
  %4178 = vxpose.xlu0.b32.cont [6/16] 0.0, 128
  %4179 = vxpose.xlu0.b32.cont [7/16] 0.0, 128
  %4180 = vxpose.xlu0.b32.cont [8/16] 0.0, 128
  %4181 = vxpose.xlu0.b32.cont [9/16] 0.0, 128
  %4182 = vxpose.xlu0.b32.cont [10/16] 0.0, 128
  %4183 = vxpose.xlu0.b32.cont [11/16] 0.0, 128
  %4184 = vxpose.xlu0.b32.cont [12/16] 0.0, 128
  %4185 = vxpose.xlu0.b32.cont [13/16] 0.0, 128
  %4186 = vxpose.xlu0.b32.cont [14/16] 0.0, 128
  %4187 = vxpose.xlu0.b32.cont [15/16] 0.0, 128
  %4188 = vxpose.xlu0.b32.end [16/16] 0.0, 128
  %v4189 = vpop.trf.xlu0
  %v4190 = vpop.trf.xlu0
  %v4191 = vpop.trf.xlu0
  %v4192 = vpop.trf.xlu0
  %v4193 = vpop.trf.xlu0
  %v4194 = vpop.trf.xlu0
  %v4195 = vpop.trf.xlu0
  %v4196 = vpop.trf.xlu0
  %v4197 = vpop.trf.xlu0
  %v4198 = vpop.trf.xlu0
  %v4199 = vpop.trf.xlu0
  %v4200 = vpop.trf.xlu0
  %v4201 = vpop.trf.xlu0
  %v4202 = vpop.trf.xlu0
  %v4203 = vpop.trf.xlu0
  %v4204 = vpop.trf.xlu0
  %4205 = vxpose.xlu0.b32.start [1/16] %v3767, 128
  %4206 = vxpose.xlu0.b32.cont [2/16] %v3770, 128
  %4207 = vxpose.xlu0.b32.cont [3/16] 0.0, 128
  %4208 = vxpose.xlu0.b32.cont [4/16] 0.0, 128
  %4209 = vxpose.xlu0.b32.cont [5/16] 0.0, 128
  %4210 = vxpose.xlu0.b32.cont [6/16] 0.0, 128
  %4211 = vxpose.xlu0.b32.cont [7/16] 0.0, 128
  %4212 = vxpose.xlu0.b32.cont [8/16] 0.0, 128
  %4213 = vxpose.xlu0.b32.cont [9/16] 0.0, 128
  %4214 = vxpose.xlu0.b32.cont [10/16] 0.0, 128
  %4215 = vxpose.xlu0.b32.cont [11/16] 0.0, 128
  %4216 = vxpose.xlu0.b32.cont [12/16] 0.0, 128
  %4217 = vxpose.xlu0.b32.cont [13/16] 0.0, 128
  %4218 = vxpose.xlu0.b32.cont [14/16] 0.0, 128
  %4219 = vxpose.xlu0.b32.cont [15/16] 0.0, 128
  %4220 = vxpose.xlu0.b32.end [16/16] 0.0, 128
  %v4221 = vpop.trf.xlu0
  %v4222 = vpop.trf.xlu0
  %v4223 = vpop.trf.xlu0
  %v4224 = vpop.trf.xlu0
  %v4225 = vpop.trf.xlu0
  %v4226 = vpop.trf.xlu0
  %v4227 = vpop.trf.xlu0
  %v4228 = vpop.trf.xlu0
  %v4229 = vpop.trf.xlu0
  %v4230 = vpop.trf.xlu0
  %v4231 = vpop.trf.xlu0
  %v4232 = vpop.trf.xlu0
  %v4233 = vpop.trf.xlu0
  %v4234 = vpop.trf.xlu0
  %v4235 = vpop.trf.xlu0
  %v4236 = vpop.trf.xlu0
  %4237 = vxpose.xlu0.b32.start [1/16] %v3775, 128
  %4238 = vxpose.xlu0.b32.cont [2/16] %v3778, 128
  %4239 = vxpose.xlu0.b32.cont [3/16] 0.0, 128
  %4240 = vxpose.xlu0.b32.cont [4/16] 0.0, 128
  %4241 = vxpose.xlu0.b32.cont [5/16] 0.0, 128
  %4242 = vxpose.xlu0.b32.cont [6/16] 0.0, 128
  %4243 = vxpose.xlu0.b32.cont [7/16] 0.0, 128
  %4244 = vxpose.xlu0.b32.cont [8/16] 0.0, 128
  %4245 = vxpose.xlu0.b32.cont [9/16] 0.0, 128
  %4246 = vxpose.xlu0.b32.cont [10/16] 0.0, 128
  %4247 = vxpose.xlu0.b32.cont [11/16] 0.0, 128
  %4248 = vxpose.xlu0.b32.cont [12/16] 0.0, 128
  %4249 = vxpose.xlu0.b32.cont [13/16] 0.0, 128
  %4250 = vxpose.xlu0.b32.cont [14/16] 0.0, 128
  %4251 = vxpose.xlu0.b32.cont [15/16] 0.0, 128
  %4252 = vxpose.xlu0.b32.end [16/16] 0.0, 128
  %v4253 = vpop.trf.xlu0
  %v4254 = vpop.trf.xlu0
  %v4255 = vpop.trf.xlu0
  %v4256 = vpop.trf.xlu0
  %v4257 = vpop.trf.xlu0
  %v4258 = vpop.trf.xlu0
  %v4259 = vpop.trf.xlu0
  %v4260 = vpop.trf.xlu0
  %v4261 = vpop.trf.xlu0
  %v4262 = vpop.trf.xlu0
  %v4263 = vpop.trf.xlu0
  %v4264 = vpop.trf.xlu0
  %v4265 = vpop.trf.xlu0
  %v4266 = vpop.trf.xlu0
  %v4267 = vpop.trf.xlu0
  %v4268 = vpop.trf.xlu0
  %4269 = vxpose.xlu0.b32.start [1/16] %v3783, 128
  %4270 = vxpose.xlu0.b32.cont [2/16] %v3786, 128
  %4271 = vxpose.xlu0.b32.cont [3/16] 0.0, 128
  %4272 = vxpose.xlu0.b32.cont [4/16] 0.0, 128
  %4273 = vxpose.xlu0.b32.cont [5/16] 0.0, 128
  %4274 = vxpose.xlu0.b32.cont [6/16] 0.0, 128
  %4275 = vxpose.xlu0.b32.cont [7/16] 0.0, 128
  %4276 = vxpose.xlu0.b32.cont [8/16] 0.0, 128
  %4277 = vxpose.xlu0.b32.cont [9/16] 0.0, 128
  %4278 = vxpose.xlu0.b32.cont [10/16] 0.0, 128
  %4279 = vxpose.xlu0.b32.cont [11/16] 0.0, 128
  %4280 = vxpose.xlu0.b32.cont [12/16] 0.0, 128
  %4281 = vxpose.xlu0.b32.cont [13/16] 0.0, 128
  %4282 = vxpose.xlu0.b32.cont [14/16] 0.0, 128
  %4283 = vxpose.xlu0.b32.cont [15/16] 0.0, 128
  %4284 = vxpose.xlu0.b32.end [16/16] 0.0, 128
  %v4285 = vpop.trf.xlu0
  %v4286 = vpop.trf.xlu0
  %v4287 = vpop.trf.xlu0
  %v4288 = vpop.trf.xlu0
  %v4289 = vpop.trf.xlu0
  %v4290 = vpop.trf.xlu0
  %v4291 = vpop.trf.xlu0
  %v4292 = vpop.trf.xlu0
  %v4293 = vpop.trf.xlu0
  %v4294 = vpop.trf.xlu0
  %v4295 = vpop.trf.xlu0
  %v4296 = vpop.trf.xlu0
  %v4297 = vpop.trf.xlu0
  %v4298 = vpop.trf.xlu0
  %v4299 = vpop.trf.xlu0
  %v4300 = vpop.trf.xlu0
  %v4301 = vadd.f32 %v3805, %v577
  %v4302 = vadd.f32 %v3837, %v581
  %v4303 = vadd.f32 %v3869, %v585
  %v4304 = vadd.f32 %v3901, %v589
  %v4305 = vadd.f32 %v3933, %v593
  %v4306 = vadd.f32 %v3965, %v597
  %v4307 = vadd.f32 %v3997, %v601
  %v4308 = vadd.f32 %v4029, %v605
  %v4309 = vadd.f32 %v4061, %v609
  %v4310 = vadd.f32 %v4093, %v613
  %v4311 = vadd.f32 %v4125, %v617
  %v4312 = vadd.f32 %v4157, %v621
  %v4313 = vadd.f32 %v4189, %v625
  %v4314 = vadd.f32 %v4221, %v629
  %v4315 = vadd.f32 %v4253, %v633
  %v4316 = vadd.f32 %v4285, %v637
  %v4317 = vsel %vm2163, %v4301, -inf
  %4318 = vmax.xlane.f32.xlu0 %v4317
  %v4319 = vpop.xlane.xlu0 %4318
  %v4320 = vsel %vm2163, %v4302, -inf
  %4321 = vmax.xlane.f32.xlu0 %v4320
  %v4322 = vpop.xlane.xlu0 %4321
  %v4323 = vsel %vm2163, %v4303, -inf
  %4324 = vmax.xlane.f32.xlu0 %v4323
  %v4325 = vpop.xlane.xlu0 %4324
  %v4326 = vsel %vm2163, %v4304, -inf
  %4327 = vmax.xlane.f32.xlu0 %v4326
  %v4328 = vpop.xlane.xlu0 %4327
  %v4329 = vsel %vm2163, %v4305, -inf
  %4330 = vmax.xlane.f32.xlu0 %v4329
  %v4331 = vpop.xlane.xlu0 %4330
  %v4332 = vsel %vm2163, %v4306, -inf
  %4333 = vmax.xlane.f32.xlu0 %v4332
  %v4334 = vpop.xlane.xlu0 %4333
  %v4335 = vsel %vm2163, %v4307, -inf
  %4336 = vmax.xlane.f32.xlu0 %v4335
  %v4337 = vpop.xlane.xlu0 %4336
  %v4338 = vsel %vm2163, %v4308, -inf
  %4339 = vmax.xlane.f32.xlu0 %v4338
  %v4340 = vpop.xlane.xlu0 %4339
  %v4341 = vsel %vm2163, %v4309, -inf
  %4342 = vmax.xlane.f32.xlu0 %v4341
  %v4343 = vpop.xlane.xlu0 %4342
  %v4344 = vsel %vm2163, %v4310, -inf
  %4345 = vmax.xlane.f32.xlu0 %v4344
  %v4346 = vpop.xlane.xlu0 %4345
  %v4347 = vsel %vm2163, %v4311, -inf
  %4348 = vmax.xlane.f32.xlu0 %v4347
  %v4349 = vpop.xlane.xlu0 %4348
  %v4350 = vsel %vm2163, %v4312, -inf
  %4351 = vmax.xlane.f32.xlu0 %v4350
  %v4352 = vpop.xlane.xlu0 %4351
  %v4353 = vsel %vm2163, %v4313, -inf
  %4354 = vmax.xlane.f32.xlu0 %v4353
  %v4355 = vpop.xlane.xlu0 %4354
  %v4356 = vsel %vm2163, %v4314, -inf
  %4357 = vmax.xlane.f32.xlu0 %v4356
  %v4358 = vpop.xlane.xlu0 %4357
  %v4359 = vsel %vm2163, %v4315, -inf
  %4360 = vmax.xlane.f32.xlu0 %v4359
  %v4361 = vpop.xlane.xlu0 %4360
  %v4362 = vsel %vm2163, %v4316, -inf
  %4363 = vmax.xlane.f32.xlu0 %v4362
  %v4364 = vpop.xlane.xlu0 %4363
  %v4365 = vsub.f32 %v4301, %v4319
  %v4366 = vsub.f32 %v4302, %v4322
  %v4367 = vsub.f32 %v4303, %v4325
  %v4368 = vsub.f32 %v4304, %v4328
  %v4369 = vsub.f32 %v4305, %v4331
  %v4370 = vsub.f32 %v4306, %v4334
  %v4371 = vsub.f32 %v4307, %v4337
  %v4372 = vsub.f32 %v4308, %v4340
  %v4373 = vsub.f32 %v4309, %v4343
  %v4374 = vsub.f32 %v4310, %v4346
  %v4375 = vsub.f32 %v4311, %v4349
  %v4376 = vsub.f32 %v4312, %v4352
  %v4377 = vsub.f32 %v4313, %v4355
  %v4378 = vsub.f32 %v4314, %v4358
  %v4379 = vsub.f32 %v4315, %v4361
  %v4380 = vsub.f32 %v4316, %v4364
  %v4381 = vmul.f32 %v4365, 1.442695
  %v4382 = vpow.pop %v4381
  %v4383 = vmul.f32 %v4366, 1.442695
  %v4384 = vpow.pop %v4383
  %v4385 = vmul.f32 %v4367, 1.442695
  %v4386 = vpow.pop %v4385
  %v4387 = vmul.f32 %v4368, 1.442695
  %v4388 = vpow.pop %v4387
  %v4389 = vmul.f32 %v4369, 1.442695
  %v4390 = vpow.pop %v4389
  %v4391 = vmul.f32 %v4370, 1.442695
  %v4392 = vpow.pop %v4391
  %v4393 = vmul.f32 %v4371, 1.442695
  %v4394 = vpow.pop %v4393
  %v4395 = vmul.f32 %v4372, 1.442695
  %v4396 = vpow.pop %v4395
  %v4397 = vmul.f32 %v4373, 1.442695
  %v4398 = vpow.pop %v4397
  %v4399 = vmul.f32 %v4374, 1.442695
  %v4400 = vpow.pop %v4399
  %v4401 = vmul.f32 %v4375, 1.442695
  %v4402 = vpow.pop %v4401
  %v4403 = vmul.f32 %v4376, 1.442695
  %v4404 = vpow.pop %v4403
  %v4405 = vmul.f32 %v4377, 1.442695
  %v4406 = vpow.pop %v4405
  %v4407 = vmul.f32 %v4378, 1.442695
  %v4408 = vpow.pop %v4407
  %v4409 = vmul.f32 %v4379, 1.442695
  %v4410 = vpow.pop %v4409
  %v4411 = vmul.f32 %v4380, 1.442695
  %v4412 = vpow.pop %v4411
  %v4413 = vsel %vm2163, %v4382, 0.0
  %4414 = vadd.xlane.f32.xlu0 %v4413
  %v4415 = vpop.xlane.xlu0 %4414
  %v4416 = vsel %vm2163, %v4384, 0.0
  %4417 = vadd.xlane.f32.xlu0 %v4416
  %v4418 = vpop.xlane.xlu0 %4417
  %v4419 = vsel %vm2163, %v4386, 0.0
  %4420 = vadd.xlane.f32.xlu0 %v4419
  %v4421 = vpop.xlane.xlu0 %4420
  %v4422 = vsel %vm2163, %v4388, 0.0
  %4423 = vadd.xlane.f32.xlu0 %v4422
  %v4424 = vpop.xlane.xlu0 %4423
  %v4425 = vsel %vm2163, %v4390, 0.0
  %4426 = vadd.xlane.f32.xlu0 %v4425
  %v4427 = vpop.xlane.xlu0 %4426
  %v4428 = vsel %vm2163, %v4392, 0.0
  %4429 = vadd.xlane.f32.xlu0 %v4428
  %v4430 = vpop.xlane.xlu0 %4429
  %v4431 = vsel %vm2163, %v4394, 0.0
  %4432 = vadd.xlane.f32.xlu0 %v4431
  %v4433 = vpop.xlane.xlu0 %4432
  %v4434 = vsel %vm2163, %v4396, 0.0
  %4435 = vadd.xlane.f32.xlu0 %v4434
  %v4436 = vpop.xlane.xlu0 %4435
  %v4437 = vsel %vm2163, %v4398, 0.0
  %4438 = vadd.xlane.f32.xlu0 %v4437
  %v4439 = vpop.xlane.xlu0 %4438
  %v4440 = vsel %vm2163, %v4400, 0.0
  %4441 = vadd.xlane.f32.xlu0 %v4440
  %v4442 = vpop.xlane.xlu0 %4441
  %v4443 = vsel %vm2163, %v4402, 0.0
  %4444 = vadd.xlane.f32.xlu0 %v4443
  %v4445 = vpop.xlane.xlu0 %4444
  %v4446 = vsel %vm2163, %v4404, 0.0
  %4447 = vadd.xlane.f32.xlu0 %v4446
  %v4448 = vpop.xlane.xlu0 %4447
  %v4449 = vsel %vm2163, %v4406, 0.0
  %4450 = vadd.xlane.f32.xlu0 %v4449
  %v4451 = vpop.xlane.xlu0 %4450
  %v4452 = vsel %vm2163, %v4408, 0.0
  %4453 = vadd.xlane.f32.xlu0 %v4452
  %v4454 = vpop.xlane.xlu0 %4453
  %v4455 = vsel %vm2163, %v4410, 0.0
  %4456 = vadd.xlane.f32.xlu0 %v4455
  %v4457 = vpop.xlane.xlu0 %4456
  %v4458 = vsel %vm2163, %v4412, 0.0
  %4459 = vadd.xlane.f32.xlu0 %v4458
  %v4460 = vpop.xlane.xlu0 %4459
  %v4461 = vrcp.pop %v4415
  %v4462 = vrcp.pop %v4418
  %v4463 = vrcp.pop %v4421
  %v4464 = vrcp.pop %v4424
  %v4465 = vrcp.pop %v4427
  %v4466 = vrcp.pop %v4430
  %v4467 = vrcp.pop %v4433
  %v4468 = vrcp.pop %v4436
  %v4469 = vrcp.pop %v4439
  %v4470 = vrcp.pop %v4442
  %v4471 = vrcp.pop %v4445
  %v4472 = vrcp.pop %v4448
  %v4473 = vrcp.pop %v4451
  %v4474 = vrcp.pop %v4454
  %v4475 = vrcp.pop %v4457
  %v4476 = vrcp.pop %v4460
  %v4477 = vmul.f32 %v4382, %v4461
  %v4478 = vmul.f32 %v4384, %v4462
  %v4479 = vmul.f32 %v4386, %v4463
  %v4480 = vmul.f32 %v4388, %v4464
  %v4481 = vmul.f32 %v4390, %v4465
  %v4482 = vmul.f32 %v4392, %v4466
  %v4483 = vmul.f32 %v4394, %v4467
  %v4484 = vmul.f32 %v4396, %v4468
  %v4485 = vmul.f32 %v4398, %v4469
  %v4486 = vmul.f32 %v4400, %v4470
  %v4487 = vmul.f32 %v4402, %v4471
  %v4488 = vmul.f32 %v4404, %v4472
  %v4489 = vmul.f32 %v4406, %v4473
  %v4490 = vmul.f32 %v4408, %v4474
  %v4491 = vmul.f32 %v4410, %v4475
  %v4492 = vmul.f32 %v4412, %v4476
  %4493 = vst.msk [vmem:[#allocation2] sm:$0xf] %vm2163, %v4477
  %4494 = vst.msk [vmem:[#allocation2 + $0x4] sm:$0xf] %vm2163, %v4478
  %4495 = vst.msk [vmem:[#allocation2 + $0x8] sm:$0xf] %vm2163, %v4479
  %4496 = vst.msk [vmem:[#allocation2 + $0xc] sm:$0xf] %vm2163, %v4480
  %4497 = vst.msk [vmem:[#allocation2 + $0x10] sm:$0xf] %vm2163, %v4481
  %4498 = vst.msk [vmem:[#allocation2 + $0x14] sm:$0xf] %vm2163, %v4482
  %4499 = vst.msk [vmem:[#allocation2 + $0x18] sm:$0xf] %vm2163, %v4483
  %4500 = vst.msk [vmem:[#allocation2 + $0x1c] sm:$0xf] %vm2163, %v4484
  %4501 = vst.msk [vmem:[#allocation2 + $0x20] sm:$0xf] %vm2163, %v4485
  %4502 = vst.msk [vmem:[#allocation2 + $0x24] sm:$0xf] %vm2163, %v4486
  %4503 = vst.msk [vmem:[#allocation2 + $0x28] sm:$0xf] %vm2163, %v4487
  %4504 = vst.msk [vmem:[#allocation2 + $0x2c] sm:$0xf] %vm2163, %v4488
  %4505 = vst.msk [vmem:[#allocation2 + $0x30] sm:$0xf] %vm2163, %v4489
  %4506 = vst.msk [vmem:[#allocation2 + $0x34] sm:$0xf] %vm2163, %v4490
  %4507 = vst.msk [vmem:[#allocation2 + $0x38] sm:$0xf] %vm2163, %v4491
  %4508 = vst.msk [vmem:[#allocation2 + $0x3c] sm:$0xf] %vm2163, %v4492
  %v4509 = vpack.c.bf16 %v3080, %v3076
  %v4510 = vld [vmem:[#allocation2] sm:$0x1]
  %v4511 = vld [vmem:[#allocation2 + $0x4] sm:$0x1]
  %v4512 = vld [vmem:[#allocation2 + $0x8] sm:$0x1]
  %v4513 = vld [vmem:[#allocation2 + $0xc] sm:$0x1]
  %v4514 = vld [vmem:[#allocation2 + $0x10] sm:$0x1]
  %v4515 = vld [vmem:[#allocation2 + $0x14] sm:$0x1]
  %v4516 = vld [vmem:[#allocation2 + $0x18] sm:$0x1]
  %v4517 = vld [vmem:[#allocation2 + $0x1c] sm:$0x1]
  %v4518 = vld [vmem:[#allocation2 + $0x20] sm:$0x1]
  %v4519 = vld [vmem:[#allocation2 + $0x24] sm:$0x1]
  %v4520 = vld [vmem:[#allocation2 + $0x28] sm:$0x1]
  %v4521 = vld [vmem:[#allocation2 + $0x2c] sm:$0x1]
  %v4522 = vld [vmem:[#allocation2 + $0x30] sm:$0x1]
  %v4523 = vld [vmem:[#allocation2 + $0x34] sm:$0x1]
  %v4524 = vld [vmem:[#allocation2 + $0x38] sm:$0x1]
  %v4525 = vld [vmem:[#allocation2 + $0x3c] sm:$0x1]
  %v4526 = vpack.c.bf16 %v4510, %v4510
  %v4527 = vpack.c.bf16 %v4511, %v4511
  %v4528 = vpack.c.bf16 %v4512, %v4512
  %v4529 = vpack.c.bf16 %v4513, %v4513
  %v4530 = vpack.c.bf16 %v4514, %v4514
  %v4531 = vpack.c.bf16 %v4515, %v4515
  %v4532 = vpack.c.bf16 %v4516, %v4516
  %v4533 = vpack.c.bf16 %v4517, %v4517
  %v4534 = vpack.c.bf16 %v4518, %v4518
  %v4535 = vpack.c.bf16 %v4519, %v4519
  %v4536 = vpack.c.bf16 %v4520, %v4520
  %v4537 = vpack.c.bf16 %v4521, %v4521
  %v4538 = vpack.c.bf16 %v4522, %v4522
  %v4539 = vpack.c.bf16 %v4523, %v4523
  %v4540 = vpack.c.bf16 %v4524, %v4524
  %v4541 = vpack.c.bf16 %v4525, %v4525
  %v4558 = vunpack.c.l.b16 %v4526
  %v4559 = vunpack.c.l.b16 %v4527
  %v4560 = vunpack.c.l.b16 %v4528
  %v4561 = vunpack.c.l.b16 %v4529
  %v4562 = vunpack.c.l.b16 %v4530
  %v4563 = vunpack.c.l.b16 %v4531
  %v4564 = vunpack.c.l.b16 %v4532
  %v4565 = vunpack.c.l.b16 %v4533
  %v4566 = vunpack.c.l.b16 %v4534
  %v4567 = vunpack.c.l.b16 %v4535
  %v4568 = vunpack.c.l.b16 %v4536
  %v4569 = vunpack.c.l.b16 %v4537
  %v4570 = vunpack.c.l.b16 %v4538
  %v4571 = vunpack.c.l.b16 %v4539
  %v4572 = vunpack.c.l.b16 %v4540
  %v4573 = vunpack.c.l.b16 %v4541
  %v4574 = vrot.slane %v4559, 7
  %v4575 = vsel %vm2422, %v4574, %v4558
  %v4576 = vrot.slane %v4560, 6
  %v4577 = vsel %vm2425, %v4576, %v4575
  %v4578 = vrot.slane %v4561, 5
  %v4579 = vsel %vm2428, %v4578, %v4577
  %v4580 = vrot.slane %v4562, 4
  %v4581 = vsel %vm2431, %v4580, %v4579
  %v4582 = vrot.slane %v4563, 3
  %v4583 = vsel %vm2434, %v4582, %v4581
  %v4584 = vrot.slane %v4564, 2
  %v4585 = vsel %vm2437, %v4584, %v4583
  %v4586 = vrot.slane %v4565, 1
  %v4587 = vsel %vm2440, %v4586, %v4585
  %v4588 = vrot.slane %v4567, 7
  %v4589 = vsel %vm2422, %v4588, %v4566
  %v4590 = vrot.slane %v4568, 6
  %v4591 = vsel %vm2425, %v4590, %v4589
  %v4592 = vrot.slane %v4569, 5
  %v4593 = vsel %vm2428, %v4592, %v4591
  %v4594 = vrot.slane %v4570, 4
  %v4595 = vsel %vm2431, %v4594, %v4593
  %v4596 = vrot.slane %v4571, 3
  %v4597 = vsel %vm2434, %v4596, %v4595
  %v4598 = vrot.slane %v4572, 2
  %v4599 = vsel %vm2437, %v4598, %v4597
  %v4600 = vrot.slane %v4573, 1
  %v4601 = vsel %vm2440, %v4600, %v4599
  %v4602 = vpack.c.b16 %v4601, %v4587
  %v4604 = vsel %vm2457, %v4602, 0
  %4606 = vmatprep.subr.bf16.mxu0 0
  %4607 = vmatpush1.bf16.msra.mxu0 0
  %4608 = vmatprep.subr.bf16.mxu0 0
  %4609 = vmatpush1.bf16.msra.mxu0 0
  %4610 = vmatprep.subr.bf16.mxu0 0
  %4611 = vmatpush1.bf16.msra.mxu0 0
  %4612 = vmatprep.subr.bf16.mxu0 0
  %4613 = vmatpush1.bf16.msra.mxu0 0
  %4614 = vmatprep.subr.bf16.mxu0 0
  %4615 = vmatpush1.bf16.msra.mxu0 0
  %4616 = vmatprep.subr.bf16.mxu0 0
  %4617 = vmatpush1.bf16.msra.mxu0 0
  %4618 = vmatprep.subr.bf16.mxu0 0
  %4619 = vmatpush1.bf16.msra.mxu0 0
  %4620 = vmatprep.subr.bf16.mxu0 0
  %4621 = vmatpush1.bf16.msra.mxu0 %v4509
  %4622 = vmatprep.subr.bf16.mxu0 0
  %4623 = vmatpush2.bf16.msra.mxu0 0
  %4624 = vmatprep.subr.bf16.mxu0 0
  %4625 = vmatpush2.bf16.msra.mxu0 0
  %4626 = vmatprep.subr.bf16.mxu0 0
  %4627 = vmatpush2.bf16.msra.mxu0 0
  %4628 = vmatprep.subr.bf16.mxu0 0
  %4629 = vmatpush2.bf16.msra.mxu0 0
  %4630 = vmatprep.subr.bf16.mxu0 0
  %4631 = vmatpush2.bf16.msra.mxu0 0
  %4632 = vmatprep.subr.bf16.mxu0 0
  %4633 = vmatpush2.bf16.msra.mxu0 0
  %4634 = vmatprep.subr.bf16.mxu0 0
  %4635 = vmatpush2.bf16.msra.mxu0 0
  %4636 = vmatprep.subr.bf16.mxu0 0
  %4637 = vmatpush2.bf16.msra.mxu0 0
  %4638 = vmatprep.mubr.bf16.mxu0 0
  %4639 = vmatmul.mubr.bf16.gmra.mxu0 %v4604
  %v4640 = vpop.f32.mrf.mxu0
  %v4641 = vadd.f32 0.0, %v4640
  %v4642 = vpop.f32.mrf.mxu0
  %v4643 = vpop.f32.mrf.mxu0
  %v4644 = vadd.f32 0.0, %v4643
  %v4645 = vpop.f32.mrf.mxu0
  %4646 = vdwg.mxu0
  %v4647 = vld [vmem:[#allocation2 + $0x1] sm:$0x1]
  %v4648 = vld [vmem:[#allocation2 + $0x5] sm:$0x1]
  %v4649 = vld [vmem:[#allocation2 + $0x9] sm:$0x1]
  %v4650 = vld [vmem:[#allocation2 + $0xd] sm:$0x1]
  %v4651 = vld [vmem:[#allocation2 + $0x11] sm:$0x1]
  %v4652 = vld [vmem:[#allocation2 + $0x15] sm:$0x1]
  %v4653 = vld [vmem:[#allocation2 + $0x19] sm:$0x1]
  %v4654 = vld [vmem:[#allocation2 + $0x1d] sm:$0x1]
  %v4655 = vld [vmem:[#allocation2 + $0x21] sm:$0x1]
  %v4656 = vld [vmem:[#allocation2 + $0x25] sm:$0x1]
  %v4657 = vld [vmem:[#allocation2 + $0x29] sm:$0x1]
  %v4658 = vld [vmem:[#allocation2 + $0x2d] sm:$0x1]
  %v4659 = vld [vmem:[#allocation2 + $0x31] sm:$0x1]
  %v4660 = vld [vmem:[#allocation2 + $0x35] sm:$0x1]
  %v4661 = vld [vmem:[#allocation2 + $0x39] sm:$0x1]
  %v4662 = vld [vmem:[#allocation2 + $0x3d] sm:$0x1]
  %v4663 = vpack.c.bf16 %v4647, %v4647
  %v4664 = vpack.c.bf16 %v4648, %v4648
  %v4665 = vpack.c.bf16 %v4649, %v4649
  %v4666 = vpack.c.bf16 %v4650, %v4650
  %v4667 = vpack.c.bf16 %v4651, %v4651
  %v4668 = vpack.c.bf16 %v4652, %v4652
  %v4669 = vpack.c.bf16 %v4653, %v4653
  %v4670 = vpack.c.bf16 %v4654, %v4654
  %v4671 = vpack.c.bf16 %v4655, %v4655
  %v4672 = vpack.c.bf16 %v4656, %v4656
  %v4673 = vpack.c.bf16 %v4657, %v4657
  %v4674 = vpack.c.bf16 %v4658, %v4658
  %v4675 = vpack.c.bf16 %v4659, %v4659
  %v4676 = vpack.c.bf16 %v4660, %v4660
  %v4677 = vpack.c.bf16 %v4661, %v4661
  %v4678 = vpack.c.bf16 %v4662, %v4662
  %v4695 = vunpack.c.l.b16 %v4663
  %v4696 = vunpack.c.l.b16 %v4664
  %v4697 = vunpack.c.l.b16 %v4665
  %v4698 = vunpack.c.l.b16 %v4666
  %v4699 = vunpack.c.l.b16 %v4667
  %v4700 = vunpack.c.l.b16 %v4668
  %v4701 = vunpack.c.l.b16 %v4669
  %v4702 = vunpack.c.l.b16 %v4670
  %v4703 = vunpack.c.l.b16 %v4671
  %v4704 = vunpack.c.l.b16 %v4672
  %v4705 = vunpack.c.l.b16 %v4673
  %v4706 = vunpack.c.l.b16 %v4674
  %v4707 = vunpack.c.l.b16 %v4675
  %v4708 = vunpack.c.l.b16 %v4676
  %v4709 = vunpack.c.l.b16 %v4677
  %v4710 = vunpack.c.l.b16 %v4678
  %v4711 = vrot.slane %v4696, 7
  %v4712 = vsel %vm2422, %v4711, %v4695
  %v4713 = vrot.slane %v4697, 6
  %v4714 = vsel %vm2425, %v4713, %v4712
  %v4715 = vrot.slane %v4698, 5
  %v4716 = vsel %vm2428, %v4715, %v4714
  %v4717 = vrot.slane %v4699, 4
  %v4718 = vsel %vm2431, %v4717, %v4716
  %v4719 = vrot.slane %v4700, 3
  %v4720 = vsel %vm2434, %v4719, %v4718
  %v4721 = vrot.slane %v4701, 2
  %v4722 = vsel %vm2437, %v4721, %v4720
  %v4723 = vrot.slane %v4702, 1
  %v4724 = vsel %vm2440, %v4723, %v4722
  %v4725 = vrot.slane %v4704, 7
  %v4726 = vsel %vm2422, %v4725, %v4703
  %v4727 = vrot.slane %v4705, 6
  %v4728 = vsel %vm2425, %v4727, %v4726
  %v4729 = vrot.slane %v4706, 5
  %v4730 = vsel %vm2428, %v4729, %v4728
  %v4731 = vrot.slane %v4707, 4
  %v4732 = vsel %vm2431, %v4731, %v4730
  %v4733 = vrot.slane %v4708, 3
  %v4734 = vsel %vm2434, %v4733, %v4732
  %v4735 = vrot.slane %v4709, 2
  %v4736 = vsel %vm2437, %v4735, %v4734
  %v4737 = vrot.slane %v4710, 1
  %v4738 = vsel %vm2440, %v4737, %v4736
  %v4739 = vpack.c.b16 %v4738, %v4724
  %4741 = vrot.lane.b32.xlu0 %v4509, 96
  %v4742 = vpop.permute.xlu0 %4741
  %v4745 = vsel %vm2457, %v4739, 0
  %4747 = vmatprep.subr.bf16.mxu0 0
  %4748 = vmatpush1.bf16.msra.mxu0 0
  %4749 = vmatprep.subr.bf16.mxu0 0
  %4750 = vmatpush1.bf16.msra.mxu0 0
  %4751 = vmatprep.subr.bf16.mxu0 0
  %4752 = vmatpush1.bf16.msra.mxu0 0
  %4753 = vmatprep.subr.bf16.mxu0 0
  %4754 = vmatpush1.bf16.msra.mxu0 0
  %4755 = vmatprep.subr.bf16.mxu0 0
  %4756 = vmatpush1.bf16.msra.mxu0 0
  %4757 = vmatprep.subr.bf16.mxu0 0
  %4758 = vmatpush1.bf16.msra.mxu0 0
  %4759 = vmatprep.subr.bf16.mxu0 0
  %4760 = vmatpush1.bf16.msra.mxu0 0
  %4761 = vmatprep.subr.bf16.mxu0 0
  %4762 = vmatpush1.bf16.msra.mxu0 %v4742
  %4763 = vmatprep.subr.bf16.mxu0 0
  %4764 = vmatpush2.bf16.msra.mxu0 0
  %4765 = vmatprep.subr.bf16.mxu0 0
  %4766 = vmatpush2.bf16.msra.mxu0 0
  %4767 = vmatprep.subr.bf16.mxu0 0
  %4768 = vmatpush2.bf16.msra.mxu0 0
  %4769 = vmatprep.subr.bf16.mxu0 0
  %4770 = vmatpush2.bf16.msra.mxu0 0
  %4771 = vmatprep.subr.bf16.mxu0 0
  %4772 = vmatpush2.bf16.msra.mxu0 0
  %4773 = vmatprep.subr.bf16.mxu0 0
  %4774 = vmatpush2.bf16.msra.mxu0 0
  %4775 = vmatprep.subr.bf16.mxu0 0
  %4776 = vmatpush2.bf16.msra.mxu0 0
  %4777 = vmatprep.subr.bf16.mxu0 0
  %4778 = vmatpush2.bf16.msra.mxu0 0
  %4779 = vmatprep.mubr.bf16.mxu0 0
  %4780 = vmatmul.mubr.bf16.gmra.mxu0 %v4745
  %v4781 = vpop.f32.mrf.mxu0
  %v4782 = vadd.f32 0.0, %v4781
  %v4783 = vpop.f32.mrf.mxu0
  %v4784 = vpop.f32.mrf.mxu0
  %v4785 = vadd.f32 0.0, %v4784
  %v4786 = vpop.f32.mrf.mxu0
  %4787 = vdwg.mxu0
  %v4788 = vld [vmem:[#allocation2 + $0x2] sm:$0x1]
  %v4789 = vld [vmem:[#allocation2 + $0x6] sm:$0x1]
  %v4790 = vld [vmem:[#allocation2 + $0xa] sm:$0x1]
  %v4791 = vld [vmem:[#allocation2 + $0xe] sm:$0x1]
  %v4792 = vld [vmem:[#allocation2 + $0x12] sm:$0x1]
  %v4793 = vld [vmem:[#allocation2 + $0x16] sm:$0x1]
  %v4794 = vld [vmem:[#allocation2 + $0x1a] sm:$0x1]
  %v4795 = vld [vmem:[#allocation2 + $0x1e] sm:$0x1]
  %v4796 = vld [vmem:[#allocation2 + $0x22] sm:$0x1]
  %v4797 = vld [vmem:[#allocation2 + $0x26] sm:$0x1]
  %v4798 = vld [vmem:[#allocation2 + $0x2a] sm:$0x1]
  %v4799 = vld [vmem:[#allocation2 + $0x2e] sm:$0x1]
  %v4800 = vld [vmem:[#allocation2 + $0x32] sm:$0x1]
  %v4801 = vld [vmem:[#allocation2 + $0x36] sm:$0x1]
  %v4802 = vld [vmem:[#allocation2 + $0x3a] sm:$0x1]
  %v4803 = vld [vmem:[#allocation2 + $0x3e] sm:$0x1]
  %v4804 = vpack.c.bf16 %v4788, %v4788
  %v4805 = vpack.c.bf16 %v4789, %v4789
  %v4806 = vpack.c.bf16 %v4790, %v4790
  %v4807 = vpack.c.bf16 %v4791, %v4791
  %v4808 = vpack.c.bf16 %v4792, %v4792
  %v4809 = vpack.c.bf16 %v4793, %v4793
  %v4810 = vpack.c.bf16 %v4794, %v4794
  %v4811 = vpack.c.bf16 %v4795, %v4795
  %v4812 = vpack.c.bf16 %v4796, %v4796
  %v4813 = vpack.c.bf16 %v4797, %v4797
  %v4814 = vpack.c.bf16 %v4798, %v4798
  %v4815 = vpack.c.bf16 %v4799, %v4799
  %v4816 = vpack.c.bf16 %v4800, %v4800
  %v4817 = vpack.c.bf16 %v4801, %v4801
  %v4818 = vpack.c.bf16 %v4802, %v4802
  %v4819 = vpack.c.bf16 %v4803, %v4803
  %v4836 = vunpack.c.l.b16 %v4804
  %v4837 = vunpack.c.l.b16 %v4805
  %v4838 = vunpack.c.l.b16 %v4806
  %v4839 = vunpack.c.l.b16 %v4807
  %v4840 = vunpack.c.l.b16 %v4808
  %v4841 = vunpack.c.l.b16 %v4809
  %v4842 = vunpack.c.l.b16 %v4810
  %v4843 = vunpack.c.l.b16 %v4811
  %v4844 = vunpack.c.l.b16 %v4812
  %v4845 = vunpack.c.l.b16 %v4813
  %v4846 = vunpack.c.l.b16 %v4814
  %v4847 = vunpack.c.l.b16 %v4815
  %v4848 = vunpack.c.l.b16 %v4816
  %v4849 = vunpack.c.l.b16 %v4817
  %v4850 = vunpack.c.l.b16 %v4818
  %v4851 = vunpack.c.l.b16 %v4819
  %v4852 = vrot.slane %v4837, 7
  %v4853 = vsel %vm2422, %v4852, %v4836
  %v4854 = vrot.slane %v4838, 6
  %v4855 = vsel %vm2425, %v4854, %v4853
  %v4856 = vrot.slane %v4839, 5
  %v4857 = vsel %vm2428, %v4856, %v4855
  %v4858 = vrot.slane %v4840, 4
  %v4859 = vsel %vm2431, %v4858, %v4857
  %v4860 = vrot.slane %v4841, 3
  %v4861 = vsel %vm2434, %v4860, %v4859
  %v4862 = vrot.slane %v4842, 2
  %v4863 = vsel %vm2437, %v4862, %v4861
  %v4864 = vrot.slane %v4843, 1
  %v4865 = vsel %vm2440, %v4864, %v4863
  %v4866 = vrot.slane %v4845, 7
  %v4867 = vsel %vm2422, %v4866, %v4844
  %v4868 = vrot.slane %v4846, 6
  %v4869 = vsel %vm2425, %v4868, %v4867
  %v4870 = vrot.slane %v4847, 5
  %v4871 = vsel %vm2428, %v4870, %v4869
  %v4872 = vrot.slane %v4848, 4
  %v4873 = vsel %vm2431, %v4872, %v4871
  %v4874 = vrot.slane %v4849, 3
  %v4875 = vsel %vm2434, %v4874, %v4873
  %v4876 = vrot.slane %v4850, 2
  %v4877 = vsel %vm2437, %v4876, %v4875
  %v4878 = vrot.slane %v4851, 1
  %v4879 = vsel %vm2440, %v4878, %v4877
  %v4880 = vpack.c.b16 %v4879, %v4865
  %4881 = vrot.lane.b32.xlu0 %v4509, 64
  %v4882 = vpop.permute.xlu0 %4881
  %v4885 = vsel %vm2457, %v4880, 0
  %4887 = vmatprep.subr.bf16.mxu0 0
  %4888 = vmatpush1.bf16.msra.mxu0 0
  %4889 = vmatprep.subr.bf16.mxu0 0
  %4890 = vmatpush1.bf16.msra.mxu0 0
  %4891 = vmatprep.subr.bf16.mxu0 0
  %4892 = vmatpush1.bf16.msra.mxu0 0
  %4893 = vmatprep.subr.bf16.mxu0 0
  %4894 = vmatpush1.bf16.msra.mxu0 0
  %4895 = vmatprep.subr.bf16.mxu0 0
  %4896 = vmatpush1.bf16.msra.mxu0 0
  %4897 = vmatprep.subr.bf16.mxu0 0
  %4898 = vmatpush1.bf16.msra.mxu0 0
  %4899 = vmatprep.subr.bf16.mxu0 0
  %4900 = vmatpush1.bf16.msra.mxu0 0
  %4901 = vmatprep.subr.bf16.mxu0 0
  %4902 = vmatpush1.bf16.msra.mxu0 %v4882
  %4903 = vmatprep.subr.bf16.mxu0 0
  %4904 = vmatpush2.bf16.msra.mxu0 0
  %4905 = vmatprep.subr.bf16.mxu0 0
  %4906 = vmatpush2.bf16.msra.mxu0 0
  %4907 = vmatprep.subr.bf16.mxu0 0
  %4908 = vmatpush2.bf16.msra.mxu0 0
  %4909 = vmatprep.subr.bf16.mxu0 0
  %4910 = vmatpush2.bf16.msra.mxu0 0
  %4911 = vmatprep.subr.bf16.mxu0 0
  %4912 = vmatpush2.bf16.msra.mxu0 0
  %4913 = vmatprep.subr.bf16.mxu0 0
  %4914 = vmatpush2.bf16.msra.mxu0 0
  %4915 = vmatprep.subr.bf16.mxu0 0
  %4916 = vmatpush2.bf16.msra.mxu0 0
  %4917 = vmatprep.subr.bf16.mxu0 0
  %4918 = vmatpush2.bf16.msra.mxu0 0
  %4919 = vmatprep.mubr.bf16.mxu0 0
  %4920 = vmatmul.mubr.bf16.gmra.mxu0 %v4885
  %v4921 = vpop.f32.mrf.mxu0
  %v4922 = vadd.f32 0.0, %v4921
  %v4923 = vpop.f32.mrf.mxu0
  %v4924 = vpop.f32.mrf.mxu0
  %v4925 = vadd.f32 0.0, %v4924
  %v4926 = vpop.f32.mrf.mxu0
  %4927 = vdwg.mxu0
  %v4928 = vld [vmem:[#allocation2 + $0x3] sm:$0x1]
  %v4929 = vld [vmem:[#allocation2 + $0x7] sm:$0x1]
  %v4930 = vld [vmem:[#allocation2 + $0xb] sm:$0x1]
  %v4931 = vld [vmem:[#allocation2 + $0xf] sm:$0x1]
  %v4932 = vld [vmem:[#allocation2 + $0x13] sm:$0x1]
  %v4933 = vld [vmem:[#allocation2 + $0x17] sm:$0x1]
  %v4934 = vld [vmem:[#allocation2 + $0x1b] sm:$0x1]
  %v4935 = vld [vmem:[#allocation2 + $0x1f] sm:$0x1]
  %v4936 = vld [vmem:[#allocation2 + $0x23] sm:$0x1]
  %v4937 = vld [vmem:[#allocation2 + $0x27] sm:$0x1]
  %v4938 = vld [vmem:[#allocation2 + $0x2b] sm:$0x1]
  %v4939 = vld [vmem:[#allocation2 + $0x2f] sm:$0x1]
  %v4940 = vld [vmem:[#allocation2 + $0x33] sm:$0x1]
  %v4941 = vld [vmem:[#allocation2 + $0x37] sm:$0x1]
  %v4942 = vld [vmem:[#allocation2 + $0x3b] sm:$0x1]
  %v4943 = vld [vmem:[#allocation2 + $0x3f] sm:$0x1]
  %v4944 = vpack.c.bf16 %v4928, %v4928
  %v4945 = vpack.c.bf16 %v4929, %v4929
  %v4946 = vpack.c.bf16 %v4930, %v4930
  %v4947 = vpack.c.bf16 %v4931, %v4931
  %v4948 = vpack.c.bf16 %v4932, %v4932
  %v4949 = vpack.c.bf16 %v4933, %v4933
  %v4950 = vpack.c.bf16 %v4934, %v4934
  %v4951 = vpack.c.bf16 %v4935, %v4935
  %v4952 = vpack.c.bf16 %v4936, %v4936
  %v4953 = vpack.c.bf16 %v4937, %v4937
  %v4954 = vpack.c.bf16 %v4938, %v4938
  %v4955 = vpack.c.bf16 %v4939, %v4939
  %v4956 = vpack.c.bf16 %v4940, %v4940
  %v4957 = vpack.c.bf16 %v4941, %v4941
  %v4958 = vpack.c.bf16 %v4942, %v4942
  %v4959 = vpack.c.bf16 %v4943, %v4943
  %v4976 = vunpack.c.l.b16 %v4944
  %v4977 = vunpack.c.l.b16 %v4945
  %v4978 = vunpack.c.l.b16 %v4946
  %v4979 = vunpack.c.l.b16 %v4947
  %v4980 = vunpack.c.l.b16 %v4948
  %v4981 = vunpack.c.l.b16 %v4949
  %v4982 = vunpack.c.l.b16 %v4950
  %v4983 = vunpack.c.l.b16 %v4951
  %v4984 = vunpack.c.l.b16 %v4952
  %v4985 = vunpack.c.l.b16 %v4953
  %v4986 = vunpack.c.l.b16 %v4954
  %v4987 = vunpack.c.l.b16 %v4955
  %v4988 = vunpack.c.l.b16 %v4956
  %v4989 = vunpack.c.l.b16 %v4957
  %v4990 = vunpack.c.l.b16 %v4958
  %v4991 = vunpack.c.l.b16 %v4959
  %v4992 = vrot.slane %v4977, 7
  %v4993 = vsel %vm2422, %v4992, %v4976
  %v4994 = vrot.slane %v4978, 6
  %v4995 = vsel %vm2425, %v4994, %v4993
  %v4996 = vrot.slane %v4979, 5
  %v4997 = vsel %vm2428, %v4996, %v4995
  %v4998 = vrot.slane %v4980, 4
  %v4999 = vsel %vm2431, %v4998, %v4997
  %v5000 = vrot.slane %v4981, 3
  %v5001 = vsel %vm2434, %v5000, %v4999
  %v5002 = vrot.slane %v4982, 2
  %v5003 = vsel %vm2437, %v5002, %v5001
  %v5004 = vrot.slane %v4983, 1
  %v5005 = vsel %vm2440, %v5004, %v5003
  %v5006 = vrot.slane %v4985, 7
  %v5007 = vsel %vm2422, %v5006, %v4984
  %v5008 = vrot.slane %v4986, 6
  %v5009 = vsel %vm2425, %v5008, %v5007
  %v5010 = vrot.slane %v4987, 5
  %v5011 = vsel %vm2428, %v5010, %v5009
  %v5012 = vrot.slane %v4988, 4
  %v5013 = vsel %vm2431, %v5012, %v5011
  %v5014 = vrot.slane %v4989, 3
  %v5015 = vsel %vm2434, %v5014, %v5013
  %v5016 = vrot.slane %v4990, 2
  %v5017 = vsel %vm2437, %v5016, %v5015
  %v5018 = vrot.slane %v4991, 1
  %v5019 = vsel %vm2440, %v5018, %v5017
  %v5020 = vpack.c.b16 %v5019, %v5005
  %5021 = vrot.lane.b32.xlu0 %v4509, 32
  %v5022 = vpop.permute.xlu0 %5021
  %v5025 = vsel %vm2457, %v5020, 0
  %5027 = vmatprep.subr.bf16.mxu0 0
  %5028 = vmatpush1.bf16.msra.mxu0 0
  %5029 = vmatprep.subr.bf16.mxu0 0
  %5030 = vmatpush1.bf16.msra.mxu0 0
  %5031 = vmatprep.subr.bf16.mxu0 0
  %5032 = vmatpush1.bf16.msra.mxu0 0
  %5033 = vmatprep.subr.bf16.mxu0 0
  %5034 = vmatpush1.bf16.msra.mxu0 0
  %5035 = vmatprep.subr.bf16.mxu0 0
  %5036 = vmatpush1.bf16.msra.mxu0 0
  %5037 = vmatprep.subr.bf16.mxu0 0
  %5038 = vmatpush1.bf16.msra.mxu0 0
  %5039 = vmatprep.subr.bf16.mxu0 0
  %5040 = vmatpush1.bf16.msra.mxu0 0
  %5041 = vmatprep.subr.bf16.mxu0 0
  %5042 = vmatpush1.bf16.msra.mxu0 %v5022
  %5043 = vmatprep.subr.bf16.mxu0 0
  %5044 = vmatpush2.bf16.msra.mxu0 0
  %5045 = vmatprep.subr.bf16.mxu0 0
  %5046 = vmatpush2.bf16.msra.mxu0 0
  %5047 = vmatprep.subr.bf16.mxu0 0
  %5048 = vmatpush2.bf16.msra.mxu0 0
  %5049 = vmatprep.subr.bf16.mxu0 0
  %5050 = vmatpush2.bf16.msra.mxu0 0
  %5051 = vmatprep.subr.bf16.mxu0 0
  %5052 = vmatpush2.bf16.msra.mxu0 0
  %5053 = vmatprep.subr.bf16.mxu0 0
  %5054 = vmatpush2.bf16.msra.mxu0 0
  %5055 = vmatprep.subr.bf16.mxu0 0
  %5056 = vmatpush2.bf16.msra.mxu0 0
  %5057 = vmatprep.subr.bf16.mxu0 0
  %5058 = vmatpush2.bf16.msra.mxu0 0
  %5059 = vmatprep.mubr.bf16.mxu0 0
  %5060 = vmatmul.mubr.bf16.gmra.mxu0 %v5025
  %v5061 = vpop.f32.mrf.mxu0
  %v5062 = vadd.f32 0.0, %v5061
  %v5063 = vpop.f32.mrf.mxu0
  %v5064 = vpop.f32.mrf.mxu0
  %v5065 = vadd.f32 0.0, %v5064
  %v5066 = vpop.f32.mrf.mxu0
  %5067 = vdwg.mxu0
  %5070 = vrot.lane.b32.xlu0 %v4782, 32
  %v5071 = vpop.permute.xlu0 %5070
  %5072 = vrot.lane.b32.xlu0 %v4785, 32
  %v5073 = vpop.permute.xlu0 %5072
  %5078 = vrot.lane.b32.xlu0 %v4922, 64
  %v5079 = vpop.permute.xlu0 %5078
  %5080 = vrot.lane.b32.xlu0 %v4925, 64
  %v5081 = vpop.permute.xlu0 %5080
  %5086 = vrot.lane.b32.xlu0 %v5062, 96
  %v5087 = vpop.permute.xlu0 %5086
  %5088 = vrot.lane.b32.xlu0 %v5065, 96
  %v5089 = vpop.permute.xlu0 %5088
  %v5092 = vsel %vm2949, %v4641, %v5071
  %v5093 = vsel %vm2949, %v4644, %v5073
  %v5094 = vsel %vm1425, %v5092, %v5079
  %v5095 = vsel %vm1425, %v5093, %v5081
  %vm5096 = vcmask 785408
  %v5097 = vsel %vm5096, %v5094, %v5087
  %v5098 = vsel %vm5096, %v5095, %v5089
  %v5099 = vlaneseq
  %v5100 = vshrl.u32 %v5099, 7
  %v5101 = vsub.s32 4, %v5100
  %v5102 = vrot.slane %v2987, %v5101
  %v5103 = vadd.f32 %v5097, %v5102
  %v5104 = vadd.f32 %v5098, %v5102
  %v5105 = vmax.f32 %v5103, 0.0
  %v5106 = vmax.f32 %v5104, 0.0
  %v5107 = vld [vmem:[%s4 + $0x108] sm:$0xff]
  %v5108 = vld [vmem:[%s4 + $0x110] sm:$0xff]
  %v5109 = vld [vmem:[%s4 + $0x118] sm:$0xff]
  %v5110 = vld [vmem:[%s4 + $0x120] sm:$0xff]
  %v5111 = vld [vmem:[%s4 + $0x128] sm:$0xff]
  %v5112 = vld [vmem:[%s4 + $0x130] sm:$0xff]
  %v5113 = vld [vmem:[%s4 + $0x138] sm:$0xff]
  %v5114 = vld [vmem:[%s4 + $0x140] sm:$0xff]
  %v5115 = vld [vmem:[%s4 + $0x148] sm:$0xff]
  %v5116 = vld [vmem:[%s4 + $0x150] sm:$0xff]
  %v5117 = vld [vmem:[%s4 + $0x158] sm:$0xff]
  %v5118 = vld [vmem:[%s4 + $0x160] sm:$0xff]
  %v5119 = vld [vmem:[%s4 + $0x168] sm:$0xff]
  %v5120 = vld [vmem:[%s4 + $0x170] sm:$0xff]
  %v5121 = vld [vmem:[%s4 + $0x178] sm:$0xff]
  %v5122 = vld [vmem:[%s4 + $0x180] sm:$0xff]
  %v5123 = vld [vmem:[%s4 + $0x188] sm:$0xf]
  %v5124 = vld [vmem:[%s4 + $0x190] sm:$0xf]
  %v5125 = vld [vmem:[%s4 + $0x198] sm:$0xf]
  %v5126 = vld [vmem:[%s4 + $0x1a0] sm:$0xf]
  %v5127 = vld [vmem:[%s4 + $0x1a8] sm:$0xf]
  %v5128 = vld [vmem:[%s4 + $0x1b0] sm:$0xf]
  %v5129 = vld [vmem:[%s4 + $0x1b8] sm:$0xf]
  %v5130 = vld [vmem:[%s4 + $0x1c0] sm:$0xf]
  %v5131 = vld [vmem:[%s4 + $0x1c8] sm:$0xf]
  %v5132 = vld [vmem:[%s4 + $0x1d0] sm:$0xf]
  %v5133 = vld [vmem:[%s4 + $0x1d8] sm:$0xf]
  %v5134 = vld [vmem:[%s4 + $0x1e0] sm:$0xf]
  %v5135 = vld [vmem:[%s4 + $0x1e8] sm:$0xf]
  %v5136 = vld [vmem:[%s4 + $0x1f0] sm:$0xf]
  %v5137 = vld [vmem:[%s4 + $0x1f8] sm:$0xf]
  %v5138 = vld [vmem:[%s4 + $0x200] sm:$0xf]
  %v5139 = vld [vmem:[%s5 + $0x20] sm:$0xff]
  %v5140 = vld [vmem:[%s5 + $0x28] sm:$0xff]
  %v5141 = vpack.c.bf16 %v5106, %v5105
  %v5142 = vlaneseq
  %v5143 = vshrl.u32 %v5142, 7
  %v5144 = vsub.s32 0, %v5143
  %v5145 = vrot.slane %v5139, %v5144
  %v5146 = vlaneseq
  %v5147 = vshrl.u32 %v5146, 7
  %v5148 = vsub.s32 0, %v5147
  %v5149 = vrot.slane %v5140, %v5148
  %v5166 = vunpack.c.l.b16 %v5107
  %v5167 = vunpack.c.h.b16 %v5107
  %v5168 = vunpack.c.l.b16 %v5108
  %v5169 = vunpack.c.h.b16 %v5108
  %v5170 = vunpack.c.l.b16 %v5109
  %v5171 = vunpack.c.h.b16 %v5109
  %v5172 = vunpack.c.l.b16 %v5110
  %v5173 = vunpack.c.h.b16 %v5110
  %v5174 = vunpack.c.l.b16 %v5111
  %v5175 = vunpack.c.h.b16 %v5111
  %v5176 = vunpack.c.l.b16 %v5112
  %v5177 = vunpack.c.h.b16 %v5112
  %v5178 = vunpack.c.l.b16 %v5113
  %v5179 = vunpack.c.h.b16 %v5113
  %v5180 = vunpack.c.l.b16 %v5114
  %v5181 = vunpack.c.h.b16 %v5114
  %v5182 = vunpack.c.l.b16 %v5115
  %v5183 = vunpack.c.h.b16 %v5115
  %v5184 = vunpack.c.l.b16 %v5116
  %v5185 = vunpack.c.h.b16 %v5116
  %v5186 = vunpack.c.l.b16 %v5117
  %v5187 = vunpack.c.h.b16 %v5117
  %v5188 = vunpack.c.l.b16 %v5118
  %v5189 = vunpack.c.h.b16 %v5118
  %v5190 = vunpack.c.l.b16 %v5119
  %v5191 = vunpack.c.h.b16 %v5119
  %v5192 = vunpack.c.l.b16 %v5120
  %v5193 = vunpack.c.h.b16 %v5120
  %v5194 = vunpack.c.l.b16 %v5121
  %v5195 = vunpack.c.h.b16 %v5121
  %v5196 = vunpack.c.l.b16 %v5122
  %v5197 = vunpack.c.h.b16 %v5122
  %v5198 = vpack.c.b16 %v5168, %v5166
  %v5199 = vpack.c.b16 %v5169, %v5167
  %v5200 = vpack.c.b16 %v5172, %v5170
  %v5201 = vpack.c.b16 %v5173, %v5171
  %v5202 = vpack.c.b16 %v5176, %v5174
  %v5203 = vpack.c.b16 %v5177, %v5175
  %v5204 = vpack.c.b16 %v5180, %v5178
  %v5205 = vpack.c.b16 %v5181, %v5179
  %v5206 = vpack.c.b16 %v5184, %v5182
  %v5207 = vpack.c.b16 %v5185, %v5183
  %v5208 = vpack.c.b16 %v5188, %v5186
  %v5209 = vpack.c.b16 %v5189, %v5187
  %v5210 = vpack.c.b16 %v5192, %v5190
  %v5211 = vpack.c.b16 %v5193, %v5191
  %v5212 = vpack.c.b16 %v5196, %v5194
  %v5213 = vpack.c.b16 %v5197, %v5195
  %5230 = vmatprep.subr.bf16.mxu0 %v5213
  %5231 = vmatpush1.bf16.msra.mxu0 %v5212
  %5232 = vmatprep.subr.bf16.mxu0 %v5211
  %5233 = vmatpush1.bf16.msra.mxu0 %v5210
  %5234 = vmatprep.subr.bf16.mxu0 %v5209
  %5235 = vmatpush1.bf16.msra.mxu0 %v5208
  %5236 = vmatprep.subr.bf16.mxu0 %v5207
  %5237 = vmatpush1.bf16.msra.mxu0 %v5206
  %5238 = vmatprep.subr.bf16.mxu0 %v5205
  %5239 = vmatpush1.bf16.msra.mxu0 %v5204
  %5240 = vmatprep.subr.bf16.mxu0 %v5203
  %5241 = vmatpush1.bf16.msra.mxu0 %v5202
  %5242 = vmatprep.subr.bf16.mxu0 %v5201
  %5243 = vmatpush1.bf16.msra.mxu0 %v5200
  %5244 = vmatprep.subr.bf16.mxu0 %v5199
  %5245 = vmatpush1.bf16.msra.mxu0 %v5198
  %5246 = vmatprep.subr.bf16.mxu0 0
  %5247 = vmatpush2.bf16.msra.mxu0 0
  %5248 = vmatprep.subr.bf16.mxu0 0
  %5249 = vmatpush2.bf16.msra.mxu0 0
  %5250 = vmatprep.subr.bf16.mxu0 0
  %5251 = vmatpush2.bf16.msra.mxu0 0
  %5252 = vmatprep.subr.bf16.mxu0 0
  %5253 = vmatpush2.bf16.msra.mxu0 0
  %5254 = vmatprep.subr.bf16.mxu0 0
  %5255 = vmatpush2.bf16.msra.mxu0 0
  %5256 = vmatprep.subr.bf16.mxu0 0
  %5257 = vmatpush2.bf16.msra.mxu0 0
  %5258 = vmatprep.subr.bf16.mxu0 0
  %5259 = vmatpush2.bf16.msra.mxu0 0
  %5260 = vmatprep.subr.bf16.mxu0 0
  %5261 = vmatpush2.bf16.msra.mxu0 0
  %5262 = vmatprep.mubr.bf16.mxu0 0
  %5263 = vmatmul.mubr.bf16.gmra.mxu0 %v5141
  %v5264 = vpop.f32.mrf.mxu0
  %v5265 = vadd.f32 %v5145, %v5264
  %v5266 = vpop.f32.mrf.mxu0
  %v5267 = vadd.f32 %v5149, %v5266
  %v5268 = vpop.f32.mrf.mxu0
  %v5269 = vadd.f32 %v5145, %v5268
  %v5270 = vpop.f32.mrf.mxu0
  %v5271 = vadd.f32 %v5149, %v5270
  %5272 = vdwg.mxu0
  %v5273 = vlaneseq
  %v5274 = vshrl.u32 %v5273, 7
  %v5275 = vsub.s32 1, %v5274
  %v5276 = vrot.slane %v5139, %v5275
  %v5277 = vmul.f32 %v59, %v5276
  %v5278 = vmul.f32 %v64, %v5276
  %v5279 = vmul.f32 %v69, %v5276
  %v5280 = vmul.f32 %v74, %v5276
  %v5281 = vmul.f32 %v79, %v5276
  %v5282 = vmul.f32 %v84, %v5276
  %v5283 = vmul.f32 %v89, %v5276
  %v5284 = vmul.f32 %v94, %v5276
  %v5285 = vmul.f32 %v99, %v5276
  %v5286 = vmul.f32 %v104, %v5276
  %v5287 = vmul.f32 %v109, %v5276
  %v5288 = vmul.f32 %v114, %v5276
  %v5289 = vmul.f32 %v119, %v5276
  %v5290 = vmul.f32 %v124, %v5276
  %v5291 = vmul.f32 %v129, %v5276
  %v5292 = vmul.f32 %v134, %v5276
  %v5293 = vmul.f32 %v139, %v5276
  %v5294 = vmul.f32 %v144, %v5276
  %v5295 = vmul.f32 %v149, %v5276
  %v5296 = vmul.f32 %v154, %v5276
  %v5297 = vmul.f32 %v159, %v5276
  %v5298 = vmul.f32 %v164, %v5276
  %v5299 = vmul.f32 %v169, %v5276
  %v5300 = vmul.f32 %v174, %v5276
  %v5301 = vmul.f32 %v179, %v5276
  %v5302 = vmul.f32 %v184, %v5276
  %v5303 = vmul.f32 %v189, %v5276
  %v5304 = vmul.f32 %v194, %v5276
  %v5305 = vmul.f32 %v199, %v5276
  %v5306 = vmul.f32 %v204, %v5276
  %v5307 = vmul.f32 %v209, %v5276
  %v5308 = vmul.f32 %v214, %v5276
  %v5309 = vlaneseq
  %v5310 = vshrl.u32 %v5309, 7
  %v5311 = vsub.s32 2, %v5310
  %v5312 = vrot.slane %v5139, %v5311
  %v5313 = vmul.f32 %v218, %v5312
  %v5314 = vmul.f32 %v222, %v5312
  %v5315 = vmul.f32 %v226, %v5312
  %v5316 = vmul.f32 %v230, %v5312
  %v5317 = vmul.f32 %v234, %v5312
  %v5318 = vmul.f32 %v238, %v5312
  %v5319 = vmul.f32 %v242, %v5312
  %v5320 = vmul.f32 %v246, %v5312
  %v5321 = vmul.f32 %v250, %v5312
  %v5322 = vmul.f32 %v254, %v5312
  %v5323 = vmul.f32 %v258, %v5312
  %v5324 = vmul.f32 %v262, %v5312
  %v5325 = vmul.f32 %v266, %v5312
  %v5326 = vmul.f32 %v270, %v5312
  %v5327 = vmul.f32 %v274, %v5312
  %v5328 = vmul.f32 %v278, %v5312
  %v5329 = vmul.f32 %v282, %v5312
  %v5330 = vmul.f32 %v286, %v5312
  %v5331 = vmul.f32 %v290, %v5312
  %v5332 = vmul.f32 %v294, %v5312
  %v5333 = vmul.f32 %v298, %v5312
  %v5334 = vmul.f32 %v302, %v5312
  %v5335 = vmul.f32 %v306, %v5312
  %v5336 = vmul.f32 %v310, %v5312
  %v5337 = vmul.f32 %v314, %v5312
  %v5338 = vmul.f32 %v318, %v5312
  %v5339 = vmul.f32 %v322, %v5312
  %v5340 = vmul.f32 %v326, %v5312
  %v5341 = vmul.f32 %v330, %v5312
  %v5342 = vmul.f32 %v334, %v5312
  %v5343 = vmul.f32 %v338, %v5312
  %v5344 = vmul.f32 %v342, %v5312
  %v5345 = vadd.f32 %v5277, %v5313
  %v5346 = vadd.f32 %v5278, %v5314
  %v5347 = vadd.f32 %v5279, %v5315
  %v5348 = vadd.f32 %v5280, %v5316
  %v5349 = vadd.f32 %v5281, %v5317
  %v5350 = vadd.f32 %v5282, %v5318
  %v5351 = vadd.f32 %v5283, %v5319
  %v5352 = vadd.f32 %v5284, %v5320
  %v5353 = vadd.f32 %v5285, %v5321
  %v5354 = vadd.f32 %v5286, %v5322
  %v5355 = vadd.f32 %v5287, %v5323
  %v5356 = vadd.f32 %v5288, %v5324
  %v5357 = vadd.f32 %v5289, %v5325
  %v5358 = vadd.f32 %v5290, %v5326
  %v5359 = vadd.f32 %v5291, %v5327
  %v5360 = vadd.f32 %v5292, %v5328
  %v5361 = vadd.f32 %v5293, %v5329
  %v5362 = vadd.f32 %v5294, %v5330
  %v5363 = vadd.f32 %v5295, %v5331
  %v5364 = vadd.f32 %v5296, %v5332
  %v5365 = vadd.f32 %v5297, %v5333
  %v5366 = vadd.f32 %v5298, %v5334
  %v5367 = vadd.f32 %v5299, %v5335
  %v5368 = vadd.f32 %v5300, %v5336
  %v5369 = vadd.f32 %v5301, %v5337
  %v5370 = vadd.f32 %v5302, %v5338
  %v5371 = vadd.f32 %v5303, %v5339
  %v5372 = vadd.f32 %v5304, %v5340
  %v5373 = vadd.f32 %v5305, %v5341
  %v5374 = vadd.f32 %v5306, %v5342
  %v5375 = vadd.f32 %v5307, %v5343
  %v5376 = vadd.f32 %v5308, %v5344
  %v5377 = vlaneseq
  %v5378 = vshrl.u32 %v5377, 7
  %v5379 = vsub.s32 3, %v5378
  %v5380 = vrot.slane %v5139, %v5379
  %v5381 = vmul.f32 %v346, %v5380
  %v5382 = vmul.f32 %v350, %v5380
  %v5383 = vmul.f32 %v354, %v5380
  %v5384 = vmul.f32 %v358, %v5380
  %v5385 = vmul.f32 %v362, %v5380
  %v5386 = vmul.f32 %v366, %v5380
  %v5387 = vmul.f32 %v370, %v5380
  %v5388 = vmul.f32 %v374, %v5380
  %v5389 = vmul.f32 %v378, %v5380
  %v5390 = vmul.f32 %v382, %v5380
  %v5391 = vmul.f32 %v386, %v5380
  %v5392 = vmul.f32 %v390, %v5380
  %v5393 = vmul.f32 %v394, %v5380
  %v5394 = vmul.f32 %v398, %v5380
  %v5395 = vmul.f32 %v402, %v5380
  %v5396 = vmul.f32 %v406, %v5380
  %v5397 = vmul.f32 %v410, %v5380
  %v5398 = vmul.f32 %v414, %v5380
  %v5399 = vmul.f32 %v418, %v5380
  %v5400 = vmul.f32 %v422, %v5380
  %v5401 = vmul.f32 %v426, %v5380
  %v5402 = vmul.f32 %v430, %v5380
  %v5403 = vmul.f32 %v434, %v5380
  %v5404 = vmul.f32 %v438, %v5380
  %v5405 = vmul.f32 %v442, %v5380
  %v5406 = vmul.f32 %v446, %v5380
  %v5407 = vmul.f32 %v450, %v5380
  %v5408 = vmul.f32 %v454, %v5380
  %v5409 = vmul.f32 %v458, %v5380
  %v5410 = vmul.f32 %v462, %v5380
  %v5411 = vmul.f32 %v466, %v5380
  %v5412 = vmul.f32 %v470, %v5380
  %v5413 = vadd.f32 %v5345, %v5381
  %v5414 = vadd.f32 %v5346, %v5382
  %v5415 = vadd.f32 %v5347, %v5383
  %v5416 = vadd.f32 %v5348, %v5384
  %v5417 = vadd.f32 %v5349, %v5385
  %v5418 = vadd.f32 %v5350, %v5386
  %v5419 = vadd.f32 %v5351, %v5387
  %v5420 = vadd.f32 %v5352, %v5388
  %v5421 = vadd.f32 %v5353, %v5389
  %v5422 = vadd.f32 %v5354, %v5390
  %v5423 = vadd.f32 %v5355, %v5391
  %v5424 = vadd.f32 %v5356, %v5392
  %v5425 = vadd.f32 %v5357, %v5393
  %v5426 = vadd.f32 %v5358, %v5394
  %v5427 = vadd.f32 %v5359, %v5395
  %v5428 = vadd.f32 %v5360, %v5396
  %v5429 = vadd.f32 %v5361, %v5397
  %v5430 = vadd.f32 %v5362, %v5398
  %v5431 = vadd.f32 %v5363, %v5399
  %v5432 = vadd.f32 %v5364, %v5400
  %v5433 = vadd.f32 %v5365, %v5401
  %v5434 = vadd.f32 %v5366, %v5402
  %v5435 = vadd.f32 %v5367, %v5403
  %v5436 = vadd.f32 %v5368, %v5404
  %v5437 = vadd.f32 %v5369, %v5405
  %v5438 = vadd.f32 %v5370, %v5406
  %v5439 = vadd.f32 %v5371, %v5407
  %v5440 = vadd.f32 %v5372, %v5408
  %v5441 = vadd.f32 %v5373, %v5409
  %v5442 = vadd.f32 %v5374, %v5410
  %v5443 = vadd.f32 %v5375, %v5411
  %v5444 = vadd.f32 %v5376, %v5412
  %v5447 = vcombine.high %v5267, %v5267
  %v5449 = vunpack.c.l.s4 1966171168
  %v5450 = vunpack.c.0.s8 %v5449
  %v5451 = vlaneseq
  %v5452 = vshrl.u32 %v5451, 7
  %v5453 = vsub.s32 %v5450, %v5452
  %v5454 = vrot.slane %v5267, %v5453
  %v5456 = vunpack.c.l.s4 1966171168
  %v5457 = vunpack.c.0.s8 %v5456
  %v5458 = vlaneseq
  %v5459 = vshrl.u32 %v5458, 7
  %v5460 = vsub.s32 %v5457, %v5459
  %v5461 = vrot.slane %v5447, %v5460
  %v5462 = vcombine.high %v5454, %v5454
  %v5463 = vcombine.high %v5461, %v5461
  %v5465 = vunpack.c.l.s4 1966171168
  %v5466 = vunpack.c.0.s8 %v5465
  %v5467 = vlaneseq
  %v5468 = vshrl.u32 %v5467, 7
  %v5469 = vsub.s32 %v5466, %v5468
  %v5470 = vrot.slane %v5454, %v5469
  %v5472 = vunpack.c.l.s4 1966171168
  %v5473 = vunpack.c.0.s8 %v5472
  %v5474 = vlaneseq
  %v5475 = vshrl.u32 %v5474, 7
  %v5476 = vsub.s32 %v5473, %v5475
  %v5477 = vrot.slane %v5461, %v5476
  %v5479 = vunpack.c.l.s4 1966171168
  %v5480 = vunpack.c.0.s8 %v5479
  %v5481 = vlaneseq
  %v5482 = vshrl.u32 %v5481, 7
  %v5483 = vsub.s32 %v5480, %v5482
  %v5484 = vrot.slane %v5462, %v5483
  %v5486 = vunpack.c.l.s4 1966171168
  %v5487 = vunpack.c.0.s8 %v5486
  %v5488 = vlaneseq
  %v5489 = vshrl.u32 %v5488, 7
  %v5490 = vsub.s32 %v5487, %v5489
  %v5491 = vrot.slane %v5463, %v5490
  %v5492 = vcombine.high %v5470, %v5470
  %v5493 = vcombine.high %v5477, %v5477
  %v5494 = vcombine.high %v5484, %v5484
  %v5495 = vcombine.high %v5491, %v5491
  %v5496 = vcombine.high %v5271, %v5271
  %v5498 = vunpack.c.l.s4 1966171168
  %v5499 = vunpack.c.0.s8 %v5498
  %v5500 = vlaneseq
  %v5501 = vshrl.u32 %v5500, 7
  %v5502 = vsub.s32 %v5499, %v5501
  %v5503 = vrot.slane %v5271, %v5502
  %v5505 = vunpack.c.l.s4 1966171168
  %v5506 = vunpack.c.0.s8 %v5505
  %v5507 = vlaneseq
  %v5508 = vshrl.u32 %v5507, 7
  %v5509 = vsub.s32 %v5506, %v5508
  %v5510 = vrot.slane %v5496, %v5509
  %v5511 = vcombine.high %v5503, %v5503
  %v5512 = vcombine.high %v5510, %v5510
  %v5514 = vunpack.c.l.s4 1966171168
  %v5515 = vunpack.c.0.s8 %v5514
  %v5516 = vlaneseq
  %v5517 = vshrl.u32 %v5516, 7
  %v5518 = vsub.s32 %v5515, %v5517
  %v5519 = vrot.slane %v5503, %v5518
  %v5521 = vunpack.c.l.s4 1966171168
  %v5522 = vunpack.c.0.s8 %v5521
  %v5523 = vlaneseq
  %v5524 = vshrl.u32 %v5523, 7
  %v5525 = vsub.s32 %v5522, %v5524
  %v5526 = vrot.slane %v5510, %v5525
  %v5528 = vunpack.c.l.s4 1966171168
  %v5529 = vunpack.c.0.s8 %v5528
  %v5530 = vlaneseq
  %v5531 = vshrl.u32 %v5530, 7
  %v5532 = vsub.s32 %v5529, %v5531
  %v5533 = vrot.slane %v5511, %v5532
  %v5535 = vunpack.c.l.s4 1966171168
  %v5536 = vunpack.c.0.s8 %v5535
  %v5537 = vlaneseq
  %v5538 = vshrl.u32 %v5537, 7
  %v5539 = vsub.s32 %v5536, %v5538
  %v5540 = vrot.slane %v5512, %v5539
  %v5541 = vcombine.high %v5519, %v5519
  %v5542 = vcombine.high %v5526, %v5526
  %v5543 = vcombine.high %v5533, %v5533
  %v5544 = vcombine.high %v5540, %v5540
  %v5545 = vlaneseq
  %v5546 = vshrl.u32 %v5545, 7
  %v5547 = vsub.s32 0, %v5546
  %v5548 = vrot.slane %v5470, %v5547
  %v5549 = vlaneseq
  %v5550 = vshrl.u32 %v5549, 7
  %v5551 = vsub.s32 0, %v5550
  %v5552 = vrot.slane %v5484, %v5551
  %v5553 = vlaneseq
  %v5554 = vshrl.u32 %v5553, 7
  %v5555 = vsub.s32 0, %v5554
  %v5556 = vrot.slane %v5492, %v5555
  %v5557 = vlaneseq
  %v5558 = vshrl.u32 %v5557, 7
  %v5559 = vsub.s32 0, %v5558
  %v5560 = vrot.slane %v5494, %v5559
  %v5561 = vlaneseq
  %v5562 = vshrl.u32 %v5561, 7
  %v5563 = vsub.s32 0, %v5562
  %v5564 = vrot.slane %v5477, %v5563
  %v5565 = vlaneseq
  %v5566 = vshrl.u32 %v5565, 7
  %v5567 = vsub.s32 0, %v5566
  %v5568 = vrot.slane %v5491, %v5567
  %v5569 = vlaneseq
  %v5570 = vshrl.u32 %v5569, 7
  %v5571 = vsub.s32 0, %v5570
  %v5572 = vrot.slane %v5493, %v5571
  %v5573 = vlaneseq
  %v5574 = vshrl.u32 %v5573, 7
  %v5575 = vsub.s32 0, %v5574
  %v5576 = vrot.slane %v5495, %v5575
  %v5577 = vlaneseq
  %v5578 = vshrl.u32 %v5577, 7
  %v5579 = vsub.s32 0, %v5578
  %v5580 = vrot.slane %v5519, %v5579
  %v5581 = vlaneseq
  %v5582 = vshrl.u32 %v5581, 7
  %v5583 = vsub.s32 0, %v5582
  %v5584 = vrot.slane %v5533, %v5583
  %v5585 = vlaneseq
  %v5586 = vshrl.u32 %v5585, 7
  %v5587 = vsub.s32 0, %v5586
  %v5588 = vrot.slane %v5541, %v5587
  %v5589 = vlaneseq
  %v5590 = vshrl.u32 %v5589, 7
  %v5591 = vsub.s32 0, %v5590
  %v5592 = vrot.slane %v5543, %v5591
  %v5593 = vlaneseq
  %v5594 = vshrl.u32 %v5593, 7
  %v5595 = vsub.s32 0, %v5594
  %v5596 = vrot.slane %v5526, %v5595
  %v5597 = vlaneseq
  %v5598 = vshrl.u32 %v5597, 7
  %v5599 = vsub.s32 0, %v5598
  %v5600 = vrot.slane %v5540, %v5599
  %v5601 = vlaneseq
  %v5602 = vshrl.u32 %v5601, 7
  %v5603 = vsub.s32 0, %v5602
  %v5604 = vrot.slane %v5542, %v5603
  %v5605 = vlaneseq
  %v5606 = vshrl.u32 %v5605, 7
  %v5607 = vsub.s32 0, %v5606
  %v5608 = vrot.slane %v5544, %v5607
  %v5625 = vadd.f32 %v5548, %v5265
  %v5626 = vadd.f32 %v5548, %v5269
  %v5627 = vadd.f32 %v5552, %v5265
  %v5628 = vadd.f32 %v5552, %v5269
  %v5629 = vadd.f32 %v5556, %v5265
  %v5630 = vadd.f32 %v5556, %v5269
  %v5631 = vadd.f32 %v5560, %v5265
  %v5632 = vadd.f32 %v5560, %v5269
  %v5633 = vadd.f32 %v5564, %v5265
  %v5634 = vadd.f32 %v5564, %v5269
  %v5635 = vadd.f32 %v5568, %v5265
  %v5636 = vadd.f32 %v5568, %v5269
  %v5637 = vadd.f32 %v5572, %v5265
  %v5638 = vadd.f32 %v5572, %v5269
  %v5639 = vadd.f32 %v5576, %v5265
  %v5640 = vadd.f32 %v5576, %v5269
  %v5641 = vadd.f32 %v5580, %v5265
  %v5642 = vadd.f32 %v5580, %v5269
  %v5643 = vadd.f32 %v5584, %v5265
  %v5644 = vadd.f32 %v5584, %v5269
  %v5645 = vadd.f32 %v5588, %v5265
  %v5646 = vadd.f32 %v5588, %v5269
  %v5647 = vadd.f32 %v5592, %v5265
  %v5648 = vadd.f32 %v5592, %v5269
  %v5649 = vadd.f32 %v5596, %v5265
  %v5650 = vadd.f32 %v5596, %v5269
  %v5651 = vadd.f32 %v5600, %v5265
  %v5652 = vadd.f32 %v5600, %v5269
  %v5653 = vadd.f32 %v5604, %v5265
  %v5654 = vadd.f32 %v5604, %v5269
  %v5655 = vadd.f32 %v5608, %v5265
  %v5656 = vadd.f32 %v5608, %v5269
  %v5657 = vadd.f32 %v5625, %v5413
  %v5658 = vadd.f32 %v5626, %v5414
  %v5659 = vadd.f32 %v5627, %v5415
  %v5660 = vadd.f32 %v5628, %v5416
  %v5661 = vadd.f32 %v5629, %v5417
  %v5662 = vadd.f32 %v5630, %v5418
  %v5663 = vadd.f32 %v5631, %v5419
  %v5664 = vadd.f32 %v5632, %v5420
  %v5665 = vadd.f32 %v5633, %v5421
  %v5666 = vadd.f32 %v5634, %v5422
  %v5667 = vadd.f32 %v5635, %v5423
  %v5668 = vadd.f32 %v5636, %v5424
  %v5669 = vadd.f32 %v5637, %v5425
  %v5670 = vadd.f32 %v5638, %v5426
  %v5671 = vadd.f32 %v5639, %v5427
  %v5672 = vadd.f32 %v5640, %v5428
  %v5673 = vadd.f32 %v5641, %v5429
  %v5674 = vadd.f32 %v5642, %v5430
  %v5675 = vadd.f32 %v5643, %v5431
  %v5676 = vadd.f32 %v5644, %v5432
  %v5677 = vadd.f32 %v5645, %v5433
  %v5678 = vadd.f32 %v5646, %v5434
  %v5679 = vadd.f32 %v5647, %v5435
  %v5680 = vadd.f32 %v5648, %v5436
  %v5681 = vadd.f32 %v5649, %v5437
  %v5682 = vadd.f32 %v5650, %v5438
  %v5683 = vadd.f32 %v5651, %v5439
  %v5684 = vadd.f32 %v5652, %v5440
  %v5685 = vadd.f32 %v5653, %v5441
  %v5686 = vadd.f32 %v5654, %v5442
  %v5687 = vadd.f32 %v5655, %v5443
  %v5688 = vadd.f32 %v5656, %v5444
  %v5689 = vmul.f32 %v5657, 0.2
  %v5690 = vmul.f32 %v5658, 0.2
  %v5691 = vmul.f32 %v5659, 0.2
  %v5692 = vmul.f32 %v5660, 0.2
  %v5693 = vmul.f32 %v5661, 0.2
  %v5694 = vmul.f32 %v5662, 0.2
  %v5695 = vmul.f32 %v5663, 0.2
  %v5696 = vmul.f32 %v5664, 0.2
  %v5697 = vmul.f32 %v5665, 0.2
  %v5698 = vmul.f32 %v5666, 0.2
  %v5699 = vmul.f32 %v5667, 0.2
  %v5700 = vmul.f32 %v5668, 0.2
  %v5701 = vmul.f32 %v5669, 0.2
  %v5702 = vmul.f32 %v5670, 0.2
  %v5703 = vmul.f32 %v5671, 0.2
  %v5704 = vmul.f32 %v5672, 0.2
  %v5705 = vmul.f32 %v5673, 0.2
  %v5706 = vmul.f32 %v5674, 0.2
  %v5707 = vmul.f32 %v5675, 0.2
  %v5708 = vmul.f32 %v5676, 0.2
  %v5709 = vmul.f32 %v5677, 0.2
  %v5710 = vmul.f32 %v5678, 0.2
  %v5711 = vmul.f32 %v5679, 0.2
  %v5712 = vmul.f32 %v5680, 0.2
  %v5713 = vmul.f32 %v5681, 0.2
  %v5714 = vmul.f32 %v5682, 0.2
  %v5715 = vmul.f32 %v5683, 0.2
  %v5716 = vmul.f32 %v5684, 0.2
  %v5717 = vmul.f32 %v5685, 0.2
  %v5718 = vmul.f32 %v5686, 0.2
  %v5719 = vmul.f32 %v5687, 0.2
  %v5720 = vmul.f32 %v5688, 0.2
  %v5721 = vmax.f32 %v5657, %v5689
  %v5722 = vmax.f32 %v5658, %v5690
  %v5723 = vmax.f32 %v5659, %v5691
  %v5724 = vmax.f32 %v5660, %v5692
  %v5725 = vmax.f32 %v5661, %v5693
  %v5726 = vmax.f32 %v5662, %v5694
  %v5727 = vmax.f32 %v5663, %v5695
  %v5728 = vmax.f32 %v5664, %v5696
  %v5729 = vmax.f32 %v5665, %v5697
  %v5730 = vmax.f32 %v5666, %v5698
  %v5731 = vmax.f32 %v5667, %v5699
  %v5732 = vmax.f32 %v5668, %v5700
  %v5733 = vmax.f32 %v5669, %v5701
  %v5734 = vmax.f32 %v5670, %v5702
  %v5735 = vmax.f32 %v5671, %v5703
  %v5736 = vmax.f32 %v5672, %v5704
  %v5737 = vmax.f32 %v5673, %v5705
  %v5738 = vmax.f32 %v5674, %v5706
  %v5739 = vmax.f32 %v5675, %v5707
  %v5740 = vmax.f32 %v5676, %v5708
  %v5741 = vmax.f32 %v5677, %v5709
  %v5742 = vmax.f32 %v5678, %v5710
  %v5743 = vmax.f32 %v5679, %v5711
  %v5744 = vmax.f32 %v5680, %v5712
  %v5745 = vmax.f32 %v5681, %v5713
  %v5746 = vmax.f32 %v5682, %v5714
  %v5747 = vmax.f32 %v5683, %v5715
  %v5748 = vmax.f32 %v5684, %v5716
  %v5749 = vmax.f32 %v5685, %v5717
  %v5750 = vmax.f32 %v5686, %v5718
  %v5751 = vmax.f32 %v5687, %v5719
  %v5752 = vmax.f32 %v5688, %v5720
  %v5753 = vpack.c.bf16 %v5722, %v5721
  %v5754 = vpack.c.bf16 %v5724, %v5723
  %v5755 = vpack.c.bf16 %v5726, %v5725
  %v5756 = vpack.c.bf16 %v5728, %v5727
  %v5757 = vpack.c.bf16 %v5730, %v5729
  %v5758 = vpack.c.bf16 %v5732, %v5731
  %v5759 = vpack.c.bf16 %v5734, %v5733
  %v5760 = vpack.c.bf16 %v5736, %v5735
  %v5761 = vpack.c.bf16 %v5738, %v5737
  %v5762 = vpack.c.bf16 %v5740, %v5739
  %v5763 = vpack.c.bf16 %v5742, %v5741
  %v5764 = vpack.c.bf16 %v5744, %v5743
  %v5765 = vpack.c.bf16 %v5746, %v5745
  %v5766 = vpack.c.bf16 %v5748, %v5747
  %v5767 = vpack.c.bf16 %v5750, %v5749
  %v5768 = vpack.c.bf16 %v5752, %v5751
  %v5785 = vunpack.c.l.b16 %v5123
  %v5786 = vunpack.c.l.b16 %v5124
  %v5787 = vunpack.c.l.b16 %v5125
  %v5788 = vunpack.c.l.b16 %v5126
  %v5789 = vunpack.c.l.b16 %v5127
  %v5790 = vunpack.c.l.b16 %v5128
  %v5791 = vunpack.c.l.b16 %v5129
  %v5792 = vunpack.c.l.b16 %v5130
  %v5793 = vunpack.c.l.b16 %v5131
  %v5794 = vunpack.c.l.b16 %v5132
  %v5795 = vunpack.c.l.b16 %v5133
  %v5796 = vunpack.c.l.b16 %v5134
  %v5797 = vunpack.c.l.b16 %v5135
  %v5798 = vunpack.c.l.b16 %v5136
  %v5799 = vunpack.c.l.b16 %v5137
  %v5800 = vunpack.c.l.b16 %v5138
  %v5801 = vpack.c.b16 %v5786, %v5785
  %v5802 = vpack.c.b16 %v5788, %v5787
  %v5803 = vpack.c.b16 %v5790, %v5789
  %v5804 = vpack.c.b16 %v5792, %v5791
  %v5805 = vpack.c.b16 %v5794, %v5793
  %v5806 = vpack.c.b16 %v5796, %v5795
  %v5807 = vpack.c.b16 %v5798, %v5797
  %v5808 = vpack.c.b16 %v5800, %v5799
  %5817 = vmatprep.subr.bf16.mxu0 0
  %5818 = vmatpush1.bf16.msra.mxu0 %v5808
  %5819 = vmatprep.subr.bf16.mxu0 0
  %5820 = vmatpush1.bf16.msra.mxu0 %v5807
  %5821 = vmatprep.subr.bf16.mxu0 0
  %5822 = vmatpush1.bf16.msra.mxu0 %v5806
  %5823 = vmatprep.subr.bf16.mxu0 0
  %5824 = vmatpush1.bf16.msra.mxu0 %v5805
  %5825 = vmatprep.subr.bf16.mxu0 0
  %5826 = vmatpush1.bf16.msra.mxu0 %v5804
  %5827 = vmatprep.subr.bf16.mxu0 0
  %5828 = vmatpush1.bf16.msra.mxu0 %v5803
  %5829 = vmatprep.subr.bf16.mxu0 0
  %5830 = vmatpush1.bf16.msra.mxu0 %v5802
  %5831 = vmatprep.subr.bf16.mxu0 0
  %5832 = vmatpush1.bf16.msra.mxu0 %v5801
  %5833 = vmatprep.subr.bf16.mxu0 0
  %5834 = vmatpush2.bf16.msra.mxu0 0
  %5835 = vmatprep.subr.bf16.mxu0 0
  %5836 = vmatpush2.bf16.msra.mxu0 0
  %5837 = vmatprep.subr.bf16.mxu0 0
  %5838 = vmatpush2.bf16.msra.mxu0 0
  %5839 = vmatprep.subr.bf16.mxu0 0
  %5840 = vmatpush2.bf16.msra.mxu0 0
  %5841 = vmatprep.subr.bf16.mxu0 0
  %5842 = vmatpush2.bf16.msra.mxu0 0
  %5843 = vmatprep.subr.bf16.mxu0 0
  %5844 = vmatpush2.bf16.msra.mxu0 0
  %5845 = vmatprep.subr.bf16.mxu0 0
  %5846 = vmatpush2.bf16.msra.mxu0 0
  %5847 = vmatprep.subr.bf16.mxu0 0
  %5848 = vmatpush2.bf16.msra.mxu0 0
  %5849 = vmatprep.mubr.bf16.mxu0 0
  %5850 = vmatmul.mubr.bf16.gmra.mxu0 %v5753
  %v5851 = vpop.f32.mrf.mxu0
  %v5852 = vadd.f32 0.0, %v5851
  %v5853 = vpop.f32.mrf.mxu0
  %v5854 = vpop.f32.mrf.mxu0
  %v5855 = vadd.f32 0.0, %v5854
  %v5856 = vpop.f32.mrf.mxu0
  %5857 = vmatprep.mubr.bf16.mxu0 0
  %5858 = vmatmul.mubr.bf16.gmra.mxu0 %v5754
  %v5859 = vpop.f32.mrf.mxu0
  %v5860 = vadd.f32 0.0, %v5859
  %v5861 = vpop.f32.mrf.mxu0
  %v5862 = vpop.f32.mrf.mxu0
  %v5863 = vadd.f32 0.0, %v5862
  %v5864 = vpop.f32.mrf.mxu0
  %5865 = vmatprep.mubr.bf16.mxu0 0
  %5866 = vmatmul.mubr.bf16.gmra.mxu0 %v5755
  %v5867 = vpop.f32.mrf.mxu0
  %v5868 = vadd.f32 0.0, %v5867
  %v5869 = vpop.f32.mrf.mxu0
  %v5870 = vpop.f32.mrf.mxu0
  %v5871 = vadd.f32 0.0, %v5870
  %v5872 = vpop.f32.mrf.mxu0
  %5873 = vmatprep.mubr.bf16.mxu0 0
  %5874 = vmatmul.mubr.bf16.gmra.mxu0 %v5756
  %v5875 = vpop.f32.mrf.mxu0
  %v5876 = vadd.f32 0.0, %v5875
  %v5877 = vpop.f32.mrf.mxu0
  %v5878 = vpop.f32.mrf.mxu0
  %v5879 = vadd.f32 0.0, %v5878
  %v5880 = vpop.f32.mrf.mxu0
  %5881 = vmatprep.mubr.bf16.mxu0 0
  %5882 = vmatmul.mubr.bf16.gmra.mxu0 %v5757
  %v5883 = vpop.f32.mrf.mxu0
  %v5884 = vadd.f32 0.0, %v5883
  %v5885 = vpop.f32.mrf.mxu0
  %v5886 = vpop.f32.mrf.mxu0
  %v5887 = vadd.f32 0.0, %v5886
  %v5888 = vpop.f32.mrf.mxu0
  %5889 = vmatprep.mubr.bf16.mxu0 0
  %5890 = vmatmul.mubr.bf16.gmra.mxu0 %v5758
  %v5891 = vpop.f32.mrf.mxu0
  %v5892 = vadd.f32 0.0, %v5891
  %v5893 = vpop.f32.mrf.mxu0
  %v5894 = vpop.f32.mrf.mxu0
  %v5895 = vadd.f32 0.0, %v5894
  %v5896 = vpop.f32.mrf.mxu0
  %5897 = vmatprep.mubr.bf16.mxu0 0
  %5898 = vmatmul.mubr.bf16.gmra.mxu0 %v5759
  %v5899 = vpop.f32.mrf.mxu0
  %v5900 = vadd.f32 0.0, %v5899
  %v5901 = vpop.f32.mrf.mxu0
  %v5902 = vpop.f32.mrf.mxu0
  %v5903 = vadd.f32 0.0, %v5902
  %v5904 = vpop.f32.mrf.mxu0
  %5905 = vmatprep.mubr.bf16.mxu0 0
  %5906 = vmatmul.mubr.bf16.gmra.mxu0 %v5760
  %v5907 = vpop.f32.mrf.mxu0
  %v5908 = vadd.f32 0.0, %v5907
  %v5909 = vpop.f32.mrf.mxu0
  %v5910 = vpop.f32.mrf.mxu0
  %v5911 = vadd.f32 0.0, %v5910
  %v5912 = vpop.f32.mrf.mxu0
  %5913 = vmatprep.mubr.bf16.mxu0 0
  %5914 = vmatmul.mubr.bf16.gmra.mxu0 %v5761
  %v5915 = vpop.f32.mrf.mxu0
  %v5916 = vadd.f32 0.0, %v5915
  %v5917 = vpop.f32.mrf.mxu0
  %v5918 = vpop.f32.mrf.mxu0
  %v5919 = vadd.f32 0.0, %v5918
  %v5920 = vpop.f32.mrf.mxu0
  %5921 = vmatprep.mubr.bf16.mxu0 0
  %5922 = vmatmul.mubr.bf16.gmra.mxu0 %v5762
  %v5923 = vpop.f32.mrf.mxu0
  %v5924 = vadd.f32 0.0, %v5923
  %v5925 = vpop.f32.mrf.mxu0
  %v5926 = vpop.f32.mrf.mxu0
  %v5927 = vadd.f32 0.0, %v5926
  %v5928 = vpop.f32.mrf.mxu0
  %5929 = vmatprep.mubr.bf16.mxu0 0
  %5930 = vmatmul.mubr.bf16.gmra.mxu0 %v5763
  %v5931 = vpop.f32.mrf.mxu0
  %v5932 = vadd.f32 0.0, %v5931
  %v5933 = vpop.f32.mrf.mxu0
  %v5934 = vpop.f32.mrf.mxu0
  %v5935 = vadd.f32 0.0, %v5934
  %v5936 = vpop.f32.mrf.mxu0
  %5937 = vmatprep.mubr.bf16.mxu0 0
  %5938 = vmatmul.mubr.bf16.gmra.mxu0 %v5764
  %v5939 = vpop.f32.mrf.mxu0
  %v5940 = vadd.f32 0.0, %v5939
  %v5941 = vpop.f32.mrf.mxu0
  %v5942 = vpop.f32.mrf.mxu0
  %v5943 = vadd.f32 0.0, %v5942
  %v5944 = vpop.f32.mrf.mxu0
  %5945 = vmatprep.mubr.bf16.mxu0 0
  %5946 = vmatmul.mubr.bf16.gmra.mxu0 %v5765
  %v5947 = vpop.f32.mrf.mxu0
  %v5948 = vadd.f32 0.0, %v5947
  %v5949 = vpop.f32.mrf.mxu0
  %v5950 = vpop.f32.mrf.mxu0
  %v5951 = vadd.f32 0.0, %v5950
  %v5952 = vpop.f32.mrf.mxu0
  %5953 = vmatprep.mubr.bf16.mxu0 0
  %5954 = vmatmul.mubr.bf16.gmra.mxu0 %v5766
  %v5955 = vpop.f32.mrf.mxu0
  %v5956 = vadd.f32 0.0, %v5955
  %v5957 = vpop.f32.mrf.mxu0
  %v5958 = vpop.f32.mrf.mxu0
  %v5959 = vadd.f32 0.0, %v5958
  %v5960 = vpop.f32.mrf.mxu0
  %5961 = vmatprep.mubr.bf16.mxu0 0
  %5962 = vmatmul.mubr.bf16.gmra.mxu0 %v5767
  %v5963 = vpop.f32.mrf.mxu0
  %v5964 = vadd.f32 0.0, %v5963
  %v5965 = vpop.f32.mrf.mxu0
  %v5966 = vpop.f32.mrf.mxu0
  %v5967 = vadd.f32 0.0, %v5966
  %v5968 = vpop.f32.mrf.mxu0
  %5969 = vmatprep.mubr.bf16.mxu0 0
  %5970 = vmatmul.mubr.bf16.gmra.mxu0 %v5768
  %v5971 = vpop.f32.mrf.mxu0
  %v5972 = vadd.f32 0.0, %v5971
  %v5973 = vpop.f32.mrf.mxu0
  %v5974 = vpop.f32.mrf.mxu0
  %v5975 = vadd.f32 0.0, %v5974
  %v5976 = vpop.f32.mrf.mxu0
  %5977 = vdwg.mxu0
  %5978 = vxpose.xlu0.b32.start [1/16] %v5852, 128
  %5979 = vxpose.xlu0.b32.cont [2/16] %v5855, 128
  %5980 = vxpose.xlu0.b32.cont [3/16] 0.0, 128
  %5981 = vxpose.xlu0.b32.cont [4/16] 0.0, 128
  %5982 = vxpose.xlu0.b32.cont [5/16] 0.0, 128
  %5983 = vxpose.xlu0.b32.cont [6/16] 0.0, 128
  %5984 = vxpose.xlu0.b32.cont [7/16] 0.0, 128
  %5985 = vxpose.xlu0.b32.cont [8/16] 0.0, 128
  %5986 = vxpose.xlu0.b32.cont [9/16] 0.0, 128
  %5987 = vxpose.xlu0.b32.cont [10/16] 0.0, 128
  %5988 = vxpose.xlu0.b32.cont [11/16] 0.0, 128
  %5989 = vxpose.xlu0.b32.cont [12/16] 0.0, 128
  %5990 = vxpose.xlu0.b32.cont [13/16] 0.0, 128
  %5991 = vxpose.xlu0.b32.cont [14/16] 0.0, 128
  %5992 = vxpose.xlu0.b32.cont [15/16] 0.0, 128
  %5993 = vxpose.xlu0.b32.end [16/16] 0.0, 128
  %v5994 = vpop.trf.xlu0
  %v5995 = vpop.trf.xlu0
  %v5996 = vpop.trf.xlu0
  %v5997 = vpop.trf.xlu0
  %v5998 = vpop.trf.xlu0
  %v5999 = vpop.trf.xlu0
  %v6000 = vpop.trf.xlu0
  %v6001 = vpop.trf.xlu0
  %v6002 = vpop.trf.xlu0
  %v6003 = vpop.trf.xlu0
  %v6004 = vpop.trf.xlu0
  %v6005 = vpop.trf.xlu0
  %v6006 = vpop.trf.xlu0
  %v6007 = vpop.trf.xlu0
  %v6008 = vpop.trf.xlu0
  %v6009 = vpop.trf.xlu0
  %6010 = vxpose.xlu0.b32.start [1/16] %v5860, 128
  %6011 = vxpose.xlu0.b32.cont [2/16] %v5863, 128
  %6012 = vxpose.xlu0.b32.cont [3/16] 0.0, 128
  %6013 = vxpose.xlu0.b32.cont [4/16] 0.0, 128
  %6014 = vxpose.xlu0.b32.cont [5/16] 0.0, 128
  %6015 = vxpose.xlu0.b32.cont [6/16] 0.0, 128
  %6016 = vxpose.xlu0.b32.cont [7/16] 0.0, 128
  %6017 = vxpose.xlu0.b32.cont [8/16] 0.0, 128
  %6018 = vxpose.xlu0.b32.cont [9/16] 0.0, 128
  %6019 = vxpose.xlu0.b32.cont [10/16] 0.0, 128
  %6020 = vxpose.xlu0.b32.cont [11/16] 0.0, 128
  %6021 = vxpose.xlu0.b32.cont [12/16] 0.0, 128
  %6022 = vxpose.xlu0.b32.cont [13/16] 0.0, 128
  %6023 = vxpose.xlu0.b32.cont [14/16] 0.0, 128
  %6024 = vxpose.xlu0.b32.cont [15/16] 0.0, 128
  %6025 = vxpose.xlu0.b32.end [16/16] 0.0, 128
  %v6026 = vpop.trf.xlu0
  %v6027 = vpop.trf.xlu0
  %v6028 = vpop.trf.xlu0
  %v6029 = vpop.trf.xlu0
  %v6030 = vpop.trf.xlu0
  %v6031 = vpop.trf.xlu0
  %v6032 = vpop.trf.xlu0
  %v6033 = vpop.trf.xlu0
  %v6034 = vpop.trf.xlu0
  %v6035 = vpop.trf.xlu0
  %v6036 = vpop.trf.xlu0
  %v6037 = vpop.trf.xlu0
  %v6038 = vpop.trf.xlu0
  %v6039 = vpop.trf.xlu0
  %v6040 = vpop.trf.xlu0
  %v6041 = vpop.trf.xlu0
  %6042 = vxpose.xlu0.b32.start [1/16] %v5868, 128
  %6043 = vxpose.xlu0.b32.cont [2/16] %v5871, 128
  %6044 = vxpose.xlu0.b32.cont [3/16] 0.0, 128
  %6045 = vxpose.xlu0.b32.cont [4/16] 0.0, 128
  %6046 = vxpose.xlu0.b32.cont [5/16] 0.0, 128
  %6047 = vxpose.xlu0.b32.cont [6/16] 0.0, 128
  %6048 = vxpose.xlu0.b32.cont [7/16] 0.0, 128
  %6049 = vxpose.xlu0.b32.cont [8/16] 0.0, 128
  %6050 = vxpose.xlu0.b32.cont [9/16] 0.0, 128
  %6051 = vxpose.xlu0.b32.cont [10/16] 0.0, 128
  %6052 = vxpose.xlu0.b32.cont [11/16] 0.0, 128
  %6053 = vxpose.xlu0.b32.cont [12/16] 0.0, 128
  %6054 = vxpose.xlu0.b32.cont [13/16] 0.0, 128
  %6055 = vxpose.xlu0.b32.cont [14/16] 0.0, 128
  %6056 = vxpose.xlu0.b32.cont [15/16] 0.0, 128
  %6057 = vxpose.xlu0.b32.end [16/16] 0.0, 128
  %v6058 = vpop.trf.xlu0
  %v6059 = vpop.trf.xlu0
  %v6060 = vpop.trf.xlu0
  %v6061 = vpop.trf.xlu0
  %v6062 = vpop.trf.xlu0
  %v6063 = vpop.trf.xlu0
  %v6064 = vpop.trf.xlu0
  %v6065 = vpop.trf.xlu0
  %v6066 = vpop.trf.xlu0
  %v6067 = vpop.trf.xlu0
  %v6068 = vpop.trf.xlu0
  %v6069 = vpop.trf.xlu0
  %v6070 = vpop.trf.xlu0
  %v6071 = vpop.trf.xlu0
  %v6072 = vpop.trf.xlu0
  %v6073 = vpop.trf.xlu0
  %6074 = vxpose.xlu0.b32.start [1/16] %v5876, 128
  %6075 = vxpose.xlu0.b32.cont [2/16] %v5879, 128
  %6076 = vxpose.xlu0.b32.cont [3/16] 0.0, 128
  %6077 = vxpose.xlu0.b32.cont [4/16] 0.0, 128
  %6078 = vxpose.xlu0.b32.cont [5/16] 0.0, 128
  %6079 = vxpose.xlu0.b32.cont [6/16] 0.0, 128
  %6080 = vxpose.xlu0.b32.cont [7/16] 0.0, 128
  %6081 = vxpose.xlu0.b32.cont [8/16] 0.0, 128
  %6082 = vxpose.xlu0.b32.cont [9/16] 0.0, 128
  %6083 = vxpose.xlu0.b32.cont [10/16] 0.0, 128
  %6084 = vxpose.xlu0.b32.cont [11/16] 0.0, 128
  %6085 = vxpose.xlu0.b32.cont [12/16] 0.0, 128
  %6086 = vxpose.xlu0.b32.cont [13/16] 0.0, 128
  %6087 = vxpose.xlu0.b32.cont [14/16] 0.0, 128
  %6088 = vxpose.xlu0.b32.cont [15/16] 0.0, 128
  %6089 = vxpose.xlu0.b32.end [16/16] 0.0, 128
  %v6090 = vpop.trf.xlu0
  %v6091 = vpop.trf.xlu0
  %v6092 = vpop.trf.xlu0
  %v6093 = vpop.trf.xlu0
  %v6094 = vpop.trf.xlu0
  %v6095 = vpop.trf.xlu0
  %v6096 = vpop.trf.xlu0
  %v6097 = vpop.trf.xlu0
  %v6098 = vpop.trf.xlu0
  %v6099 = vpop.trf.xlu0
  %v6100 = vpop.trf.xlu0
  %v6101 = vpop.trf.xlu0
  %v6102 = vpop.trf.xlu0
  %v6103 = vpop.trf.xlu0
  %v6104 = vpop.trf.xlu0
  %v6105 = vpop.trf.xlu0
  %6106 = vxpose.xlu0.b32.start [1/16] %v5884, 128
  %6107 = vxpose.xlu0.b32.cont [2/16] %v5887, 128
  %6108 = vxpose.xlu0.b32.cont [3/16] 0.0, 128
  %6109 = vxpose.xlu0.b32.cont [4/16] 0.0, 128
  %6110 = vxpose.xlu0.b32.cont [5/16] 0.0, 128
  %6111 = vxpose.xlu0.b32.cont [6/16] 0.0, 128
  %6112 = vxpose.xlu0.b32.cont [7/16] 0.0, 128
  %6113 = vxpose.xlu0.b32.cont [8/16] 0.0, 128
  %6114 = vxpose.xlu0.b32.cont [9/16] 0.0, 128
  %6115 = vxpose.xlu0.b32.cont [10/16] 0.0, 128
  %6116 = vxpose.xlu0.b32.cont [11/16] 0.0, 128
  %6117 = vxpose.xlu0.b32.cont [12/16] 0.0, 128
  %6118 = vxpose.xlu0.b32.cont [13/16] 0.0, 128
  %6119 = vxpose.xlu0.b32.cont [14/16] 0.0, 128
  %6120 = vxpose.xlu0.b32.cont [15/16] 0.0, 128
  %6121 = vxpose.xlu0.b32.end [16/16] 0.0, 128
  %v6122 = vpop.trf.xlu0
  %v6123 = vpop.trf.xlu0
  %v6124 = vpop.trf.xlu0
  %v6125 = vpop.trf.xlu0
  %v6126 = vpop.trf.xlu0
  %v6127 = vpop.trf.xlu0
  %v6128 = vpop.trf.xlu0
  %v6129 = vpop.trf.xlu0
  %v6130 = vpop.trf.xlu0
  %v6131 = vpop.trf.xlu0
  %v6132 = vpop.trf.xlu0
  %v6133 = vpop.trf.xlu0
  %v6134 = vpop.trf.xlu0
  %v6135 = vpop.trf.xlu0
  %v6136 = vpop.trf.xlu0
  %v6137 = vpop.trf.xlu0
  %6138 = vxpose.xlu0.b32.start [1/16] %v5892, 128
  %6139 = vxpose.xlu0.b32.cont [2/16] %v5895, 128
  %6140 = vxpose.xlu0.b32.cont [3/16] 0.0, 128
  %6141 = vxpose.xlu0.b32.cont [4/16] 0.0, 128
  %6142 = vxpose.xlu0.b32.cont [5/16] 0.0, 128
  %6143 = vxpose.xlu0.b32.cont [6/16] 0.0, 128
  %6144 = vxpose.xlu0.b32.cont [7/16] 0.0, 128
  %6145 = vxpose.xlu0.b32.cont [8/16] 0.0, 128
  %6146 = vxpose.xlu0.b32.cont [9/16] 0.0, 128
  %6147 = vxpose.xlu0.b32.cont [10/16] 0.0, 128
  %6148 = vxpose.xlu0.b32.cont [11/16] 0.0, 128
  %6149 = vxpose.xlu0.b32.cont [12/16] 0.0, 128
  %6150 = vxpose.xlu0.b32.cont [13/16] 0.0, 128
  %6151 = vxpose.xlu0.b32.cont [14/16] 0.0, 128
  %6152 = vxpose.xlu0.b32.cont [15/16] 0.0, 128
  %6153 = vxpose.xlu0.b32.end [16/16] 0.0, 128
  %v6154 = vpop.trf.xlu0
  %v6155 = vpop.trf.xlu0
  %v6156 = vpop.trf.xlu0
  %v6157 = vpop.trf.xlu0
  %v6158 = vpop.trf.xlu0
  %v6159 = vpop.trf.xlu0
  %v6160 = vpop.trf.xlu0
  %v6161 = vpop.trf.xlu0
  %v6162 = vpop.trf.xlu0
  %v6163 = vpop.trf.xlu0
  %v6164 = vpop.trf.xlu0
  %v6165 = vpop.trf.xlu0
  %v6166 = vpop.trf.xlu0
  %v6167 = vpop.trf.xlu0
  %v6168 = vpop.trf.xlu0
  %v6169 = vpop.trf.xlu0
  %6170 = vxpose.xlu0.b32.start [1/16] %v5900, 128
  %6171 = vxpose.xlu0.b32.cont [2/16] %v5903, 128
  %6172 = vxpose.xlu0.b32.cont [3/16] 0.0, 128
  %6173 = vxpose.xlu0.b32.cont [4/16] 0.0, 128
  %6174 = vxpose.xlu0.b32.cont [5/16] 0.0, 128
  %6175 = vxpose.xlu0.b32.cont [6/16] 0.0, 128
  %6176 = vxpose.xlu0.b32.cont [7/16] 0.0, 128
  %6177 = vxpose.xlu0.b32.cont [8/16] 0.0, 128
  %6178 = vxpose.xlu0.b32.cont [9/16] 0.0, 128
  %6179 = vxpose.xlu0.b32.cont [10/16] 0.0, 128
  %6180 = vxpose.xlu0.b32.cont [11/16] 0.0, 128
  %6181 = vxpose.xlu0.b32.cont [12/16] 0.0, 128
  %6182 = vxpose.xlu0.b32.cont [13/16] 0.0, 128
  %6183 = vxpose.xlu0.b32.cont [14/16] 0.0, 128
  %6184 = vxpose.xlu0.b32.cont [15/16] 0.0, 128
  %6185 = vxpose.xlu0.b32.end [16/16] 0.0, 128
  %v6186 = vpop.trf.xlu0
  %v6187 = vpop.trf.xlu0
  %v6188 = vpop.trf.xlu0
  %v6189 = vpop.trf.xlu0
  %v6190 = vpop.trf.xlu0
  %v6191 = vpop.trf.xlu0
  %v6192 = vpop.trf.xlu0
  %v6193 = vpop.trf.xlu0
  %v6194 = vpop.trf.xlu0
  %v6195 = vpop.trf.xlu0
  %v6196 = vpop.trf.xlu0
  %v6197 = vpop.trf.xlu0
  %v6198 = vpop.trf.xlu0
  %v6199 = vpop.trf.xlu0
  %v6200 = vpop.trf.xlu0
  %v6201 = vpop.trf.xlu0
  %6202 = vxpose.xlu0.b32.start [1/16] %v5908, 128
  %6203 = vxpose.xlu0.b32.cont [2/16] %v5911, 128
  %6204 = vxpose.xlu0.b32.cont [3/16] 0.0, 128
  %6205 = vxpose.xlu0.b32.cont [4/16] 0.0, 128
  %6206 = vxpose.xlu0.b32.cont [5/16] 0.0, 128
  %6207 = vxpose.xlu0.b32.cont [6/16] 0.0, 128
  %6208 = vxpose.xlu0.b32.cont [7/16] 0.0, 128
  %6209 = vxpose.xlu0.b32.cont [8/16] 0.0, 128
  %6210 = vxpose.xlu0.b32.cont [9/16] 0.0, 128
  %6211 = vxpose.xlu0.b32.cont [10/16] 0.0, 128
  %6212 = vxpose.xlu0.b32.cont [11/16] 0.0, 128
  %6213 = vxpose.xlu0.b32.cont [12/16] 0.0, 128
  %6214 = vxpose.xlu0.b32.cont [13/16] 0.0, 128
  %6215 = vxpose.xlu0.b32.cont [14/16] 0.0, 128
  %6216 = vxpose.xlu0.b32.cont [15/16] 0.0, 128
  %6217 = vxpose.xlu0.b32.end [16/16] 0.0, 128
  %v6218 = vpop.trf.xlu0
  %v6219 = vpop.trf.xlu0
  %v6220 = vpop.trf.xlu0
  %v6221 = vpop.trf.xlu0
  %v6222 = vpop.trf.xlu0
  %v6223 = vpop.trf.xlu0
  %v6224 = vpop.trf.xlu0
  %v6225 = vpop.trf.xlu0
  %v6226 = vpop.trf.xlu0
  %v6227 = vpop.trf.xlu0
  %v6228 = vpop.trf.xlu0
  %v6229 = vpop.trf.xlu0
  %v6230 = vpop.trf.xlu0
  %v6231 = vpop.trf.xlu0
  %v6232 = vpop.trf.xlu0
  %v6233 = vpop.trf.xlu0
  %6234 = vxpose.xlu0.b32.start [1/16] %v5916, 128
  %6235 = vxpose.xlu0.b32.cont [2/16] %v5919, 128
  %6236 = vxpose.xlu0.b32.cont [3/16] 0.0, 128
  %6237 = vxpose.xlu0.b32.cont [4/16] 0.0, 128
  %6238 = vxpose.xlu0.b32.cont [5/16] 0.0, 128
  %6239 = vxpose.xlu0.b32.cont [6/16] 0.0, 128
  %6240 = vxpose.xlu0.b32.cont [7/16] 0.0, 128
  %6241 = vxpose.xlu0.b32.cont [8/16] 0.0, 128
  %6242 = vxpose.xlu0.b32.cont [9/16] 0.0, 128
  %6243 = vxpose.xlu0.b32.cont [10/16] 0.0, 128
  %6244 = vxpose.xlu0.b32.cont [11/16] 0.0, 128
  %6245 = vxpose.xlu0.b32.cont [12/16] 0.0, 128
  %6246 = vxpose.xlu0.b32.cont [13/16] 0.0, 128
  %6247 = vxpose.xlu0.b32.cont [14/16] 0.0, 128
  %6248 = vxpose.xlu0.b32.cont [15/16] 0.0, 128
  %6249 = vxpose.xlu0.b32.end [16/16] 0.0, 128
  %v6250 = vpop.trf.xlu0
  %v6251 = vpop.trf.xlu0
  %v6252 = vpop.trf.xlu0
  %v6253 = vpop.trf.xlu0
  %v6254 = vpop.trf.xlu0
  %v6255 = vpop.trf.xlu0
  %v6256 = vpop.trf.xlu0
  %v6257 = vpop.trf.xlu0
  %v6258 = vpop.trf.xlu0
  %v6259 = vpop.trf.xlu0
  %v6260 = vpop.trf.xlu0
  %v6261 = vpop.trf.xlu0
  %v6262 = vpop.trf.xlu0
  %v6263 = vpop.trf.xlu0
  %v6264 = vpop.trf.xlu0
  %v6265 = vpop.trf.xlu0
  %6266 = vxpose.xlu0.b32.start [1/16] %v5924, 128
  %6267 = vxpose.xlu0.b32.cont [2/16] %v5927, 128
  %6268 = vxpose.xlu0.b32.cont [3/16] 0.0, 128
  %6269 = vxpose.xlu0.b32.cont [4/16] 0.0, 128
  %6270 = vxpose.xlu0.b32.cont [5/16] 0.0, 128
  %6271 = vxpose.xlu0.b32.cont [6/16] 0.0, 128
  %6272 = vxpose.xlu0.b32.cont [7/16] 0.0, 128
  %6273 = vxpose.xlu0.b32.cont [8/16] 0.0, 128
  %6274 = vxpose.xlu0.b32.cont [9/16] 0.0, 128
  %6275 = vxpose.xlu0.b32.cont [10/16] 0.0, 128
  %6276 = vxpose.xlu0.b32.cont [11/16] 0.0, 128
  %6277 = vxpose.xlu0.b32.cont [12/16] 0.0, 128
  %6278 = vxpose.xlu0.b32.cont [13/16] 0.0, 128
  %6279 = vxpose.xlu0.b32.cont [14/16] 0.0, 128
  %6280 = vxpose.xlu0.b32.cont [15/16] 0.0, 128
  %6281 = vxpose.xlu0.b32.end [16/16] 0.0, 128
  %v6282 = vpop.trf.xlu0
  %v6283 = vpop.trf.xlu0
  %v6284 = vpop.trf.xlu0
  %v6285 = vpop.trf.xlu0
  %v6286 = vpop.trf.xlu0
  %v6287 = vpop.trf.xlu0
  %v6288 = vpop.trf.xlu0
  %v6289 = vpop.trf.xlu0
  %v6290 = vpop.trf.xlu0
  %v6291 = vpop.trf.xlu0
  %v6292 = vpop.trf.xlu0
  %v6293 = vpop.trf.xlu0
  %v6294 = vpop.trf.xlu0
  %v6295 = vpop.trf.xlu0
  %v6296 = vpop.trf.xlu0
  %v6297 = vpop.trf.xlu0
  %6298 = vxpose.xlu0.b32.start [1/16] %v5932, 128
  %6299 = vxpose.xlu0.b32.cont [2/16] %v5935, 128
  %6300 = vxpose.xlu0.b32.cont [3/16] 0.0, 128
  %6301 = vxpose.xlu0.b32.cont [4/16] 0.0, 128
  %6302 = vxpose.xlu0.b32.cont [5/16] 0.0, 128
  %6303 = vxpose.xlu0.b32.cont [6/16] 0.0, 128
  %6304 = vxpose.xlu0.b32.cont [7/16] 0.0, 128
  %6305 = vxpose.xlu0.b32.cont [8/16] 0.0, 128
  %6306 = vxpose.xlu0.b32.cont [9/16] 0.0, 128
  %6307 = vxpose.xlu0.b32.cont [10/16] 0.0, 128
  %6308 = vxpose.xlu0.b32.cont [11/16] 0.0, 128
  %6309 = vxpose.xlu0.b32.cont [12/16] 0.0, 128
  %6310 = vxpose.xlu0.b32.cont [13/16] 0.0, 128
  %6311 = vxpose.xlu0.b32.cont [14/16] 0.0, 128
  %6312 = vxpose.xlu0.b32.cont [15/16] 0.0, 128
  %6313 = vxpose.xlu0.b32.end [16/16] 0.0, 128
  %v6314 = vpop.trf.xlu0
  %v6315 = vpop.trf.xlu0
  %v6316 = vpop.trf.xlu0
  %v6317 = vpop.trf.xlu0
  %v6318 = vpop.trf.xlu0
  %v6319 = vpop.trf.xlu0
  %v6320 = vpop.trf.xlu0
  %v6321 = vpop.trf.xlu0
  %v6322 = vpop.trf.xlu0
  %v6323 = vpop.trf.xlu0
  %v6324 = vpop.trf.xlu0
  %v6325 = vpop.trf.xlu0
  %v6326 = vpop.trf.xlu0
  %v6327 = vpop.trf.xlu0
  %v6328 = vpop.trf.xlu0
  %v6329 = vpop.trf.xlu0
  %6330 = vxpose.xlu0.b32.start [1/16] %v5940, 128
  %6331 = vxpose.xlu0.b32.cont [2/16] %v5943, 128
  %6332 = vxpose.xlu0.b32.cont [3/16] 0.0, 128
  %6333 = vxpose.xlu0.b32.cont [4/16] 0.0, 128
  %6334 = vxpose.xlu0.b32.cont [5/16] 0.0, 128
  %6335 = vxpose.xlu0.b32.cont [6/16] 0.0, 128
  %6336 = vxpose.xlu0.b32.cont [7/16] 0.0, 128
  %6337 = vxpose.xlu0.b32.cont [8/16] 0.0, 128
  %6338 = vxpose.xlu0.b32.cont [9/16] 0.0, 128
  %6339 = vxpose.xlu0.b32.cont [10/16] 0.0, 128
  %6340 = vxpose.xlu0.b32.cont [11/16] 0.0, 128
  %6341 = vxpose.xlu0.b32.cont [12/16] 0.0, 128
  %6342 = vxpose.xlu0.b32.cont [13/16] 0.0, 128
  %6343 = vxpose.xlu0.b32.cont [14/16] 0.0, 128
  %6344 = vxpose.xlu0.b32.cont [15/16] 0.0, 128
  %6345 = vxpose.xlu0.b32.end [16/16] 0.0, 128
  %v6346 = vpop.trf.xlu0
  %v6347 = vpop.trf.xlu0
  %v6348 = vpop.trf.xlu0
  %v6349 = vpop.trf.xlu0
  %v6350 = vpop.trf.xlu0
  %v6351 = vpop.trf.xlu0
  %v6352 = vpop.trf.xlu0
  %v6353 = vpop.trf.xlu0
  %v6354 = vpop.trf.xlu0
  %v6355 = vpop.trf.xlu0
  %v6356 = vpop.trf.xlu0
  %v6357 = vpop.trf.xlu0
  %v6358 = vpop.trf.xlu0
  %v6359 = vpop.trf.xlu0
  %v6360 = vpop.trf.xlu0
  %v6361 = vpop.trf.xlu0
  %6362 = vxpose.xlu0.b32.start [1/16] %v5948, 128
  %6363 = vxpose.xlu0.b32.cont [2/16] %v5951, 128
  %6364 = vxpose.xlu0.b32.cont [3/16] 0.0, 128
  %6365 = vxpose.xlu0.b32.cont [4/16] 0.0, 128
  %6366 = vxpose.xlu0.b32.cont [5/16] 0.0, 128
  %6367 = vxpose.xlu0.b32.cont [6/16] 0.0, 128
  %6368 = vxpose.xlu0.b32.cont [7/16] 0.0, 128
  %6369 = vxpose.xlu0.b32.cont [8/16] 0.0, 128
  %6370 = vxpose.xlu0.b32.cont [9/16] 0.0, 128
  %6371 = vxpose.xlu0.b32.cont [10/16] 0.0, 128
  %6372 = vxpose.xlu0.b32.cont [11/16] 0.0, 128
  %6373 = vxpose.xlu0.b32.cont [12/16] 0.0, 128
  %6374 = vxpose.xlu0.b32.cont [13/16] 0.0, 128
  %6375 = vxpose.xlu0.b32.cont [14/16] 0.0, 128
  %6376 = vxpose.xlu0.b32.cont [15/16] 0.0, 128
  %6377 = vxpose.xlu0.b32.end [16/16] 0.0, 128
  %v6378 = vpop.trf.xlu0
  %v6379 = vpop.trf.xlu0
  %v6380 = vpop.trf.xlu0
  %v6381 = vpop.trf.xlu0
  %v6382 = vpop.trf.xlu0
  %v6383 = vpop.trf.xlu0
  %v6384 = vpop.trf.xlu0
  %v6385 = vpop.trf.xlu0
  %v6386 = vpop.trf.xlu0
  %v6387 = vpop.trf.xlu0
  %v6388 = vpop.trf.xlu0
  %v6389 = vpop.trf.xlu0
  %v6390 = vpop.trf.xlu0
  %v6391 = vpop.trf.xlu0
  %v6392 = vpop.trf.xlu0
  %v6393 = vpop.trf.xlu0
  %6394 = vxpose.xlu0.b32.start [1/16] %v5956, 128
  %6395 = vxpose.xlu0.b32.cont [2/16] %v5959, 128
  %6396 = vxpose.xlu0.b32.cont [3/16] 0.0, 128
  %6397 = vxpose.xlu0.b32.cont [4/16] 0.0, 128
  %6398 = vxpose.xlu0.b32.cont [5/16] 0.0, 128
  %6399 = vxpose.xlu0.b32.cont [6/16] 0.0, 128
  %6400 = vxpose.xlu0.b32.cont [7/16] 0.0, 128
  %6401 = vxpose.xlu0.b32.cont [8/16] 0.0, 128
  %6402 = vxpose.xlu0.b32.cont [9/16] 0.0, 128
  %6403 = vxpose.xlu0.b32.cont [10/16] 0.0, 128
  %6404 = vxpose.xlu0.b32.cont [11/16] 0.0, 128
  %6405 = vxpose.xlu0.b32.cont [12/16] 0.0, 128
  %6406 = vxpose.xlu0.b32.cont [13/16] 0.0, 128
  %6407 = vxpose.xlu0.b32.cont [14/16] 0.0, 128
  %6408 = vxpose.xlu0.b32.cont [15/16] 0.0, 128
  %6409 = vxpose.xlu0.b32.end [16/16] 0.0, 128
  %v6410 = vpop.trf.xlu0
  %v6411 = vpop.trf.xlu0
  %v6412 = vpop.trf.xlu0
  %v6413 = vpop.trf.xlu0
  %v6414 = vpop.trf.xlu0
  %v6415 = vpop.trf.xlu0
  %v6416 = vpop.trf.xlu0
  %v6417 = vpop.trf.xlu0
  %v6418 = vpop.trf.xlu0
  %v6419 = vpop.trf.xlu0
  %v6420 = vpop.trf.xlu0
  %v6421 = vpop.trf.xlu0
  %v6422 = vpop.trf.xlu0
  %v6423 = vpop.trf.xlu0
  %v6424 = vpop.trf.xlu0
  %v6425 = vpop.trf.xlu0
  %6426 = vxpose.xlu0.b32.start [1/16] %v5964, 128
  %6427 = vxpose.xlu0.b32.cont [2/16] %v5967, 128
  %6428 = vxpose.xlu0.b32.cont [3/16] 0.0, 128
  %6429 = vxpose.xlu0.b32.cont [4/16] 0.0, 128
  %6430 = vxpose.xlu0.b32.cont [5/16] 0.0, 128
  %6431 = vxpose.xlu0.b32.cont [6/16] 0.0, 128
  %6432 = vxpose.xlu0.b32.cont [7/16] 0.0, 128
  %6433 = vxpose.xlu0.b32.cont [8/16] 0.0, 128
  %6434 = vxpose.xlu0.b32.cont [9/16] 0.0, 128
  %6435 = vxpose.xlu0.b32.cont [10/16] 0.0, 128
  %6436 = vxpose.xlu0.b32.cont [11/16] 0.0, 128
  %6437 = vxpose.xlu0.b32.cont [12/16] 0.0, 128
  %6438 = vxpose.xlu0.b32.cont [13/16] 0.0, 128
  %6439 = vxpose.xlu0.b32.cont [14/16] 0.0, 128
  %6440 = vxpose.xlu0.b32.cont [15/16] 0.0, 128
  %6441 = vxpose.xlu0.b32.end [16/16] 0.0, 128
  %v6442 = vpop.trf.xlu0
  %v6443 = vpop.trf.xlu0
  %v6444 = vpop.trf.xlu0
  %v6445 = vpop.trf.xlu0
  %v6446 = vpop.trf.xlu0
  %v6447 = vpop.trf.xlu0
  %v6448 = vpop.trf.xlu0
  %v6449 = vpop.trf.xlu0
  %v6450 = vpop.trf.xlu0
  %v6451 = vpop.trf.xlu0
  %v6452 = vpop.trf.xlu0
  %v6453 = vpop.trf.xlu0
  %v6454 = vpop.trf.xlu0
  %v6455 = vpop.trf.xlu0
  %v6456 = vpop.trf.xlu0
  %v6457 = vpop.trf.xlu0
  %6458 = vxpose.xlu0.b32.start [1/16] %v5972, 128
  %6459 = vxpose.xlu0.b32.cont [2/16] %v5975, 128
  %6460 = vxpose.xlu0.b32.cont [3/16] 0.0, 128
  %6461 = vxpose.xlu0.b32.cont [4/16] 0.0, 128
  %6462 = vxpose.xlu0.b32.cont [5/16] 0.0, 128
  %6463 = vxpose.xlu0.b32.cont [6/16] 0.0, 128
  %6464 = vxpose.xlu0.b32.cont [7/16] 0.0, 128
  %6465 = vxpose.xlu0.b32.cont [8/16] 0.0, 128
  %6466 = vxpose.xlu0.b32.cont [9/16] 0.0, 128
  %6467 = vxpose.xlu0.b32.cont [10/16] 0.0, 128
  %6468 = vxpose.xlu0.b32.cont [11/16] 0.0, 128
  %6469 = vxpose.xlu0.b32.cont [12/16] 0.0, 128
  %6470 = vxpose.xlu0.b32.cont [13/16] 0.0, 128
  %6471 = vxpose.xlu0.b32.cont [14/16] 0.0, 128
  %6472 = vxpose.xlu0.b32.cont [15/16] 0.0, 128
  %6473 = vxpose.xlu0.b32.end [16/16] 0.0, 128
  %v6474 = vpop.trf.xlu0
  %v6475 = vpop.trf.xlu0
  %v6476 = vpop.trf.xlu0
  %v6477 = vpop.trf.xlu0
  %v6478 = vpop.trf.xlu0
  %v6479 = vpop.trf.xlu0
  %v6480 = vpop.trf.xlu0
  %v6481 = vpop.trf.xlu0
  %v6482 = vpop.trf.xlu0
  %v6483 = vpop.trf.xlu0
  %v6484 = vpop.trf.xlu0
  %v6485 = vpop.trf.xlu0
  %v6486 = vpop.trf.xlu0
  %v6487 = vpop.trf.xlu0
  %v6488 = vpop.trf.xlu0
  %v6489 = vpop.trf.xlu0
  %v6490 = vadd.f32 %v5994, %v577
  %v6491 = vadd.f32 %v6026, %v581
  %v6492 = vadd.f32 %v6058, %v585
  %v6493 = vadd.f32 %v6090, %v589
  %v6494 = vadd.f32 %v6122, %v593
  %v6495 = vadd.f32 %v6154, %v597
  %v6496 = vadd.f32 %v6186, %v601
  %v6497 = vadd.f32 %v6218, %v605
  %v6498 = vadd.f32 %v6250, %v609
  %v6499 = vadd.f32 %v6282, %v613
  %v6500 = vadd.f32 %v6314, %v617
  %v6501 = vadd.f32 %v6346, %v621
  %v6502 = vadd.f32 %v6378, %v625
  %v6503 = vadd.f32 %v6410, %v629
  %v6504 = vadd.f32 %v6442, %v633
  %v6505 = vadd.f32 %v6474, %v637
  %v6506 = vsel %vm2163, %v6490, -inf
  %6507 = vmax.xlane.f32.xlu0 %v6506
  %v6508 = vpop.xlane.xlu0 %6507
  %v6509 = vsel %vm2163, %v6491, -inf
  %6510 = vmax.xlane.f32.xlu0 %v6509
  %v6511 = vpop.xlane.xlu0 %6510
  %v6512 = vsel %vm2163, %v6492, -inf
  %6513 = vmax.xlane.f32.xlu0 %v6512
  %v6514 = vpop.xlane.xlu0 %6513
  %v6515 = vsel %vm2163, %v6493, -inf
  %6516 = vmax.xlane.f32.xlu0 %v6515
  %v6517 = vpop.xlane.xlu0 %6516
  %v6518 = vsel %vm2163, %v6494, -inf
  %6519 = vmax.xlane.f32.xlu0 %v6518
  %v6520 = vpop.xlane.xlu0 %6519
  %v6521 = vsel %vm2163, %v6495, -inf
  %6522 = vmax.xlane.f32.xlu0 %v6521
  %v6523 = vpop.xlane.xlu0 %6522
  %v6524 = vsel %vm2163, %v6496, -inf
  %6525 = vmax.xlane.f32.xlu0 %v6524
  %v6526 = vpop.xlane.xlu0 %6525
  %v6527 = vsel %vm2163, %v6497, -inf
  %6528 = vmax.xlane.f32.xlu0 %v6527
  %v6529 = vpop.xlane.xlu0 %6528
  %v6530 = vsel %vm2163, %v6498, -inf
  %6531 = vmax.xlane.f32.xlu0 %v6530
  %v6532 = vpop.xlane.xlu0 %6531
  %v6533 = vsel %vm2163, %v6499, -inf
  %6534 = vmax.xlane.f32.xlu0 %v6533
  %v6535 = vpop.xlane.xlu0 %6534
  %v6536 = vsel %vm2163, %v6500, -inf
  %6537 = vmax.xlane.f32.xlu0 %v6536
  %v6538 = vpop.xlane.xlu0 %6537
  %v6539 = vsel %vm2163, %v6501, -inf
  %6540 = vmax.xlane.f32.xlu0 %v6539
  %v6541 = vpop.xlane.xlu0 %6540
  %v6542 = vsel %vm2163, %v6502, -inf
  %6543 = vmax.xlane.f32.xlu0 %v6542
  %v6544 = vpop.xlane.xlu0 %6543
  %v6545 = vsel %vm2163, %v6503, -inf
  %6546 = vmax.xlane.f32.xlu0 %v6545
  %v6547 = vpop.xlane.xlu0 %6546
  %v6548 = vsel %vm2163, %v6504, -inf
  %6549 = vmax.xlane.f32.xlu0 %v6548
  %v6550 = vpop.xlane.xlu0 %6549
  %v6551 = vsel %vm2163, %v6505, -inf
  %6552 = vmax.xlane.f32.xlu0 %v6551
  %v6553 = vpop.xlane.xlu0 %6552
  %v6554 = vsub.f32 %v6490, %v6508
  %v6555 = vsub.f32 %v6491, %v6511
  %v6556 = vsub.f32 %v6492, %v6514
  %v6557 = vsub.f32 %v6493, %v6517
  %v6558 = vsub.f32 %v6494, %v6520
  %v6559 = vsub.f32 %v6495, %v6523
  %v6560 = vsub.f32 %v6496, %v6526
  %v6561 = vsub.f32 %v6497, %v6529
  %v6562 = vsub.f32 %v6498, %v6532
  %v6563 = vsub.f32 %v6499, %v6535
  %v6564 = vsub.f32 %v6500, %v6538
  %v6565 = vsub.f32 %v6501, %v6541
  %v6566 = vsub.f32 %v6502, %v6544
  %v6567 = vsub.f32 %v6503, %v6547
  %v6568 = vsub.f32 %v6504, %v6550
  %v6569 = vsub.f32 %v6505, %v6553
  %v6570 = vmul.f32 %v6554, 1.442695
  %v6571 = vpow.pop %v6570
  %v6572 = vmul.f32 %v6555, 1.442695
  %v6573 = vpow.pop %v6572
  %v6574 = vmul.f32 %v6556, 1.442695
  %v6575 = vpow.pop %v6574
  %v6576 = vmul.f32 %v6557, 1.442695
  %v6577 = vpow.pop %v6576
  %v6578 = vmul.f32 %v6558, 1.442695
  %v6579 = vpow.pop %v6578
  %v6580 = vmul.f32 %v6559, 1.442695
  %v6581 = vpow.pop %v6580
  %v6582 = vmul.f32 %v6560, 1.442695
  %v6583 = vpow.pop %v6582
  %v6584 = vmul.f32 %v6561, 1.442695
  %v6585 = vpow.pop %v6584
  %v6586 = vmul.f32 %v6562, 1.442695
  %v6587 = vpow.pop %v6586
  %v6588 = vmul.f32 %v6563, 1.442695
  %v6589 = vpow.pop %v6588
  %v6590 = vmul.f32 %v6564, 1.442695
  %v6591 = vpow.pop %v6590
  %v6592 = vmul.f32 %v6565, 1.442695
  %v6593 = vpow.pop %v6592
  %v6594 = vmul.f32 %v6566, 1.442695
  %v6595 = vpow.pop %v6594
  %v6596 = vmul.f32 %v6567, 1.442695
  %v6597 = vpow.pop %v6596
  %v6598 = vmul.f32 %v6568, 1.442695
  %v6599 = vpow.pop %v6598
  %v6600 = vmul.f32 %v6569, 1.442695
  %v6601 = vpow.pop %v6600
  %v6602 = vsel %vm2163, %v6571, 0.0
  %6603 = vadd.xlane.f32.xlu0 %v6602
  %v6604 = vpop.xlane.xlu0 %6603
  %v6605 = vsel %vm2163, %v6573, 0.0
  %6606 = vadd.xlane.f32.xlu0 %v6605
  %v6607 = vpop.xlane.xlu0 %6606
  %v6608 = vsel %vm2163, %v6575, 0.0
  %6609 = vadd.xlane.f32.xlu0 %v6608
  %v6610 = vpop.xlane.xlu0 %6609
  %v6611 = vsel %vm2163, %v6577, 0.0
  %6612 = vadd.xlane.f32.xlu0 %v6611
  %v6613 = vpop.xlane.xlu0 %6612
  %v6614 = vsel %vm2163, %v6579, 0.0
  %6615 = vadd.xlane.f32.xlu0 %v6614
  %v6616 = vpop.xlane.xlu0 %6615
  %v6617 = vsel %vm2163, %v6581, 0.0
  %6618 = vadd.xlane.f32.xlu0 %v6617
  %v6619 = vpop.xlane.xlu0 %6618
  %v6620 = vsel %vm2163, %v6583, 0.0
  %6621 = vadd.xlane.f32.xlu0 %v6620
  %v6622 = vpop.xlane.xlu0 %6621
  %v6623 = vsel %vm2163, %v6585, 0.0
  %6624 = vadd.xlane.f32.xlu0 %v6623
  %v6625 = vpop.xlane.xlu0 %6624
  %v6626 = vsel %vm2163, %v6587, 0.0
  %6627 = vadd.xlane.f32.xlu0 %v6626
  %v6628 = vpop.xlane.xlu0 %6627
  %v6629 = vsel %vm2163, %v6589, 0.0
  %6630 = vadd.xlane.f32.xlu0 %v6629
  %v6631 = vpop.xlane.xlu0 %6630
  %v6632 = vsel %vm2163, %v6591, 0.0
  %6633 = vadd.xlane.f32.xlu0 %v6632
  %v6634 = vpop.xlane.xlu0 %6633
  %v6635 = vsel %vm2163, %v6593, 0.0
  %6636 = vadd.xlane.f32.xlu0 %v6635
  %v6637 = vpop.xlane.xlu0 %6636
  %v6638 = vsel %vm2163, %v6595, 0.0
  %6639 = vadd.xlane.f32.xlu0 %v6638
  %v6640 = vpop.xlane.xlu0 %6639
  %v6641 = vsel %vm2163, %v6597, 0.0
  %6642 = vadd.xlane.f32.xlu0 %v6641
  %v6643 = vpop.xlane.xlu0 %6642
  %v6644 = vsel %vm2163, %v6599, 0.0
  %6645 = vadd.xlane.f32.xlu0 %v6644
  %v6646 = vpop.xlane.xlu0 %6645
  %v6647 = vsel %vm2163, %v6601, 0.0
  %6648 = vadd.xlane.f32.xlu0 %v6647
  %v6649 = vpop.xlane.xlu0 %6648
  %v6650 = vrcp.pop %v6604
  %v6651 = vrcp.pop %v6607
  %v6652 = vrcp.pop %v6610
  %v6653 = vrcp.pop %v6613
  %v6654 = vrcp.pop %v6616
  %v6655 = vrcp.pop %v6619
  %v6656 = vrcp.pop %v6622
  %v6657 = vrcp.pop %v6625
  %v6658 = vrcp.pop %v6628
  %v6659 = vrcp.pop %v6631
  %v6660 = vrcp.pop %v6634
  %v6661 = vrcp.pop %v6637
  %v6662 = vrcp.pop %v6640
  %v6663 = vrcp.pop %v6643
  %v6664 = vrcp.pop %v6646
  %v6665 = vrcp.pop %v6649
  %v6666 = vmul.f32 %v6571, %v6650
  %v6667 = vmul.f32 %v6573, %v6651
  %v6668 = vmul.f32 %v6575, %v6652
  %v6669 = vmul.f32 %v6577, %v6653
  %v6670 = vmul.f32 %v6579, %v6654
  %v6671 = vmul.f32 %v6581, %v6655
  %v6672 = vmul.f32 %v6583, %v6656
  %v6673 = vmul.f32 %v6585, %v6657
  %v6674 = vmul.f32 %v6587, %v6658
  %v6675 = vmul.f32 %v6589, %v6659
  %v6676 = vmul.f32 %v6591, %v6660
  %v6677 = vmul.f32 %v6593, %v6661
  %v6678 = vmul.f32 %v6595, %v6662
  %v6679 = vmul.f32 %v6597, %v6663
  %v6680 = vmul.f32 %v6599, %v6664
  %v6681 = vmul.f32 %v6601, %v6665
  %6682 = vst.msk [vmem:[#allocation2] sm:$0xf] %vm2163, %v6666
  %6683 = vst.msk [vmem:[#allocation2 + $0x4] sm:$0xf] %vm2163, %v6667
  %6684 = vst.msk [vmem:[#allocation2 + $0x8] sm:$0xf] %vm2163, %v6668
  %6685 = vst.msk [vmem:[#allocation2 + $0xc] sm:$0xf] %vm2163, %v6669
  %6686 = vst.msk [vmem:[#allocation2 + $0x10] sm:$0xf] %vm2163, %v6670
  %6687 = vst.msk [vmem:[#allocation2 + $0x14] sm:$0xf] %vm2163, %v6671
  %6688 = vst.msk [vmem:[#allocation2 + $0x18] sm:$0xf] %vm2163, %v6672
  %6689 = vst.msk [vmem:[#allocation2 + $0x1c] sm:$0xf] %vm2163, %v6673
  %6690 = vst.msk [vmem:[#allocation2 + $0x20] sm:$0xf] %vm2163, %v6674
  %6691 = vst.msk [vmem:[#allocation2 + $0x24] sm:$0xf] %vm2163, %v6675
  %6692 = vst.msk [vmem:[#allocation2 + $0x28] sm:$0xf] %vm2163, %v6676
  %6693 = vst.msk [vmem:[#allocation2 + $0x2c] sm:$0xf] %vm2163, %v6677
  %6694 = vst.msk [vmem:[#allocation2 + $0x30] sm:$0xf] %vm2163, %v6678
  %6695 = vst.msk [vmem:[#allocation2 + $0x34] sm:$0xf] %vm2163, %v6679
  %6696 = vst.msk [vmem:[#allocation2 + $0x38] sm:$0xf] %vm2163, %v6680
  %6697 = vst.msk [vmem:[#allocation2 + $0x3c] sm:$0xf] %vm2163, %v6681
  %v6698 = vpack.c.bf16 %v5269, %v5265
  %v6699 = vld [vmem:[#allocation2] sm:$0x1]
  %v6700 = vld [vmem:[#allocation2 + $0x4] sm:$0x1]
  %v6701 = vld [vmem:[#allocation2 + $0x8] sm:$0x1]
  %v6702 = vld [vmem:[#allocation2 + $0xc] sm:$0x1]
  %v6703 = vld [vmem:[#allocation2 + $0x10] sm:$0x1]
  %v6704 = vld [vmem:[#allocation2 + $0x14] sm:$0x1]
  %v6705 = vld [vmem:[#allocation2 + $0x18] sm:$0x1]
  %v6706 = vld [vmem:[#allocation2 + $0x1c] sm:$0x1]
  %v6707 = vld [vmem:[#allocation2 + $0x20] sm:$0x1]
  %v6708 = vld [vmem:[#allocation2 + $0x24] sm:$0x1]
  %v6709 = vld [vmem:[#allocation2 + $0x28] sm:$0x1]
  %v6710 = vld [vmem:[#allocation2 + $0x2c] sm:$0x1]
  %v6711 = vld [vmem:[#allocation2 + $0x30] sm:$0x1]
  %v6712 = vld [vmem:[#allocation2 + $0x34] sm:$0x1]
  %v6713 = vld [vmem:[#allocation2 + $0x38] sm:$0x1]
  %v6714 = vld [vmem:[#allocation2 + $0x3c] sm:$0x1]
  %v6715 = vpack.c.bf16 %v6699, %v6699
  %v6716 = vpack.c.bf16 %v6700, %v6700
  %v6717 = vpack.c.bf16 %v6701, %v6701
  %v6718 = vpack.c.bf16 %v6702, %v6702
  %v6719 = vpack.c.bf16 %v6703, %v6703
  %v6720 = vpack.c.bf16 %v6704, %v6704
  %v6721 = vpack.c.bf16 %v6705, %v6705
  %v6722 = vpack.c.bf16 %v6706, %v6706
  %v6723 = vpack.c.bf16 %v6707, %v6707
  %v6724 = vpack.c.bf16 %v6708, %v6708
  %v6725 = vpack.c.bf16 %v6709, %v6709
  %v6726 = vpack.c.bf16 %v6710, %v6710
  %v6727 = vpack.c.bf16 %v6711, %v6711
  %v6728 = vpack.c.bf16 %v6712, %v6712
  %v6729 = vpack.c.bf16 %v6713, %v6713
  %v6730 = vpack.c.bf16 %v6714, %v6714
  %v6747 = vunpack.c.l.b16 %v6715
  %v6748 = vunpack.c.l.b16 %v6716
  %v6749 = vunpack.c.l.b16 %v6717
  %v6750 = vunpack.c.l.b16 %v6718
  %v6751 = vunpack.c.l.b16 %v6719
  %v6752 = vunpack.c.l.b16 %v6720
  %v6753 = vunpack.c.l.b16 %v6721
  %v6754 = vunpack.c.l.b16 %v6722
  %v6755 = vunpack.c.l.b16 %v6723
  %v6756 = vunpack.c.l.b16 %v6724
  %v6757 = vunpack.c.l.b16 %v6725
  %v6758 = vunpack.c.l.b16 %v6726
  %v6759 = vunpack.c.l.b16 %v6727
  %v6760 = vunpack.c.l.b16 %v6728
  %v6761 = vunpack.c.l.b16 %v6729
  %v6762 = vunpack.c.l.b16 %v6730
  %v6763 = vrot.slane %v6748, 7
  %v6764 = vsel %vm2422, %v6763, %v6747
  %v6765 = vrot.slane %v6749, 6
  %v6766 = vsel %vm2425, %v6765, %v6764
  %v6767 = vrot.slane %v6750, 5
  %v6768 = vsel %vm2428, %v6767, %v6766
  %v6769 = vrot.slane %v6751, 4
  %v6770 = vsel %vm2431, %v6769, %v6768
  %v6771 = vrot.slane %v6752, 3
  %v6772 = vsel %vm2434, %v6771, %v6770
  %v6773 = vrot.slane %v6753, 2
  %v6774 = vsel %vm2437, %v6773, %v6772
  %v6775 = vrot.slane %v6754, 1
  %v6776 = vsel %vm2440, %v6775, %v6774
  %v6777 = vrot.slane %v6756, 7
  %v6778 = vsel %vm2422, %v6777, %v6755
  %v6779 = vrot.slane %v6757, 6
  %v6780 = vsel %vm2425, %v6779, %v6778
  %v6781 = vrot.slane %v6758, 5
  %v6782 = vsel %vm2428, %v6781, %v6780
  %v6783 = vrot.slane %v6759, 4
  %v6784 = vsel %vm2431, %v6783, %v6782
  %v6785 = vrot.slane %v6760, 3
  %v6786 = vsel %vm2434, %v6785, %v6784
  %v6787 = vrot.slane %v6761, 2
  %v6788 = vsel %vm2437, %v6787, %v6786
  %v6789 = vrot.slane %v6762, 1
  %v6790 = vsel %vm2440, %v6789, %v6788
  %v6791 = vpack.c.b16 %v6790, %v6776
  %v6793 = vsel %vm2457, %v6791, 0
  %6795 = vmatprep.subr.bf16.mxu0 0
  %6796 = vmatpush1.bf16.msra.mxu0 0
  %6797 = vmatprep.subr.bf16.mxu0 0
  %6798 = vmatpush1.bf16.msra.mxu0 0
  %6799 = vmatprep.subr.bf16.mxu0 0
  %6800 = vmatpush1.bf16.msra.mxu0 0
  %6801 = vmatprep.subr.bf16.mxu0 0
  %6802 = vmatpush1.bf16.msra.mxu0 0
  %6803 = vmatprep.subr.bf16.mxu0 0
  %6804 = vmatpush1.bf16.msra.mxu0 0
  %6805 = vmatprep.subr.bf16.mxu0 0
  %6806 = vmatpush1.bf16.msra.mxu0 0
  %6807 = vmatprep.subr.bf16.mxu0 0
  %6808 = vmatpush1.bf16.msra.mxu0 0
  %6809 = vmatprep.subr.bf16.mxu0 0
  %6810 = vmatpush1.bf16.msra.mxu0 %v6698
  %6811 = vmatprep.subr.bf16.mxu0 0
  %6812 = vmatpush2.bf16.msra.mxu0 0
  %6813 = vmatprep.subr.bf16.mxu0 0
  %6814 = vmatpush2.bf16.msra.mxu0 0
  %6815 = vmatprep.subr.bf16.mxu0 0
  %6816 = vmatpush2.bf16.msra.mxu0 0
  %6817 = vmatprep.subr.bf16.mxu0 0
  %6818 = vmatpush2.bf16.msra.mxu0 0
  %6819 = vmatprep.subr.bf16.mxu0 0
  %6820 = vmatpush2.bf16.msra.mxu0 0
  %6821 = vmatprep.subr.bf16.mxu0 0
  %6822 = vmatpush2.bf16.msra.mxu0 0
  %6823 = vmatprep.subr.bf16.mxu0 0
  %6824 = vmatpush2.bf16.msra.mxu0 0
  %6825 = vmatprep.subr.bf16.mxu0 0
  %6826 = vmatpush2.bf16.msra.mxu0 0
  %6827 = vmatprep.mubr.bf16.mxu0 0
  %6828 = vmatmul.mubr.bf16.gmra.mxu0 %v6793
  %v6829 = vpop.f32.mrf.mxu0
  %v6830 = vadd.f32 0.0, %v6829
  %v6831 = vpop.f32.mrf.mxu0
  %v6832 = vpop.f32.mrf.mxu0
  %v6833 = vadd.f32 0.0, %v6832
  %v6834 = vpop.f32.mrf.mxu0
  %6835 = vdwg.mxu0
  %v6836 = vld [vmem:[#allocation2 + $0x1] sm:$0x1]
  %v6837 = vld [vmem:[#allocation2 + $0x5] sm:$0x1]
  %v6838 = vld [vmem:[#allocation2 + $0x9] sm:$0x1]
  %v6839 = vld [vmem:[#allocation2 + $0xd] sm:$0x1]
  %v6840 = vld [vmem:[#allocation2 + $0x11] sm:$0x1]
  %v6841 = vld [vmem:[#allocation2 + $0x15] sm:$0x1]
  %v6842 = vld [vmem:[#allocation2 + $0x19] sm:$0x1]
  %v6843 = vld [vmem:[#allocation2 + $0x1d] sm:$0x1]
  %v6844 = vld [vmem:[#allocation2 + $0x21] sm:$0x1]
  %v6845 = vld [vmem:[#allocation2 + $0x25] sm:$0x1]
  %v6846 = vld [vmem:[#allocation2 + $0x29] sm:$0x1]
  %v6847 = vld [vmem:[#allocation2 + $0x2d] sm:$0x1]
  %v6848 = vld [vmem:[#allocation2 + $0x31] sm:$0x1]
  %v6849 = vld [vmem:[#allocation2 + $0x35] sm:$0x1]
  %v6850 = vld [vmem:[#allocation2 + $0x39] sm:$0x1]
  %v6851 = vld [vmem:[#allocation2 + $0x3d] sm:$0x1]
  %v6852 = vpack.c.bf16 %v6836, %v6836
  %v6853 = vpack.c.bf16 %v6837, %v6837
  %v6854 = vpack.c.bf16 %v6838, %v6838
  %v6855 = vpack.c.bf16 %v6839, %v6839
  %v6856 = vpack.c.bf16 %v6840, %v6840
  %v6857 = vpack.c.bf16 %v6841, %v6841
  %v6858 = vpack.c.bf16 %v6842, %v6842
  %v6859 = vpack.c.bf16 %v6843, %v6843
  %v6860 = vpack.c.bf16 %v6844, %v6844
  %v6861 = vpack.c.bf16 %v6845, %v6845
  %v6862 = vpack.c.bf16 %v6846, %v6846
  %v6863 = vpack.c.bf16 %v6847, %v6847
  %v6864 = vpack.c.bf16 %v6848, %v6848
  %v6865 = vpack.c.bf16 %v6849, %v6849
  %v6866 = vpack.c.bf16 %v6850, %v6850
  %v6867 = vpack.c.bf16 %v6851, %v6851
  %v6884 = vunpack.c.l.b16 %v6852
  %v6885 = vunpack.c.l.b16 %v6853
  %v6886 = vunpack.c.l.b16 %v6854
  %v6887 = vunpack.c.l.b16 %v6855
  %v6888 = vunpack.c.l.b16 %v6856
  %v6889 = vunpack.c.l.b16 %v6857
  %v6890 = vunpack.c.l.b16 %v6858
  %v6891 = vunpack.c.l.b16 %v6859
  %v6892 = vunpack.c.l.b16 %v6860
  %v6893 = vunpack.c.l.b16 %v6861
  %v6894 = vunpack.c.l.b16 %v6862
  %v6895 = vunpack.c.l.b16 %v6863
  %v6896 = vunpack.c.l.b16 %v6864
  %v6897 = vunpack.c.l.b16 %v6865
  %v6898 = vunpack.c.l.b16 %v6866
  %v6899 = vunpack.c.l.b16 %v6867
  %v6900 = vrot.slane %v6885, 7
  %v6901 = vsel %vm2422, %v6900, %v6884
  %v6902 = vrot.slane %v6886, 6
  %v6903 = vsel %vm2425, %v6902, %v6901
  %v6904 = vrot.slane %v6887, 5
  %v6905 = vsel %vm2428, %v6904, %v6903
  %v6906 = vrot.slane %v6888, 4
  %v6907 = vsel %vm2431, %v6906, %v6905
  %v6908 = vrot.slane %v6889, 3
  %v6909 = vsel %vm2434, %v6908, %v6907
  %v6910 = vrot.slane %v6890, 2
  %v6911 = vsel %vm2437, %v6910, %v6909
  %v6912 = vrot.slane %v6891, 1
  %v6913 = vsel %vm2440, %v6912, %v6911
  %v6914 = vrot.slane %v6893, 7
  %v6915 = vsel %vm2422, %v6914, %v6892
  %v6916 = vrot.slane %v6894, 6
  %v6917 = vsel %vm2425, %v6916, %v6915
  %v6918 = vrot.slane %v6895, 5
  %v6919 = vsel %vm2428, %v6918, %v6917
  %v6920 = vrot.slane %v6896, 4
  %v6921 = vsel %vm2431, %v6920, %v6919
  %v6922 = vrot.slane %v6897, 3
  %v6923 = vsel %vm2434, %v6922, %v6921
  %v6924 = vrot.slane %v6898, 2
  %v6925 = vsel %vm2437, %v6924, %v6923
  %v6926 = vrot.slane %v6899, 1
  %v6927 = vsel %vm2440, %v6926, %v6925
  %v6928 = vpack.c.b16 %v6927, %v6913
  %6930 = vrot.lane.b32.xlu0 %v6698, 96
  %v6931 = vpop.permute.xlu0 %6930
  %v6934 = vsel %vm2457, %v6928, 0
  %6936 = vmatprep.subr.bf16.mxu0 0
  %6937 = vmatpush1.bf16.msra.mxu0 0
  %6938 = vmatprep.subr.bf16.mxu0 0
  %6939 = vmatpush1.bf16.msra.mxu0 0
  %6940 = vmatprep.subr.bf16.mxu0 0
  %6941 = vmatpush1.bf16.msra.mxu0 0
  %6942 = vmatprep.subr.bf16.mxu0 0
  %6943 = vmatpush1.bf16.msra.mxu0 0
  %6944 = vmatprep.subr.bf16.mxu0 0
  %6945 = vmatpush1.bf16.msra.mxu0 0
  %6946 = vmatprep.subr.bf16.mxu0 0
  %6947 = vmatpush1.bf16.msra.mxu0 0
  %6948 = vmatprep.subr.bf16.mxu0 0
  %6949 = vmatpush1.bf16.msra.mxu0 0
  %6950 = vmatprep.subr.bf16.mxu0 0
  %6951 = vmatpush1.bf16.msra.mxu0 %v6931
  %6952 = vmatprep.subr.bf16.mxu0 0
  %6953 = vmatpush2.bf16.msra.mxu0 0
  %6954 = vmatprep.subr.bf16.mxu0 0
  %6955 = vmatpush2.bf16.msra.mxu0 0
  %6956 = vmatprep.subr.bf16.mxu0 0
  %6957 = vmatpush2.bf16.msra.mxu0 0
  %6958 = vmatprep.subr.bf16.mxu0 0
  %6959 = vmatpush2.bf16.msra.mxu0 0
  %6960 = vmatprep.subr.bf16.mxu0 0
  %6961 = vmatpush2.bf16.msra.mxu0 0
  %6962 = vmatprep.subr.bf16.mxu0 0
  %6963 = vmatpush2.bf16.msra.mxu0 0
  %6964 = vmatprep.subr.bf16.mxu0 0
  %6965 = vmatpush2.bf16.msra.mxu0 0
  %6966 = vmatprep.subr.bf16.mxu0 0
  %6967 = vmatpush2.bf16.msra.mxu0 0
  %6968 = vmatprep.mubr.bf16.mxu0 0
  %6969 = vmatmul.mubr.bf16.gmra.mxu0 %v6934
  %v6970 = vpop.f32.mrf.mxu0
  %v6971 = vadd.f32 0.0, %v6970
  %v6972 = vpop.f32.mrf.mxu0
  %v6973 = vpop.f32.mrf.mxu0
  %v6974 = vadd.f32 0.0, %v6973
  %v6975 = vpop.f32.mrf.mxu0
  %6976 = vdwg.mxu0
  %v6977 = vld [vmem:[#allocation2 + $0x2] sm:$0x1]
  %v6978 = vld [vmem:[#allocation2 + $0x6] sm:$0x1]
  %v6979 = vld [vmem:[#allocation2 + $0xa] sm:$0x1]
  %v6980 = vld [vmem:[#allocation2 + $0xe] sm:$0x1]
  %v6981 = vld [vmem:[#allocation2 + $0x12] sm:$0x1]
  %v6982 = vld [vmem:[#allocation2 + $0x16] sm:$0x1]
  %v6983 = vld [vmem:[#allocation2 + $0x1a] sm:$0x1]
  %v6984 = vld [vmem:[#allocation2 + $0x1e] sm:$0x1]
  %v6985 = vld [vmem:[#allocation2 + $0x22] sm:$0x1]
  %v6986 = vld [vmem:[#allocation2 + $0x26] sm:$0x1]
  %v6987 = vld [vmem:[#allocation2 + $0x2a] sm:$0x1]
  %v6988 = vld [vmem:[#allocation2 + $0x2e] sm:$0x1]
  %v6989 = vld [vmem:[#allocation2 + $0x32] sm:$0x1]
  %v6990 = vld [vmem:[#allocation2 + $0x36] sm:$0x1]
  %v6991 = vld [vmem:[#allocation2 + $0x3a] sm:$0x1]
  %v6992 = vld [vmem:[#allocation2 + $0x3e] sm:$0x1]
  %v6993 = vpack.c.bf16 %v6977, %v6977
  %v6994 = vpack.c.bf16 %v6978, %v6978
  %v6995 = vpack.c.bf16 %v6979, %v6979
  %v6996 = vpack.c.bf16 %v6980, %v6980
  %v6997 = vpack.c.bf16 %v6981, %v6981
  %v6998 = vpack.c.bf16 %v6982, %v6982
  %v6999 = vpack.c.bf16 %v6983, %v6983
  %v7000 = vpack.c.bf16 %v6984, %v6984
  %v7001 = vpack.c.bf16 %v6985, %v6985
  %v7002 = vpack.c.bf16 %v6986, %v6986
  %v7003 = vpack.c.bf16 %v6987, %v6987
  %v7004 = vpack.c.bf16 %v6988, %v6988
  %v7005 = vpack.c.bf16 %v6989, %v6989
  %v7006 = vpack.c.bf16 %v6990, %v6990
  %v7007 = vpack.c.bf16 %v6991, %v6991
  %v7008 = vpack.c.bf16 %v6992, %v6992
  %v7025 = vunpack.c.l.b16 %v6993
  %v7026 = vunpack.c.l.b16 %v6994
  %v7027 = vunpack.c.l.b16 %v6995
  %v7028 = vunpack.c.l.b16 %v6996
  %v7029 = vunpack.c.l.b16 %v6997
  %v7030 = vunpack.c.l.b16 %v6998
  %v7031 = vunpack.c.l.b16 %v6999
  %v7032 = vunpack.c.l.b16 %v7000
  %v7033 = vunpack.c.l.b16 %v7001
  %v7034 = vunpack.c.l.b16 %v7002
  %v7035 = vunpack.c.l.b16 %v7003
  %v7036 = vunpack.c.l.b16 %v7004
  %v7037 = vunpack.c.l.b16 %v7005
  %v7038 = vunpack.c.l.b16 %v7006
  %v7039 = vunpack.c.l.b16 %v7007
  %v7040 = vunpack.c.l.b16 %v7008
  %v7041 = vrot.slane %v7026, 7
  %v7042 = vsel %vm2422, %v7041, %v7025
  %v7043 = vrot.slane %v7027, 6
  %v7044 = vsel %vm2425, %v7043, %v7042
  %v7045 = vrot.slane %v7028, 5
  %v7046 = vsel %vm2428, %v7045, %v7044
  %v7047 = vrot.slane %v7029, 4
  %v7048 = vsel %vm2431, %v7047, %v7046
  %v7049 = vrot.slane %v7030, 3
  %v7050 = vsel %vm2434, %v7049, %v7048
  %v7051 = vrot.slane %v7031, 2
  %v7052 = vsel %vm2437, %v7051, %v7050
  %v7053 = vrot.slane %v7032, 1
  %v7054 = vsel %vm2440, %v7053, %v7052
  %v7055 = vrot.slane %v7034, 7
  %v7056 = vsel %vm2422, %v7055, %v7033
  %v7057 = vrot.slane %v7035, 6
  %v7058 = vsel %vm2425, %v7057, %v7056
  %v7059 = vrot.slane %v7036, 5
  %v7060 = vsel %vm2428, %v7059, %v7058
  %v7061 = vrot.slane %v7037, 4
  %v7062 = vsel %vm2431, %v7061, %v7060
  %v7063 = vrot.slane %v7038, 3
  %v7064 = vsel %vm2434, %v7063, %v7062
  %v7065 = vrot.slane %v7039, 2
  %v7066 = vsel %vm2437, %v7065, %v7064
  %v7067 = vrot.slane %v7040, 1
  %v7068 = vsel %vm2440, %v7067, %v7066
  %v7069 = vpack.c.b16 %v7068, %v7054
  %7070 = vrot.lane.b32.xlu0 %v6698, 64
  %v7071 = vpop.permute.xlu0 %7070
  %v7074 = vsel %vm2457, %v7069, 0
  %7076 = vmatprep.subr.bf16.mxu0 0
  %7077 = vmatpush1.bf16.msra.mxu0 0
  %7078 = vmatprep.subr.bf16.mxu0 0
  %7079 = vmatpush1.bf16.msra.mxu0 0
  %7080 = vmatprep.subr.bf16.mxu0 0
  %7081 = vmatpush1.bf16.msra.mxu0 0
  %7082 = vmatprep.subr.bf16.mxu0 0
  %7083 = vmatpush1.bf16.msra.mxu0 0
  %7084 = vmatprep.subr.bf16.mxu0 0
  %7085 = vmatpush1.bf16.msra.mxu0 0
  %7086 = vmatprep.subr.bf16.mxu0 0
  %7087 = vmatpush1.bf16.msra.mxu0 0
  %7088 = vmatprep.subr.bf16.mxu0 0
  %7089 = vmatpush1.bf16.msra.mxu0 0
  %7090 = vmatprep.subr.bf16.mxu0 0
  %7091 = vmatpush1.bf16.msra.mxu0 %v7071
  %7092 = vmatprep.subr.bf16.mxu0 0
  %7093 = vmatpush2.bf16.msra.mxu0 0
  %7094 = vmatprep.subr.bf16.mxu0 0
  %7095 = vmatpush2.bf16.msra.mxu0 0
  %7096 = vmatprep.subr.bf16.mxu0 0
  %7097 = vmatpush2.bf16.msra.mxu0 0
  %7098 = vmatprep.subr.bf16.mxu0 0
  %7099 = vmatpush2.bf16.msra.mxu0 0
  %7100 = vmatprep.subr.bf16.mxu0 0
  %7101 = vmatpush2.bf16.msra.mxu0 0
  %7102 = vmatprep.subr.bf16.mxu0 0
  %7103 = vmatpush2.bf16.msra.mxu0 0
  %7104 = vmatprep.subr.bf16.mxu0 0
  %7105 = vmatpush2.bf16.msra.mxu0 0
  %7106 = vmatprep.subr.bf16.mxu0 0
  %7107 = vmatpush2.bf16.msra.mxu0 0
  %7108 = vmatprep.mubr.bf16.mxu0 0
  %7109 = vmatmul.mubr.bf16.gmra.mxu0 %v7074
  %v7110 = vpop.f32.mrf.mxu0
  %v7111 = vadd.f32 0.0, %v7110
  %v7112 = vpop.f32.mrf.mxu0
  %v7113 = vpop.f32.mrf.mxu0
  %v7114 = vadd.f32 0.0, %v7113
  %v7115 = vpop.f32.mrf.mxu0
  %7116 = vdwg.mxu0
  %v7117 = vld [vmem:[#allocation2 + $0x3] sm:$0x1]
  %v7118 = vld [vmem:[#allocation2 + $0x7] sm:$0x1]
  %v7119 = vld [vmem:[#allocation2 + $0xb] sm:$0x1]
  %v7120 = vld [vmem:[#allocation2 + $0xf] sm:$0x1]
  %v7121 = vld [vmem:[#allocation2 + $0x13] sm:$0x1]
  %v7122 = vld [vmem:[#allocation2 + $0x17] sm:$0x1]
  %v7123 = vld [vmem:[#allocation2 + $0x1b] sm:$0x1]
  %v7124 = vld [vmem:[#allocation2 + $0x1f] sm:$0x1]
  %v7125 = vld [vmem:[#allocation2 + $0x23] sm:$0x1]
  %v7126 = vld [vmem:[#allocation2 + $0x27] sm:$0x1]
  %v7127 = vld [vmem:[#allocation2 + $0x2b] sm:$0x1]
  %v7128 = vld [vmem:[#allocation2 + $0x2f] sm:$0x1]
  %v7129 = vld [vmem:[#allocation2 + $0x33] sm:$0x1]
  %v7130 = vld [vmem:[#allocation2 + $0x37] sm:$0x1]
  %v7131 = vld [vmem:[#allocation2 + $0x3b] sm:$0x1]
  %v7132 = vld [vmem:[#allocation2 + $0x3f] sm:$0x1]
  %v7133 = vpack.c.bf16 %v7117, %v7117
  %v7134 = vpack.c.bf16 %v7118, %v7118
  %v7135 = vpack.c.bf16 %v7119, %v7119
  %v7136 = vpack.c.bf16 %v7120, %v7120
  %v7137 = vpack.c.bf16 %v7121, %v7121
  %v7138 = vpack.c.bf16 %v7122, %v7122
  %v7139 = vpack.c.bf16 %v7123, %v7123
  %v7140 = vpack.c.bf16 %v7124, %v7124
  %v7141 = vpack.c.bf16 %v7125, %v7125
  %v7142 = vpack.c.bf16 %v7126, %v7126
  %v7143 = vpack.c.bf16 %v7127, %v7127
  %v7144 = vpack.c.bf16 %v7128, %v7128
  %v7145 = vpack.c.bf16 %v7129, %v7129
  %v7146 = vpack.c.bf16 %v7130, %v7130
  %v7147 = vpack.c.bf16 %v7131, %v7131
  %v7148 = vpack.c.bf16 %v7132, %v7132
  %v7165 = vunpack.c.l.b16 %v7133
  %v7166 = vunpack.c.l.b16 %v7134
  %v7167 = vunpack.c.l.b16 %v7135
  %v7168 = vunpack.c.l.b16 %v7136
  %v7169 = vunpack.c.l.b16 %v7137
  %v7170 = vunpack.c.l.b16 %v7138
  %v7171 = vunpack.c.l.b16 %v7139
  %v7172 = vunpack.c.l.b16 %v7140
  %v7173 = vunpack.c.l.b16 %v7141
  %v7174 = vunpack.c.l.b16 %v7142
  %v7175 = vunpack.c.l.b16 %v7143
  %v7176 = vunpack.c.l.b16 %v7144
  %v7177 = vunpack.c.l.b16 %v7145
  %v7178 = vunpack.c.l.b16 %v7146
  %v7179 = vunpack.c.l.b16 %v7147
  %v7180 = vunpack.c.l.b16 %v7148
  %v7181 = vrot.slane %v7166, 7
  %v7182 = vsel %vm2422, %v7181, %v7165
  %v7183 = vrot.slane %v7167, 6
  %v7184 = vsel %vm2425, %v7183, %v7182
  %v7185 = vrot.slane %v7168, 5
  %v7186 = vsel %vm2428, %v7185, %v7184
  %v7187 = vrot.slane %v7169, 4
  %v7188 = vsel %vm2431, %v7187, %v7186
  %v7189 = vrot.slane %v7170, 3
  %v7190 = vsel %vm2434, %v7189, %v7188
  %v7191 = vrot.slane %v7171, 2
  %v7192 = vsel %vm2437, %v7191, %v7190
  %v7193 = vrot.slane %v7172, 1
  %v7194 = vsel %vm2440, %v7193, %v7192
  %v7195 = vrot.slane %v7174, 7
  %v7196 = vsel %vm2422, %v7195, %v7173
  %v7197 = vrot.slane %v7175, 6
  %v7198 = vsel %vm2425, %v7197, %v7196
  %v7199 = vrot.slane %v7176, 5
  %v7200 = vsel %vm2428, %v7199, %v7198
  %v7201 = vrot.slane %v7177, 4
  %v7202 = vsel %vm2431, %v7201, %v7200
  %v7203 = vrot.slane %v7178, 3
  %v7204 = vsel %vm2434, %v7203, %v7202
  %v7205 = vrot.slane %v7179, 2
  %v7206 = vsel %vm2437, %v7205, %v7204
  %v7207 = vrot.slane %v7180, 1
  %v7208 = vsel %vm2440, %v7207, %v7206
  %v7209 = vpack.c.b16 %v7208, %v7194
  %7210 = vrot.lane.b32.xlu0 %v6698, 32
  %v7211 = vpop.permute.xlu0 %7210
  %v7214 = vsel %vm2457, %v7209, 0
  %7216 = vmatprep.subr.bf16.mxu0 0
  %7217 = vmatpush1.bf16.msra.mxu0 0
  %7218 = vmatprep.subr.bf16.mxu0 0
  %7219 = vmatpush1.bf16.msra.mxu0 0
  %7220 = vmatprep.subr.bf16.mxu0 0
  %7221 = vmatpush1.bf16.msra.mxu0 0
  %7222 = vmatprep.subr.bf16.mxu0 0
  %7223 = vmatpush1.bf16.msra.mxu0 0
  %7224 = vmatprep.subr.bf16.mxu0 0
  %7225 = vmatpush1.bf16.msra.mxu0 0
  %7226 = vmatprep.subr.bf16.mxu0 0
  %7227 = vmatpush1.bf16.msra.mxu0 0
  %7228 = vmatprep.subr.bf16.mxu0 0
  %7229 = vmatpush1.bf16.msra.mxu0 0
  %7230 = vmatprep.subr.bf16.mxu0 0
  %7231 = vmatpush1.bf16.msra.mxu0 %v7211
  %7232 = vmatprep.subr.bf16.mxu0 0
  %7233 = vmatpush2.bf16.msra.mxu0 0
  %7234 = vmatprep.subr.bf16.mxu0 0
  %7235 = vmatpush2.bf16.msra.mxu0 0
  %7236 = vmatprep.subr.bf16.mxu0 0
  %7237 = vmatpush2.bf16.msra.mxu0 0
  %7238 = vmatprep.subr.bf16.mxu0 0
  %7239 = vmatpush2.bf16.msra.mxu0 0
  %7240 = vmatprep.subr.bf16.mxu0 0
  %7241 = vmatpush2.bf16.msra.mxu0 0
  %7242 = vmatprep.subr.bf16.mxu0 0
  %7243 = vmatpush2.bf16.msra.mxu0 0
  %7244 = vmatprep.subr.bf16.mxu0 0
  %7245 = vmatpush2.bf16.msra.mxu0 0
  %7246 = vmatprep.subr.bf16.mxu0 0
  %7247 = vmatpush2.bf16.msra.mxu0 0
  %7248 = vmatprep.mubr.bf16.mxu0 0
  %7249 = vmatmul.mubr.bf16.gmra.mxu0 %v7214
  %v7250 = vpop.f32.mrf.mxu0
  %v7251 = vadd.f32 0.0, %v7250
  %v7252 = vpop.f32.mrf.mxu0
  %v7253 = vpop.f32.mrf.mxu0
  %v7254 = vadd.f32 0.0, %v7253
  %v7255 = vpop.f32.mrf.mxu0
  %7256 = vdwg.mxu0
  %7259 = vrot.lane.b32.xlu0 %v6971, 32
  %v7260 = vpop.permute.xlu0 %7259
  %7261 = vrot.lane.b32.xlu0 %v6974, 32
  %v7262 = vpop.permute.xlu0 %7261
  %7267 = vrot.lane.b32.xlu0 %v7111, 64
  %v7268 = vpop.permute.xlu0 %7267
  %7269 = vrot.lane.b32.xlu0 %v7114, 64
  %v7270 = vpop.permute.xlu0 %7269
  %7275 = vrot.lane.b32.xlu0 %v7251, 96
  %v7276 = vpop.permute.xlu0 %7275
  %7277 = vrot.lane.b32.xlu0 %v7254, 96
  %v7278 = vpop.permute.xlu0 %7277
  %v7281 = vsel %vm2949, %v6830, %v7260
  %v7282 = vsel %vm2949, %v6833, %v7262
  %v7283 = vsel %vm1425, %v7281, %v7268
  %v7284 = vsel %vm1425, %v7282, %v7270
  %v7285 = vsel %vm5096, %v7283, %v7276
  %v7286 = vsel %vm5096, %v7284, %v7278
  %v7287 = vlaneseq
  %v7288 = vshrl.u32 %v7287, 7
  %v7289 = vsub.s32 4, %v7288
  %v7290 = vrot.slane %v5139, %v7289
  %v7291 = vadd.f32 %v7285, %v7290
  %v7292 = vadd.f32 %v7286, %v7290
  %v7293 = vmax.f32 %v7291, 0.0
  %v7294 = vmax.f32 %v7292, 0.0
  %v7295 = vld [vmem:[%s4 + $0x208] sm:$0xf]
  %v7296 = vld [vmem:[%s4 + $0x210] sm:$0xf]
  %v7297 = vld [vmem:[%s4 + $0x218] sm:$0xf]
  %v7298 = vld [vmem:[%s4 + $0x220] sm:$0xf]
  %v7299 = vld [vmem:[%s4 + $0x228] sm:$0xf]
  %v7300 = vld [vmem:[%s4 + $0x230] sm:$0xf]
  %v7301 = vld [vmem:[%s4 + $0x238] sm:$0xf]
  %v7302 = vld [vmem:[%s4 + $0x240] sm:$0xf]
  %v7303 = vld [vmem:[%s4 + $0x248] sm:$0xf]
  %v7304 = vld [vmem:[%s4 + $0x250] sm:$0xf]
  %v7305 = vld [vmem:[%s4 + $0x258] sm:$0xf]
  %v7306 = vld [vmem:[%s4 + $0x260] sm:$0xf]
  %v7307 = vld [vmem:[%s4 + $0x268] sm:$0xf]
  %v7308 = vld [vmem:[%s4 + $0x270] sm:$0xf]
  %v7309 = vld [vmem:[%s4 + $0x278] sm:$0xf]
  %v7310 = vld [vmem:[%s4 + $0x280] sm:$0xf]
  %v7311 = vld [vmem:[%s4 + $0x288] sm:$0xf]
  %v7312 = vld [vmem:[%s4 + $0x290] sm:$0xf]
  %v7313 = vld [vmem:[%s4 + $0x298] sm:$0xf]
  %v7314 = vld [vmem:[%s4 + $0x2a0] sm:$0xf]
  %v7315 = vld [vmem:[%s4 + $0x2a8] sm:$0xf]
  %v7316 = vld [vmem:[%s4 + $0x2b0] sm:$0xf]
  %v7317 = vld [vmem:[%s4 + $0x2b8] sm:$0xf]
  %v7318 = vld [vmem:[%s4 + $0x2c0] sm:$0xf]
  %v7319 = vld [vmem:[%s5 + $0x30] sm:$0xff]
  %v7320 = vpack.c.bf16 %v7294, %v7293
  %v7321 = vlaneseq
  %v7322 = vshrl.u32 %v7321, 7
  %v7323 = vsub.s32 0, %v7322
  %v7324 = vrot.slane %v7319, %v7323
  %v7341 = vunpack.c.l.b16 %v7295
  %v7342 = vunpack.c.l.b16 %v7296
  %v7343 = vunpack.c.l.b16 %v7297
  %v7344 = vunpack.c.l.b16 %v7298
  %v7345 = vunpack.c.l.b16 %v7299
  %v7346 = vunpack.c.l.b16 %v7300
  %v7347 = vunpack.c.l.b16 %v7301
  %v7348 = vunpack.c.l.b16 %v7302
  %v7349 = vunpack.c.l.b16 %v7303
  %v7350 = vunpack.c.l.b16 %v7304
  %v7351 = vunpack.c.l.b16 %v7305
  %v7352 = vunpack.c.l.b16 %v7306
  %v7353 = vunpack.c.l.b16 %v7307
  %v7354 = vunpack.c.l.b16 %v7308
  %v7355 = vunpack.c.l.b16 %v7309
  %v7356 = vunpack.c.l.b16 %v7310
  %v7357 = vpack.c.b16 %v7342, %v7341
  %v7358 = vpack.c.b16 %v7344, %v7343
  %v7359 = vpack.c.b16 %v7346, %v7345
  %v7360 = vpack.c.b16 %v7348, %v7347
  %v7361 = vpack.c.b16 %v7350, %v7349
  %v7362 = vpack.c.b16 %v7352, %v7351
  %v7363 = vpack.c.b16 %v7354, %v7353
  %v7364 = vpack.c.b16 %v7356, %v7355
  %7373 = vmatprep.subr.bf16.mxu0 0
  %7374 = vmatpush1.bf16.msra.mxu0 %v7364
  %7375 = vmatprep.subr.bf16.mxu0 0
  %7376 = vmatpush1.bf16.msra.mxu0 %v7363
  %7377 = vmatprep.subr.bf16.mxu0 0
  %7378 = vmatpush1.bf16.msra.mxu0 %v7362
  %7379 = vmatprep.subr.bf16.mxu0 0
  %7380 = vmatpush1.bf16.msra.mxu0 %v7361
  %7381 = vmatprep.subr.bf16.mxu0 0
  %7382 = vmatpush1.bf16.msra.mxu0 %v7360
  %7383 = vmatprep.subr.bf16.mxu0 0
  %7384 = vmatpush1.bf16.msra.mxu0 %v7359
  %7385 = vmatprep.subr.bf16.mxu0 0
  %7386 = vmatpush1.bf16.msra.mxu0 %v7358
  %7387 = vmatprep.subr.bf16.mxu0 0
  %7388 = vmatpush1.bf16.msra.mxu0 %v7357
  %7389 = vmatprep.subr.bf16.mxu0 0
  %7390 = vmatpush2.bf16.msra.mxu0 0
  %7391 = vmatprep.subr.bf16.mxu0 0
  %7392 = vmatpush2.bf16.msra.mxu0 0
  %7393 = vmatprep.subr.bf16.mxu0 0
  %7394 = vmatpush2.bf16.msra.mxu0 0
  %7395 = vmatprep.subr.bf16.mxu0 0
  %7396 = vmatpush2.bf16.msra.mxu0 0
  %7397 = vmatprep.subr.bf16.mxu0 0
  %7398 = vmatpush2.bf16.msra.mxu0 0
  %7399 = vmatprep.subr.bf16.mxu0 0
  %7400 = vmatpush2.bf16.msra.mxu0 0
  %7401 = vmatprep.subr.bf16.mxu0 0
  %7402 = vmatpush2.bf16.msra.mxu0 0
  %7403 = vmatprep.subr.bf16.mxu0 0
  %7404 = vmatpush2.bf16.msra.mxu0 0
  %7405 = vmatprep.mubr.bf16.mxu0 0
  %7406 = vmatmul.mubr.bf16.gmra.mxu0 %v7320
  %v7407 = vpop.f32.mrf.mxu0
  %v7408 = vadd.f32 %v7324, %v7407
  %v7409 = vpop.f32.mrf.mxu0
  %v7410 = vpop.f32.mrf.mxu0
  %v7411 = vadd.f32 %v7324, %v7410
  %v7412 = vpop.f32.mrf.mxu0
  %7413 = vdwg.mxu0
  %v7414 = vlaneseq
  %v7415 = vshrl.u32 %v7414, 7
  %v7416 = vsub.s32 1, %v7415
  %v7417 = vrot.slane %v7319, %v7416
  %v7418 = vmul.f32 %v59, %v7417
  %v7419 = vmul.f32 %v64, %v7417
  %v7420 = vmul.f32 %v69, %v7417
  %v7421 = vmul.f32 %v74, %v7417
  %v7422 = vmul.f32 %v79, %v7417
  %v7423 = vmul.f32 %v84, %v7417
  %v7424 = vmul.f32 %v89, %v7417
  %v7425 = vmul.f32 %v94, %v7417
  %v7426 = vmul.f32 %v99, %v7417
  %v7427 = vmul.f32 %v104, %v7417
  %v7428 = vmul.f32 %v109, %v7417
  %v7429 = vmul.f32 %v114, %v7417
  %v7430 = vmul.f32 %v119, %v7417
  %v7431 = vmul.f32 %v124, %v7417
  %v7432 = vmul.f32 %v129, %v7417
  %v7433 = vmul.f32 %v134, %v7417
  %v7434 = vmul.f32 %v139, %v7417
  %v7435 = vmul.f32 %v144, %v7417
  %v7436 = vmul.f32 %v149, %v7417
  %v7437 = vmul.f32 %v154, %v7417
  %v7438 = vmul.f32 %v159, %v7417
  %v7439 = vmul.f32 %v164, %v7417
  %v7440 = vmul.f32 %v169, %v7417
  %v7441 = vmul.f32 %v174, %v7417
  %v7442 = vmul.f32 %v179, %v7417
  %v7443 = vmul.f32 %v184, %v7417
  %v7444 = vmul.f32 %v189, %v7417
  %v7445 = vmul.f32 %v194, %v7417
  %v7446 = vmul.f32 %v199, %v7417
  %v7447 = vmul.f32 %v204, %v7417
  %v7448 = vmul.f32 %v209, %v7417
  %v7449 = vmul.f32 %v214, %v7417
  %v7450 = vlaneseq
  %v7451 = vshrl.u32 %v7450, 7
  %v7452 = vsub.s32 2, %v7451
  %v7453 = vrot.slane %v7319, %v7452
  %v7454 = vmul.f32 %v218, %v7453
  %v7455 = vmul.f32 %v222, %v7453
  %v7456 = vmul.f32 %v226, %v7453
  %v7457 = vmul.f32 %v230, %v7453
  %v7458 = vmul.f32 %v234, %v7453
  %v7459 = vmul.f32 %v238, %v7453
  %v7460 = vmul.f32 %v242, %v7453
  %v7461 = vmul.f32 %v246, %v7453
  %v7462 = vmul.f32 %v250, %v7453
  %v7463 = vmul.f32 %v254, %v7453
  %v7464 = vmul.f32 %v258, %v7453
  %v7465 = vmul.f32 %v262, %v7453
  %v7466 = vmul.f32 %v266, %v7453
  %v7467 = vmul.f32 %v270, %v7453
  %v7468 = vmul.f32 %v274, %v7453
  %v7469 = vmul.f32 %v278, %v7453
  %v7470 = vmul.f32 %v282, %v7453
  %v7471 = vmul.f32 %v286, %v7453
  %v7472 = vmul.f32 %v290, %v7453
  %v7473 = vmul.f32 %v294, %v7453
  %v7474 = vmul.f32 %v298, %v7453
  %v7475 = vmul.f32 %v302, %v7453
  %v7476 = vmul.f32 %v306, %v7453
  %v7477 = vmul.f32 %v310, %v7453
  %v7478 = vmul.f32 %v314, %v7453
  %v7479 = vmul.f32 %v318, %v7453
  %v7480 = vmul.f32 %v322, %v7453
  %v7481 = vmul.f32 %v326, %v7453
  %v7482 = vmul.f32 %v330, %v7453
  %v7483 = vmul.f32 %v334, %v7453
  %v7484 = vmul.f32 %v338, %v7453
  %v7485 = vmul.f32 %v342, %v7453
  %v7486 = vadd.f32 %v7418, %v7454
  %v7487 = vadd.f32 %v7419, %v7455
  %v7488 = vadd.f32 %v7420, %v7456
  %v7489 = vadd.f32 %v7421, %v7457
  %v7490 = vadd.f32 %v7422, %v7458
  %v7491 = vadd.f32 %v7423, %v7459
  %v7492 = vadd.f32 %v7424, %v7460
  %v7493 = vadd.f32 %v7425, %v7461
  %v7494 = vadd.f32 %v7426, %v7462
  %v7495 = vadd.f32 %v7427, %v7463
  %v7496 = vadd.f32 %v7428, %v7464
  %v7497 = vadd.f32 %v7429, %v7465
  %v7498 = vadd.f32 %v7430, %v7466
  %v7499 = vadd.f32 %v7431, %v7467
  %v7500 = vadd.f32 %v7432, %v7468
  %v7501 = vadd.f32 %v7433, %v7469
  %v7502 = vadd.f32 %v7434, %v7470
  %v7503 = vadd.f32 %v7435, %v7471
  %v7504 = vadd.f32 %v7436, %v7472
  %v7505 = vadd.f32 %v7437, %v7473
  %v7506 = vadd.f32 %v7438, %v7474
  %v7507 = vadd.f32 %v7439, %v7475
  %v7508 = vadd.f32 %v7440, %v7476
  %v7509 = vadd.f32 %v7441, %v7477
  %v7510 = vadd.f32 %v7442, %v7478
  %v7511 = vadd.f32 %v7443, %v7479
  %v7512 = vadd.f32 %v7444, %v7480
  %v7513 = vadd.f32 %v7445, %v7481
  %v7514 = vadd.f32 %v7446, %v7482
  %v7515 = vadd.f32 %v7447, %v7483
  %v7516 = vadd.f32 %v7448, %v7484
  %v7517 = vadd.f32 %v7449, %v7485
  %v7518 = vlaneseq
  %v7519 = vshrl.u32 %v7518, 7
  %v7520 = vsub.s32 3, %v7519
  %v7521 = vrot.slane %v7319, %v7520
  %v7522 = vmul.f32 %v346, %v7521
  %v7523 = vmul.f32 %v350, %v7521
  %v7524 = vmul.f32 %v354, %v7521
  %v7525 = vmul.f32 %v358, %v7521
  %v7526 = vmul.f32 %v362, %v7521
  %v7527 = vmul.f32 %v366, %v7521
  %v7528 = vmul.f32 %v370, %v7521
  %v7529 = vmul.f32 %v374, %v7521
  %v7530 = vmul.f32 %v378, %v7521
  %v7531 = vmul.f32 %v382, %v7521
  %v7532 = vmul.f32 %v386, %v7521
  %v7533 = vmul.f32 %v390, %v7521
  %v7534 = vmul.f32 %v394, %v7521
  %v7535 = vmul.f32 %v398, %v7521
  %v7536 = vmul.f32 %v402, %v7521
  %v7537 = vmul.f32 %v406, %v7521
  %v7538 = vmul.f32 %v410, %v7521
  %v7539 = vmul.f32 %v414, %v7521
  %v7540 = vmul.f32 %v418, %v7521
  %v7541 = vmul.f32 %v422, %v7521
  %v7542 = vmul.f32 %v426, %v7521
  %v7543 = vmul.f32 %v430, %v7521
  %v7544 = vmul.f32 %v434, %v7521
  %v7545 = vmul.f32 %v438, %v7521
  %v7546 = vmul.f32 %v442, %v7521
  %v7547 = vmul.f32 %v446, %v7521
  %v7548 = vmul.f32 %v450, %v7521
  %v7549 = vmul.f32 %v454, %v7521
  %v7550 = vmul.f32 %v458, %v7521
  %v7551 = vmul.f32 %v462, %v7521
  %v7552 = vmul.f32 %v466, %v7521
  %v7553 = vmul.f32 %v470, %v7521
  %v7554 = vadd.f32 %v7486, %v7522
  %v7555 = vadd.f32 %v7487, %v7523
  %v7556 = vadd.f32 %v7488, %v7524
  %v7557 = vadd.f32 %v7489, %v7525
  %v7558 = vadd.f32 %v7490, %v7526
  %v7559 = vadd.f32 %v7491, %v7527
  %v7560 = vadd.f32 %v7492, %v7528
  %v7561 = vadd.f32 %v7493, %v7529
  %v7562 = vadd.f32 %v7494, %v7530
  %v7563 = vadd.f32 %v7495, %v7531
  %v7564 = vadd.f32 %v7496, %v7532
  %v7565 = vadd.f32 %v7497, %v7533
  %v7566 = vadd.f32 %v7498, %v7534
  %v7567 = vadd.f32 %v7499, %v7535
  %v7568 = vadd.f32 %v7500, %v7536
  %v7569 = vadd.f32 %v7501, %v7537
  %v7570 = vadd.f32 %v7502, %v7538
  %v7571 = vadd.f32 %v7503, %v7539
  %v7572 = vadd.f32 %v7504, %v7540
  %v7573 = vadd.f32 %v7505, %v7541
  %v7574 = vadd.f32 %v7506, %v7542
  %v7575 = vadd.f32 %v7507, %v7543
  %v7576 = vadd.f32 %v7508, %v7544
  %v7577 = vadd.f32 %v7509, %v7545
  %v7578 = vadd.f32 %v7510, %v7546
  %v7579 = vadd.f32 %v7511, %v7547
  %v7580 = vadd.f32 %v7512, %v7548
  %v7581 = vadd.f32 %v7513, %v7549
  %v7582 = vadd.f32 %v7514, %v7550
  %v7583 = vadd.f32 %v7515, %v7551
  %v7584 = vadd.f32 %v7516, %v7552
  %v7585 = vadd.f32 %v7517, %v7553
  %v7588 = vcombine.high %v7408, %v7408
  %v7590 = vunpack.c.l.s4 1966171168
  %v7591 = vunpack.c.0.s8 %v7590
  %v7592 = vlaneseq
  %v7593 = vshrl.u32 %v7592, 7
  %v7594 = vsub.s32 %v7591, %v7593
  %v7595 = vrot.slane %v7408, %v7594
  %v7597 = vunpack.c.l.s4 1966171168
  %v7598 = vunpack.c.0.s8 %v7597
  %v7599 = vlaneseq
  %v7600 = vshrl.u32 %v7599, 7
  %v7601 = vsub.s32 %v7598, %v7600
  %v7602 = vrot.slane %v7588, %v7601
  %v7603 = vcombine.high %v7595, %v7595
  %v7604 = vcombine.high %v7602, %v7602
  %v7606 = vunpack.c.l.s4 1966171168
  %v7607 = vunpack.c.0.s8 %v7606
  %v7608 = vlaneseq
  %v7609 = vshrl.u32 %v7608, 7
  %v7610 = vsub.s32 %v7607, %v7609
  %v7611 = vrot.slane %v7595, %v7610
  %v7613 = vunpack.c.l.s4 1966171168
  %v7614 = vunpack.c.0.s8 %v7613
  %v7615 = vlaneseq
  %v7616 = vshrl.u32 %v7615, 7
  %v7617 = vsub.s32 %v7614, %v7616
  %v7618 = vrot.slane %v7602, %v7617
  %v7620 = vunpack.c.l.s4 1966171168
  %v7621 = vunpack.c.0.s8 %v7620
  %v7622 = vlaneseq
  %v7623 = vshrl.u32 %v7622, 7
  %v7624 = vsub.s32 %v7621, %v7623
  %v7625 = vrot.slane %v7603, %v7624
  %v7627 = vunpack.c.l.s4 1966171168
  %v7628 = vunpack.c.0.s8 %v7627
  %v7629 = vlaneseq
  %v7630 = vshrl.u32 %v7629, 7
  %v7631 = vsub.s32 %v7628, %v7630
  %v7632 = vrot.slane %v7604, %v7631
  %v7633 = vcombine.high %v7611, %v7611
  %v7634 = vcombine.high %v7618, %v7618
  %v7635 = vcombine.high %v7625, %v7625
  %v7636 = vcombine.high %v7632, %v7632
  %v7637 = vcombine.high %v7411, %v7411
  %v7639 = vunpack.c.l.s4 1966171168
  %v7640 = vunpack.c.0.s8 %v7639
  %v7641 = vlaneseq
  %v7642 = vshrl.u32 %v7641, 7
  %v7643 = vsub.s32 %v7640, %v7642
  %v7644 = vrot.slane %v7411, %v7643
  %v7646 = vunpack.c.l.s4 1966171168
  %v7647 = vunpack.c.0.s8 %v7646
  %v7648 = vlaneseq
  %v7649 = vshrl.u32 %v7648, 7
  %v7650 = vsub.s32 %v7647, %v7649
  %v7651 = vrot.slane %v7637, %v7650
  %v7652 = vcombine.high %v7644, %v7644
  %v7653 = vcombine.high %v7651, %v7651
  %v7655 = vunpack.c.l.s4 1966171168
  %v7656 = vunpack.c.0.s8 %v7655
  %v7657 = vlaneseq
  %v7658 = vshrl.u32 %v7657, 7
  %v7659 = vsub.s32 %v7656, %v7658
  %v7660 = vrot.slane %v7644, %v7659
  %v7662 = vunpack.c.l.s4 1966171168
  %v7663 = vunpack.c.0.s8 %v7662
  %v7664 = vlaneseq
  %v7665 = vshrl.u32 %v7664, 7
  %v7666 = vsub.s32 %v7663, %v7665
  %v7667 = vrot.slane %v7651, %v7666
  %v7669 = vunpack.c.l.s4 1966171168
  %v7670 = vunpack.c.0.s8 %v7669
  %v7671 = vlaneseq
  %v7672 = vshrl.u32 %v7671, 7
  %v7673 = vsub.s32 %v7670, %v7672
  %v7674 = vrot.slane %v7652, %v7673
  %v7676 = vunpack.c.l.s4 1966171168
  %v7677 = vunpack.c.0.s8 %v7676
  %v7678 = vlaneseq
  %v7679 = vshrl.u32 %v7678, 7
  %v7680 = vsub.s32 %v7677, %v7679
  %v7681 = vrot.slane %v7653, %v7680
  %v7682 = vcombine.high %v7660, %v7660
  %v7683 = vcombine.high %v7667, %v7667
  %v7684 = vcombine.high %v7674, %v7674
  %v7685 = vcombine.high %v7681, %v7681
  %v7686 = vlaneseq
  %v7687 = vshrl.u32 %v7686, 7
  %v7688 = vsub.s32 0, %v7687
  %v7689 = vrot.slane %v7611, %v7688
  %v7690 = vlaneseq
  %v7691 = vshrl.u32 %v7690, 7
  %v7692 = vsub.s32 0, %v7691
  %v7693 = vrot.slane %v7625, %v7692
  %v7694 = vlaneseq
  %v7695 = vshrl.u32 %v7694, 7
  %v7696 = vsub.s32 0, %v7695
  %v7697 = vrot.slane %v7633, %v7696
  %v7698 = vlaneseq
  %v7699 = vshrl.u32 %v7698, 7
  %v7700 = vsub.s32 0, %v7699
  %v7701 = vrot.slane %v7635, %v7700
  %v7702 = vlaneseq
  %v7703 = vshrl.u32 %v7702, 7
  %v7704 = vsub.s32 0, %v7703
  %v7705 = vrot.slane %v7618, %v7704
  %v7706 = vlaneseq
  %v7707 = vshrl.u32 %v7706, 7
  %v7708 = vsub.s32 0, %v7707
  %v7709 = vrot.slane %v7632, %v7708
  %v7710 = vlaneseq
  %v7711 = vshrl.u32 %v7710, 7
  %v7712 = vsub.s32 0, %v7711
  %v7713 = vrot.slane %v7634, %v7712
  %v7714 = vlaneseq
  %v7715 = vshrl.u32 %v7714, 7
  %v7716 = vsub.s32 0, %v7715
  %v7717 = vrot.slane %v7636, %v7716
  %v7718 = vlaneseq
  %v7719 = vshrl.u32 %v7718, 7
  %v7720 = vsub.s32 0, %v7719
  %v7721 = vrot.slane %v7660, %v7720
  %v7722 = vlaneseq
  %v7723 = vshrl.u32 %v7722, 7
  %v7724 = vsub.s32 0, %v7723
  %v7725 = vrot.slane %v7674, %v7724
  %v7726 = vlaneseq
  %v7727 = vshrl.u32 %v7726, 7
  %v7728 = vsub.s32 0, %v7727
  %v7729 = vrot.slane %v7682, %v7728
  %v7730 = vlaneseq
  %v7731 = vshrl.u32 %v7730, 7
  %v7732 = vsub.s32 0, %v7731
  %v7733 = vrot.slane %v7684, %v7732
  %v7734 = vlaneseq
  %v7735 = vshrl.u32 %v7734, 7
  %v7736 = vsub.s32 0, %v7735
  %v7737 = vrot.slane %v7667, %v7736
  %v7738 = vlaneseq
  %v7739 = vshrl.u32 %v7738, 7
  %v7740 = vsub.s32 0, %v7739
  %v7741 = vrot.slane %v7681, %v7740
  %v7742 = vlaneseq
  %v7743 = vshrl.u32 %v7742, 7
  %v7744 = vsub.s32 0, %v7743
  %v7745 = vrot.slane %v7683, %v7744
  %v7746 = vlaneseq
  %v7747 = vshrl.u32 %v7746, 7
  %v7748 = vsub.s32 0, %v7747
  %v7749 = vrot.slane %v7685, %v7748
  %7766 = vrot.lane.b32.xlu0 %v7408, 64
  %v7767 = vpop.permute.xlu0 %7766
  %7768 = vrot.lane.b32.xlu0 %v7411, 64
  %v7769 = vpop.permute.xlu0 %7768
  %v7772 = vadd.f32 %v7689, %v7767
  %v7773 = vadd.f32 %v7689, %v7769
  %v7774 = vadd.f32 %v7693, %v7767
  %v7775 = vadd.f32 %v7693, %v7769
  %v7776 = vadd.f32 %v7697, %v7767
  %v7777 = vadd.f32 %v7697, %v7769
  %v7778 = vadd.f32 %v7701, %v7767
  %v7779 = vadd.f32 %v7701, %v7769
  %v7780 = vadd.f32 %v7705, %v7767
  %v7781 = vadd.f32 %v7705, %v7769
  %v7782 = vadd.f32 %v7709, %v7767
  %v7783 = vadd.f32 %v7709, %v7769
  %v7784 = vadd.f32 %v7713, %v7767
  %v7785 = vadd.f32 %v7713, %v7769
  %v7786 = vadd.f32 %v7717, %v7767
  %v7787 = vadd.f32 %v7717, %v7769
  %v7788 = vadd.f32 %v7721, %v7767
  %v7789 = vadd.f32 %v7721, %v7769
  %v7790 = vadd.f32 %v7725, %v7767
  %v7791 = vadd.f32 %v7725, %v7769
  %v7792 = vadd.f32 %v7729, %v7767
  %v7793 = vadd.f32 %v7729, %v7769
  %v7794 = vadd.f32 %v7733, %v7767
  %v7795 = vadd.f32 %v7733, %v7769
  %v7796 = vadd.f32 %v7737, %v7767
  %v7797 = vadd.f32 %v7737, %v7769
  %v7798 = vadd.f32 %v7741, %v7767
  %v7799 = vadd.f32 %v7741, %v7769
  %v7800 = vadd.f32 %v7745, %v7767
  %v7801 = vadd.f32 %v7745, %v7769
  %v7802 = vadd.f32 %v7749, %v7767
  %v7803 = vadd.f32 %v7749, %v7769
  %7836 = vrot.lane.b32.xlu0 %v7554, 64
  %v7837 = vpop.permute.xlu0 %7836
  %7838 = vrot.lane.b32.xlu0 %v7555, 64
  %v7839 = vpop.permute.xlu0 %7838
  %7840 = vrot.lane.b32.xlu0 %v7556, 64
  %v7841 = vpop.permute.xlu0 %7840
  %7842 = vrot.lane.b32.xlu0 %v7557, 64
  %v7843 = vpop.permute.xlu0 %7842
  %7844 = vrot.lane.b32.xlu0 %v7558, 64
  %v7845 = vpop.permute.xlu0 %7844
  %7846 = vrot.lane.b32.xlu0 %v7559, 64
  %v7847 = vpop.permute.xlu0 %7846
  %7848 = vrot.lane.b32.xlu0 %v7560, 64
  %v7849 = vpop.permute.xlu0 %7848
  %7850 = vrot.lane.b32.xlu0 %v7561, 64
  %v7851 = vpop.permute.xlu0 %7850
  %7852 = vrot.lane.b32.xlu0 %v7562, 64
  %v7853 = vpop.permute.xlu0 %7852
  %7854 = vrot.lane.b32.xlu0 %v7563, 64
  %v7855 = vpop.permute.xlu0 %7854
  %7856 = vrot.lane.b32.xlu0 %v7564, 64
  %v7857 = vpop.permute.xlu0 %7856
  %7858 = vrot.lane.b32.xlu0 %v7565, 64
  %v7859 = vpop.permute.xlu0 %7858
  %7860 = vrot.lane.b32.xlu0 %v7566, 64
  %v7861 = vpop.permute.xlu0 %7860
  %7862 = vrot.lane.b32.xlu0 %v7567, 64
  %v7863 = vpop.permute.xlu0 %7862
  %7864 = vrot.lane.b32.xlu0 %v7568, 64
  %v7865 = vpop.permute.xlu0 %7864
  %7866 = vrot.lane.b32.xlu0 %v7569, 64
  %v7867 = vpop.permute.xlu0 %7866
  %7868 = vrot.lane.b32.xlu0 %v7570, 64
  %v7869 = vpop.permute.xlu0 %7868
  %7870 = vrot.lane.b32.xlu0 %v7571, 64
  %v7871 = vpop.permute.xlu0 %7870
  %7872 = vrot.lane.b32.xlu0 %v7572, 64
  %v7873 = vpop.permute.xlu0 %7872
  %7874 = vrot.lane.b32.xlu0 %v7573, 64
  %v7875 = vpop.permute.xlu0 %7874
  %7876 = vrot.lane.b32.xlu0 %v7574, 64
  %v7877 = vpop.permute.xlu0 %7876
  %7878 = vrot.lane.b32.xlu0 %v7575, 64
  %v7879 = vpop.permute.xlu0 %7878
  %7880 = vrot.lane.b32.xlu0 %v7576, 64
  %v7881 = vpop.permute.xlu0 %7880
  %7882 = vrot.lane.b32.xlu0 %v7577, 64
  %v7883 = vpop.permute.xlu0 %7882
  %7884 = vrot.lane.b32.xlu0 %v7578, 64
  %v7885 = vpop.permute.xlu0 %7884
  %7886 = vrot.lane.b32.xlu0 %v7579, 64
  %v7887 = vpop.permute.xlu0 %7886
  %7888 = vrot.lane.b32.xlu0 %v7580, 64
  %v7889 = vpop.permute.xlu0 %7888
  %7890 = vrot.lane.b32.xlu0 %v7581, 64
  %v7891 = vpop.permute.xlu0 %7890
  %7892 = vrot.lane.b32.xlu0 %v7582, 64
  %v7893 = vpop.permute.xlu0 %7892
  %7894 = vrot.lane.b32.xlu0 %v7583, 64
  %v7895 = vpop.permute.xlu0 %7894
  %7896 = vrot.lane.b32.xlu0 %v7584, 64
  %v7897 = vpop.permute.xlu0 %7896
  %7898 = vrot.lane.b32.xlu0 %v7585, 64
  %v7899 = vpop.permute.xlu0 %7898
  %v7932 = vadd.f32 %v7772, %v7837
  %v7933 = vadd.f32 %v7773, %v7839
  %v7934 = vadd.f32 %v7774, %v7841
  %v7935 = vadd.f32 %v7775, %v7843
  %v7936 = vadd.f32 %v7776, %v7845
  %v7937 = vadd.f32 %v7777, %v7847
  %v7938 = vadd.f32 %v7778, %v7849
  %v7939 = vadd.f32 %v7779, %v7851
  %v7940 = vadd.f32 %v7780, %v7853
  %v7941 = vadd.f32 %v7781, %v7855
  %v7942 = vadd.f32 %v7782, %v7857
  %v7943 = vadd.f32 %v7783, %v7859
  %v7944 = vadd.f32 %v7784, %v7861
  %v7945 = vadd.f32 %v7785, %v7863
  %v7946 = vadd.f32 %v7786, %v7865
  %v7947 = vadd.f32 %v7787, %v7867
  %v7948 = vadd.f32 %v7788, %v7869
  %v7949 = vadd.f32 %v7789, %v7871
  %v7950 = vadd.f32 %v7790, %v7873
  %v7951 = vadd.f32 %v7791, %v7875
  %v7952 = vadd.f32 %v7792, %v7877
  %v7953 = vadd.f32 %v7793, %v7879
  %v7954 = vadd.f32 %v7794, %v7881
  %v7955 = vadd.f32 %v7795, %v7883
  %v7956 = vadd.f32 %v7796, %v7885
  %v7957 = vadd.f32 %v7797, %v7887
  %v7958 = vadd.f32 %v7798, %v7889
  %v7959 = vadd.f32 %v7799, %v7891
  %v7960 = vadd.f32 %v7800, %v7893
  %v7961 = vadd.f32 %v7801, %v7895
  %v7962 = vadd.f32 %v7802, %v7897
  %v7963 = vadd.f32 %v7803, %v7899
  %v7964 = vmul.f32 %v7932, 0.2
  %v7965 = vmul.f32 %v7933, 0.2
  %v7966 = vmul.f32 %v7934, 0.2
  %v7967 = vmul.f32 %v7935, 0.2
  %v7968 = vmul.f32 %v7936, 0.2
  %v7969 = vmul.f32 %v7937, 0.2
  %v7970 = vmul.f32 %v7938, 0.2
  %v7971 = vmul.f32 %v7939, 0.2
  %v7972 = vmul.f32 %v7940, 0.2
  %v7973 = vmul.f32 %v7941, 0.2
  %v7974 = vmul.f32 %v7942, 0.2
  %v7975 = vmul.f32 %v7943, 0.2
  %v7976 = vmul.f32 %v7944, 0.2
  %v7977 = vmul.f32 %v7945, 0.2
  %v7978 = vmul.f32 %v7946, 0.2
  %v7979 = vmul.f32 %v7947, 0.2
  %v7980 = vmul.f32 %v7948, 0.2
  %v7981 = vmul.f32 %v7949, 0.2
  %v7982 = vmul.f32 %v7950, 0.2
  %v7983 = vmul.f32 %v7951, 0.2
  %v7984 = vmul.f32 %v7952, 0.2
  %v7985 = vmul.f32 %v7953, 0.2
  %v7986 = vmul.f32 %v7954, 0.2
  %v7987 = vmul.f32 %v7955, 0.2
  %v7988 = vmul.f32 %v7956, 0.2
  %v7989 = vmul.f32 %v7957, 0.2
  %v7990 = vmul.f32 %v7958, 0.2
  %v7991 = vmul.f32 %v7959, 0.2
  %v7992 = vmul.f32 %v7960, 0.2
  %v7993 = vmul.f32 %v7961, 0.2
  %v7994 = vmul.f32 %v7962, 0.2
  %v7995 = vmul.f32 %v7963, 0.2
  %v7996 = vmax.f32 %v7932, %v7964
  %v7997 = vmax.f32 %v7933, %v7965
  %v7998 = vmax.f32 %v7934, %v7966
  %v7999 = vmax.f32 %v7935, %v7967
  %v8000 = vmax.f32 %v7936, %v7968
  %v8001 = vmax.f32 %v7937, %v7969
  %v8002 = vmax.f32 %v7938, %v7970
  %v8003 = vmax.f32 %v7939, %v7971
  %v8004 = vmax.f32 %v7940, %v7972
  %v8005 = vmax.f32 %v7941, %v7973
  %v8006 = vmax.f32 %v7942, %v7974
  %v8007 = vmax.f32 %v7943, %v7975
  %v8008 = vmax.f32 %v7944, %v7976
  %v8009 = vmax.f32 %v7945, %v7977
  %v8010 = vmax.f32 %v7946, %v7978
  %v8011 = vmax.f32 %v7947, %v7979
  %v8012 = vmax.f32 %v7948, %v7980
  %v8013 = vmax.f32 %v7949, %v7981
  %v8014 = vmax.f32 %v7950, %v7982
  %v8015 = vmax.f32 %v7951, %v7983
  %v8016 = vmax.f32 %v7952, %v7984
  %v8017 = vmax.f32 %v7953, %v7985
  %v8018 = vmax.f32 %v7954, %v7986
  %v8019 = vmax.f32 %v7955, %v7987
  %v8020 = vmax.f32 %v7956, %v7988
  %v8021 = vmax.f32 %v7957, %v7989
  %v8022 = vmax.f32 %v7958, %v7990
  %v8023 = vmax.f32 %v7959, %v7991
  %v8024 = vmax.f32 %v7960, %v7992
  %v8025 = vmax.f32 %v7961, %v7993
  %v8026 = vmax.f32 %v7962, %v7994
  %v8027 = vmax.f32 %v7963, %v7995
  %v8028 = vpack.c.bf16 %v7997, %v7996
  %v8029 = vpack.c.bf16 %v7999, %v7998
  %v8030 = vpack.c.bf16 %v8001, %v8000
  %v8031 = vpack.c.bf16 %v8003, %v8002
  %v8032 = vpack.c.bf16 %v8005, %v8004
  %v8033 = vpack.c.bf16 %v8007, %v8006
  %v8034 = vpack.c.bf16 %v8009, %v8008
  %v8035 = vpack.c.bf16 %v8011, %v8010
  %v8036 = vpack.c.bf16 %v8013, %v8012
  %v8037 = vpack.c.bf16 %v8015, %v8014
  %v8038 = vpack.c.bf16 %v8017, %v8016
  %v8039 = vpack.c.bf16 %v8019, %v8018
  %v8040 = vpack.c.bf16 %v8021, %v8020
  %v8041 = vpack.c.bf16 %v8023, %v8022
  %v8042 = vpack.c.bf16 %v8025, %v8024
  %v8043 = vpack.c.bf16 %v8027, %v8026
  %8060 = vrot.lane.b32.xlu0 %v8028, 64
  %v8061 = vpop.permute.xlu0 %8060
  %8062 = vrot.lane.b32.xlu0 %v8029, 64
  %v8063 = vpop.permute.xlu0 %8062
  %8064 = vrot.lane.b32.xlu0 %v8030, 64
  %v8065 = vpop.permute.xlu0 %8064
  %8066 = vrot.lane.b32.xlu0 %v8031, 64
  %v8067 = vpop.permute.xlu0 %8066
  %8068 = vrot.lane.b32.xlu0 %v8032, 64
  %v8069 = vpop.permute.xlu0 %8068
  %8070 = vrot.lane.b32.xlu0 %v8033, 64
  %v8071 = vpop.permute.xlu0 %8070
  %8072 = vrot.lane.b32.xlu0 %v8034, 64
  %v8073 = vpop.permute.xlu0 %8072
  %8074 = vrot.lane.b32.xlu0 %v8035, 64
  %v8075 = vpop.permute.xlu0 %8074
  %8076 = vrot.lane.b32.xlu0 %v8036, 64
  %v8077 = vpop.permute.xlu0 %8076
  %8078 = vrot.lane.b32.xlu0 %v8037, 64
  %v8079 = vpop.permute.xlu0 %8078
  %8080 = vrot.lane.b32.xlu0 %v8038, 64
  %v8081 = vpop.permute.xlu0 %8080
  %8082 = vrot.lane.b32.xlu0 %v8039, 64
  %v8083 = vpop.permute.xlu0 %8082
  %8084 = vrot.lane.b32.xlu0 %v8040, 64
  %v8085 = vpop.permute.xlu0 %8084
  %8086 = vrot.lane.b32.xlu0 %v8041, 64
  %v8087 = vpop.permute.xlu0 %8086
  %8088 = vrot.lane.b32.xlu0 %v8042, 64
  %v8089 = vpop.permute.xlu0 %8088
  %8090 = vrot.lane.b32.xlu0 %v8043, 64
  %v8091 = vpop.permute.xlu0 %8090
  %v8100 = vunpack.c.l.b16 %v7311
  %v8101 = vunpack.c.l.b16 %v7312
  %v8102 = vunpack.c.l.b16 %v7313
  %v8103 = vunpack.c.l.b16 %v7314
  %v8104 = vunpack.c.l.b16 %v7315
  %v8105 = vunpack.c.l.b16 %v7316
  %v8106 = vunpack.c.l.b16 %v7317
  %v8107 = vunpack.c.l.b16 %v7318
  %v8108 = vpack.c.b16 %v8101, %v8100
  %v8109 = vpack.c.b16 %v8103, %v8102
  %v8110 = vpack.c.b16 %v8105, %v8104
  %v8111 = vpack.c.b16 %v8107, %v8106
  %v8117 = vsel %vm1425, %v8061, 0
  %v8120 = vsel %vm1425, %v8063, 0
  %v8123 = vsel %vm1425, %v8065, 0
  %v8126 = vsel %vm1425, %v8067, 0
  %v8129 = vsel %vm1425, %v8069, 0
  %v8132 = vsel %vm1425, %v8071, 0
  %v8135 = vsel %vm1425, %v8073, 0
  %v8138 = vsel %vm1425, %v8075, 0
  %v8141 = vsel %vm1425, %v8077, 0
  %v8144 = vsel %vm1425, %v8079, 0
  %v8147 = vsel %vm1425, %v8081, 0
  %v8150 = vsel %vm1425, %v8083, 0
  %v8153 = vsel %vm1425, %v8085, 0
  %v8156 = vsel %vm1425, %v8087, 0
  %v8159 = vsel %vm1425, %v8089, 0
  %v8162 = vsel %vm1425, %v8091, 0
  %8164 = vmatprep.subr.bf16.mxu0 0
  %8165 = vmatpush1.bf16.msra.mxu0 0
  %8166 = vmatprep.subr.bf16.mxu0 0
  %8167 = vmatpush1.bf16.msra.mxu0 0
  %8168 = vmatprep.subr.bf16.mxu0 0
  %8169 = vmatpush1.bf16.msra.mxu0 0
  %8170 = vmatprep.subr.bf16.mxu0 0
  %8171 = vmatpush1.bf16.msra.mxu0 0
  %8172 = vmatprep.subr.bf16.mxu0 0
  %8173 = vmatpush1.bf16.msra.mxu0 %v8111
  %8174 = vmatprep.subr.bf16.mxu0 0
  %8175 = vmatpush1.bf16.msra.mxu0 %v8110
  %8176 = vmatprep.subr.bf16.mxu0 0
  %8177 = vmatpush1.bf16.msra.mxu0 %v8109
  %8178 = vmatprep.subr.bf16.mxu0 0
  %8179 = vmatpush1.bf16.msra.mxu0 %v8108
  %8180 = vmatprep.subr.bf16.mxu0 0
  %8181 = vmatpush2.bf16.msra.mxu0 0
  %8182 = vmatprep.subr.bf16.mxu0 0
  %8183 = vmatpush2.bf16.msra.mxu0 0
  %8184 = vmatprep.subr.bf16.mxu0 0
  %8185 = vmatpush2.bf16.msra.mxu0 0
  %8186 = vmatprep.subr.bf16.mxu0 0
  %8187 = vmatpush2.bf16.msra.mxu0 0
  %8188 = vmatprep.subr.bf16.mxu0 0
  %8189 = vmatpush2.bf16.msra.mxu0 0
  %8190 = vmatprep.subr.bf16.mxu0 0
  %8191 = vmatpush2.bf16.msra.mxu0 0
  %8192 = vmatprep.subr.bf16.mxu0 0
  %8193 = vmatpush2.bf16.msra.mxu0 0
  %8194 = vmatprep.subr.bf16.mxu0 0
  %8195 = vmatpush2.bf16.msra.mxu0 0
  %8196 = vmatprep.mubr.bf16.mxu0 0
  %8197 = vmatmul.mubr.bf16.gmra.mxu0 %v8117
  %v8198 = vpop.f32.mrf.mxu0
  %v8199 = vadd.f32 0.0, %v8198
  %v8200 = vpop.f32.mrf.mxu0
  %v8201 = vpop.f32.mrf.mxu0
  %v8202 = vadd.f32 0.0, %v8201
  %v8203 = vpop.f32.mrf.mxu0
  %8204 = vmatprep.mubr.bf16.mxu0 0
  %8205 = vmatmul.mubr.bf16.gmra.mxu0 %v8120
  %v8206 = vpop.f32.mrf.mxu0
  %v8207 = vadd.f32 0.0, %v8206
  %v8208 = vpop.f32.mrf.mxu0
  %v8209 = vpop.f32.mrf.mxu0
  %v8210 = vadd.f32 0.0, %v8209
  %v8211 = vpop.f32.mrf.mxu0
  %8212 = vmatprep.mubr.bf16.mxu0 0
  %8213 = vmatmul.mubr.bf16.gmra.mxu0 %v8123
  %v8214 = vpop.f32.mrf.mxu0
  %v8215 = vadd.f32 0.0, %v8214
  %v8216 = vpop.f32.mrf.mxu0
  %v8217 = vpop.f32.mrf.mxu0
  %v8218 = vadd.f32 0.0, %v8217
  %v8219 = vpop.f32.mrf.mxu0
  %8220 = vmatprep.mubr.bf16.mxu0 0
  %8221 = vmatmul.mubr.bf16.gmra.mxu0 %v8126
  %v8222 = vpop.f32.mrf.mxu0
  %v8223 = vadd.f32 0.0, %v8222
  %v8224 = vpop.f32.mrf.mxu0
  %v8225 = vpop.f32.mrf.mxu0
  %v8226 = vadd.f32 0.0, %v8225
  %v8227 = vpop.f32.mrf.mxu0
  %8228 = vmatprep.mubr.bf16.mxu0 0
  %8229 = vmatmul.mubr.bf16.gmra.mxu0 %v8129
  %v8230 = vpop.f32.mrf.mxu0
  %v8231 = vadd.f32 0.0, %v8230
  %v8232 = vpop.f32.mrf.mxu0
  %v8233 = vpop.f32.mrf.mxu0
  %v8234 = vadd.f32 0.0, %v8233
  %v8235 = vpop.f32.mrf.mxu0
  %8236 = vmatprep.mubr.bf16.mxu0 0
  %8237 = vmatmul.mubr.bf16.gmra.mxu0 %v8132
  %v8238 = vpop.f32.mrf.mxu0
  %v8239 = vadd.f32 0.0, %v8238
  %v8240 = vpop.f32.mrf.mxu0
  %v8241 = vpop.f32.mrf.mxu0
  %v8242 = vadd.f32 0.0, %v8241
  %v8243 = vpop.f32.mrf.mxu0
  %8244 = vmatprep.mubr.bf16.mxu0 0
  %8245 = vmatmul.mubr.bf16.gmra.mxu0 %v8135
  %v8246 = vpop.f32.mrf.mxu0
  %v8247 = vadd.f32 0.0, %v8246
  %v8248 = vpop.f32.mrf.mxu0
  %v8249 = vpop.f32.mrf.mxu0
  %v8250 = vadd.f32 0.0, %v8249
  %v8251 = vpop.f32.mrf.mxu0
  %8252 = vmatprep.mubr.bf16.mxu0 0
  %8253 = vmatmul.mubr.bf16.gmra.mxu0 %v8138
  %v8254 = vpop.f32.mrf.mxu0
  %v8255 = vadd.f32 0.0, %v8254
  %v8256 = vpop.f32.mrf.mxu0
  %v8257 = vpop.f32.mrf.mxu0
  %v8258 = vadd.f32 0.0, %v8257
  %v8259 = vpop.f32.mrf.mxu0
  %8260 = vmatprep.mubr.bf16.mxu0 0
  %8261 = vmatmul.mubr.bf16.gmra.mxu0 %v8141
  %v8262 = vpop.f32.mrf.mxu0
  %v8263 = vadd.f32 0.0, %v8262
  %v8264 = vpop.f32.mrf.mxu0
  %v8265 = vpop.f32.mrf.mxu0
  %v8266 = vadd.f32 0.0, %v8265
  %v8267 = vpop.f32.mrf.mxu0
  %8268 = vmatprep.mubr.bf16.mxu0 0
  %8269 = vmatmul.mubr.bf16.gmra.mxu0 %v8144
  %v8270 = vpop.f32.mrf.mxu0
  %v8271 = vadd.f32 0.0, %v8270
  %v8272 = vpop.f32.mrf.mxu0
  %v8273 = vpop.f32.mrf.mxu0
  %v8274 = vadd.f32 0.0, %v8273
  %v8275 = vpop.f32.mrf.mxu0
  %8276 = vmatprep.mubr.bf16.mxu0 0
  %8277 = vmatmul.mubr.bf16.gmra.mxu0 %v8147
  %v8278 = vpop.f32.mrf.mxu0
  %v8279 = vadd.f32 0.0, %v8278
  %v8280 = vpop.f32.mrf.mxu0
  %v8281 = vpop.f32.mrf.mxu0
  %v8282 = vadd.f32 0.0, %v8281
  %v8283 = vpop.f32.mrf.mxu0
  %8284 = vmatprep.mubr.bf16.mxu0 0
  %8285 = vmatmul.mubr.bf16.gmra.mxu0 %v8150
  %v8286 = vpop.f32.mrf.mxu0
  %v8287 = vadd.f32 0.0, %v8286
  %v8288 = vpop.f32.mrf.mxu0
  %v8289 = vpop.f32.mrf.mxu0
  %v8290 = vadd.f32 0.0, %v8289
  %v8291 = vpop.f32.mrf.mxu0
  %8292 = vmatprep.mubr.bf16.mxu0 0
  %8293 = vmatmul.mubr.bf16.gmra.mxu0 %v8153
  %v8294 = vpop.f32.mrf.mxu0
  %v8295 = vadd.f32 0.0, %v8294
  %v8296 = vpop.f32.mrf.mxu0
  %v8297 = vpop.f32.mrf.mxu0
  %v8298 = vadd.f32 0.0, %v8297
  %v8299 = vpop.f32.mrf.mxu0
  %8300 = vmatprep.mubr.bf16.mxu0 0
  %8301 = vmatmul.mubr.bf16.gmra.mxu0 %v8156
  %v8302 = vpop.f32.mrf.mxu0
  %v8303 = vadd.f32 0.0, %v8302
  %v8304 = vpop.f32.mrf.mxu0
  %v8305 = vpop.f32.mrf.mxu0
  %v8306 = vadd.f32 0.0, %v8305
  %v8307 = vpop.f32.mrf.mxu0
  %8308 = vmatprep.mubr.bf16.mxu0 0
  %8309 = vmatmul.mubr.bf16.gmra.mxu0 %v8159
  %v8310 = vpop.f32.mrf.mxu0
  %v8311 = vadd.f32 0.0, %v8310
  %v8312 = vpop.f32.mrf.mxu0
  %v8313 = vpop.f32.mrf.mxu0
  %v8314 = vadd.f32 0.0, %v8313
  %v8315 = vpop.f32.mrf.mxu0
  %8316 = vmatprep.mubr.bf16.mxu0 0
  %8317 = vmatmul.mubr.bf16.gmra.mxu0 %v8162
  %v8318 = vpop.f32.mrf.mxu0
  %v8319 = vadd.f32 0.0, %v8318
  %v8320 = vpop.f32.mrf.mxu0
  %v8321 = vpop.f32.mrf.mxu0
  %v8322 = vadd.f32 0.0, %v8321
  %v8323 = vpop.f32.mrf.mxu0
  %8324 = vdwg.mxu0
  %8325 = vxpose.xlu0.b32.start [1/16] %v8199, 128
  %8326 = vxpose.xlu0.b32.cont [2/16] %v8202, 128
  %8327 = vxpose.xlu0.b32.cont [3/16] 0.0, 128
  %8328 = vxpose.xlu0.b32.cont [4/16] 0.0, 128
  %8329 = vxpose.xlu0.b32.cont [5/16] 0.0, 128
  %8330 = vxpose.xlu0.b32.cont [6/16] 0.0, 128
  %8331 = vxpose.xlu0.b32.cont [7/16] 0.0, 128
  %8332 = vxpose.xlu0.b32.cont [8/16] 0.0, 128
  %8333 = vxpose.xlu0.b32.cont [9/16] 0.0, 128
  %8334 = vxpose.xlu0.b32.cont [10/16] 0.0, 128
  %8335 = vxpose.xlu0.b32.cont [11/16] 0.0, 128
  %8336 = vxpose.xlu0.b32.cont [12/16] 0.0, 128
  %8337 = vxpose.xlu0.b32.cont [13/16] 0.0, 128
  %8338 = vxpose.xlu0.b32.cont [14/16] 0.0, 128
  %8339 = vxpose.xlu0.b32.cont [15/16] 0.0, 128
  %8340 = vxpose.xlu0.b32.end [16/16] 0.0, 128
  %v8341 = vpop.trf.xlu0
  %v8342 = vpop.trf.xlu0
  %v8343 = vpop.trf.xlu0
  %v8344 = vpop.trf.xlu0
  %v8345 = vpop.trf.xlu0
  %v8346 = vpop.trf.xlu0
  %v8347 = vpop.trf.xlu0
  %v8348 = vpop.trf.xlu0
  %v8349 = vpop.trf.xlu0
  %v8350 = vpop.trf.xlu0
  %v8351 = vpop.trf.xlu0
  %v8352 = vpop.trf.xlu0
  %v8353 = vpop.trf.xlu0
  %v8354 = vpop.trf.xlu0
  %v8355 = vpop.trf.xlu0
  %v8356 = vpop.trf.xlu0
  %8357 = vxpose.xlu0.b32.start [1/16] %v8207, 128
  %8358 = vxpose.xlu0.b32.cont [2/16] %v8210, 128
  %8359 = vxpose.xlu0.b32.cont [3/16] 0.0, 128
  %8360 = vxpose.xlu0.b32.cont [4/16] 0.0, 128
  %8361 = vxpose.xlu0.b32.cont [5/16] 0.0, 128
  %8362 = vxpose.xlu0.b32.cont [6/16] 0.0, 128
  %8363 = vxpose.xlu0.b32.cont [7/16] 0.0, 128
  %8364 = vxpose.xlu0.b32.cont [8/16] 0.0, 128
  %8365 = vxpose.xlu0.b32.cont [9/16] 0.0, 128
  %8366 = vxpose.xlu0.b32.cont [10/16] 0.0, 128
  %8367 = vxpose.xlu0.b32.cont [11/16] 0.0, 128
  %8368 = vxpose.xlu0.b32.cont [12/16] 0.0, 128
  %8369 = vxpose.xlu0.b32.cont [13/16] 0.0, 128
  %8370 = vxpose.xlu0.b32.cont [14/16] 0.0, 128
  %8371 = vxpose.xlu0.b32.cont [15/16] 0.0, 128
  %8372 = vxpose.xlu0.b32.end [16/16] 0.0, 128
  %v8373 = vpop.trf.xlu0
  %v8374 = vpop.trf.xlu0
  %v8375 = vpop.trf.xlu0
  %v8376 = vpop.trf.xlu0
  %v8377 = vpop.trf.xlu0
  %v8378 = vpop.trf.xlu0
  %v8379 = vpop.trf.xlu0
  %v8380 = vpop.trf.xlu0
  %v8381 = vpop.trf.xlu0
  %v8382 = vpop.trf.xlu0
  %v8383 = vpop.trf.xlu0
  %v8384 = vpop.trf.xlu0
  %v8385 = vpop.trf.xlu0
  %v8386 = vpop.trf.xlu0
  %v8387 = vpop.trf.xlu0
  %v8388 = vpop.trf.xlu0
  %8389 = vxpose.xlu0.b32.start [1/16] %v8215, 128
  %8390 = vxpose.xlu0.b32.cont [2/16] %v8218, 128
  %8391 = vxpose.xlu0.b32.cont [3/16] 0.0, 128
  %8392 = vxpose.xlu0.b32.cont [4/16] 0.0, 128
  %8393 = vxpose.xlu0.b32.cont [5/16] 0.0, 128
  %8394 = vxpose.xlu0.b32.cont [6/16] 0.0, 128
  %8395 = vxpose.xlu0.b32.cont [7/16] 0.0, 128
  %8396 = vxpose.xlu0.b32.cont [8/16] 0.0, 128
  %8397 = vxpose.xlu0.b32.cont [9/16] 0.0, 128
  %8398 = vxpose.xlu0.b32.cont [10/16] 0.0, 128
  %8399 = vxpose.xlu0.b32.cont [11/16] 0.0, 128
  %8400 = vxpose.xlu0.b32.cont [12/16] 0.0, 128
  %8401 = vxpose.xlu0.b32.cont [13/16] 0.0, 128
  %8402 = vxpose.xlu0.b32.cont [14/16] 0.0, 128
  %8403 = vxpose.xlu0.b32.cont [15/16] 0.0, 128
  %8404 = vxpose.xlu0.b32.end [16/16] 0.0, 128
  %v8405 = vpop.trf.xlu0
  %v8406 = vpop.trf.xlu0
  %v8407 = vpop.trf.xlu0
  %v8408 = vpop.trf.xlu0
  %v8409 = vpop.trf.xlu0
  %v8410 = vpop.trf.xlu0
  %v8411 = vpop.trf.xlu0
  %v8412 = vpop.trf.xlu0
  %v8413 = vpop.trf.xlu0
  %v8414 = vpop.trf.xlu0
  %v8415 = vpop.trf.xlu0
  %v8416 = vpop.trf.xlu0
  %v8417 = vpop.trf.xlu0
  %v8418 = vpop.trf.xlu0
  %v8419 = vpop.trf.xlu0
  %v8420 = vpop.trf.xlu0
  %8421 = vxpose.xlu0.b32.start [1/16] %v8223, 128
  %8422 = vxpose.xlu0.b32.cont [2/16] %v8226, 128
  %8423 = vxpose.xlu0.b32.cont [3/16] 0.0, 128
  %8424 = vxpose.xlu0.b32.cont [4/16] 0.0, 128
  %8425 = vxpose.xlu0.b32.cont [5/16] 0.0, 128
  %8426 = vxpose.xlu0.b32.cont [6/16] 0.0, 128
  %8427 = vxpose.xlu0.b32.cont [7/16] 0.0, 128
  %8428 = vxpose.xlu0.b32.cont [8/16] 0.0, 128
  %8429 = vxpose.xlu0.b32.cont [9/16] 0.0, 128
  %8430 = vxpose.xlu0.b32.cont [10/16] 0.0, 128
  %8431 = vxpose.xlu0.b32.cont [11/16] 0.0, 128
  %8432 = vxpose.xlu0.b32.cont [12/16] 0.0, 128
  %8433 = vxpose.xlu0.b32.cont [13/16] 0.0, 128
  %8434 = vxpose.xlu0.b32.cont [14/16] 0.0, 128
  %8435 = vxpose.xlu0.b32.cont [15/16] 0.0, 128
  %8436 = vxpose.xlu0.b32.end [16/16] 0.0, 128
  %v8437 = vpop.trf.xlu0
  %v8438 = vpop.trf.xlu0
  %v8439 = vpop.trf.xlu0
  %v8440 = vpop.trf.xlu0
  %v8441 = vpop.trf.xlu0
  %v8442 = vpop.trf.xlu0
  %v8443 = vpop.trf.xlu0
  %v8444 = vpop.trf.xlu0
  %v8445 = vpop.trf.xlu0
  %v8446 = vpop.trf.xlu0
  %v8447 = vpop.trf.xlu0
  %v8448 = vpop.trf.xlu0
  %v8449 = vpop.trf.xlu0
  %v8450 = vpop.trf.xlu0
  %v8451 = vpop.trf.xlu0
  %v8452 = vpop.trf.xlu0
  %8453 = vxpose.xlu0.b32.start [1/16] %v8231, 128
  %8454 = vxpose.xlu0.b32.cont [2/16] %v8234, 128
  %8455 = vxpose.xlu0.b32.cont [3/16] 0.0, 128
  %8456 = vxpose.xlu0.b32.cont [4/16] 0.0, 128
  %8457 = vxpose.xlu0.b32.cont [5/16] 0.0, 128
  %8458 = vxpose.xlu0.b32.cont [6/16] 0.0, 128
  %8459 = vxpose.xlu0.b32.cont [7/16] 0.0, 128
  %8460 = vxpose.xlu0.b32.cont [8/16] 0.0, 128
  %8461 = vxpose.xlu0.b32.cont [9/16] 0.0, 128
  %8462 = vxpose.xlu0.b32.cont [10/16] 0.0, 128
  %8463 = vxpose.xlu0.b32.cont [11/16] 0.0, 128
  %8464 = vxpose.xlu0.b32.cont [12/16] 0.0, 128
  %8465 = vxpose.xlu0.b32.cont [13/16] 0.0, 128
  %8466 = vxpose.xlu0.b32.cont [14/16] 0.0, 128
  %8467 = vxpose.xlu0.b32.cont [15/16] 0.0, 128
  %8468 = vxpose.xlu0.b32.end [16/16] 0.0, 128
  %v8469 = vpop.trf.xlu0
  %v8470 = vpop.trf.xlu0
  %v8471 = vpop.trf.xlu0
  %v8472 = vpop.trf.xlu0
  %v8473 = vpop.trf.xlu0
  %v8474 = vpop.trf.xlu0
  %v8475 = vpop.trf.xlu0
  %v8476 = vpop.trf.xlu0
  %v8477 = vpop.trf.xlu0
  %v8478 = vpop.trf.xlu0
  %v8479 = vpop.trf.xlu0
  %v8480 = vpop.trf.xlu0
  %v8481 = vpop.trf.xlu0
  %v8482 = vpop.trf.xlu0
  %v8483 = vpop.trf.xlu0
  %v8484 = vpop.trf.xlu0
  %8485 = vxpose.xlu0.b32.start [1/16] %v8239, 128
  %8486 = vxpose.xlu0.b32.cont [2/16] %v8242, 128
  %8487 = vxpose.xlu0.b32.cont [3/16] 0.0, 128
  %8488 = vxpose.xlu0.b32.cont [4/16] 0.0, 128
  %8489 = vxpose.xlu0.b32.cont [5/16] 0.0, 128
  %8490 = vxpose.xlu0.b32.cont [6/16] 0.0, 128
  %8491 = vxpose.xlu0.b32.cont [7/16] 0.0, 128
  %8492 = vxpose.xlu0.b32.cont [8/16] 0.0, 128
  %8493 = vxpose.xlu0.b32.cont [9/16] 0.0, 128
  %8494 = vxpose.xlu0.b32.cont [10/16] 0.0, 128
  %8495 = vxpose.xlu0.b32.cont [11/16] 0.0, 128
  %8496 = vxpose.xlu0.b32.cont [12/16] 0.0, 128
  %8497 = vxpose.xlu0.b32.cont [13/16] 0.0, 128
  %8498 = vxpose.xlu0.b32.cont [14/16] 0.0, 128
  %8499 = vxpose.xlu0.b32.cont [15/16] 0.0, 128
  %8500 = vxpose.xlu0.b32.end [16/16] 0.0, 128
  %v8501 = vpop.trf.xlu0
  %v8502 = vpop.trf.xlu0
  %v8503 = vpop.trf.xlu0
  %v8504 = vpop.trf.xlu0
  %v8505 = vpop.trf.xlu0
  %v8506 = vpop.trf.xlu0
  %v8507 = vpop.trf.xlu0
  %v8508 = vpop.trf.xlu0
  %v8509 = vpop.trf.xlu0
  %v8510 = vpop.trf.xlu0
  %v8511 = vpop.trf.xlu0
  %v8512 = vpop.trf.xlu0
  %v8513 = vpop.trf.xlu0
  %v8514 = vpop.trf.xlu0
  %v8515 = vpop.trf.xlu0
  %v8516 = vpop.trf.xlu0
  %8517 = vxpose.xlu0.b32.start [1/16] %v8247, 128
  %8518 = vxpose.xlu0.b32.cont [2/16] %v8250, 128
  %8519 = vxpose.xlu0.b32.cont [3/16] 0.0, 128
  %8520 = vxpose.xlu0.b32.cont [4/16] 0.0, 128
  %8521 = vxpose.xlu0.b32.cont [5/16] 0.0, 128
  %8522 = vxpose.xlu0.b32.cont [6/16] 0.0, 128
  %8523 = vxpose.xlu0.b32.cont [7/16] 0.0, 128
  %8524 = vxpose.xlu0.b32.cont [8/16] 0.0, 128
  %8525 = vxpose.xlu0.b32.cont [9/16] 0.0, 128
  %8526 = vxpose.xlu0.b32.cont [10/16] 0.0, 128
  %8527 = vxpose.xlu0.b32.cont [11/16] 0.0, 128
  %8528 = vxpose.xlu0.b32.cont [12/16] 0.0, 128
  %8529 = vxpose.xlu0.b32.cont [13/16] 0.0, 128
  %8530 = vxpose.xlu0.b32.cont [14/16] 0.0, 128
  %8531 = vxpose.xlu0.b32.cont [15/16] 0.0, 128
  %8532 = vxpose.xlu0.b32.end [16/16] 0.0, 128
  %v8533 = vpop.trf.xlu0
  %v8534 = vpop.trf.xlu0
  %v8535 = vpop.trf.xlu0
  %v8536 = vpop.trf.xlu0
  %v8537 = vpop.trf.xlu0
  %v8538 = vpop.trf.xlu0
  %v8539 = vpop.trf.xlu0
  %v8540 = vpop.trf.xlu0
  %v8541 = vpop.trf.xlu0
  %v8542 = vpop.trf.xlu0
  %v8543 = vpop.trf.xlu0
  %v8544 = vpop.trf.xlu0
  %v8545 = vpop.trf.xlu0
  %v8546 = vpop.trf.xlu0
  %v8547 = vpop.trf.xlu0
  %v8548 = vpop.trf.xlu0
  %8549 = vxpose.xlu0.b32.start [1/16] %v8255, 128
  %8550 = vxpose.xlu0.b32.cont [2/16] %v8258, 128
  %8551 = vxpose.xlu0.b32.cont [3/16] 0.0, 128
  %8552 = vxpose.xlu0.b32.cont [4/16] 0.0, 128
  %8553 = vxpose.xlu0.b32.cont [5/16] 0.0, 128
  %8554 = vxpose.xlu0.b32.cont [6/16] 0.0, 128
  %8555 = vxpose.xlu0.b32.cont [7/16] 0.0, 128
  %8556 = vxpose.xlu0.b32.cont [8/16] 0.0, 128
  %8557 = vxpose.xlu0.b32.cont [9/16] 0.0, 128
  %8558 = vxpose.xlu0.b32.cont [10/16] 0.0, 128
  %8559 = vxpose.xlu0.b32.cont [11/16] 0.0, 128
  %8560 = vxpose.xlu0.b32.cont [12/16] 0.0, 128
  %8561 = vxpose.xlu0.b32.cont [13/16] 0.0, 128
  %8562 = vxpose.xlu0.b32.cont [14/16] 0.0, 128
  %8563 = vxpose.xlu0.b32.cont [15/16] 0.0, 128
  %8564 = vxpose.xlu0.b32.end [16/16] 0.0, 128
  %v8565 = vpop.trf.xlu0
  %v8566 = vpop.trf.xlu0
  %v8567 = vpop.trf.xlu0
  %v8568 = vpop.trf.xlu0
  %v8569 = vpop.trf.xlu0
  %v8570 = vpop.trf.xlu0
  %v8571 = vpop.trf.xlu0
  %v8572 = vpop.trf.xlu0
  %v8573 = vpop.trf.xlu0
  %v8574 = vpop.trf.xlu0
  %v8575 = vpop.trf.xlu0
  %v8576 = vpop.trf.xlu0
  %v8577 = vpop.trf.xlu0
  %v8578 = vpop.trf.xlu0
  %v8579 = vpop.trf.xlu0
  %v8580 = vpop.trf.xlu0
  %8581 = vxpose.xlu0.b32.start [1/16] %v8263, 128
  %8582 = vxpose.xlu0.b32.cont [2/16] %v8266, 128
  %8583 = vxpose.xlu0.b32.cont [3/16] 0.0, 128
  %8584 = vxpose.xlu0.b32.cont [4/16] 0.0, 128
  %8585 = vxpose.xlu0.b32.cont [5/16] 0.0, 128
  %8586 = vxpose.xlu0.b32.cont [6/16] 0.0, 128
  %8587 = vxpose.xlu0.b32.cont [7/16] 0.0, 128
  %8588 = vxpose.xlu0.b32.cont [8/16] 0.0, 128
  %8589 = vxpose.xlu0.b32.cont [9/16] 0.0, 128
  %8590 = vxpose.xlu0.b32.cont [10/16] 0.0, 128
  %8591 = vxpose.xlu0.b32.cont [11/16] 0.0, 128
  %8592 = vxpose.xlu0.b32.cont [12/16] 0.0, 128
  %8593 = vxpose.xlu0.b32.cont [13/16] 0.0, 128
  %8594 = vxpose.xlu0.b32.cont [14/16] 0.0, 128
  %8595 = vxpose.xlu0.b32.cont [15/16] 0.0, 128
  %8596 = vxpose.xlu0.b32.end [16/16] 0.0, 128
  %v8597 = vpop.trf.xlu0
  %v8598 = vpop.trf.xlu0
  %v8599 = vpop.trf.xlu0
  %v8600 = vpop.trf.xlu0
  %v8601 = vpop.trf.xlu0
  %v8602 = vpop.trf.xlu0
  %v8603 = vpop.trf.xlu0
  %v8604 = vpop.trf.xlu0
  %v8605 = vpop.trf.xlu0
  %v8606 = vpop.trf.xlu0
  %v8607 = vpop.trf.xlu0
  %v8608 = vpop.trf.xlu0
  %v8609 = vpop.trf.xlu0
  %v8610 = vpop.trf.xlu0
  %v8611 = vpop.trf.xlu0
  %v8612 = vpop.trf.xlu0
  %8613 = vxpose.xlu0.b32.start [1/16] %v8271, 128
  %8614 = vxpose.xlu0.b32.cont [2/16] %v8274, 128
  %8615 = vxpose.xlu0.b32.cont [3/16] 0.0, 128
  %8616 = vxpose.xlu0.b32.cont [4/16] 0.0, 128
  %8617 = vxpose.xlu0.b32.cont [5/16] 0.0, 128
  %8618 = vxpose.xlu0.b32.cont [6/16] 0.0, 128
  %8619 = vxpose.xlu0.b32.cont [7/16] 0.0, 128
  %8620 = vxpose.xlu0.b32.cont [8/16] 0.0, 128
  %8621 = vxpose.xlu0.b32.cont [9/16] 0.0, 128
  %8622 = vxpose.xlu0.b32.cont [10/16] 0.0, 128
  %8623 = vxpose.xlu0.b32.cont [11/16] 0.0, 128
  %8624 = vxpose.xlu0.b32.cont [12/16] 0.0, 128
  %8625 = vxpose.xlu0.b32.cont [13/16] 0.0, 128
  %8626 = vxpose.xlu0.b32.cont [14/16] 0.0, 128
  %8627 = vxpose.xlu0.b32.cont [15/16] 0.0, 128
  %8628 = vxpose.xlu0.b32.end [16/16] 0.0, 128
  %v8629 = vpop.trf.xlu0
  %v8630 = vpop.trf.xlu0
  %v8631 = vpop.trf.xlu0
  %v8632 = vpop.trf.xlu0
  %v8633 = vpop.trf.xlu0
  %v8634 = vpop.trf.xlu0
  %v8635 = vpop.trf.xlu0
  %v8636 = vpop.trf.xlu0
  %v8637 = vpop.trf.xlu0
  %v8638 = vpop.trf.xlu0
  %v8639 = vpop.trf.xlu0
  %v8640 = vpop.trf.xlu0
  %v8641 = vpop.trf.xlu0
  %v8642 = vpop.trf.xlu0
  %v8643 = vpop.trf.xlu0
  %v8644 = vpop.trf.xlu0
  %8645 = vxpose.xlu0.b32.start [1/16] %v8279, 128
  %8646 = vxpose.xlu0.b32.cont [2/16] %v8282, 128
  %8647 = vxpose.xlu0.b32.cont [3/16] 0.0, 128
  %8648 = vxpose.xlu0.b32.cont [4/16] 0.0, 128
  %8649 = vxpose.xlu0.b32.cont [5/16] 0.0, 128
  %8650 = vxpose.xlu0.b32.cont [6/16] 0.0, 128
  %8651 = vxpose.xlu0.b32.cont [7/16] 0.0, 128
  %8652 = vxpose.xlu0.b32.cont [8/16] 0.0, 128
  %8653 = vxpose.xlu0.b32.cont [9/16] 0.0, 128
  %8654 = vxpose.xlu0.b32.cont [10/16] 0.0, 128
  %8655 = vxpose.xlu0.b32.cont [11/16] 0.0, 128
  %8656 = vxpose.xlu0.b32.cont [12/16] 0.0, 128
  %8657 = vxpose.xlu0.b32.cont [13/16] 0.0, 128
  %8658 = vxpose.xlu0.b32.cont [14/16] 0.0, 128
  %8659 = vxpose.xlu0.b32.cont [15/16] 0.0, 128
  %8660 = vxpose.xlu0.b32.end [16/16] 0.0, 128
  %v8661 = vpop.trf.xlu0
  %v8662 = vpop.trf.xlu0
  %v8663 = vpop.trf.xlu0
  %v8664 = vpop.trf.xlu0
  %v8665 = vpop.trf.xlu0
  %v8666 = vpop.trf.xlu0
  %v8667 = vpop.trf.xlu0
  %v8668 = vpop.trf.xlu0
  %v8669 = vpop.trf.xlu0
  %v8670 = vpop.trf.xlu0
  %v8671 = vpop.trf.xlu0
  %v8672 = vpop.trf.xlu0
  %v8673 = vpop.trf.xlu0
  %v8674 = vpop.trf.xlu0
  %v8675 = vpop.trf.xlu0
  %v8676 = vpop.trf.xlu0
  %8677 = vxpose.xlu0.b32.start [1/16] %v8287, 128
  %8678 = vxpose.xlu0.b32.cont [2/16] %v8290, 128
  %8679 = vxpose.xlu0.b32.cont [3/16] 0.0, 128
  %8680 = vxpose.xlu0.b32.cont [4/16] 0.0, 128
  %8681 = vxpose.xlu0.b32.cont [5/16] 0.0, 128
  %8682 = vxpose.xlu0.b32.cont [6/16] 0.0, 128
  %8683 = vxpose.xlu0.b32.cont [7/16] 0.0, 128
  %8684 = vxpose.xlu0.b32.cont [8/16] 0.0, 128
  %8685 = vxpose.xlu0.b32.cont [9/16] 0.0, 128
  %8686 = vxpose.xlu0.b32.cont [10/16] 0.0, 128
  %8687 = vxpose.xlu0.b32.cont [11/16] 0.0, 128
  %8688 = vxpose.xlu0.b32.cont [12/16] 0.0, 128
  %8689 = vxpose.xlu0.b32.cont [13/16] 0.0, 128
  %8690 = vxpose.xlu0.b32.cont [14/16] 0.0, 128
  %8691 = vxpose.xlu0.b32.cont [15/16] 0.0, 128
  %8692 = vxpose.xlu0.b32.end [16/16] 0.0, 128
  %v8693 = vpop.trf.xlu0
  %v8694 = vpop.trf.xlu0
  %v8695 = vpop.trf.xlu0
  %v8696 = vpop.trf.xlu0
  %v8697 = vpop.trf.xlu0
  %v8698 = vpop.trf.xlu0
  %v8699 = vpop.trf.xlu0
  %v8700 = vpop.trf.xlu0
  %v8701 = vpop.trf.xlu0
  %v8702 = vpop.trf.xlu0
  %v8703 = vpop.trf.xlu0
  %v8704 = vpop.trf.xlu0
  %v8705 = vpop.trf.xlu0
  %v8706 = vpop.trf.xlu0
  %v8707 = vpop.trf.xlu0
  %v8708 = vpop.trf.xlu0
  %8709 = vxpose.xlu0.b32.start [1/16] %v8295, 128
  %8710 = vxpose.xlu0.b32.cont [2/16] %v8298, 128
  %8711 = vxpose.xlu0.b32.cont [3/16] 0.0, 128
  %8712 = vxpose.xlu0.b32.cont [4/16] 0.0, 128
  %8713 = vxpose.xlu0.b32.cont [5/16] 0.0, 128
  %8714 = vxpose.xlu0.b32.cont [6/16] 0.0, 128
  %8715 = vxpose.xlu0.b32.cont [7/16] 0.0, 128
  %8716 = vxpose.xlu0.b32.cont [8/16] 0.0, 128
  %8717 = vxpose.xlu0.b32.cont [9/16] 0.0, 128
  %8718 = vxpose.xlu0.b32.cont [10/16] 0.0, 128
  %8719 = vxpose.xlu0.b32.cont [11/16] 0.0, 128
  %8720 = vxpose.xlu0.b32.cont [12/16] 0.0, 128
  %8721 = vxpose.xlu0.b32.cont [13/16] 0.0, 128
  %8722 = vxpose.xlu0.b32.cont [14/16] 0.0, 128
  %8723 = vxpose.xlu0.b32.cont [15/16] 0.0, 128
  %8724 = vxpose.xlu0.b32.end [16/16] 0.0, 128
  %v8725 = vpop.trf.xlu0
  %v8726 = vpop.trf.xlu0
  %v8727 = vpop.trf.xlu0
  %v8728 = vpop.trf.xlu0
  %v8729 = vpop.trf.xlu0
  %v8730 = vpop.trf.xlu0
  %v8731 = vpop.trf.xlu0
  %v8732 = vpop.trf.xlu0
  %v8733 = vpop.trf.xlu0
  %v8734 = vpop.trf.xlu0
  %v8735 = vpop.trf.xlu0
  %v8736 = vpop.trf.xlu0
  %v8737 = vpop.trf.xlu0
  %v8738 = vpop.trf.xlu0
  %v8739 = vpop.trf.xlu0
  %v8740 = vpop.trf.xlu0
  %8741 = vxpose.xlu0.b32.start [1/16] %v8303, 128
  %8742 = vxpose.xlu0.b32.cont [2/16] %v8306, 128
  %8743 = vxpose.xlu0.b32.cont [3/16] 0.0, 128
  %8744 = vxpose.xlu0.b32.cont [4/16] 0.0, 128
  %8745 = vxpose.xlu0.b32.cont [5/16] 0.0, 128
  %8746 = vxpose.xlu0.b32.cont [6/16] 0.0, 128
  %8747 = vxpose.xlu0.b32.cont [7/16] 0.0, 128
  %8748 = vxpose.xlu0.b32.cont [8/16] 0.0, 128
  %8749 = vxpose.xlu0.b32.cont [9/16] 0.0, 128
  %8750 = vxpose.xlu0.b32.cont [10/16] 0.0, 128
  %8751 = vxpose.xlu0.b32.cont [11/16] 0.0, 128
  %8752 = vxpose.xlu0.b32.cont [12/16] 0.0, 128
  %8753 = vxpose.xlu0.b32.cont [13/16] 0.0, 128
  %8754 = vxpose.xlu0.b32.cont [14/16] 0.0, 128
  %8755 = vxpose.xlu0.b32.cont [15/16] 0.0, 128
  %8756 = vxpose.xlu0.b32.end [16/16] 0.0, 128
  %v8757 = vpop.trf.xlu0
  %v8758 = vpop.trf.xlu0
  %v8759 = vpop.trf.xlu0
  %v8760 = vpop.trf.xlu0
  %v8761 = vpop.trf.xlu0
  %v8762 = vpop.trf.xlu0
  %v8763 = vpop.trf.xlu0
  %v8764 = vpop.trf.xlu0
  %v8765 = vpop.trf.xlu0
  %v8766 = vpop.trf.xlu0
  %v8767 = vpop.trf.xlu0
  %v8768 = vpop.trf.xlu0
  %v8769 = vpop.trf.xlu0
  %v8770 = vpop.trf.xlu0
  %v8771 = vpop.trf.xlu0
  %v8772 = vpop.trf.xlu0
  %8773 = vxpose.xlu0.b32.start [1/16] %v8311, 128
  %8774 = vxpose.xlu0.b32.cont [2/16] %v8314, 128
  %8775 = vxpose.xlu0.b32.cont [3/16] 0.0, 128
  %8776 = vxpose.xlu0.b32.cont [4/16] 0.0, 128
  %8777 = vxpose.xlu0.b32.cont [5/16] 0.0, 128
  %8778 = vxpose.xlu0.b32.cont [6/16] 0.0, 128
  %8779 = vxpose.xlu0.b32.cont [7/16] 0.0, 128
  %8780 = vxpose.xlu0.b32.cont [8/16] 0.0, 128
  %8781 = vxpose.xlu0.b32.cont [9/16] 0.0, 128
  %8782 = vxpose.xlu0.b32.cont [10/16] 0.0, 128
  %8783 = vxpose.xlu0.b32.cont [11/16] 0.0, 128
  %8784 = vxpose.xlu0.b32.cont [12/16] 0.0, 128
  %8785 = vxpose.xlu0.b32.cont [13/16] 0.0, 128
  %8786 = vxpose.xlu0.b32.cont [14/16] 0.0, 128
  %8787 = vxpose.xlu0.b32.cont [15/16] 0.0, 128
  %8788 = vxpose.xlu0.b32.end [16/16] 0.0, 128
  %v8789 = vpop.trf.xlu0
  %v8790 = vpop.trf.xlu0
  %v8791 = vpop.trf.xlu0
  %v8792 = vpop.trf.xlu0
  %v8793 = vpop.trf.xlu0
  %v8794 = vpop.trf.xlu0
  %v8795 = vpop.trf.xlu0
  %v8796 = vpop.trf.xlu0
  %v8797 = vpop.trf.xlu0
  %v8798 = vpop.trf.xlu0
  %v8799 = vpop.trf.xlu0
  %v8800 = vpop.trf.xlu0
  %v8801 = vpop.trf.xlu0
  %v8802 = vpop.trf.xlu0
  %v8803 = vpop.trf.xlu0
  %v8804 = vpop.trf.xlu0
  %8805 = vxpose.xlu0.b32.start [1/16] %v8319, 128
  %8806 = vxpose.xlu0.b32.cont [2/16] %v8322, 128
  %8807 = vxpose.xlu0.b32.cont [3/16] 0.0, 128
  %8808 = vxpose.xlu0.b32.cont [4/16] 0.0, 128
  %8809 = vxpose.xlu0.b32.cont [5/16] 0.0, 128
  %8810 = vxpose.xlu0.b32.cont [6/16] 0.0, 128
  %8811 = vxpose.xlu0.b32.cont [7/16] 0.0, 128
  %8812 = vxpose.xlu0.b32.cont [8/16] 0.0, 128
  %8813 = vxpose.xlu0.b32.cont [9/16] 0.0, 128
  %8814 = vxpose.xlu0.b32.cont [10/16] 0.0, 128
  %8815 = vxpose.xlu0.b32.cont [11/16] 0.0, 128
  %8816 = vxpose.xlu0.b32.cont [12/16] 0.0, 128
  %8817 = vxpose.xlu0.b32.cont [13/16] 0.0, 128
  %8818 = vxpose.xlu0.b32.cont [14/16] 0.0, 128
  %8819 = vxpose.xlu0.b32.cont [15/16] 0.0, 128
  %8820 = vxpose.xlu0.b32.end [16/16] 0.0, 128
  %v8821 = vpop.trf.xlu0
  %v8822 = vpop.trf.xlu0
  %v8823 = vpop.trf.xlu0
  %v8824 = vpop.trf.xlu0
  %v8825 = vpop.trf.xlu0
  %v8826 = vpop.trf.xlu0
  %v8827 = vpop.trf.xlu0
  %v8828 = vpop.trf.xlu0
  %v8829 = vpop.trf.xlu0
  %v8830 = vpop.trf.xlu0
  %v8831 = vpop.trf.xlu0
  %v8832 = vpop.trf.xlu0
  %v8833 = vpop.trf.xlu0
  %v8834 = vpop.trf.xlu0
  %v8835 = vpop.trf.xlu0
  %v8836 = vpop.trf.xlu0
  %v8837 = vadd.f32 %v8341, %v577
  %v8838 = vadd.f32 %v8373, %v581
  %v8839 = vadd.f32 %v8405, %v585
  %v8840 = vadd.f32 %v8437, %v589
  %v8841 = vadd.f32 %v8469, %v593
  %v8842 = vadd.f32 %v8501, %v597
  %v8843 = vadd.f32 %v8533, %v601
  %v8844 = vadd.f32 %v8565, %v605
  %v8845 = vadd.f32 %v8597, %v609
  %v8846 = vadd.f32 %v8629, %v613
  %v8847 = vadd.f32 %v8661, %v617
  %v8848 = vadd.f32 %v8693, %v621
  %v8849 = vadd.f32 %v8725, %v625
  %v8850 = vadd.f32 %v8757, %v629
  %v8851 = vadd.f32 %v8789, %v633
  %v8852 = vadd.f32 %v8821, %v637
  %v8853 = vsel %vm2163, %v8837, -inf
  %8854 = vmax.xlane.f32.xlu0 %v8853
  %v8855 = vpop.xlane.xlu0 %8854
  %v8856 = vsel %vm2163, %v8838, -inf
  %8857 = vmax.xlane.f32.xlu0 %v8856
  %v8858 = vpop.xlane.xlu0 %8857
  %v8859 = vsel %vm2163, %v8839, -inf
  %8860 = vmax.xlane.f32.xlu0 %v8859
  %v8861 = vpop.xlane.xlu0 %8860
  %v8862 = vsel %vm2163, %v8840, -inf
  %8863 = vmax.xlane.f32.xlu0 %v8862
  %v8864 = vpop.xlane.xlu0 %8863
  %v8865 = vsel %vm2163, %v8841, -inf
  %8866 = vmax.xlane.f32.xlu0 %v8865
  %v8867 = vpop.xlane.xlu0 %8866
  %v8868 = vsel %vm2163, %v8842, -inf
  %8869 = vmax.xlane.f32.xlu0 %v8868
  %v8870 = vpop.xlane.xlu0 %8869
  %v8871 = vsel %vm2163, %v8843, -inf
  %8872 = vmax.xlane.f32.xlu0 %v8871
  %v8873 = vpop.xlane.xlu0 %8872
  %v8874 = vsel %vm2163, %v8844, -inf
  %8875 = vmax.xlane.f32.xlu0 %v8874
  %v8876 = vpop.xlane.xlu0 %8875
  %v8877 = vsel %vm2163, %v8845, -inf
  %8878 = vmax.xlane.f32.xlu0 %v8877
  %v8879 = vpop.xlane.xlu0 %8878
  %v8880 = vsel %vm2163, %v8846, -inf
  %8881 = vmax.xlane.f32.xlu0 %v8880
  %v8882 = vpop.xlane.xlu0 %8881
  %v8883 = vsel %vm2163, %v8847, -inf
  %8884 = vmax.xlane.f32.xlu0 %v8883
  %v8885 = vpop.xlane.xlu0 %8884
  %v8886 = vsel %vm2163, %v8848, -inf
  %8887 = vmax.xlane.f32.xlu0 %v8886
  %v8888 = vpop.xlane.xlu0 %8887
  %v8889 = vsel %vm2163, %v8849, -inf
  %8890 = vmax.xlane.f32.xlu0 %v8889
  %v8891 = vpop.xlane.xlu0 %8890
  %v8892 = vsel %vm2163, %v8850, -inf
  %8893 = vmax.xlane.f32.xlu0 %v8892
  %v8894 = vpop.xlane.xlu0 %8893
  %v8895 = vsel %vm2163, %v8851, -inf
  %8896 = vmax.xlane.f32.xlu0 %v8895
  %v8897 = vpop.xlane.xlu0 %8896
  %v8898 = vsel %vm2163, %v8852, -inf
  %8899 = vmax.xlane.f32.xlu0 %v8898
  %v8900 = vpop.xlane.xlu0 %8899
  %v8901 = vsub.f32 %v8837, %v8855
  %v8902 = vsub.f32 %v8838, %v8858
  %v8903 = vsub.f32 %v8839, %v8861
  %v8904 = vsub.f32 %v8840, %v8864
  %v8905 = vsub.f32 %v8841, %v8867
  %v8906 = vsub.f32 %v8842, %v8870
  %v8907 = vsub.f32 %v8843, %v8873
  %v8908 = vsub.f32 %v8844, %v8876
  %v8909 = vsub.f32 %v8845, %v8879
  %v8910 = vsub.f32 %v8846, %v8882
  %v8911 = vsub.f32 %v8847, %v8885
  %v8912 = vsub.f32 %v8848, %v8888
  %v8913 = vsub.f32 %v8849, %v8891
  %v8914 = vsub.f32 %v8850, %v8894
  %v8915 = vsub.f32 %v8851, %v8897
  %v8916 = vsub.f32 %v8852, %v8900
  %v8917 = vmul.f32 %v8901, 1.442695
  %v8918 = vpow.pop %v8917
  %v8919 = vmul.f32 %v8902, 1.442695
  %v8920 = vpow.pop %v8919
  %v8921 = vmul.f32 %v8903, 1.442695
  %v8922 = vpow.pop %v8921
  %v8923 = vmul.f32 %v8904, 1.442695
  %v8924 = vpow.pop %v8923
  %v8925 = vmul.f32 %v8905, 1.442695
  %v8926 = vpow.pop %v8925
  %v8927 = vmul.f32 %v8906, 1.442695
  %v8928 = vpow.pop %v8927
  %v8929 = vmul.f32 %v8907, 1.442695
  %v8930 = vpow.pop %v8929
  %v8931 = vmul.f32 %v8908, 1.442695
  %v8932 = vpow.pop %v8931
  %v8933 = vmul.f32 %v8909, 1.442695
  %v8934 = vpow.pop %v8933
  %v8935 = vmul.f32 %v8910, 1.442695
  %v8936 = vpow.pop %v8935
  %v8937 = vmul.f32 %v8911, 1.442695
  %v8938 = vpow.pop %v8937
  %v8939 = vmul.f32 %v8912, 1.442695
  %v8940 = vpow.pop %v8939
  %v8941 = vmul.f32 %v8913, 1.442695
  %v8942 = vpow.pop %v8941
  %v8943 = vmul.f32 %v8914, 1.442695
  %v8944 = vpow.pop %v8943
  %v8945 = vmul.f32 %v8915, 1.442695
  %v8946 = vpow.pop %v8945
  %v8947 = vmul.f32 %v8916, 1.442695
  %v8948 = vpow.pop %v8947
  %v8949 = vsel %vm2163, %v8918, 0.0
  %8950 = vadd.xlane.f32.xlu0 %v8949
  %v8951 = vpop.xlane.xlu0 %8950
  %v8952 = vsel %vm2163, %v8920, 0.0
  %8953 = vadd.xlane.f32.xlu0 %v8952
  %v8954 = vpop.xlane.xlu0 %8953
  %v8955 = vsel %vm2163, %v8922, 0.0
  %8956 = vadd.xlane.f32.xlu0 %v8955
  %v8957 = vpop.xlane.xlu0 %8956
  %v8958 = vsel %vm2163, %v8924, 0.0
  %8959 = vadd.xlane.f32.xlu0 %v8958
  %v8960 = vpop.xlane.xlu0 %8959
  %v8961 = vsel %vm2163, %v8926, 0.0
  %8962 = vadd.xlane.f32.xlu0 %v8961
  %v8963 = vpop.xlane.xlu0 %8962
  %v8964 = vsel %vm2163, %v8928, 0.0
  %8965 = vadd.xlane.f32.xlu0 %v8964
  %v8966 = vpop.xlane.xlu0 %8965
  %v8967 = vsel %vm2163, %v8930, 0.0
  %8968 = vadd.xlane.f32.xlu0 %v8967
  %v8969 = vpop.xlane.xlu0 %8968
  %v8970 = vsel %vm2163, %v8932, 0.0
  %8971 = vadd.xlane.f32.xlu0 %v8970
  %v8972 = vpop.xlane.xlu0 %8971
  %v8973 = vsel %vm2163, %v8934, 0.0
  %8974 = vadd.xlane.f32.xlu0 %v8973
  %v8975 = vpop.xlane.xlu0 %8974
  %v8976 = vsel %vm2163, %v8936, 0.0
  %8977 = vadd.xlane.f32.xlu0 %v8976
  %v8978 = vpop.xlane.xlu0 %8977
  %v8979 = vsel %vm2163, %v8938, 0.0
  %8980 = vadd.xlane.f32.xlu0 %v8979
  %v8981 = vpop.xlane.xlu0 %8980
  %v8982 = vsel %vm2163, %v8940, 0.0
  %8983 = vadd.xlane.f32.xlu0 %v8982
  %v8984 = vpop.xlane.xlu0 %8983
  %v8985 = vsel %vm2163, %v8942, 0.0
  %8986 = vadd.xlane.f32.xlu0 %v8985
  %v8987 = vpop.xlane.xlu0 %8986
  %v8988 = vsel %vm2163, %v8944, 0.0
  %8989 = vadd.xlane.f32.xlu0 %v8988
  %v8990 = vpop.xlane.xlu0 %8989
  %v8991 = vsel %vm2163, %v8946, 0.0
  %8992 = vadd.xlane.f32.xlu0 %v8991
  %v8993 = vpop.xlane.xlu0 %8992
  %v8994 = vsel %vm2163, %v8948, 0.0
  %8995 = vadd.xlane.f32.xlu0 %v8994
  %v8996 = vpop.xlane.xlu0 %8995
  %v8997 = vrcp.pop %v8951
  %v8998 = vrcp.pop %v8954
  %v8999 = vrcp.pop %v8957
  %v9000 = vrcp.pop %v8960
  %v9001 = vrcp.pop %v8963
  %v9002 = vrcp.pop %v8966
  %v9003 = vrcp.pop %v8969
  %v9004 = vrcp.pop %v8972
  %v9005 = vrcp.pop %v8975
  %v9006 = vrcp.pop %v8978
  %v9007 = vrcp.pop %v8981
  %v9008 = vrcp.pop %v8984
  %v9009 = vrcp.pop %v8987
  %v9010 = vrcp.pop %v8990
  %v9011 = vrcp.pop %v8993
  %v9012 = vrcp.pop %v8996
  %v9013 = vmul.f32 %v8918, %v8997
  %v9014 = vmul.f32 %v8920, %v8998
  %v9015 = vmul.f32 %v8922, %v8999
  %v9016 = vmul.f32 %v8924, %v9000
  %v9017 = vmul.f32 %v8926, %v9001
  %v9018 = vmul.f32 %v8928, %v9002
  %v9019 = vmul.f32 %v8930, %v9003
  %v9020 = vmul.f32 %v8932, %v9004
  %v9021 = vmul.f32 %v8934, %v9005
  %v9022 = vmul.f32 %v8936, %v9006
  %v9023 = vmul.f32 %v8938, %v9007
  %v9024 = vmul.f32 %v8940, %v9008
  %v9025 = vmul.f32 %v8942, %v9009
  %v9026 = vmul.f32 %v8944, %v9010
  %v9027 = vmul.f32 %v8946, %v9011
  %v9028 = vmul.f32 %v8948, %v9012
  %9029 = vst.msk [vmem:[#allocation2] sm:$0xf] %vm2163, %v9013
  %9030 = vst.msk [vmem:[#allocation2 + $0x4] sm:$0xf] %vm2163, %v9014
  %9031 = vst.msk [vmem:[#allocation2 + $0x8] sm:$0xf] %vm2163, %v9015
  %9032 = vst.msk [vmem:[#allocation2 + $0xc] sm:$0xf] %vm2163, %v9016
  %9033 = vst.msk [vmem:[#allocation2 + $0x10] sm:$0xf] %vm2163, %v9017
  %9034 = vst.msk [vmem:[#allocation2 + $0x14] sm:$0xf] %vm2163, %v9018
  %9035 = vst.msk [vmem:[#allocation2 + $0x18] sm:$0xf] %vm2163, %v9019
  %9036 = vst.msk [vmem:[#allocation2 + $0x1c] sm:$0xf] %vm2163, %v9020
  %9037 = vst.msk [vmem:[#allocation2 + $0x20] sm:$0xf] %vm2163, %v9021
  %9038 = vst.msk [vmem:[#allocation2 + $0x24] sm:$0xf] %vm2163, %v9022
  %9039 = vst.msk [vmem:[#allocation2 + $0x28] sm:$0xf] %vm2163, %v9023
  %9040 = vst.msk [vmem:[#allocation2 + $0x2c] sm:$0xf] %vm2163, %v9024
  %9041 = vst.msk [vmem:[#allocation2 + $0x30] sm:$0xf] %vm2163, %v9025
  %9042 = vst.msk [vmem:[#allocation2 + $0x34] sm:$0xf] %vm2163, %v9026
  %9043 = vst.msk [vmem:[#allocation2 + $0x38] sm:$0xf] %vm2163, %v9027
  %9044 = vst.msk [vmem:[#allocation2 + $0x3c] sm:$0xf] %vm2163, %v9028
  %v9045 = vpack.c.bf16 %v7411, %v7408
  %v9046 = vld [vmem:[#allocation2] sm:$0x1]
  %v9047 = vld [vmem:[#allocation2 + $0x4] sm:$0x1]
  %v9048 = vld [vmem:[#allocation2 + $0x8] sm:$0x1]
  %v9049 = vld [vmem:[#allocation2 + $0xc] sm:$0x1]
  %v9050 = vld [vmem:[#allocation2 + $0x10] sm:$0x1]
  %v9051 = vld [vmem:[#allocation2 + $0x14] sm:$0x1]
  %v9052 = vld [vmem:[#allocation2 + $0x18] sm:$0x1]
  %v9053 = vld [vmem:[#allocation2 + $0x1c] sm:$0x1]
  %v9054 = vld [vmem:[#allocation2 + $0x20] sm:$0x1]
  %v9055 = vld [vmem:[#allocation2 + $0x24] sm:$0x1]
  %v9056 = vld [vmem:[#allocation2 + $0x28] sm:$0x1]
  %v9057 = vld [vmem:[#allocation2 + $0x2c] sm:$0x1]
  %v9058 = vld [vmem:[#allocation2 + $0x30] sm:$0x1]
  %v9059 = vld [vmem:[#allocation2 + $0x34] sm:$0x1]
  %v9060 = vld [vmem:[#allocation2 + $0x38] sm:$0x1]
  %v9061 = vld [vmem:[#allocation2 + $0x3c] sm:$0x1]
  %v9062 = vpack.c.bf16 %v9046, %v9046
  %v9063 = vpack.c.bf16 %v9047, %v9047
  %v9064 = vpack.c.bf16 %v9048, %v9048
  %v9065 = vpack.c.bf16 %v9049, %v9049
  %v9066 = vpack.c.bf16 %v9050, %v9050
  %v9067 = vpack.c.bf16 %v9051, %v9051
  %v9068 = vpack.c.bf16 %v9052, %v9052
  %v9069 = vpack.c.bf16 %v9053, %v9053
  %v9070 = vpack.c.bf16 %v9054, %v9054
  %v9071 = vpack.c.bf16 %v9055, %v9055
  %v9072 = vpack.c.bf16 %v9056, %v9056
  %v9073 = vpack.c.bf16 %v9057, %v9057
  %v9074 = vpack.c.bf16 %v9058, %v9058
  %v9075 = vpack.c.bf16 %v9059, %v9059
  %v9076 = vpack.c.bf16 %v9060, %v9060
  %v9077 = vpack.c.bf16 %v9061, %v9061
  %v9094 = vunpack.c.l.b16 %v9062
  %v9095 = vunpack.c.l.b16 %v9063
  %v9096 = vunpack.c.l.b16 %v9064
  %v9097 = vunpack.c.l.b16 %v9065
  %v9098 = vunpack.c.l.b16 %v9066
  %v9099 = vunpack.c.l.b16 %v9067
  %v9100 = vunpack.c.l.b16 %v9068
  %v9101 = vunpack.c.l.b16 %v9069
  %v9102 = vunpack.c.l.b16 %v9070
  %v9103 = vunpack.c.l.b16 %v9071
  %v9104 = vunpack.c.l.b16 %v9072
  %v9105 = vunpack.c.l.b16 %v9073
  %v9106 = vunpack.c.l.b16 %v9074
  %v9107 = vunpack.c.l.b16 %v9075
  %v9108 = vunpack.c.l.b16 %v9076
  %v9109 = vunpack.c.l.b16 %v9077
  %v9110 = vrot.slane %v9095, 7
  %v9111 = vsel %vm2422, %v9110, %v9094
  %v9112 = vrot.slane %v9096, 6
  %v9113 = vsel %vm2425, %v9112, %v9111
  %v9114 = vrot.slane %v9097, 5
  %v9115 = vsel %vm2428, %v9114, %v9113
  %v9116 = vrot.slane %v9098, 4
  %v9117 = vsel %vm2431, %v9116, %v9115
  %v9118 = vrot.slane %v9099, 3
  %v9119 = vsel %vm2434, %v9118, %v9117
  %v9120 = vrot.slane %v9100, 2
  %v9121 = vsel %vm2437, %v9120, %v9119
  %v9122 = vrot.slane %v9101, 1
  %v9123 = vsel %vm2440, %v9122, %v9121
  %v9124 = vrot.slane %v9103, 7
  %v9125 = vsel %vm2422, %v9124, %v9102
  %v9126 = vrot.slane %v9104, 6
  %v9127 = vsel %vm2425, %v9126, %v9125
  %v9128 = vrot.slane %v9105, 5
  %v9129 = vsel %vm2428, %v9128, %v9127
  %v9130 = vrot.slane %v9106, 4
  %v9131 = vsel %vm2431, %v9130, %v9129
  %v9132 = vrot.slane %v9107, 3
  %v9133 = vsel %vm2434, %v9132, %v9131
  %v9134 = vrot.slane %v9108, 2
  %v9135 = vsel %vm2437, %v9134, %v9133
  %v9136 = vrot.slane %v9109, 1
  %v9137 = vsel %vm2440, %v9136, %v9135
  %v9138 = vpack.c.b16 %v9137, %v9123
  %v9140 = vsel %vm2457, %v9138, 0
  %9142 = vmatprep.subr.bf16.mxu0 0
  %9143 = vmatpush1.bf16.msra.mxu0 0
  %9144 = vmatprep.subr.bf16.mxu0 0
  %9145 = vmatpush1.bf16.msra.mxu0 0
  %9146 = vmatprep.subr.bf16.mxu0 0
  %9147 = vmatpush1.bf16.msra.mxu0 0
  %9148 = vmatprep.subr.bf16.mxu0 0
  %9149 = vmatpush1.bf16.msra.mxu0 0
  %9150 = vmatprep.subr.bf16.mxu0 0
  %9151 = vmatpush1.bf16.msra.mxu0 0
  %9152 = vmatprep.subr.bf16.mxu0 0
  %9153 = vmatpush1.bf16.msra.mxu0 0
  %9154 = vmatprep.subr.bf16.mxu0 0
  %9155 = vmatpush1.bf16.msra.mxu0 0
  %9156 = vmatprep.subr.bf16.mxu0 0
  %9157 = vmatpush1.bf16.msra.mxu0 %v9045
  %9158 = vmatprep.subr.bf16.mxu0 0
  %9159 = vmatpush2.bf16.msra.mxu0 0
  %9160 = vmatprep.subr.bf16.mxu0 0
  %9161 = vmatpush2.bf16.msra.mxu0 0
  %9162 = vmatprep.subr.bf16.mxu0 0
  %9163 = vmatpush2.bf16.msra.mxu0 0
  %9164 = vmatprep.subr.bf16.mxu0 0
  %9165 = vmatpush2.bf16.msra.mxu0 0
  %9166 = vmatprep.subr.bf16.mxu0 0
  %9167 = vmatpush2.bf16.msra.mxu0 0
  %9168 = vmatprep.subr.bf16.mxu0 0
  %9169 = vmatpush2.bf16.msra.mxu0 0
  %9170 = vmatprep.subr.bf16.mxu0 0
  %9171 = vmatpush2.bf16.msra.mxu0 0
  %9172 = vmatprep.subr.bf16.mxu0 0
  %9173 = vmatpush2.bf16.msra.mxu0 0
  %9174 = vmatprep.mubr.bf16.mxu0 0
  %9175 = vmatmul.mubr.bf16.gmra.mxu0 %v9140
  %v9176 = vpop.f32.mrf.mxu0
  %v9177 = vadd.f32 0.0, %v9176
  %v9178 = vpop.f32.mrf.mxu0
  %v9179 = vpop.f32.mrf.mxu0
  %v9180 = vadd.f32 0.0, %v9179
  %v9181 = vpop.f32.mrf.mxu0
  %9182 = vdwg.mxu0
  %v9183 = vld [vmem:[#allocation2 + $0x1] sm:$0x1]
  %v9184 = vld [vmem:[#allocation2 + $0x5] sm:$0x1]
  %v9185 = vld [vmem:[#allocation2 + $0x9] sm:$0x1]
  %v9186 = vld [vmem:[#allocation2 + $0xd] sm:$0x1]
  %v9187 = vld [vmem:[#allocation2 + $0x11] sm:$0x1]
  %v9188 = vld [vmem:[#allocation2 + $0x15] sm:$0x1]
  %v9189 = vld [vmem:[#allocation2 + $0x19] sm:$0x1]
  %v9190 = vld [vmem:[#allocation2 + $0x1d] sm:$0x1]
  %v9191 = vld [vmem:[#allocation2 + $0x21] sm:$0x1]
  %v9192 = vld [vmem:[#allocation2 + $0x25] sm:$0x1]
  %v9193 = vld [vmem:[#allocation2 + $0x29] sm:$0x1]
  %v9194 = vld [vmem:[#allocation2 + $0x2d] sm:$0x1]
  %v9195 = vld [vmem:[#allocation2 + $0x31] sm:$0x1]
  %v9196 = vld [vmem:[#allocation2 + $0x35] sm:$0x1]
  %v9197 = vld [vmem:[#allocation2 + $0x39] sm:$0x1]
  %v9198 = vld [vmem:[#allocation2 + $0x3d] sm:$0x1]
  %v9199 = vpack.c.bf16 %v9183, %v9183
  %v9200 = vpack.c.bf16 %v9184, %v9184
  %v9201 = vpack.c.bf16 %v9185, %v9185
  %v9202 = vpack.c.bf16 %v9186, %v9186
  %v9203 = vpack.c.bf16 %v9187, %v9187
  %v9204 = vpack.c.bf16 %v9188, %v9188
  %v9205 = vpack.c.bf16 %v9189, %v9189
  %v9206 = vpack.c.bf16 %v9190, %v9190
  %v9207 = vpack.c.bf16 %v9191, %v9191
  %v9208 = vpack.c.bf16 %v9192, %v9192
  %v9209 = vpack.c.bf16 %v9193, %v9193
  %v9210 = vpack.c.bf16 %v9194, %v9194
  %v9211 = vpack.c.bf16 %v9195, %v9195
  %v9212 = vpack.c.bf16 %v9196, %v9196
  %v9213 = vpack.c.bf16 %v9197, %v9197
  %v9214 = vpack.c.bf16 %v9198, %v9198
  %v9231 = vunpack.c.l.b16 %v9199
  %v9232 = vunpack.c.l.b16 %v9200
  %v9233 = vunpack.c.l.b16 %v9201
  %v9234 = vunpack.c.l.b16 %v9202
  %v9235 = vunpack.c.l.b16 %v9203
  %v9236 = vunpack.c.l.b16 %v9204
  %v9237 = vunpack.c.l.b16 %v9205
  %v9238 = vunpack.c.l.b16 %v9206
  %v9239 = vunpack.c.l.b16 %v9207
  %v9240 = vunpack.c.l.b16 %v9208
  %v9241 = vunpack.c.l.b16 %v9209
  %v9242 = vunpack.c.l.b16 %v9210
  %v9243 = vunpack.c.l.b16 %v9211
  %v9244 = vunpack.c.l.b16 %v9212
  %v9245 = vunpack.c.l.b16 %v9213
  %v9246 = vunpack.c.l.b16 %v9214
  %v9247 = vrot.slane %v9232, 7
  %v9248 = vsel %vm2422, %v9247, %v9231
  %v9249 = vrot.slane %v9233, 6
  %v9250 = vsel %vm2425, %v9249, %v9248
  %v9251 = vrot.slane %v9234, 5
  %v9252 = vsel %vm2428, %v9251, %v9250
  %v9253 = vrot.slane %v9235, 4
  %v9254 = vsel %vm2431, %v9253, %v9252
  %v9255 = vrot.slane %v9236, 3
  %v9256 = vsel %vm2434, %v9255, %v9254
  %v9257 = vrot.slane %v9237, 2
  %v9258 = vsel %vm2437, %v9257, %v9256
  %v9259 = vrot.slane %v9238, 1
  %v9260 = vsel %vm2440, %v9259, %v9258
  %v9261 = vrot.slane %v9240, 7
  %v9262 = vsel %vm2422, %v9261, %v9239
  %v9263 = vrot.slane %v9241, 6
  %v9264 = vsel %vm2425, %v9263, %v9262
  %v9265 = vrot.slane %v9242, 5
  %v9266 = vsel %vm2428, %v9265, %v9264
  %v9267 = vrot.slane %v9243, 4
  %v9268 = vsel %vm2431, %v9267, %v9266
  %v9269 = vrot.slane %v9244, 3
  %v9270 = vsel %vm2434, %v9269, %v9268
  %v9271 = vrot.slane %v9245, 2
  %v9272 = vsel %vm2437, %v9271, %v9270
  %v9273 = vrot.slane %v9246, 1
  %v9274 = vsel %vm2440, %v9273, %v9272
  %v9275 = vpack.c.b16 %v9274, %v9260
  %9277 = vrot.lane.b32.xlu0 %v9045, 96
  %v9278 = vpop.permute.xlu0 %9277
  %v9281 = vsel %vm2457, %v9275, 0
  %9283 = vmatprep.subr.bf16.mxu0 0
  %9284 = vmatpush1.bf16.msra.mxu0 0
  %9285 = vmatprep.subr.bf16.mxu0 0
  %9286 = vmatpush1.bf16.msra.mxu0 0
  %9287 = vmatprep.subr.bf16.mxu0 0
  %9288 = vmatpush1.bf16.msra.mxu0 0
  %9289 = vmatprep.subr.bf16.mxu0 0
  %9290 = vmatpush1.bf16.msra.mxu0 0
  %9291 = vmatprep.subr.bf16.mxu0 0
  %9292 = vmatpush1.bf16.msra.mxu0 0
  %9293 = vmatprep.subr.bf16.mxu0 0
  %9294 = vmatpush1.bf16.msra.mxu0 0
  %9295 = vmatprep.subr.bf16.mxu0 0
  %9296 = vmatpush1.bf16.msra.mxu0 0
  %9297 = vmatprep.subr.bf16.mxu0 0
  %9298 = vmatpush1.bf16.msra.mxu0 %v9278
  %9299 = vmatprep.subr.bf16.mxu0 0
  %9300 = vmatpush2.bf16.msra.mxu0 0
  %9301 = vmatprep.subr.bf16.mxu0 0
  %9302 = vmatpush2.bf16.msra.mxu0 0
  %9303 = vmatprep.subr.bf16.mxu0 0
  %9304 = vmatpush2.bf16.msra.mxu0 0
  %9305 = vmatprep.subr.bf16.mxu0 0
  %9306 = vmatpush2.bf16.msra.mxu0 0
  %9307 = vmatprep.subr.bf16.mxu0 0
  %9308 = vmatpush2.bf16.msra.mxu0 0
  %9309 = vmatprep.subr.bf16.mxu0 0
  %9310 = vmatpush2.bf16.msra.mxu0 0
  %9311 = vmatprep.subr.bf16.mxu0 0
  %9312 = vmatpush2.bf16.msra.mxu0 0
  %9313 = vmatprep.subr.bf16.mxu0 0
  %9314 = vmatpush2.bf16.msra.mxu0 0
  %9315 = vmatprep.mubr.bf16.mxu0 0
  %9316 = vmatmul.mubr.bf16.gmra.mxu0 %v9281
  %v9317 = vpop.f32.mrf.mxu0
  %v9318 = vadd.f32 0.0, %v9317
  %v9319 = vpop.f32.mrf.mxu0
  %v9320 = vpop.f32.mrf.mxu0
  %v9321 = vadd.f32 0.0, %v9320
  %v9322 = vpop.f32.mrf.mxu0
  %9323 = vdwg.mxu0
  %9326 = vrot.lane.b32.xlu0 %v9318, 32
  %v9327 = vpop.permute.xlu0 %9326
  %9328 = vrot.lane.b32.xlu0 %v9321, 32
  %v9329 = vpop.permute.xlu0 %9328
  %v9332 = vsel %vm2949, %v9177, %v9327
  %v9333 = vsel %vm2949, %v9180, %v9329
  %v9334 = vlaneseq
  %v9335 = vshrl.u32 %v9334, 7
  %v9336 = vsub.s32 4, %v9335
  %v9337 = vrot.slane %v7319, %v9336
  %v9338 = vadd.f32 %v9332, %v9337
  %v9339 = vadd.f32 %v9333, %v9337
  %v9340 = vmax.f32 %v9338, 0.0
  %v9341 = vmax.f32 %v9339, 0.0
  %v9342 = vld [vmem:[%s3] sm:$0xff]
  %v9344 = vsel %vm2457, %v9342, 0
  %9346 = vmatprep.subr.mxu0 0.0
  %9347 = vmatpush1.msra.mxu0 0.0
  %9348 = vmatprep.subr.mxu0 0.0
  %9349 = vmatpush1.msra.mxu0 0.0
  %9350 = vmatprep.subr.mxu0 0.0
  %9351 = vmatpush1.msra.mxu0 0.0
  %9352 = vmatprep.subr.mxu0 0.0
  %9353 = vmatpush1.msra.mxu0 0.0
  %9354 = vmatprep.subr.mxu0 0.0
  %9355 = vmatpush1.msra.mxu0 0.0
  %9356 = vmatprep.subr.mxu0 0.0
  %9357 = vmatpush1.msra.mxu0 0.0
  %9358 = vmatprep.subr.mxu0 0.0
  %9359 = vmatpush1.msra.mxu0 0.0
  %9360 = vmatprep.subr.mxu0 0.0
  %9361 = vmatpush1.msra.mxu0 0.0
  %9362 = vmatprep.subr.mxu0 0.0
  %9363 = vmatpush1.msra.mxu0 0.0
  %9364 = vmatprep.subr.mxu0 0.0
  %9365 = vmatpush1.msra.mxu0 0.0
  %9366 = vmatprep.subr.mxu0 0.0
  %9367 = vmatpush1.msra.mxu0 0.0
  %9368 = vmatprep.subr.mxu0 0.0
  %9369 = vmatpush1.msra.mxu0 0.0
  %9370 = vmatprep.subr.mxu0 0.0
  %9371 = vmatpush1.msra.mxu0 0.0
  %9372 = vmatprep.subr.mxu0 0.0
  %9373 = vmatpush1.msra.mxu0 0.0
  %9374 = vmatprep.subr.mxu0 0.0
  %9375 = vmatpush1.msra.mxu0 %v9341
  %9376 = vmatprep.subr.mxu0 0.0
  %9377 = vmatpush1.msra.mxu0 %v9340
  %9378 = vmatprep.subr.mxu0 0.0
  %9379 = vmatpush2.msra.mxu0 0.0
  %9380 = vmatprep.subr.mxu0 0.0
  %9381 = vmatpush2.msra.mxu0 0.0
  %9382 = vmatprep.subr.mxu0 0.0
  %9383 = vmatpush2.msra.mxu0 0.0
  %9384 = vmatprep.subr.mxu0 0.0
  %9385 = vmatpush2.msra.mxu0 0.0
  %9386 = vmatprep.subr.mxu0 0.0
  %9387 = vmatpush2.msra.mxu0 0.0
  %9388 = vmatprep.subr.mxu0 0.0
  %9389 = vmatpush2.msra.mxu0 0.0
  %9390 = vmatprep.subr.mxu0 0.0
  %9391 = vmatpush2.msra.mxu0 0.0
  %9392 = vmatprep.subr.mxu0 0.0
  %9393 = vmatpush2.msra.mxu0 0.0
  %9394 = vmatprep.subr.mxu0 0.0
  %9395 = vmatpush2.msra.mxu0 0.0
  %9396 = vmatprep.subr.mxu0 0.0
  %9397 = vmatpush2.msra.mxu0 0.0
  %9398 = vmatprep.subr.mxu0 0.0
  %9399 = vmatpush2.msra.mxu0 0.0
  %9400 = vmatprep.subr.mxu0 0.0
  %9401 = vmatpush2.msra.mxu0 0.0
  %9402 = vmatprep.subr.mxu0 0.0
  %9403 = vmatpush2.msra.mxu0 0.0
  %9404 = vmatprep.subr.mxu0 0.0
  %9405 = vmatpush2.msra.mxu0 0.0
  %9406 = vmatprep.subr.mxu0 0.0
  %9407 = vmatpush2.msra.mxu0 0.0
  %9408 = vmatprep.subr.mxu0 0.0
  %9409 = vmatpush2.msra.mxu0 0.0
  %9410 = vmatprep.mubr.f32.mxu0 0.0
  %9411 = vmatmul.mubr.f32.gmra.mxu0 %v9344
  %v9412 = vpop.f32.mrf.mxu0
  %v9413 = vadd.f32 0.0, %v9412
  %v9414 = vpop.f32.mrf.mxu0
  %9415 = vdwg.mxu0
  %v9416 = vld [vmem:[%s5 + $0x40] sm:$0xff]
  %v9417 = vld [vmem:[%s5 + $0x50] sm:$0xff]
  %v9418 = vld [vmem:[%s5 + $0x60] sm:$0xff]
  %v9419 = vld [vmem:[%s5 + $0x70] sm:$0xff]
  %v9420 = vld [vmem:[%s5 + $0x80] sm:$0xff]
  %v9421 = vld [vmem:[%s5 + $0x90] sm:$0xff]
  %v9422 = vld [vmem:[%s5 + $0xa0] sm:$0xff]
  %v9423 = vld [vmem:[%s5 + $0xb0] sm:$0xff]
  %v9424 = vld [vmem:[%s5 + $0xc0] ss:$0 sm:$0xff]
  %v9426 = vsel %vm1425, %v9413, 0
  %9428 = vmatprep.subr.mxu0 0.0
  %9429 = vmatpush1.msra.mxu0 0.0
  %9430 = vmatprep.subr.mxu0 0.0
  %9431 = vmatpush1.msra.mxu0 0.0
  %9432 = vmatprep.subr.mxu0 0.0
  %9433 = vmatpush1.msra.mxu0 0.0
  %9434 = vmatprep.subr.mxu0 0.0
  %9435 = vmatpush1.msra.mxu0 0.0
  %9436 = vmatprep.subr.mxu0 0.0
  %9437 = vmatpush1.msra.mxu0 0.0
  %9438 = vmatprep.subr.mxu0 0.0
  %9439 = vmatpush1.msra.mxu0 0.0
  %9440 = vmatprep.subr.mxu0 0.0
  %9441 = vmatpush1.msra.mxu0 0.0
  %9442 = vmatprep.subr.mxu0 0.0
  %9443 = vmatpush1.msra.mxu0 0.0
  %9444 = vmatprep.subr.mxu0 0.0
  %9445 = vmatpush1.msra.mxu0 %v9423
  %9446 = vmatprep.subr.mxu0 0.0
  %9447 = vmatpush1.msra.mxu0 %v9422
  %9448 = vmatprep.subr.mxu0 0.0
  %9449 = vmatpush1.msra.mxu0 %v9421
  %9450 = vmatprep.subr.mxu0 0.0
  %9451 = vmatpush1.msra.mxu0 %v9420
  %9452 = vmatprep.subr.mxu0 0.0
  %9453 = vmatpush1.msra.mxu0 %v9419
  %9454 = vmatprep.subr.mxu0 0.0
  %9455 = vmatpush1.msra.mxu0 %v9418
  %9456 = vmatprep.subr.mxu0 0.0
  %9457 = vmatpush1.msra.mxu0 %v9417
  %9458 = vmatprep.subr.mxu0 0.0
  %9459 = vmatpush1.msra.mxu0 %v9416
  %9460 = vmatprep.subr.mxu0 0.0
  %9461 = vmatpush2.msra.mxu0 0.0
  %9462 = vmatprep.subr.mxu0 0.0
  %9463 = vmatpush2.msra.mxu0 0.0
  %9464 = vmatprep.subr.mxu0 0.0
  %9465 = vmatpush2.msra.mxu0 0.0
  %9466 = vmatprep.subr.mxu0 0.0
  %9467 = vmatpush2.msra.mxu0 0.0
  %9468 = vmatprep.subr.mxu0 0.0
  %9469 = vmatpush2.msra.mxu0 0.0
  %9470 = vmatprep.subr.mxu0 0.0
  %9471 = vmatpush2.msra.mxu0 0.0
  %9472 = vmatprep.subr.mxu0 0.0
  %9473 = vmatpush2.msra.mxu0 0.0
  %9474 = vmatprep.subr.mxu0 0.0
  %9475 = vmatpush2.msra.mxu0 0.0
  %9476 = vmatprep.subr.mxu0 0.0
  %9477 = vmatpush2.msra.mxu0 0.0
  %9478 = vmatprep.subr.mxu0 0.0
  %9479 = vmatpush2.msra.mxu0 0.0
  %9480 = vmatprep.subr.mxu0 0.0
  %9481 = vmatpush2.msra.mxu0 0.0
  %9482 = vmatprep.subr.mxu0 0.0
  %9483 = vmatpush2.msra.mxu0 0.0
  %9484 = vmatprep.subr.mxu0 0.0
  %9485 = vmatpush2.msra.mxu0 0.0
  %9486 = vmatprep.subr.mxu0 0.0
  %9487 = vmatpush2.msra.mxu0 0.0
  %9488 = vmatprep.subr.mxu0 0.0
  %9489 = vmatpush2.msra.mxu0 0.0
  %9490 = vmatprep.subr.mxu0 0.0
  %9491 = vmatpush2.msra.mxu0 0.0
  %9492 = vmatprep.mubr.f32.mxu0 0.0
  %9493 = vmatmul.mubr.f32.gmra.mxu0 %v9426
  %v9494 = vpop.f32.mrf.mxu0
  %v9495 = vadd.f32 %v9424, %v9494
  %v9496 = vpop.f32.mrf.mxu0
  %9497 = vdwg.mxu0
  %9498 = vst [vmem:[%s6] sm:$0xff] %v9495
  // Predicated region
  $region26: #{gnn_forward.1} parent=0 // pred_check
    _
  $region27: #{gnn_forward.1} parent=0 // pred_check_branch
    %9500 = sbr.rel (0) target = $region29
  $region28: #{gnn_forward.1} parent=0 // pred_region
    _
  $region29: #{gnn_forward.1} parent=0 // pred_fallthru
    _
  // Predicated region
  $region30: #{gnn_forward.1} parent=0 // pred_check
    _
  $region31: #{gnn_forward.1} parent=0 // pred_check_branch
    %9502 = sbr.rel (0) target = $region33
  $region32: #{gnn_forward.1} parent=0 // pred_region
    _
  $region33: #{gnn_forward.1} parent=0 // pred_fallthru
    _

</llo_original>
